<compile_context>
chip_gen: v7x
topology: tpu7x:2x2x1
jax: 0.10.0
libtpu: 0.0.40
codegen_flags: <defaults>
</compile_context>

<pallas_src>
import functools
import math

import jax
import jax.numpy as jnp
from jax.experimental import pallas as pl
from jax.experimental.pallas import tpu as pltpu

# ----------------------- small synthetic ViT config -------------------------
FEATURE_DIM = 32      # vit_b_16 would be 768
NUM_CLASSES = 2
IMG = 32              # image H = W
PATCH = 16            # ViT patch size
NUM_HEADS = 2
HEAD_DIM = FEATURE_DIM // NUM_HEADS
MLP_DIM = 64
NUM_LAYERS = 2
LN_EPS = 1e-6

W_DTYPE = jnp.bfloat16   # matmul-weight / token dtype (f32 accumulation)
OUT_LANES = 128          # lane-dense packed output width


# ----------------------------- exact-erf GELU --------------------------------
def _erf_poly(x):
    """erf via Abramowitz & Stegun 7.1.26 (max abs err ~1.5e-7), VPU-only ops."""
    a1, a2, a3, a4, a5 = (0.254829592, -0.284496736, 1.421413741,
                          -1.453152027, 1.061405429)
    p = 0.3275911
    ax = jnp.abs(x)
    t = 1.0 / (1.0 + p * ax)
    poly = ((((a5 * t + a4) * t + a3) * t + a2) * t + a1) * t
    y = 1.0 - poly * jnp.exp(-ax * ax)
    return jnp.where(x < 0.0, -y, y)


def _gelu_erf(x):
    """Exact-erf GELU (matches torch.nn.GELU) built from lowerable ops."""
    return 0.5 * x * (1.0 + _erf_poly(x * 0.7071067811865475))


# ------------------------------ fused kernel --------------------------------
def _vit_mil_kernel(
    tok_ref,                       # (S, K)  bf16  flattened patches (CLS rows = 0)
    patch_w_ref,                   # (K, D)  bf16
    posadj_ref,                    # (T, D)  f32   cls/pos/patch-bias adjustment
    ln1g_ref, ln1b_ref,            # (1, D)  f32   (per-layer block)
    wq_ref, wk_ref, wv_ref,        # (H, D, dh) bf16 (per-layer block, per head)
    bq_ref, bk_ref, bv_ref,        # (H, 1, dh) f32
    wo_ref,                        # (H, dh, D) bf16
    bo_ref,                        # (1, D)  f32
    ln2g_ref, ln2b_ref,            # (1, D)  f32
    w1_ref, b1_ref,                # (D, M) bf16, (1, M) f32
    w2_ref, b2_ref,                # (M, D) bf16, (1, D) f32
    lnfg_ref, lnfb_ref,            # (1, D)  f32   final encoder LN
    attw_ref, attb_ref,            # (1, D), (1, 1) f32   MIL attention Linear(D,1)
    clsw_ref, clsb_ref,            # (D, C), (1, C) f32   classifier
    out_ref,                       # (Bg, 128) f32  packed [logits | attn | pad]
    x_sc,                          # (S, D)  f32 scratch: residual stream
    *, n_img, T, Bg, N,
):
    dh = HEAD_DIM
    scale = 1.0 / math.sqrt(dh)
    layer = pl.program_id(1)

    def layer_norm(v, g, b):
        mu = jnp.mean(v, axis=-1, keepdims=True)
        c = v - mu
        var = jnp.mean(c * c, axis=-1, keepdims=True)
        return c * jax.lax.rsqrt(var + LN_EPS) * g + b

    # ---- patch embedding + cls/pos injection (first layer step only) ----
    @pl.when(layer == 0)
    def _():
        emb = jnp.dot(tok_ref[...], patch_w_ref[...],
                      preferred_element_type=jnp.float32)              # (S, D)
        # (T, D) posadj tiled per image inside VMEM (no S-sized DMA).
        posadj = jnp.concatenate([posadj_ref[...]] * n_img, axis=0)    # (S, D)
        x_sc[...] = emb + posadj

    x = x_sc[...]                                                      # (S, D) f32

    # ---- one pre-LN encoder layer (layer index = grid axis 1) ----
    h1 = layer_norm(x, ln1g_ref[...], ln1b_ref[...])
    h1c = h1.astype(W_DTYPE)

    # Per-head Q/K/V slabs; head weights pre-split -> slices start at lane 0.
    q_heads, k_heads, v_heads = [], [], []
    for hd in range(NUM_HEADS):
        q_heads.append(jnp.dot(h1c, wq_ref[hd],
                               preferred_element_type=jnp.float32) + bq_ref[hd])
        k_heads.append(jnp.dot(h1c, wk_ref[hd],
                               preferred_element_type=jnp.float32) + bk_ref[hd])
        v_heads.append(jnp.dot(h1c, wv_ref[hd],
                               preferred_element_type=jnp.float32) + bv_ref[hd])

    # Per-image attention: (T, T) scores instead of (S, S); no mask needed.
    img_outs = []
    for i in range(n_img):
        lo = i * T
        acc = None
        for hd in range(NUM_HEADS):
            qi = q_heads[hd][lo:lo + T, :]
            ki = k_heads[hd][lo:lo + T, :]
            vi = v_heads[hd][lo:lo + T, :]
            s = jax.lax.dot_general(qi, ki, (((1,), (1,)), ((), ())),
                                    preferred_element_type=jnp.float32) * scale
            s = s - jnp.max(s, axis=-1, keepdims=True)
            p = jnp.exp(s)
            p = p * pl.reciprocal(jnp.sum(p, axis=-1, keepdims=True), approx=True)
            ctx = jnp.dot(p, vi, preferred_element_type=jnp.float32)   # (T, dh)
            proj = jnp.dot(ctx.astype(W_DTYPE), wo_ref[hd],
                           preferred_element_type=jnp.float32)         # (T, D)
            acc = proj if acc is None else acc + proj                  # no concat of heads
        img_outs.append(acc)
    x = x + jnp.concatenate(img_outs, axis=0) + bo_ref[...]

    h2 = layer_norm(x, ln2g_ref[...], ln2b_ref[...])
    m = jnp.dot(h2.astype(W_DTYPE), w1_ref[...],
                preferred_element_type=jnp.float32) + b1_ref[...]
    m = _gelu_erf(m)                                                   # exact erf GELU
    x = x + jnp.dot(m.astype(W_DTYPE), w2_ref[...],
                    preferred_element_type=jnp.float32) + b2_ref[...]
    x_sc[...] = x

    # ---- final LN on CLS rows + MIL head (last layer step only) ----
    @pl.when(layer == NUM_LAYERS - 1)
    def _():
        S = n_img * T
        BNg = Bg * N
        # 0/1 CLS-row gather generated in-kernel (no HBM mask operand).
        rid = jax.lax.broadcasted_iota(jnp.int32, (BNg, S), 0)
        cid = jax.lax.broadcasted_iota(jnp.int32, (BNg, S), 1)
        selcls = (cid == rid * T).astype(jnp.float32)
        feats = jnp.dot(selcls, x, preferred_element_type=jnp.float32)  # (BNg, D)
        fn = layer_norm(feats, lnfg_ref[...], lnfb_ref[...])

        rows = []
        for b in range(Bg):
            fb = fn[b * N:(b + 1) * N, :]                                # (N, D)
            sc = jax.lax.dot_general(attw_ref[...], fb,
                                     (((1,), (1,)), ((), ())),
                                     preferred_element_type=jnp.float32) + attb_ref[...]
            sc = sc - jnp.max(sc, axis=-1, keepdims=True)                # per-bag max
            e = jnp.exp(sc)
            aw = e / jnp.sum(e, axis=-1, keepdims=True)                  # exact normalize
            weighted = jnp.dot(aw, fb, preferred_element_type=jnp.float32)     # (1, D)
            logit = (jnp.dot(weighted, clsw_ref[...],
                             preferred_element_type=jnp.float32) + clsb_ref[...])  # (1, C)
            pad = jnp.zeros((1, OUT_LANES - NUM_CLASSES - N), jnp.float32)
            rows.append(jnp.concatenate([logit, aw, pad], axis=-1))     # (1, 128)
        out_ref[...] = jnp.concatenate(rows, axis=0)                     # lane-dense store


# ------------------------------ pallas_call wrapper --------------------------
def _fused_call(args, *, G, Bg, N, T, S, K):
    D, dh, Hh = FEATURE_DIM, HEAD_DIM, NUM_HEADS
    M, C, L = MLP_DIM, NUM_CLASSES, NUM_LAYERS
    n_img = Bg * N

    def const2(g, l):
        return (0, 0)

    def per_l3(g, l):
        return (l, 0, 0)

    def per_l4(g, l):
        return (l, 0, 0, 0)

    def per_g3(g, l):
        return (g, 0, 0)

    in_specs = [
        pl.BlockSpec((None, S, K), per_g3),       # tok
        pl.BlockSpec((K, D), const2),             # patch_w (resident)
        pl.BlockSpec((T, D), const2),             # posadj (one (T,D) tile)
        pl.BlockSpec((None, 1, D), per_l3),       # ln1_g   (streamed per layer)
        pl.BlockSpec((None, 1, D), per_l3),       # ln1_b
        pl.BlockSpec((None, Hh, D, dh), per_l4),  # wq
        pl.BlockSpec((None, Hh, D, dh), per_l4),  # wk
        pl.BlockSpec((None, Hh, D, dh), per_l4),  # wv
        pl.BlockSpec((None, Hh, 1, dh), per_l4),  # bq
        pl.BlockSpec((None, Hh, 1, dh), per_l4),  # bk
        pl.BlockSpec((None, Hh, 1, dh), per_l4),  # bv
        pl.BlockSpec((None, Hh, dh, D), per_l4),  # wo (per head)
        pl.BlockSpec((None, 1, D), per_l3),       # bo
        pl.BlockSpec((None, 1, D), per_l3),       # ln2_g
        pl.BlockSpec((None, 1, D), per_l3),       # ln2_b
        pl.BlockSpec((None, D, M), per_l3),       # w1
        pl.BlockSpec((None, 1, M), per_l3),       # b1
        pl.BlockSpec((None, M, D), per_l3),       # w2
        pl.BlockSpec((None, 1, D), per_l3),       # b2
        pl.BlockSpec((1, D), const2),             # ln_f gamma
        pl.BlockSpec((1, D), const2),             # ln_f beta
        pl.BlockSpec((1, D), const2),             # att_w
        pl.BlockSpec((1, 1), const2),             # att_b
        pl.BlockSpec((D, C), const2),             # cls_w
        pl.BlockSpec((1, C), const2),             # cls_b
    ]
    out_spec = pl.BlockSpec((None, Bg, OUT_LANES), per_g3)

    # Advisory cost estimate so XLA schedules around this long custom call.
    flops = 2 * G * S * K * D + L * G * (
        2 * S * D * 3 * D + 4 * n_img * NUM_HEADS * T * T * dh
        + 2 * S * D * D + 4 * S * D * M)
    trans = L * G * (n_img * NUM_HEADS * T * T + S * M) + G * n_img
    bytes_accessed = sum(int(a.size) * a.dtype.itemsize for a in args) \
        + G * Bg * OUT_LANES * 4

    kernel = functools.partial(_vit_mil_kernel, n_img=n_img, T=T, Bg=Bg, N=N)
    return pl.pallas_call(
        kernel,
        out_shape=jax.ShapeDtypeStruct((G, Bg, OUT_LANES), jnp.float32),
        grid=(G, L),
        in_specs=in_specs,
        out_specs=out_spec,
        scratch_shapes=[pltpu.VMEM((S, D), jnp.float32)],
        compiler_params=pltpu.CompilerParams(
            dimension_semantics=("parallel", "arbitrary"),
            vmem_limit_bytes=32 * 1024 * 1024,
        ),
        cost_estimate=pl.CostEstimate(
            flops=int(flops),
            transcendentals=int(trans),
            bytes_accessed=int(bytes_accessed),
        ),
    )(*args)


# ------------------------------ glue / params -------------------------------
def extract_patches(imgs):
    """imgs (BN, 3, H, W) NCHW -> (BN, Ts, 3*P*P), flattened in (c, ph, pw) order
    (matches Conv2d patch-embed weight flattening)."""
    BN, C, H, W = imgs.shape
    gh, gw = H // PATCH, W // PATCH
    x = imgs.reshape(BN, C, gh, PATCH, gw, PATCH)
    x = x.transpose(0, 2, 4, 1, 3, 5)
    return x.reshape(BN, gh * gw, C * PATCH * PATCH)


def _default_num_groups(batch):
    """2-way bag split only where there are 2 TensorCores per chip (v7x);
    single group on v5e/v6e keeps the token slab 8-row aligned."""
    try:
        kind = jax.devices()[0].device_kind.lower()
    except Exception:
        kind = ""
    dual_tc = ("v7" in kind) or ("7x" in kind)
    return 2 if (dual_tc and batch % 2 == 0) else 1


def _split_heads(params):
    """Pre-split packed QKV / out-proj weights per head (lane-0 aligned slices)."""
    L, Hh, D, dh = NUM_LAYERS, NUM_HEADS, FEATURE_DIM, HEAD_DIM
    wqkv, bqkv = params["wqkv"], params["bqkv"]

    def split_w(w):                                   # (L, D, D) -> (L, H, D, dh)
        return w.reshape(L, D, Hh, dh).transpose(0, 2, 1, 3)

    def split_b(b):                                   # (L, 1, D) -> (L, H, 1, dh)
        return b.reshape(L, 1, Hh, dh).transpose(0, 2, 1, 3)

    wq = split_w(wqkv[:, :, 0:D])
    wk = split_w(wqkv[:, :, D:2 * D])
    wv = split_w(wqkv[:, :, 2 * D:3 * D])
    bq = split_b(bqkv[:, :, 0:D])
    bk = split_b(bqkv[:, :, D:2 * D])
    bv = split_b(bqkv[:, :, 2 * D:3 * D])
    wo_h = params["wo"].reshape(L, Hh, dh, D)         # rows hd*dh:(hd+1)*dh
    return wq, wk, wv, bq, bk, bv, wo_h


def init_params(key):
    keys = iter(jax.random.split(key, 64))

    def nrm(shape, scale=0.02):
        return (scale * jax.random.normal(next(keys), shape)).astype(jnp.float32)

    D, M, C = FEATURE_DIM, MLP_DIM, NUM_CLASSES
    K = 3 * PATCH * PATCH
    T = (IMG // PATCH) ** 2 + 1
    L = NUM_LAYERS
    return {
        "patch_w": nrm((K, D)),
        "patch_b": nrm((1, D)),
        "cls": nrm((1, D)),
        "pos": nrm((T, D)),
        "ln1_g": jnp.ones((L, 1, D), jnp.float32),
        "ln1_b": jnp.zeros((L, 1, D), jnp.float32),
        "wqkv": nrm((L, D, 3 * D)),
        "bqkv": nrm((L, 1, 3 * D)),
        "wo": nrm((L, D, D)),
        "bo": nrm((L, 1, D)),
        "ln2_g": jnp.ones((L, 1, D), jnp.float32),
        "ln2_b": jnp.zeros((L, 1, D), jnp.float32),
        "w1": nrm((L, D, M)),
        "b1": nrm((L, 1, M)),
        "w2": nrm((L, M, D)),
        "b2": nrm((L, 1, D)),
        "ln_f_g": jnp.ones((1, D), jnp.float32),
        "ln_f_b": jnp.zeros((1, D), jnp.float32),
        "att_w": nrm((1, D)),          # nn.Linear(D, 1).weight
        "att_b": nrm((1, 1)),
        "cls_w_t": nrm((D, C)),        # nn.Linear(D, C).weight, transposed
        "cls_b": nrm((1, C)),
    }


def vit_mil_forward(params, patches, num_groups=None):
    """Mirror of ViT_MIL.forward. patches: (B, N, 3, H, W) [or 6-D with dim1==1]."""
    if patches.ndim == 6 and patches.shape[1] == 1:
        patches = jnp.squeeze(patches, axis=1)
    B, N, C_in, H, W = patches.shape
    BN = B * N

    imgs = patches.reshape(BN, C_in, H, W)
    tok = extract_patches(imgs)                                   # (BN, Ts, K)
    Ts, K = tok.shape[1], tok.shape[2]
    T = Ts + 1
    # zero placeholder row per image for the CLS token (patch-embed output 0;
    # posadj injects cls + pos[0] inside the kernel)
    tok = jnp.concatenate([jnp.zeros((BN, 1, K), tok.dtype), tok], axis=1)

    G = _default_num_groups(B) if num_groups is None else num_groups
    Bg = B // G
    S = Bg * N * T
    tok_g = tok.reshape(G, S, K).astype(W_DTYPE)

    # CLS / positional-embedding / patch-bias adjustment, one (T, D) tile.
    posadj = jnp.concatenate(
        [params["cls"] + params["pos"][0:1, :],
         params["pos"][1:, :] + params["patch_b"]], axis=0)        # (T, D)

    wq, wk, wv, bq, bk, bv, wo_h = _split_heads(params)

    def cast(a):
        return a.astype(W_DTYPE)

    args = (
        tok_g,
        cast(params["patch_w"]),
        posadj,
        params["ln1_g"], params["ln1_b"],
        cast(wq), cast(wk), cast(wv),
        bq, bk, bv,
        cast(wo_h), params["bo"],
        params["ln2_g"], params["ln2_b"],
        cast(params["w1"]), params["b1"],
        cast(params["w2"]), params["b2"],
        params["ln_f_g"], params["ln_f_b"],
        params["att_w"], params["att_b"],
        params["cls_w_t"], params["cls_b"],
    )
    packed = _fused_call(args, G=G, Bg=Bg, N=N, T=T, S=S, K=K)      # (G, Bg, 128)
    packed = packed.reshape(B, OUT_LANES)
    logits = packed[:, :NUM_CLASSES]
    attn_weights = packed[:, NUM_CLASSES:NUM_CLASSES + N].reshape(B, N, 1)
    return logits, attn_weights


# ------------------------ plain-JAX reference (checking) --------------------
def vit_mil_reference(params, patches):
    if patches.ndim == 6 and patches.shape[1] == 1:
        patches = jnp.squeeze(patches, axis=1)
    B, N, C_in, H, W = patches.shape
    D, dh = FEATURE_DIM, HEAD_DIM
    imgs = patches.reshape(B * N, C_in, H, W)
    tok = extract_patches(imgs)
    emb = jnp.einsum("bpk,kd->bpd", tok, params["patch_w"]) + params["patch_b"]
    cls = jnp.broadcast_to(params["cls"][None], (B * N, 1, D))
    x = jnp.concatenate([cls, emb], axis=1) + params["pos"][None]

    def ln(v, g, b):
        mu = v.mean(-1, keepdims=True)
        var = ((v - mu) ** 2).mean(-1, keepdims=True)
        return (v - mu) * jax.lax.rsqrt(var + LN_EPS) * g + b

    def split(z):
        bn, t, _ = z.shape
        return z.reshape(bn, t, NUM_HEADS, dh).transpose(0, 2, 1, 3)

    for l in range(NUM_LAYERS):
        h = ln(x, params["ln1_g"][l], params["ln1_b"][l])
        qkv = jnp.einsum("btd,de->bte", h, params["wqkv"][l]) + params["bqkv"][l]
        q, k, v = qkv[..., :D], qkv[..., D:2 * D], qkv[..., 2 * D:]
        qh, kh, vh = split(q), split(k), split(v)
        s = jnp.einsum("bhtd,bhsd->bhts", qh, kh) / math.sqrt(dh)
        p = jax.nn.softmax(s, axis=-1)
        ctx = jnp.einsum("bhts,bhsd->bhtd", p, vh).transpose(0, 2, 1, 3).reshape(x.shape)
        x = x + jnp.einsum("btd,de->bte", ctx, params["wo"][l]) + params["bo"][l]
        h2 = ln(x, params["ln2_g"][l], params["ln2_b"][l])
        m = jax.nn.gelu(jnp.einsum("btd,dm->btm", h2, params["w1"][l]) + params["b1"][l],
                        approximate=False)
        x = x + jnp.einsum("btm,md->btd", m, params["w2"][l]) + params["b2"][l]

    feats = ln(x[:, 0, :], params["ln_f_g"], params["ln_f_b"]).reshape(B, N, D)
    scores = jnp.einsum("bnd,d->bn", feats, params["att_w"][0]) + params["att_b"][0, 0]
    aw = jax.nn.softmax(scores, axis=1)[..., None]
    weighted = jnp.sum(aw * feats, axis=1)
    logits = weighted @ params["cls_w_t"] + params["cls_b"]
    return logits, aw


# ---------------------------------- main -------------------------------------
if __name__ == "__main__":
    key = jax.random.PRNGKey(0)
    pkey, xkey = jax.random.split(key)
    params = init_params(pkey)

    B, N = 2, 4
    patches = jax.random.normal(xkey, (B, N, 3, IMG, IMG), dtype=jnp.float32)

    fwd = jax.jit(vit_mil_forward)
    logits, attn = fwd(params, patches)
    jax.block_until_ready((logits, attn))

    assert logits.shape == (B, NUM_CLASSES), logits.shape
    assert attn.shape == (B, N, 1), attn.shape
    assert bool(jnp.all(jnp.isfinite(logits))) and bool(jnp.all(jnp.isfinite(attn)))
    # MIL softmax over patches uses exact division -> tight sum-to-1 check.
    assert jnp.allclose(jnp.sum(attn, axis=1), 1.0, atol=1e-4)

    # Compare against a plain-JAX f32 reference of the same forward
    # (kernel uses bf16 matmul weights -> modest tolerance).
    ref_logits, ref_attn = jax.jit(vit_mil_reference)(params, patches)
    assert jnp.allclose(logits, ref_logits, atol=2e-2), (logits, ref_logits)
    assert jnp.allclose(attn, ref_attn, atol=2e-2)

    print("KERNEL_OK")
</pallas_src>

<mosaic_0001>
module attributes {stable_mosaic.version = 11 : i64} {
  func.func @_vit_mil_kernel(%arg0: i32, %arg1: i32, %arg2: memref<1x40x768xbf16, #tpu.memory_space<vmem>>, %arg3: memref<768x32xbf16, #tpu.memory_space<vmem>>, %arg4: memref<5x32xf32, #tpu.memory_space<vmem>>, %arg5: memref<1x1x32xf32, #tpu.memory_space<vmem>>, %arg6: memref<1x1x32xf32, #tpu.memory_space<vmem>>, %arg7: memref<1x2x32x16xbf16, #tpu.memory_space<vmem>>, %arg8: memref<1x2x32x16xbf16, #tpu.memory_space<vmem>>, %arg9: memref<1x2x32x16xbf16, #tpu.memory_space<vmem>>, %arg10: memref<1x2x1x16xf32, #tpu.memory_space<vmem>>, %arg11: memref<1x2x1x16xf32, #tpu.memory_space<vmem>>, %arg12: memref<1x2x1x16xf32, #tpu.memory_space<vmem>>, %arg13: memref<1x2x16x32xbf16, #tpu.memory_space<vmem>>, %arg14: memref<1x1x32xf32, #tpu.memory_space<vmem>>, %arg15: memref<1x1x32xf32, #tpu.memory_space<vmem>>, %arg16: memref<1x1x32xf32, #tpu.memory_space<vmem>>, %arg17: memref<1x32x64xbf16, #tpu.memory_space<vmem>>, %arg18: memref<1x1x64xf32, #tpu.memory_space<vmem>>, %arg19: memref<1x64x32xbf16, #tpu.memory_space<vmem>>, %arg20: memref<1x1x32xf32, #tpu.memory_space<vmem>>, %arg21: memref<1x32xf32, #tpu.memory_space<vmem>>, %arg22: memref<1x32xf32, #tpu.memory_space<vmem>>, %arg23: memref<1x32xf32, #tpu.memory_space<vmem>>, %arg24: memref<1x1xf32, #tpu.memory_space<vmem>>, %arg25: memref<32x2xf32, #tpu.memory_space<vmem>>, %arg26: memref<1x2xf32, #tpu.memory_space<vmem>>, %arg27: memref<1x2x128xf32, #tpu.memory_space<vmem>>, %arg28: memref<40x32xf32, #tpu.memory_space<vmem>>) attributes {dimension_semantics = [#tpu.dimension_semantics<parallel>, #tpu.dimension_semantics<arbitrary>], iteration_bounds = array<i64: 1, 2>, scalar_prefetch = 0 : i64, scratch_operands = 1 : i64, tpu.core_type = #tpu.core_type<tc>, window_params = [{transform_indices = @transform_0, window_bounds = array<i64: 1, 40, 768>}, {pipeline_mode = #tpu.pipeline_mode<synchronous>, transform_indices = @transform_1, window_bounds = array<i64: 768, 32>}, {pipeline_mode = #tpu.pipeline_mode<synchronous>, transform_indices = @transform_2, window_bounds = array<i64: 5, 32>}, {transform_indices = @transform_3, window_bounds = array<i64: 1, 1, 32>}, {transform_indices = @transform_4, window_bounds = array<i64: 1, 1, 32>}, {transform_indices = @transform_5, window_bounds = array<i64: 1, 2, 32, 16>}, {transform_indices = @transform_6, window_bounds = array<i64: 1, 2, 32, 16>}, {transform_indices = @transform_7, window_bounds = array<i64: 1, 2, 32, 16>}, {transform_indices = @transform_8, window_bounds = array<i64: 1, 2, 1, 16>}, {transform_indices = @transform_9, window_bounds = array<i64: 1, 2, 1, 16>}, {transform_indices = @transform_10, window_bounds = array<i64: 1, 2, 1, 16>}, {transform_indices = @transform_11, window_bounds = array<i64: 1, 2, 16, 32>}, {transform_indices = @transform_12, window_bounds = array<i64: 1, 1, 32>}, {transform_indices = @transform_13, window_bounds = array<i64: 1, 1, 32>}, {transform_indices = @transform_14, window_bounds = array<i64: 1, 1, 32>}, {transform_indices = @transform_15, window_bounds = array<i64: 1, 32, 64>}, {transform_indices = @transform_16, window_bounds = array<i64: 1, 1, 64>}, {transform_indices = @transform_17, window_bounds = array<i64: 1, 64, 32>}, {transform_indices = @transform_18, window_bounds = array<i64: 1, 1, 32>}, {pipeline_mode = #tpu.pipeline_mode<synchronous>, transform_indices = @transform_19, window_bounds = array<i64: 1, 32>}, {pipeline_mode = #tpu.pipeline_mode<synchronous>, transform_indices = @transform_20, window_bounds = array<i64: 1, 32>}, {pipeline_mode = #tpu.pipeline_mode<synchronous>, transform_indices = @transform_21, window_bounds = array<i64: 1, 32>}, {pipeline_mode = #tpu.pipeline_mode<synchronous>, transform_indices = @transform_22, window_bounds = array<i64: 1, 1>}, {pipeline_mode = #tpu.pipeline_mode<synchronous>, transform_indices = @transform_23, window_bounds = array<i64: 32, 2>}, {pipeline_mode = #tpu.pipeline_mode<synchronous>, transform_indices = @transform_24, window_bounds = array<i64: 1, 2>}, {transform_indices = @transform_25, window_bounds = array<i64: 1, 2, 128>}]} {
    %c0_i32 = arith.constant 0 : i32
    %0 = arith.cmpi eq, %arg1, %c0_i32 : i32
    %1 = arith.extui %0 : i1 to i32
    %c0_i32_0 = arith.constant 0 : i32
    %2 = arith.cmpi ne, %1, %c0_i32_0 : i32
    scf.if %2 {
      %c0_271 = arith.constant 0 : index
      %c0_272 = arith.constant 0 : index
      %c0_273 = arith.constant 0 : index
      %506 = vector.load %arg2[%c0_271, %c0_272, %c0_273] : memref<1x40x768xbf16, #tpu.memory_space<vmem>>, vector<1x40x768xbf16>
      %507 = vector.shape_cast %506 : vector<1x40x768xbf16> to vector<40x768xbf16>
      %c0_274 = arith.constant 0 : index
      %c0_275 = arith.constant 0 : index
      %508 = vector.load %arg3[%c0_274, %c0_275] : memref<768x32xbf16, #tpu.memory_space<vmem>>, vector<768x32xbf16>
      %cst_276 = arith.constant dense<0.000000e+00> : vector<40x32xf32>
      %509 = tpu.matmul %507, %508, %cst_276 {dimension_numbers = #tpu.dot_dimension_numbers<[1], [0], [0], [1], [0, 0, 1, 1], [], []>} : vector<40x768xbf16>, vector<768x32xbf16>, vector<40x32xf32> -> vector<40x32xf32>
      %c0_277 = arith.constant 0 : index
      %c0_278 = arith.constant 0 : index
      %510 = vector.load %arg4[%c0_277, %c0_278] : memref<5x32xf32, #tpu.memory_space<vmem>>, vector<5x32xf32>
      %511 = tpu.concatenate %510, %510, %510, %510, %510, %510, %510, %510 in 0 : vector<5x32xf32>, vector<5x32xf32>, vector<5x32xf32>, vector<5x32xf32>, vector<5x32xf32>, vector<5x32xf32>, vector<5x32xf32>, vector<5x32xf32> -> vector<40x32xf32>
      %512 = arith.addf %509, %511 : vector<40x32xf32>
      %c0_279 = arith.constant 0 : index
      %c0_280 = arith.constant 0 : index
      %513 = vector.load %arg28[%c0_279, %c0_280] : memref<40x32xf32, #tpu.memory_space<vmem>>, vector<40x32xf32>
      tpu.vector_store %arg28[%c0_279, %c0_280], %512 {strides = array<i32>} : memref<40x32xf32, #tpu.memory_space<vmem>>, vector<40x32xf32>,
    } else {
    }
    %c0 = arith.constant 0 : index
    %c0_1 = arith.constant 0 : index
    %3 = vector.load %arg28[%c0, %c0_1] : memref<40x32xf32, #tpu.memory_space<vmem>>, vector<40x32xf32>
    %c0_2 = arith.constant 0 : index
    %c0_3 = arith.constant 0 : index
    %c0_4 = arith.constant 0 : index
    %4 = vector.load %arg5[%c0_2, %c0_3, %c0_4] : memref<1x1x32xf32, #tpu.memory_space<vmem>>, vector<1x1x32xf32>
    %5 = vector.shape_cast %4 : vector<1x1x32xf32> to vector<1x32xf32>
    %c0_5 = arith.constant 0 : index
    %c0_6 = arith.constant 0 : index
    %c0_7 = arith.constant 0 : index
    %6 = vector.load %arg6[%c0_5, %c0_6, %c0_7] : memref<1x1x32xf32, #tpu.memory_space<vmem>>, vector<1x1x32xf32>
    %7 = vector.shape_cast %6 : vector<1x1x32xf32> to vector<1x32xf32>
    %cst = arith.constant dense<0.000000e+00> : vector<40xf32>
    %8 = vector.multi_reduction <add>, %3, %cst [1] : vector<40x32xf32> to vector<40xf32>
    %9 = vector.shape_cast %8 : vector<40xf32> to vector<40x1xf32>
    %cst_8 = arith.constant 3.200000e+01 : f32
    %10 = vector.broadcast %cst_8 : f32 to vector<40x1xf32>
    %11 = arith.divf %9, %10 : vector<40x1xf32>
    %12 = vector.broadcast %11 : vector<40x1xf32> to vector<40x32xf32>
    %13 = arith.subf %3, %12 : vector<40x32xf32>
    %14 = arith.mulf %13, %13 : vector<40x32xf32>
    %cst_9 = arith.constant dense<0.000000e+00> : vector<40xf32>
    %15 = vector.multi_reduction <add>, %14, %cst_9 [1] : vector<40x32xf32> to vector<40xf32>
    %16 = vector.shape_cast %15 : vector<40xf32> to vector<40x1xf32>
    %cst_10 = arith.constant 3.200000e+01 : f32
    %17 = vector.broadcast %cst_10 : f32 to vector<40x1xf32>
    %18 = arith.divf %16, %17 : vector<40x1xf32>
    %cst_11 = arith.constant 9.99999997E-7 : f32
    %19 = vector.broadcast %cst_11 : f32 to vector<40x1xf32>
    %20 = arith.addf %18, %19 : vector<40x1xf32>
    %21 = math.rsqrt %20 : vector<40x1xf32>
    %22 = vector.broadcast %21 : vector<40x1xf32> to vector<40x32xf32>
    %23 = arith.mulf %13, %22 : vector<40x32xf32>
    %24 = vector.broadcast %5 : vector<1x32xf32> to vector<40x32xf32>
    %25 = arith.mulf %23, %24 : vector<40x32xf32>
    %26 = vector.broadcast %7 : vector<1x32xf32> to vector<40x32xf32>
    %27 = arith.addf %25, %26 : vector<40x32xf32>
    %28 = arith.truncf %27 : vector<40x32xf32> to vector<40x32xbf16>
    %c0_12 = arith.constant 0 : index
    %c0_13 = arith.constant 0 : index
    %c0_14 = arith.constant 0 : index
    %c0_15 = arith.constant 0 : index
    %29 = vector.load %arg7[%c0_12, %c0_13, %c0_14, %c0_15] : memref<1x2x32x16xbf16, #tpu.memory_space<vmem>>, vector<1x1x32x16xbf16>
    %30 = vector.shape_cast %29 : vector<1x1x32x16xbf16> to vector<32x16xbf16>
    %cst_16 = arith.constant dense<0.000000e+00> : vector<40x16xf32>
    %31 = tpu.matmul %28, %30, %cst_16 {dimension_numbers = #tpu.dot_dimension_numbers<[1], [0], [0], [1], [0, 0, 1, 1], [], []>} : vector<40x32xbf16>, vector<32x16xbf16>, vector<40x16xf32> -> vector<40x16xf32>
    %c0_17 = arith.constant 0 : index
    %c0_18 = arith.constant 0 : index
    %c0_19 = arith.constant 0 : index
    %c0_20 = arith.constant 0 : index
    %32 = vector.load %arg10[%c0_17, %c0_18, %c0_19, %c0_20] : memref<1x2x1x16xf32, #tpu.memory_space<vmem>>, vector<1x1x1x16xf32>
    %33 = vector.shape_cast %32 : vector<1x1x1x16xf32> to vector<1x16xf32>
    %34 = vector.broadcast %33 : vector<1x16xf32> to vector<40x16xf32>
    %35 = arith.addf %31, %34 : vector<40x16xf32>
    %c0_21 = arith.constant 0 : index
    %c0_22 = arith.constant 0 : index
    %c0_23 = arith.constant 0 : index
    %c0_24 = arith.constant 0 : index
    %36 = vector.load %arg8[%c0_21, %c0_22, %c0_23, %c0_24] : memref<1x2x32x16xbf16, #tpu.memory_space<vmem>>, vector<1x1x32x16xbf16>
    %37 = vector.shape_cast %36 : vector<1x1x32x16xbf16> to vector<32x16xbf16>
    %cst_25 = arith.constant dense<0.000000e+00> : vector<40x16xf32>
    %38 = tpu.matmul %28, %37, %cst_25 {dimension_numbers = #tpu.dot_dimension_numbers<[1], [0], [0], [1], [0, 0, 1, 1], [], []>} : vector<40x32xbf16>, vector<32x16xbf16>, vector<40x16xf32> -> vector<40x16xf32>
    %c0_26 = arith.constant 0 : index
    %c0_27 = arith.constant 0 : index
    %c0_28 = arith.constant 0 : index
    %c0_29 = arith.constant 0 : index
    %39 = vector.load %arg11[%c0_26, %c0_27, %c0_28, %c0_29] : memref<1x2x1x16xf32, #tpu.memory_space<vmem>>, vector<1x1x1x16xf32>
    %40 = vector.shape_cast %39 : vector<1x1x1x16xf32> to vector<1x16xf32>
    %41 = vector.broadcast %40 : vector<1x16xf32> to vector<40x16xf32>
    %42 = arith.addf %38, %41 : vector<40x16xf32>
    %c0_30 = arith.constant 0 : index
    %c0_31 = arith.constant 0 : index
    %c0_32 = arith.constant 0 : index
    %c0_33 = arith.constant 0 : index
    %43 = vector.load %arg9[%c0_30, %c0_31, %c0_32, %c0_33] : memref<1x2x32x16xbf16, #tpu.memory_space<vmem>>, vector<1x1x32x16xbf16>
    %44 = vector.shape_cast %43 : vector<1x1x32x16xbf16> to vector<32x16xbf16>
    %cst_34 = arith.constant dense<0.000000e+00> : vector<40x16xf32>
    %45 = tpu.matmul %28, %44, %cst_34 {dimension_numbers = #tpu.dot_dimension_numbers<[1], [0], [0], [1], [0, 0, 1, 1], [], []>} : vector<40x32xbf16>, vector<32x16xbf16>, vector<40x16xf32> -> vector<40x16xf32>
    %c0_35 = arith.constant 0 : index
    %c0_36 = arith.constant 0 : index
    %c0_37 = arith.constant 0 : index
    %c0_38 = arith.constant 0 : index
    %46 = vector.load %arg12[%c0_35, %c0_36, %c0_37, %c0_38] : memref<1x2x1x16xf32, #tpu.memory_space<vmem>>, vector<1x1x1x16xf32>
    %47 = vector.shape_cast %46 : vector<1x1x1x16xf32> to vector<1x16xf32>
    %48 = vector.broadcast %47 : vector<1x16xf32> to vector<40x16xf32>
    %49 = arith.addf %45, %48 : vector<40x16xf32>
    %c0_39 = arith.constant 0 : index
    %c1 = arith.constant 1 : index
    %c0_40 = arith.constant 0 : index
    %c0_41 = arith.constant 0 : index
    %50 = vector.load %arg7[%c0_39, %c1, %c0_40, %c0_41] : memref<1x2x32x16xbf16, #tpu.memory_space<vmem>>, vector<1x1x32x16xbf16>
    %51 = vector.shape_cast %50 : vector<1x1x32x16xbf16> to vector<32x16xbf16>
    %cst_42 = arith.constant dense<0.000000e+00> : vector<40x16xf32>
    %52 = tpu.matmul %28, %51, %cst_42 {dimension_numbers = #tpu.dot_dimension_numbers<[1], [0], [0], [1], [0, 0, 1, 1], [], []>} : vector<40x32xbf16>, vector<32x16xbf16>, vector<40x16xf32> -> vector<40x16xf32>
    %c0_43 = arith.constant 0 : index
    %c1_44 = arith.constant 1 : index
    %c0_45 = arith.constant 0 : index
    %c0_46 = arith.constant 0 : index
    %53 = vector.load %arg10[%c0_43, %c1_44, %c0_45, %c0_46] : memref<1x2x1x16xf32, #tpu.memory_space<vmem>>, vector<1x1x1x16xf32>
    %54 = vector.shape_cast %53 : vector<1x1x1x16xf32> to vector<1x16xf32>
    %55 = vector.broadcast %54 : vector<1x16xf32> to vector<40x16xf32>
    %56 = arith.addf %52, %55 : vector<40x16xf32>
    %c0_47 = arith.constant 0 : index
    %c1_48 = arith.constant 1 : index
    %c0_49 = arith.constant 0 : index
    %c0_50 = arith.constant 0 : index
    %57 = vector.load %arg8[%c0_47, %c1_48, %c0_49, %c0_50] : memref<1x2x32x16xbf16, #tpu.memory_space<vmem>>, vector<1x1x32x16xbf16>
    %58 = vector.shape_cast %57 : vector<1x1x32x16xbf16> to vector<32x16xbf16>
    %cst_51 = arith.constant dense<0.000000e+00> : vector<40x16xf32>
    %59 = tpu.matmul %28, %58, %cst_51 {dimension_numbers = #tpu.dot_dimension_numbers<[1], [0], [0], [1], [0, 0, 1, 1], [], []>} : vector<40x32xbf16>, vector<32x16xbf16>, vector<40x16xf32> -> vector<40x16xf32>
    %c0_52 = arith.constant 0 : index
    %c1_53 = arith.constant 1 : index
    %c0_54 = arith.constant 0 : index
    %c0_55 = arith.constant 0 : index
    %60 = vector.load %arg11[%c0_52, %c1_53, %c0_54, %c0_55] : memref<1x2x1x16xf32, #tpu.memory_space<vmem>>, vector<1x1x1x16xf32>
    %61 = vector.shape_cast %60 : vector<1x1x1x16xf32> to vector<1x16xf32>
    %62 = vector.broadcast %61 : vector<1x16xf32> to vector<40x16xf32>
    %63 = arith.addf %59, %62 : vector<40x16xf32>
    %c0_56 = arith.constant 0 : index
    %c1_57 = arith.constant 1 : index
    %c0_58 = arith.constant 0 : index
    %c0_59 = arith.constant 0 : index
    %64 = vector.load %arg9[%c0_56, %c1_57, %c0_58, %c0_59] : memref<1x2x32x16xbf16, #tpu.memory_space<vmem>>, vector<1x1x32x16xbf16>
    %65 = vector.shape_cast %64 : vector<1x1x32x16xbf16> to vector<32x16xbf16>
    %cst_60 = arith.constant dense<0.000000e+00> : vector<40x16xf32>
    %66 = tpu.matmul %28, %65, %cst_60 {dimension_numbers = #tpu.dot_dimension_numbers<[1], [0], [0], [1], [0, 0, 1, 1], [], []>} : vector<40x32xbf16>, vector<32x16xbf16>, vector<40x16xf32> -> vector<40x16xf32>
    %c0_61 = arith.constant 0 : index
    %c1_62 = arith.constant 1 : index
    %c0_63 = arith.constant 0 : index
    %c0_64 = arith.constant 0 : index
    %67 = vector.load %arg12[%c0_61, %c1_62, %c0_63, %c0_64] : memref<1x2x1x16xf32, #tpu.memory_space<vmem>>, vector<1x1x1x16xf32>
    %68 = vector.shape_cast %67 : vector<1x1x1x16xf32> to vector<1x16xf32>
    %69 = vector.broadcast %68 : vector<1x16xf32> to vector<40x16xf32>
    %70 = arith.addf %66, %69 : vector<40x16xf32>
    %71 = vector.extract_strided_slice %35 {offsets = [0, 0], sizes = [5, 16], strides = [1, 1]} : vector<40x16xf32> to vector<5x16xf32>
    %72 = vector.extract_strided_slice %42 {offsets = [0, 0], sizes = [5, 16], strides = [1, 1]} : vector<40x16xf32> to vector<5x16xf32>
    %73 = vector.extract_strided_slice %49 {offsets = [0, 0], sizes = [5, 16], strides = [1, 1]} : vector<40x16xf32> to vector<5x16xf32>
    %cst_65 = arith.constant dense<0.000000e+00> : vector<5x5xf32>
    %74 = tpu.matmul %71, %72, %cst_65 {dimension_numbers = #tpu.dot_dimension_numbers<[1], [1], [0], [0], [0, 0, 1, 0], [], []>} : vector<5x16xf32>, vector<5x16xf32>, vector<5x5xf32> -> vector<5x5xf32>
    %cst_66 = arith.constant 2.500000e-01 : f32
    %75 = vector.broadcast %cst_66 : f32 to vector<5x5xf32>
    %76 = arith.mulf %74, %75 : vector<5x5xf32>
    %cst_67 = arith.constant dense<0xFF800000> : vector<5xf32>
    %77 = vector.multi_reduction <maximumf>, %76, %cst_67 [1] : vector<5x5xf32> to vector<5xf32>
    %78 = vector.shape_cast %77 : vector<5xf32> to vector<5x1xf32>
    %79 = vector.broadcast %78 : vector<5x1xf32> to vector<5x5xf32>
    %80 = arith.subf %76, %79 : vector<5x5xf32>
    %81 = math.exp %80 : vector<5x5xf32>
    %cst_68 = arith.constant dense<0.000000e+00> : vector<5xf32>
    %82 = vector.multi_reduction <add>, %81, %cst_68 [1] : vector<5x5xf32> to vector<5xf32>
    %83 = vector.shape_cast %82 : vector<5xf32> to vector<5x1xf32>
    %84 = tpu.reciprocal %83 {approx = true} : vector<5x1xf32> -> vector<5x1xf32>
    %85 = vector.broadcast %84 : vector<5x1xf32> to vector<5x5xf32>
    %86 = arith.mulf %81, %85 : vector<5x5xf32>
    %cst_69 = arith.constant dense<0.000000e+00> : vector<5x16xf32>
    %87 = tpu.matmul %86, %73, %cst_69 {dimension_numbers = #tpu.dot_dimension_numbers<[1], [0], [0], [1], [0, 0, 1, 1], [], []>} : vector<5x5xf32>, vector<5x16xf32>, vector<5x16xf32> -> vector<5x16xf32>
    %88 = arith.truncf %87 : vector<5x16xf32> to vector<5x16xbf16>
    %c0_70 = arith.constant 0 : index
    %c0_71 = arith.constant 0 : index
    %c0_72 = arith.constant 0 : index
    %c0_73 = arith.constant 0 : index
    %89 = vector.load %arg13[%c0_70, %c0_71, %c0_72, %c0_73] : memref<1x2x16x32xbf16, #tpu.memory_space<vmem>>, vector<1x1x16x32xbf16>
    %90 = vector.shape_cast %89 : vector<1x1x16x32xbf16> to vector<16x32xbf16>
    %cst_74 = arith.constant dense<0.000000e+00> : vector<5x32xf32>
    %91 = tpu.matmul %88, %90, %cst_74 {dimension_numbers = #tpu.dot_dimension_numbers<[1], [0], [0], [1], [0, 0, 1, 1], [], []>} : vector<5x16xbf16>, vector<16x32xbf16>, vector<5x32xf32> -> vector<5x32xf32>
    %92 = vector.extract_strided_slice %56 {offsets = [0, 0], sizes = [5, 16], strides = [1, 1]} : vector<40x16xf32> to vector<5x16xf32>
    %93 = vector.extract_strided_slice %63 {offsets = [0, 0], sizes = [5, 16], strides = [1, 1]} : vector<40x16xf32> to vector<5x16xf32>
    %94 = vector.extract_strided_slice %70 {offsets = [0, 0], sizes = [5, 16], strides = [1, 1]} : vector<40x16xf32> to vector<5x16xf32>
    %cst_75 = arith.constant dense<0.000000e+00> : vector<5x5xf32>
    %95 = tpu.matmul %92, %93, %cst_75 {dimension_numbers = #tpu.dot_dimension_numbers<[1], [1], [0], [0], [0, 0, 1, 0], [], []>} : vector<5x16xf32>, vector<5x16xf32>, vector<5x5xf32> -> vector<5x5xf32>
    %cst_76 = arith.constant 2.500000e-01 : f32
    %96 = vector.broadcast %cst_76 : f32 to vector<5x5xf32>
    %97 = arith.mulf %95, %96 : vector<5x5xf32>
    %cst_77 = arith.constant dense<0xFF800000> : vector<5xf32>
    %98 = vector.multi_reduction <maximumf>, %97, %cst_77 [1] : vector<5x5xf32> to vector<5xf32>
    %99 = vector.shape_cast %98 : vector<5xf32> to vector<5x1xf32>
    %100 = vector.broadcast %99 : vector<5x1xf32> to vector<5x5xf32>
    %101 = arith.subf %97, %100 : vector<5x5xf32>
    %102 = math.exp %101 : vector<5x5xf32>
    %cst_78 = arith.constant dense<0.000000e+00> : vector<5xf32>
    %103 = vector.multi_reduction <add>, %102, %cst_78 [1] : vector<5x5xf32> to vector<5xf32>
    %104 = vector.shape_cast %103 : vector<5xf32> to vector<5x1xf32>
    %105 = tpu.reciprocal %104 {approx = true} : vector<5x1xf32> -> vector<5x1xf32>
    %106 = vector.broadcast %105 : vector<5x1xf32> to vector<5x5xf32>
    %107 = arith.mulf %102, %106 : vector<5x5xf32>
    %cst_79 = arith.constant dense<0.000000e+00> : vector<5x16xf32>
    %108 = tpu.matmul %107, %94, %cst_79 {dimension_numbers = #tpu.dot_dimension_numbers<[1], [0], [0], [1], [0, 0, 1, 1], [], []>} : vector<5x5xf32>, vector<5x16xf32>, vector<5x16xf32> -> vector<5x16xf32>
    %109 = arith.truncf %108 : vector<5x16xf32> to vector<5x16xbf16>
    %c0_80 = arith.constant 0 : index
    %c1_81 = arith.constant 1 : index
    %c0_82 = arith.constant 0 : index
    %c0_83 = arith.constant 0 : index
    %110 = vector.load %arg13[%c0_80, %c1_81, %c0_82, %c0_83] : memref<1x2x16x32xbf16, #tpu.memory_space<vmem>>, vector<1x1x16x32xbf16>
    %111 = vector.shape_cast %110 : vector<1x1x16x32xbf16> to vector<16x32xbf16>
    %cst_84 = arith.constant dense<0.000000e+00> : vector<5x32xf32>
    %112 = tpu.matmul %109, %111, %cst_84 {dimension_numbers = #tpu.dot_dimension_numbers<[1], [0], [0], [1], [0, 0, 1, 1], [], []>} : vector<5x16xbf16>, vector<16x32xbf16>, vector<5x32xf32> -> vector<5x32xf32>
    %113 = arith.addf %91, %112 : vector<5x32xf32>
    %114 = vector.extract_strided_slice %35 {offsets = [5, 0], sizes = [5, 16], strides = [1, 1]} : vector<40x16xf32> to vector<5x16xf32>
    %115 = vector.extract_strided_slice %42 {offsets = [5, 0], sizes = [5, 16], strides = [1, 1]} : vector<40x16xf32> to vector<5x16xf32>
    %116 = vector.extract_strided_slice %49 {offsets = [5, 0], sizes = [5, 16], strides = [1, 1]} : vector<40x16xf32> to vector<5x16xf32>
    %cst_85 = arith.constant dense<0.000000e+00> : vector<5x5xf32>
    %117 = tpu.matmul %114, %115, %cst_85 {dimension_numbers = #tpu.dot_dimension_numbers<[1], [1], [0], [0], [0, 0, 1, 0], [], []>} : vector<5x16xf32>, vector<5x16xf32>, vector<5x5xf32> -> vector<5x5xf32>
    %cst_86 = arith.constant 2.500000e-01 : f32
    %118 = vector.broadcast %cst_86 : f32 to vector<5x5xf32>
    %119 = arith.mulf %117, %118 : vector<5x5xf32>
    %cst_87 = arith.constant dense<0xFF800000> : vector<5xf32>
    %120 = vector.multi_reduction <maximumf>, %119, %cst_87 [1] : vector<5x5xf32> to vector<5xf32>
    %121 = vector.shape_cast %120 : vector<5xf32> to vector<5x1xf32>
    %122 = vector.broadcast %121 : vector<5x1xf32> to vector<5x5xf32>
    %123 = arith.subf %119, %122 : vector<5x5xf32>
    %124 = math.exp %123 : vector<5x5xf32>
    %cst_88 = arith.constant dense<0.000000e+00> : vector<5xf32>
    %125 = vector.multi_reduction <add>, %124, %cst_88 [1] : vector<5x5xf32> to vector<5xf32>
    %126 = vector.shape_cast %125 : vector<5xf32> to vector<5x1xf32>
    %127 = tpu.reciprocal %126 {approx = true} : vector<5x1xf32> -> vector<5x1xf32>
    %128 = vector.broadcast %127 : vector<5x1xf32> to vector<5x5xf32>
    %129 = arith.mulf %124, %128 : vector<5x5xf32>
    %cst_89 = arith.constant dense<0.000000e+00> : vector<5x16xf32>
    %130 = tpu.matmul %129, %116, %cst_89 {dimension_numbers = #tpu.dot_dimension_numbers<[1], [0], [0], [1], [0, 0, 1, 1], [], []>} : vector<5x5xf32>, vector<5x16xf32>, vector<5x16xf32> -> vector<5x16xf32>
    %131 = arith.truncf %130 : vector<5x16xf32> to vector<5x16xbf16>
    %c0_90 = arith.constant 0 : index
    %c0_91 = arith.constant 0 : index
    %c0_92 = arith.constant 0 : index
    %c0_93 = arith.constant 0 : index
    %132 = vector.load %arg13[%c0_90, %c0_91, %c0_92, %c0_93] : memref<1x2x16x32xbf16, #tpu.memory_space<vmem>>, vector<1x1x16x32xbf16>
    %133 = vector.shape_cast %132 : vector<1x1x16x32xbf16> to vector<16x32xbf16>
    %cst_94 = arith.constant dense<0.000000e+00> : vector<5x32xf32>
    %134 = tpu.matmul %131, %133, %cst_94 {dimension_numbers = #tpu.dot_dimension_numbers<[1], [0], [0], [1], [0, 0, 1, 1], [], []>} : vector<5x16xbf16>, vector<16x32xbf16>, vector<5x32xf32> -> vector<5x32xf32>
    %135 = vector.extract_strided_slice %56 {offsets = [5, 0], sizes = [5, 16], strides = [1, 1]} : vector<40x16xf32> to vector<5x16xf32>
    %136 = vector.extract_strided_slice %63 {offsets = [5, 0], sizes = [5, 16], strides = [1, 1]} : vector<40x16xf32> to vector<5x16xf32>
    %137 = vector.extract_strided_slice %70 {offsets = [5, 0], sizes = [5, 16], strides = [1, 1]} : vector<40x16xf32> to vector<5x16xf32>
    %cst_95 = arith.constant dense<0.000000e+00> : vector<5x5xf32>
    %138 = tpu.matmul %135, %136, %cst_95 {dimension_numbers = #tpu.dot_dimension_numbers<[1], [1], [0], [0], [0, 0, 1, 0], [], []>} : vector<5x16xf32>, vector<5x16xf32>, vector<5x5xf32> -> vector<5x5xf32>
    %cst_96 = arith.constant 2.500000e-01 : f32
    %139 = vector.broadcast %cst_96 : f32 to vector<5x5xf32>
    %140 = arith.mulf %138, %139 : vector<5x5xf32>
    %cst_97 = arith.constant dense<0xFF800000> : vector<5xf32>
    %141 = vector.multi_reduction <maximumf>, %140, %cst_97 [1] : vector<5x5xf32> to vector<5xf32>
    %142 = vector.shape_cast %141 : vector<5xf32> to vector<5x1xf32>
    %143 = vector.broadcast %142 : vector<5x1xf32> to vector<5x5xf32>
    %144 = arith.subf %140, %143 : vector<5x5xf32>
    %145 = math.exp %144 : vector<5x5xf32>
    %cst_98 = arith.constant dense<0.000000e+00> : vector<5xf32>
    %146 = vector.multi_reduction <add>, %145, %cst_98 [1] : vector<5x5xf32> to vector<5xf32>
    %147 = vector.shape_cast %146 : vector<5xf32> to vector<5x1xf32>
    %148 = tpu.reciprocal %147 {approx = true} : vector<5x1xf32> -> vector<5x1xf32>
    %149 = vector.broadcast %148 : vector<5x1xf32> to vector<5x5xf32>
    %150 = arith.mulf %145, %149 : vector<5x5xf32>
    %cst_99 = arith.constant dense<0.000000e+00> : vector<5x16xf32>
    %151 = tpu.matmul %150, %137, %cst_99 {dimension_numbers = #tpu.dot_dimension_numbers<[1], [0], [0], [1], [0, 0, 1, 1], [], []>} : vector<5x5xf32>, vector<5x16xf32>, vector<5x16xf32> -> vector<5x16xf32>
    %152 = arith.truncf %151 : vector<5x16xf32> to vector<5x16xbf16>
    %c0_100 = arith.constant 0 : index
    %c1_101 = arith.constant 1 : index
    %c0_102 = arith.constant 0 : index
    %c0_103 = arith.constant 0 : index
    %153 = vector.load %arg13[%c0_100, %c1_101, %c0_102, %c0_103] : memref<1x2x16x32xbf16, #tpu.memory_space<vmem>>, vector<1x1x16x32xbf16>
    %154 = vector.shape_cast %153 : vector<1x1x16x32xbf16> to vector<16x32xbf16>
    %cst_104 = arith.constant dense<0.000000e+00> : vector<5x32xf32>
    %155 = tpu.matmul %152, %154, %cst_104 {dimension_numbers = #tpu.dot_dimension_numbers<[1], [0], [0], [1], [0, 0, 1, 1], [], []>} : vector<5x16xbf16>, vector<16x32xbf16>, vector<5x32xf32> -> vector<5x32xf32>
    %156 = arith.addf %134, %155 : vector<5x32xf32>
    %157 = vector.extract_strided_slice %35 {offsets = [10, 0], sizes = [5, 16], strides = [1, 1]} : vector<40x16xf32> to vector<5x16xf32>
    %158 = vector.extract_strided_slice %42 {offsets = [10, 0], sizes = [5, 16], strides = [1, 1]} : vector<40x16xf32> to vector<5x16xf32>
    %159 = vector.extract_strided_slice %49 {offsets = [10, 0], sizes = [5, 16], strides = [1, 1]} : vector<40x16xf32> to vector<5x16xf32>
    %cst_105 = arith.constant dense<0.000000e+00> : vector<5x5xf32>
    %160 = tpu.matmul %157, %158, %cst_105 {dimension_numbers = #tpu.dot_dimension_numbers<[1], [1], [0], [0], [0, 0, 1, 0], [], []>} : vector<5x16xf32>, vector<5x16xf32>, vector<5x5xf32> -> vector<5x5xf32>
    %cst_106 = arith.constant 2.500000e-01 : f32
    %161 = vector.broadcast %cst_106 : f32 to vector<5x5xf32>
    %162 = arith.mulf %160, %161 : vector<5x5xf32>
    %cst_107 = arith.constant dense<0xFF800000> : vector<5xf32>
    %163 = vector.multi_reduction <maximumf>, %162, %cst_107 [1] : vector<5x5xf32> to vector<5xf32>
    %164 = vector.shape_cast %163 : vector<5xf32> to vector<5x1xf32>
    %165 = vector.broadcast %164 : vector<5x1xf32> to vector<5x5xf32>
    %166 = arith.subf %162, %165 : vector<5x5xf32>
    %167 = math.exp %166 : vector<5x5xf32>
    %cst_108 = arith.constant dense<0.000000e+00> : vector<5xf32>
    %168 = vector.multi_reduction <add>, %167, %cst_108 [1] : vector<5x5xf32> to vector<5xf32>
    %169 = vector.shape_cast %168 : vector<5xf32> to vector<5x1xf32>
    %170 = tpu.reciprocal %169 {approx = true} : vector<5x1xf32> -> vector<5x1xf32>
    %171 = vector.broadcast %170 : vector<5x1xf32> to vector<5x5xf32>
    %172 = arith.mulf %167, %171 : vector<5x5xf32>
    %cst_109 = arith.constant dense<0.000000e+00> : vector<5x16xf32>
    %173 = tpu.matmul %172, %159, %cst_109 {dimension_numbers = #tpu.dot_dimension_numbers<[1], [0], [0], [1], [0, 0, 1, 1], [], []>} : vector<5x5xf32>, vector<5x16xf32>, vector<5x16xf32> -> vector<5x16xf32>
    %174 = arith.truncf %173 : vector<5x16xf32> to vector<5x16xbf16>
    %c0_110 = arith.constant 0 : index
    %c0_111 = arith.constant 0 : index
    %c0_112 = arith.constant 0 : index
    %c0_113 = arith.constant 0 : index
    %175 = vector.load %arg13[%c0_110, %c0_111, %c0_112, %c0_113] : memref<1x2x16x32xbf16, #tpu.memory_space<vmem>>, vector<1x1x16x32xbf16>
    %176 = vector.shape_cast %175 : vector<1x1x16x32xbf16> to vector<16x32xbf16>
    %cst_114 = arith.constant dense<0.000000e+00> : vector<5x32xf32>
    %177 = tpu.matmul %174, %176, %cst_114 {dimension_numbers = #tpu.dot_dimension_numbers<[1], [0], [0], [1], [0, 0, 1, 1], [], []>} : vector<5x16xbf16>, vector<16x32xbf16>, vector<5x32xf32> -> vector<5x32xf32>
    %178 = vector.extract_strided_slice %56 {offsets = [10, 0], sizes = [5, 16], strides = [1, 1]} : vector<40x16xf32> to vector<5x16xf32>
    %179 = vector.extract_strided_slice %63 {offsets = [10, 0], sizes = [5, 16], strides = [1, 1]} : vector<40x16xf32> to vector<5x16xf32>
    %180 = vector.extract_strided_slice %70 {offsets = [10, 0], sizes = [5, 16], strides = [1, 1]} : vector<40x16xf32> to vector<5x16xf32>
    %cst_115 = arith.constant dense<0.000000e+00> : vector<5x5xf32>
    %181 = tpu.matmul %178, %179, %cst_115 {dimension_numbers = #tpu.dot_dimension_numbers<[1], [1], [0], [0], [0, 0, 1, 0], [], []>} : vector<5x16xf32>, vector<5x16xf32>, vector<5x5xf32> -> vector<5x5xf32>
    %cst_116 = arith.constant 2.500000e-01 : f32
    %182 = vector.broadcast %cst_116 : f32 to vector<5x5xf32>
    %183 = arith.mulf %181, %182 : vector<5x5xf32>
    %cst_117 = arith.constant dense<0xFF800000> : vector<5xf32>
    %184 = vector.multi_reduction <maximumf>, %183, %cst_117 [1] : vector<5x5xf32> to vector<5xf32>
    %185 = vector.shape_cast %184 : vector<5xf32> to vector<5x1xf32>
    %186 = vector.broadcast %185 : vector<5x1xf32> to vector<5x5xf32>
    %187 = arith.subf %183, %186 : vector<5x5xf32>
    %188 = math.exp %187 : vector<5x5xf32>
    %cst_118 = arith.constant dense<0.000000e+00> : vector<5xf32>
    %189 = vector.multi_reduction <add>, %188, %cst_118 [1] : vector<5x5xf32> to vector<5xf32>
    %190 = vector.shape_cast %189 : vector<5xf32> to vector<5x1xf32>
    %191 = tpu.reciprocal %190 {approx = true} : vector<5x1xf32> -> vector<5x1xf32>
    %192 = vector.broadcast %191 : vector<5x1xf32> to vector<5x5xf32>
    %193 = arith.mulf %188, %192 : vector<5x5xf32>
    %cst_119 = arith.constant dense<0.000000e+00> : vector<5x16xf32>
    %194 = tpu.matmul %193, %180, %cst_119 {dimension_numbers = #tpu.dot_dimension_numbers<[1], [0], [0], [1], [0, 0, 1, 1], [], []>} : vector<5x5xf32>, vector<5x16xf32>, vector<5x16xf32> -> vector<5x16xf32>
    %195 = arith.truncf %194 : vector<5x16xf32> to vector<5x16xbf16>
    %c0_120 = arith.constant 0 : index
    %c1_121 = arith.constant 1 : index
    %c0_122 = arith.constant 0 : index
    %c0_123 = arith.constant 0 : index
    %196 = vector.load %arg13[%c0_120, %c1_121, %c0_122, %c0_123] : memref<1x2x16x32xbf16, #tpu.memory_space<vmem>>, vector<1x1x16x32xbf16>
    %197 = vector.shape_cast %196 : vector<1x1x16x32xbf16> to vector<16x32xbf16>
    %cst_124 = arith.constant dense<0.000000e+00> : vector<5x32xf32>
    %198 = tpu.matmul %195, %197, %cst_124 {dimension_numbers = #tpu.dot_dimension_numbers<[1], [0], [0], [1], [0, 0, 1, 1], [], []>} : vector<5x16xbf16>, vector<16x32xbf16>, vector<5x32xf32> -> vector<5x32xf32>
    %199 = arith.addf %177, %198 : vector<5x32xf32>
    %200 = vector.extract_strided_slice %35 {offsets = [15, 0], sizes = [5, 16], strides = [1, 1]} : vector<40x16xf32> to vector<5x16xf32>
    %201 = vector.extract_strided_slice %42 {offsets = [15, 0], sizes = [5, 16], strides = [1, 1]} : vector<40x16xf32> to vector<5x16xf32>
    %202 = vector.extract_strided_slice %49 {offsets = [15, 0], sizes = [5, 16], strides = [1, 1]} : vector<40x16xf32> to vector<5x16xf32>
    %cst_125 = arith.constant dense<0.000000e+00> : vector<5x5xf32>
    %203 = tpu.matmul %200, %201, %cst_125 {dimension_numbers = #tpu.dot_dimension_numbers<[1], [1], [0], [0], [0, 0, 1, 0], [], []>} : vector<5x16xf32>, vector<5x16xf32>, vector<5x5xf32> -> vector<5x5xf32>
    %cst_126 = arith.constant 2.500000e-01 : f32
    %204 = vector.broadcast %cst_126 : f32 to vector<5x5xf32>
    %205 = arith.mulf %203, %204 : vector<5x5xf32>
    %cst_127 = arith.constant dense<0xFF800000> : vector<5xf32>
    %206 = vector.multi_reduction <maximumf>, %205, %cst_127 [1] : vector<5x5xf32> to vector<5xf32>
    %207 = vector.shape_cast %206 : vector<5xf32> to vector<5x1xf32>
    %208 = vector.broadcast %207 : vector<5x1xf32> to vector<5x5xf32>
    %209 = arith.subf %205, %208 : vector<5x5xf32>
    %210 = math.exp %209 : vector<5x5xf32>
    %cst_128 = arith.constant dense<0.000000e+00> : vector<5xf32>
    %211 = vector.multi_reduction <add>, %210, %cst_128 [1] : vector<5x5xf32> to vector<5xf32>
    %212 = vector.shape_cast %211 : vector<5xf32> to vector<5x1xf32>
    %213 = tpu.reciprocal %212 {approx = true} : vector<5x1xf32> -> vector<5x1xf32>
    %214 = vector.broadcast %213 : vector<5x1xf32> to vector<5x5xf32>
    %215 = arith.mulf %210, %214 : vector<5x5xf32>
    %cst_129 = arith.constant dense<0.000000e+00> : vector<5x16xf32>
    %216 = tpu.matmul %215, %202, %cst_129 {dimension_numbers = #tpu.dot_dimension_numbers<[1], [0], [0], [1], [0, 0, 1, 1], [], []>} : vector<5x5xf32>, vector<5x16xf32>, vector<5x16xf32> -> vector<5x16xf32>
    %217 = arith.truncf %216 : vector<5x16xf32> to vector<5x16xbf16>
    %c0_130 = arith.constant 0 : index
    %c0_131 = arith.constant 0 : index
    %c0_132 = arith.constant 0 : index
    %c0_133 = arith.constant 0 : index
    %218 = vector.load %arg13[%c0_130, %c0_131, %c0_132, %c0_133] : memref<1x2x16x32xbf16, #tpu.memory_space<vmem>>, vector<1x1x16x32xbf16>
    %219 = vector.shape_cast %218 : vector<1x1x16x32xbf16> to vector<16x32xbf16>
    %cst_134 = arith.constant dense<0.000000e+00> : vector<5x32xf32>
    %220 = tpu.matmul %217, %219, %cst_134 {dimension_numbers = #tpu.dot_dimension_numbers<[1], [0], [0], [1], [0, 0, 1, 1], [], []>} : vector<5x16xbf16>, vector<16x32xbf16>, vector<5x32xf32> -> vector<5x32xf32>
    %221 = vector.extract_strided_slice %56 {offsets = [15, 0], sizes = [5, 16], strides = [1, 1]} : vector<40x16xf32> to vector<5x16xf32>
    %222 = vector.extract_strided_slice %63 {offsets = [15, 0], sizes = [5, 16], strides = [1, 1]} : vector<40x16xf32> to vector<5x16xf32>
    %223 = vector.extract_strided_slice %70 {offsets = [15, 0], sizes = [5, 16], strides = [1, 1]} : vector<40x16xf32> to vector<5x16xf32>
    %cst_135 = arith.constant dense<0.000000e+00> : vector<5x5xf32>
    %224 = tpu.matmul %221, %222, %cst_135 {dimension_numbers = #tpu.dot_dimension_numbers<[1], [1], [0], [0], [0, 0, 1, 0], [], []>} : vector<5x16xf32>, vector<5x16xf32>, vector<5x5xf32> -> vector<5x5xf32>
    %cst_136 = arith.constant 2.500000e-01 : f32
    %225 = vector.broadcast %cst_136 : f32 to vector<5x5xf32>
    %226 = arith.mulf %224, %225 : vector<5x5xf32>
    %cst_137 = arith.constant dense<0xFF800000> : vector<5xf32>
    %227 = vector.multi_reduction <maximumf>, %226, %cst_137 [1] : vector<5x5xf32> to vector<5xf32>
    %228 = vector.shape_cast %227 : vector<5xf32> to vector<5x1xf32>
    %229 = vector.broadcast %228 : vector<5x1xf32> to vector<5x5xf32>
    %230 = arith.subf %226, %229 : vector<5x5xf32>
    %231 = math.exp %230 : vector<5x5xf32>
    %cst_138 = arith.constant dense<0.000000e+00> : vector<5xf32>
    %232 = vector.multi_reduction <add>, %231, %cst_138 [1] : vector<5x5xf32> to vector<5xf32>
    %233 = vector.shape_cast %232 : vector<5xf32> to vector<5x1xf32>
    %234 = tpu.reciprocal %233 {approx = true} : vector<5x1xf32> -> vector<5x1xf32>
    %235 = vector.broadcast %234 : vector<5x1xf32> to vector<5x5xf32>
    %236 = arith.mulf %231, %235 : vector<5x5xf32>
    %cst_139 = arith.constant dense<0.000000e+00> : vector<5x16xf32>
    %237 = tpu.matmul %236, %223, %cst_139 {dimension_numbers = #tpu.dot_dimension_numbers<[1], [0], [0], [1], [0, 0, 1, 1], [], []>} : vector<5x5xf32>, vector<5x16xf32>, vector<5x16xf32> -> vector<5x16xf32>
    %238 = arith.truncf %237 : vector<5x16xf32> to vector<5x16xbf16>
    %c0_140 = arith.constant 0 : index
    %c1_141 = arith.constant 1 : index
    %c0_142 = arith.constant 0 : index
    %c0_143 = arith.constant 0 : index
    %239 = vector.load %arg13[%c0_140, %c1_141, %c0_142, %c0_143] : memref<1x2x16x32xbf16, #tpu.memory_space<vmem>>, vector<1x1x16x32xbf16>
    %240 = vector.shape_cast %239 : vector<1x1x16x32xbf16> to vector<16x32xbf16>
    %cst_144 = arith.constant dense<0.000000e+00> : vector<5x32xf32>
    %241 = tpu.matmul %238, %240, %cst_144 {dimension_numbers = #tpu.dot_dimension_numbers<[1], [0], [0], [1], [0, 0, 1, 1], [], []>} : vector<5x16xbf16>, vector<16x32xbf16>, vector<5x32xf32> -> vector<5x32xf32>
    %242 = arith.addf %220, %241 : vector<5x32xf32>
    %243 = vector.extract_strided_slice %35 {offsets = [20, 0], sizes = [5, 16], strides = [1, 1]} : vector<40x16xf32> to vector<5x16xf32>
    %244 = vector.extract_strided_slice %42 {offsets = [20, 0], sizes = [5, 16], strides = [1, 1]} : vector<40x16xf32> to vector<5x16xf32>
    %245 = vector.extract_strided_slice %49 {offsets = [20, 0], sizes = [5, 16], strides = [1, 1]} : vector<40x16xf32> to vector<5x16xf32>
    %cst_145 = arith.constant dense<0.000000e+00> : vector<5x5xf32>
    %246 = tpu.matmul %243, %244, %cst_145 {dimension_numbers = #tpu.dot_dimension_numbers<[1], [1], [0], [0], [0, 0, 1, 0], [], []>} : vector<5x16xf32>, vector<5x16xf32>, vector<5x5xf32> -> vector<5x5xf32>
    %cst_146 = arith.constant 2.500000e-01 : f32
    %247 = vector.broadcast %cst_146 : f32 to vector<5x5xf32>
    %248 = arith.mulf %246, %247 : vector<5x5xf32>
    %cst_147 = arith.constant dense<0xFF800000> : vector<5xf32>
    %249 = vector.multi_reduction <maximumf>, %248, %cst_147 [1] : vector<5x5xf32> to vector<5xf32>
    %250 = vector.shape_cast %249 : vector<5xf32> to vector<5x1xf32>
    %251 = vector.broadcast %250 : vector<5x1xf32> to vector<5x5xf32>
    %252 = arith.subf %248, %251 : vector<5x5xf32>
    %253 = math.exp %252 : vector<5x5xf32>
    %cst_148 = arith.constant dense<0.000000e+00> : vector<5xf32>
    %254 = vector.multi_reduction <add>, %253, %cst_148 [1] : vector<5x5xf32> to vector<5xf32>
    %255 = vector.shape_cast %254 : vector<5xf32> to vector<5x1xf32>
    %256 = tpu.reciprocal %255 {approx = true} : vector<5x1xf32> -> vector<5x1xf32>
    %257 = vector.broadcast %256 : vector<5x1xf32> to vector<5x5xf32>
    %258 = arith.mulf %253, %257 : vector<5x5xf32>
    %cst_149 = arith.constant dense<0.000000e+00> : vector<5x16xf32>
    %259 = tpu.matmul %258, %245, %cst_149 {dimension_numbers = #tpu.dot_dimension_numbers<[1], [0], [0], [1], [0, 0, 1, 1], [], []>} : vector<5x5xf32>, vector<5x16xf32>, vector<5x16xf32> -> vector<5x16xf32>
    %260 = arith.truncf %259 : vector<5x16xf32> to vector<5x16xbf16>
    %c0_150 = arith.constant 0 : index
    %c0_151 = arith.constant 0 : index
    %c0_152 = arith.constant 0 : index
    %c0_153 = arith.constant 0 : index
    %261 = vector.load %arg13[%c0_150, %c0_151, %c0_152, %c0_153] : memref<1x2x16x32xbf16, #tpu.memory_space<vmem>>, vector<1x1x16x32xbf16>
    %262 = vector.shape_cast %261 : vector<1x1x16x32xbf16> to vector<16x32xbf16>
    %cst_154 = arith.constant dense<0.000000e+00> : vector<5x32xf32>
    %263 = tpu.matmul %260, %262, %cst_154 {dimension_numbers = #tpu.dot_dimension_numbers<[1], [0], [0], [1], [0, 0, 1, 1], [], []>} : vector<5x16xbf16>, vector<16x32xbf16>, vector<5x32xf32> -> vector<5x32xf32>
    %264 = vector.extract_strided_slice %56 {offsets = [20, 0], sizes = [5, 16], strides = [1, 1]} : vector<40x16xf32> to vector<5x16xf32>
    %265 = vector.extract_strided_slice %63 {offsets = [20, 0], sizes = [5, 16], strides = [1, 1]} : vector<40x16xf32> to vector<5x16xf32>
    %266 = vector.extract_strided_slice %70 {offsets = [20, 0], sizes = [5, 16], strides = [1, 1]} : vector<40x16xf32> to vector<5x16xf32>
    %cst_155 = arith.constant dense<0.000000e+00> : vector<5x5xf32>
    %267 = tpu.matmul %264, %265, %cst_155 {dimension_numbers = #tpu.dot_dimension_numbers<[1], [1], [0], [0], [0, 0, 1, 0], [], []>} : vector<5x16xf32>, vector<5x16xf32>, vector<5x5xf32> -> vector<5x5xf32>
    %cst_156 = arith.constant 2.500000e-01 : f32
    %268 = vector.broadcast %cst_156 : f32 to vector<5x5xf32>
    %269 = arith.mulf %267, %268 : vector<5x5xf32>
    %cst_157 = arith.constant dense<0xFF800000> : vector<5xf32>
    %270 = vector.multi_reduction <maximumf>, %269, %cst_157 [1] : vector<5x5xf32> to vector<5xf32>
    %271 = vector.shape_cast %270 : vector<5xf32> to vector<5x1xf32>
    %272 = vector.broadcast %271 : vector<5x1xf32> to vector<5x5xf32>
    %273 = arith.subf %269, %272 : vector<5x5xf32>
    %274 = math.exp %273 : vector<5x5xf32>
    %cst_158 = arith.constant dense<0.000000e+00> : vector<5xf32>
    %275 = vector.multi_reduction <add>, %274, %cst_158 [1] : vector<5x5xf32> to vector<5xf32>
    %276 = vector.shape_cast %275 : vector<5xf32> to vector<5x1xf32>
    %277 = tpu.reciprocal %276 {approx = true} : vector<5x1xf32> -> vector<5x1xf32>
    %278 = vector.broadcast %277 : vector<5x1xf32> to vector<5x5xf32>
    %279 = arith.mulf %274, %278 : vector<5x5xf32>
    %cst_159 = arith.constant dense<0.000000e+00> : vector<5x16xf32>
    %280 = tpu.matmul %279, %266, %cst_159 {dimension_numbers = #tpu.dot_dimension_numbers<[1], [0], [0], [1], [0, 0, 1, 1], [], []>} : vector<5x5xf32>, vector<5x16xf32>, vector<5x16xf32> -> vector<5x16xf32>
    %281 = arith.truncf %280 : vector<5x16xf32> to vector<5x16xbf16>
    %c0_160 = arith.constant 0 : index
    %c1_161 = arith.constant 1 : index
    %c0_162 = arith.constant 0 : index
    %c0_163 = arith.constant 0 : index
    %282 = vector.load %arg13[%c0_160, %c1_161, %c0_162, %c0_163] : memref<1x2x16x32xbf16, #tpu.memory_space<vmem>>, vector<1x1x16x32xbf16>
    %283 = vector.shape_cast %282 : vector<1x1x16x32xbf16> to vector<16x32xbf16>
    %cst_164 = arith.constant dense<0.000000e+00> : vector<5x32xf32>
    %284 = tpu.matmul %281, %283, %cst_164 {dimension_numbers = #tpu.dot_dimension_numbers<[1], [0], [0], [1], [0, 0, 1, 1], [], []>} : vector<5x16xbf16>, vector<16x32xbf16>, vector<5x32xf32> -> vector<5x32xf32>
    %285 = arith.addf %263, %284 : vector<5x32xf32>
    %286 = vector.extract_strided_slice %35 {offsets = [25, 0], sizes = [5, 16], strides = [1, 1]} : vector<40x16xf32> to vector<5x16xf32>
    %287 = vector.extract_strided_slice %42 {offsets = [25, 0], sizes = [5, 16], strides = [1, 1]} : vector<40x16xf32> to vector<5x16xf32>
    %288 = vector.extract_strided_slice %49 {offsets = [25, 0], sizes = [5, 16], strides = [1, 1]} : vector<40x16xf32> to vector<5x16xf32>
    %cst_165 = arith.constant dense<0.000000e+00> : vector<5x5xf32>
    %289 = tpu.matmul %286, %287, %cst_165 {dimension_numbers = #tpu.dot_dimension_numbers<[1], [1], [0], [0], [0, 0, 1, 0], [], []>} : vector<5x16xf32>, vector<5x16xf32>, vector<5x5xf32> -> vector<5x5xf32>
    %cst_166 = arith.constant 2.500000e-01 : f32
    %290 = vector.broadcast %cst_166 : f32 to vector<5x5xf32>
    %291 = arith.mulf %289, %290 : vector<5x5xf32>
    %cst_167 = arith.constant dense<0xFF800000> : vector<5xf32>
    %292 = vector.multi_reduction <maximumf>, %291, %cst_167 [1] : vector<5x5xf32> to vector<5xf32>
    %293 = vector.shape_cast %292 : vector<5xf32> to vector<5x1xf32>
    %294 = vector.broadcast %293 : vector<5x1xf32> to vector<5x5xf32>
    %295 = arith.subf %291, %294 : vector<5x5xf32>
    %296 = math.exp %295 : vector<5x5xf32>
    %cst_168 = arith.constant dense<0.000000e+00> : vector<5xf32>
    %297 = vector.multi_reduction <add>, %296, %cst_168 [1] : vector<5x5xf32> to vector<5xf32>
    %298 = vector.shape_cast %297 : vector<5xf32> to vector<5x1xf32>
    %299 = tpu.reciprocal %298 {approx = true} : vector<5x1xf32> -> vector<5x1xf32>
    %300 = vector.broadcast %299 : vector<5x1xf32> to vector<5x5xf32>
    %301 = arith.mulf %296, %300 : vector<5x5xf32>
    %cst_169 = arith.constant dense<0.000000e+00> : vector<5x16xf32>
    %302 = tpu.matmul %301, %288, %cst_169 {dimension_numbers = #tpu.dot_dimension_numbers<[1], [0], [0], [1], [0, 0, 1, 1], [], []>} : vector<5x5xf32>, vector<5x16xf32>, vector<5x16xf32> -> vector<5x16xf32>
    %303 = arith.truncf %302 : vector<5x16xf32> to vector<5x16xbf16>
    %c0_170 = arith.constant 0 : index
    %c0_171 = arith.constant 0 : index
    %c0_172 = arith.constant 0 : index
    %c0_173 = arith.constant 0 : index
    %304 = vector.load %arg13[%c0_170, %c0_171, %c0_172, %c0_173] : memref<1x2x16x32xbf16, #tpu.memory_space<vmem>>, vector<1x1x16x32xbf16>
    %305 = vector.shape_cast %304 : vector<1x1x16x32xbf16> to vector<16x32xbf16>
    %cst_174 = arith.constant dense<0.000000e+00> : vector<5x32xf32>
    %306 = tpu.matmul %303, %305, %cst_174 {dimension_numbers = #tpu.dot_dimension_numbers<[1], [0], [0], [1], [0, 0, 1, 1], [], []>} : vector<5x16xbf16>, vector<16x32xbf16>, vector<5x32xf32> -> vector<5x32xf32>
    %307 = vector.extract_strided_slice %56 {offsets = [25, 0], sizes = [5, 16], strides = [1, 1]} : vector<40x16xf32> to vector<5x16xf32>
    %308 = vector.extract_strided_slice %63 {offsets = [25, 0], sizes = [5, 16], strides = [1, 1]} : vector<40x16xf32> to vector<5x16xf32>
    %309 = vector.extract_strided_slice %70 {offsets = [25, 0], sizes = [5, 16], strides = [1, 1]} : vector<40x16xf32> to vector<5x16xf32>
    %cst_175 = arith.constant dense<0.000000e+00> : vector<5x5xf32>
    %310 = tpu.matmul %307, %308, %cst_175 {dimension_numbers = #tpu.dot_dimension_numbers<[1], [1], [0], [0], [0, 0, 1, 0], [], []>} : vector<5x16xf32>, vector<5x16xf32>, vector<5x5xf32> -> vector<5x5xf32>
    %cst_176 = arith.constant 2.500000e-01 : f32
    %311 = vector.broadcast %cst_176 : f32 to vector<5x5xf32>
    %312 = arith.mulf %310, %311 : vector<5x5xf32>
    %cst_177 = arith.constant dense<0xFF800000> : vector<5xf32>
    %313 = vector.multi_reduction <maximumf>, %312, %cst_177 [1] : vector<5x5xf32> to vector<5xf32>
    %314 = vector.shape_cast %313 : vector<5xf32> to vector<5x1xf32>
    %315 = vector.broadcast %314 : vector<5x1xf32> to vector<5x5xf32>
    %316 = arith.subf %312, %315 : vector<5x5xf32>
    %317 = math.exp %316 : vector<5x5xf32>
    %cst_178 = arith.constant dense<0.000000e+00> : vector<5xf32>
    %318 = vector.multi_reduction <add>, %317, %cst_178 [1] : vector<5x5xf32> to vector<5xf32>
    %319 = vector.shape_cast %318 : vector<5xf32> to vector<5x1xf32>
    %320 = tpu.reciprocal %319 {approx = true} : vector<5x1xf32> -> vector<5x1xf32>
    %321 = vector.broadcast %320 : vector<5x1xf32> to vector<5x5xf32>
    %322 = arith.mulf %317, %321 : vector<5x5xf32>
    %cst_179 = arith.constant dense<0.000000e+00> : vector<5x16xf32>
    %323 = tpu.matmul %322, %309, %cst_179 {dimension_numbers = #tpu.dot_dimension_numbers<[1], [0], [0], [1], [0, 0, 1, 1], [], []>} : vector<5x5xf32>, vector<5x16xf32>, vector<5x16xf32> -> vector<5x16xf32>
    %324 = arith.truncf %323 : vector<5x16xf32> to vector<5x16xbf16>
    %c0_180 = arith.constant 0 : index
    %c1_181 = arith.constant 1 : index
    %c0_182 = arith.constant 0 : index
    %c0_183 = arith.constant 0 : index
    %325 = vector.load %arg13[%c0_180, %c1_181, %c0_182, %c0_183] : memref<1x2x16x32xbf16, #tpu.memory_space<vmem>>, vector<1x1x16x32xbf16>
    %326 = vector.shape_cast %325 : vector<1x1x16x32xbf16> to vector<16x32xbf16>
    %cst_184 = arith.constant dense<0.000000e+00> : vector<5x32xf32>
    %327 = tpu.matmul %324, %326, %cst_184 {dimension_numbers = #tpu.dot_dimension_numbers<[1], [0], [0], [1], [0, 0, 1, 1], [], []>} : vector<5x16xbf16>, vector<16x32xbf16>, vector<5x32xf32> -> vector<5x32xf32>
    %328 = arith.addf %306, %327 : vector<5x32xf32>
    %329 = vector.extract_strided_slice %35 {offsets = [30, 0], sizes = [5, 16], strides = [1, 1]} : vector<40x16xf32> to vector<5x16xf32>
    %330 = vector.extract_strided_slice %42 {offsets = [30, 0], sizes = [5, 16], strides = [1, 1]} : vector<40x16xf32> to vector<5x16xf32>
    %331 = vector.extract_strided_slice %49 {offsets = [30, 0], sizes = [5, 16], strides = [1, 1]} : vector<40x16xf32> to vector<5x16xf32>
    %cst_185 = arith.constant dense<0.000000e+00> : vector<5x5xf32>
    %332 = tpu.matmul %329, %330, %cst_185 {dimension_numbers = #tpu.dot_dimension_numbers<[1], [1], [0], [0], [0, 0, 1, 0], [], []>} : vector<5x16xf32>, vector<5x16xf32>, vector<5x5xf32> -> vector<5x5xf32>
    %cst_186 = arith.constant 2.500000e-01 : f32
    %333 = vector.broadcast %cst_186 : f32 to vector<5x5xf32>
    %334 = arith.mulf %332, %333 : vector<5x5xf32>
    %cst_187 = arith.constant dense<0xFF800000> : vector<5xf32>
    %335 = vector.multi_reduction <maximumf>, %334, %cst_187 [1] : vector<5x5xf32> to vector<5xf32>
    %336 = vector.shape_cast %335 : vector<5xf32> to vector<5x1xf32>
    %337 = vector.broadcast %336 : vector<5x1xf32> to vector<5x5xf32>
    %338 = arith.subf %334, %337 : vector<5x5xf32>
    %339 = math.exp %338 : vector<5x5xf32>
    %cst_188 = arith.constant dense<0.000000e+00> : vector<5xf32>
    %340 = vector.multi_reduction <add>, %339, %cst_188 [1] : vector<5x5xf32> to vector<5xf32>
    %341 = vector.shape_cast %340 : vector<5xf32> to vector<5x1xf32>
    %342 = tpu.reciprocal %341 {approx = true} : vector<5x1xf32> -> vector<5x1xf32>
    %343 = vector.broadcast %342 : vector<5x1xf32> to vector<5x5xf32>
    %344 = arith.mulf %339, %343 : vector<5x5xf32>
    %cst_189 = arith.constant dense<0.000000e+00> : vector<5x16xf32>
    %345 = tpu.matmul %344, %331, %cst_189 {dimension_numbers = #tpu.dot_dimension_numbers<[1], [0], [0], [1], [0, 0, 1, 1], [], []>} : vector<5x5xf32>, vector<5x16xf32>, vector<5x16xf32> -> vector<5x16xf32>
    %346 = arith.truncf %345 : vector<5x16xf32> to vector<5x16xbf16>
    %c0_190 = arith.constant 0 : index
    %c0_191 = arith.constant 0 : index
    %c0_192 = arith.constant 0 : index
    %c0_193 = arith.constant 0 : index
    %347 = vector.load %arg13[%c0_190, %c0_191, %c0_192, %c0_193] : memref<1x2x16x32xbf16, #tpu.memory_space<vmem>>, vector<1x1x16x32xbf16>
    %348 = vector.shape_cast %347 : vector<1x1x16x32xbf16> to vector<16x32xbf16>
    %cst_194 = arith.constant dense<0.000000e+00> : vector<5x32xf32>
    %349 = tpu.matmul %346, %348, %cst_194 {dimension_numbers = #tpu.dot_dimension_numbers<[1], [0], [0], [1], [0, 0, 1, 1], [], []>} : vector<5x16xbf16>, vector<16x32xbf16>, vector<5x32xf32> -> vector<5x32xf32>
    %350 = vector.extract_strided_slice %56 {offsets = [30, 0], sizes = [5, 16], strides = [1, 1]} : vector<40x16xf32> to vector<5x16xf32>
    %351 = vector.extract_strided_slice %63 {offsets = [30, 0], sizes = [5, 16], strides = [1, 1]} : vector<40x16xf32> to vector<5x16xf32>
    %352 = vector.extract_strided_slice %70 {offsets = [30, 0], sizes = [5, 16], strides = [1, 1]} : vector<40x16xf32> to vector<5x16xf32>
    %cst_195 = arith.constant dense<0.000000e+00> : vector<5x5xf32>
    %353 = tpu.matmul %350, %351, %cst_195 {dimension_numbers = #tpu.dot_dimension_numbers<[1], [1], [0], [0], [0, 0, 1, 0], [], []>} : vector<5x16xf32>, vector<5x16xf32>, vector<5x5xf32> -> vector<5x5xf32>
    %cst_196 = arith.constant 2.500000e-01 : f32
    %354 = vector.broadcast %cst_196 : f32 to vector<5x5xf32>
    %355 = arith.mulf %353, %354 : vector<5x5xf32>
    %cst_197 = arith.constant dense<0xFF800000> : vector<5xf32>
    %356 = vector.multi_reduction <maximumf>, %355, %cst_197 [1] : vector<5x5xf32> to vector<5xf32>
    %357 = vector.shape_cast %356 : vector<5xf32> to vector<5x1xf32>
    %358 = vector.broadcast %357 : vector<5x1xf32> to vector<5x5xf32>
    %359 = arith.subf %355, %358 : vector<5x5xf32>
    %360 = math.exp %359 : vector<5x5xf32>
    %cst_198 = arith.constant dense<0.000000e+00> : vector<5xf32>
    %361 = vector.multi_reduction <add>, %360, %cst_198 [1] : vector<5x5xf32> to vector<5xf32>
    %362 = vector.shape_cast %361 : vector<5xf32> to vector<5x1xf32>
    %363 = tpu.reciprocal %362 {approx = true} : vector<5x1xf32> -> vector<5x1xf32>
    %364 = vector.broadcast %363 : vector<5x1xf32> to vector<5x5xf32>
    %365 = arith.mulf %360, %364 : vector<5x5xf32>
    %cst_199 = arith.constant dense<0.000000e+00> : vector<5x16xf32>
    %366 = tpu.matmul %365, %352, %cst_199 {dimension_numbers = #tpu.dot_dimension_numbers<[1], [0], [0], [1], [0, 0, 1, 1], [], []>} : vector<5x5xf32>, vector<5x16xf32>, vector<5x16xf32> -> vector<5x16xf32>
    %367 = arith.truncf %366 : vector<5x16xf32> to vector<5x16xbf16>
    %c0_200 = arith.constant 0 : index
    %c1_201 = arith.constant 1 : index
    %c0_202 = arith.constant 0 : index
    %c0_203 = arith.constant 0 : index
    %368 = vector.load %arg13[%c0_200, %c1_201, %c0_202, %c0_203] : memref<1x2x16x32xbf16, #tpu.memory_space<vmem>>, vector<1x1x16x32xbf16>
    %369 = vector.shape_cast %368 : vector<1x1x16x32xbf16> to vector<16x32xbf16>
    %cst_204 = arith.constant dense<0.000000e+00> : vector<5x32xf32>
    %370 = tpu.matmul %367, %369, %cst_204 {dimension_numbers = #tpu.dot_dimension_numbers<[1], [0], [0], [1], [0, 0, 1, 1], [], []>} : vector<5x16xbf16>, vector<16x32xbf16>, vector<5x32xf32> -> vector<5x32xf32>
    %371 = arith.addf %349, %370 : vector<5x32xf32>
    %372 = vector.extract_strided_slice %35 {offsets = [35, 0], sizes = [5, 16], strides = [1, 1]} : vector<40x16xf32> to vector<5x16xf32>
    %373 = vector.extract_strided_slice %42 {offsets = [35, 0], sizes = [5, 16], strides = [1, 1]} : vector<40x16xf32> to vector<5x16xf32>
    %374 = vector.extract_strided_slice %49 {offsets = [35, 0], sizes = [5, 16], strides = [1, 1]} : vector<40x16xf32> to vector<5x16xf32>
    %cst_205 = arith.constant dense<0.000000e+00> : vector<5x5xf32>
    %375 = tpu.matmul %372, %373, %cst_205 {dimension_numbers = #tpu.dot_dimension_numbers<[1], [1], [0], [0], [0, 0, 1, 0], [], []>} : vector<5x16xf32>, vector<5x16xf32>, vector<5x5xf32> -> vector<5x5xf32>
    %cst_206 = arith.constant 2.500000e-01 : f32
    %376 = vector.broadcast %cst_206 : f32 to vector<5x5xf32>
    %377 = arith.mulf %375, %376 : vector<5x5xf32>
    %cst_207 = arith.constant dense<0xFF800000> : vector<5xf32>
    %378 = vector.multi_reduction <maximumf>, %377, %cst_207 [1] : vector<5x5xf32> to vector<5xf32>
    %379 = vector.shape_cast %378 : vector<5xf32> to vector<5x1xf32>
    %380 = vector.broadcast %379 : vector<5x1xf32> to vector<5x5xf32>
    %381 = arith.subf %377, %380 : vector<5x5xf32>
    %382 = math.exp %381 : vector<5x5xf32>
    %cst_208 = arith.constant dense<0.000000e+00> : vector<5xf32>
    %383 = vector.multi_reduction <add>, %382, %cst_208 [1] : vector<5x5xf32> to vector<5xf32>
    %384 = vector.shape_cast %383 : vector<5xf32> to vector<5x1xf32>
    %385 = tpu.reciprocal %384 {approx = true} : vector<5x1xf32> -> vector<5x1xf32>
    %386 = vector.broadcast %385 : vector<5x1xf32> to vector<5x5xf32>
    %387 = arith.mulf %382, %386 : vector<5x5xf32>
    %cst_209 = arith.constant dense<0.000000e+00> : vector<5x16xf32>
    %388 = tpu.matmul %387, %374, %cst_209 {dimension_numbers = #tpu.dot_dimension_numbers<[1], [0], [0], [1], [0, 0, 1, 1], [], []>} : vector<5x5xf32>, vector<5x16xf32>, vector<5x16xf32> -> vector<5x16xf32>
    %389 = arith.truncf %388 : vector<5x16xf32> to vector<5x16xbf16>
    %c0_210 = arith.constant 0 : index
    %c0_211 = arith.constant 0 : index
    %c0_212 = arith.constant 0 : index
    %c0_213 = arith.constant 0 : index
    %390 = vector.load %arg13[%c0_210, %c0_211, %c0_212, %c0_213] : memref<1x2x16x32xbf16, #tpu.memory_space<vmem>>, vector<1x1x16x32xbf16>
    %391 = vector.shape_cast %390 : vector<1x1x16x32xbf16> to vector<16x32xbf16>
    %cst_214 = arith.constant dense<0.000000e+00> : vector<5x32xf32>
    %392 = tpu.matmul %389, %391, %cst_214 {dimension_numbers = #tpu.dot_dimension_numbers<[1], [0], [0], [1], [0, 0, 1, 1], [], []>} : vector<5x16xbf16>, vector<16x32xbf16>, vector<5x32xf32> -> vector<5x32xf32>
    %393 = vector.extract_strided_slice %56 {offsets = [35, 0], sizes = [5, 16], strides = [1, 1]} : vector<40x16xf32> to vector<5x16xf32>
    %394 = vector.extract_strided_slice %63 {offsets = [35, 0], sizes = [5, 16], strides = [1, 1]} : vector<40x16xf32> to vector<5x16xf32>
    %395 = vector.extract_strided_slice %70 {offsets = [35, 0], sizes = [5, 16], strides = [1, 1]} : vector<40x16xf32> to vector<5x16xf32>
    %cst_215 = arith.constant dense<0.000000e+00> : vector<5x5xf32>
    %396 = tpu.matmul %393, %394, %cst_215 {dimension_numbers = #tpu.dot_dimension_numbers<[1], [1], [0], [0], [0, 0, 1, 0], [], []>} : vector<5x16xf32>, vector<5x16xf32>, vector<5x5xf32> -> vector<5x5xf32>
    %cst_216 = arith.constant 2.500000e-01 : f32
    %397 = vector.broadcast %cst_216 : f32 to vector<5x5xf32>
    %398 = arith.mulf %396, %397 : vector<5x5xf32>
    %cst_217 = arith.constant dense<0xFF800000> : vector<5xf32>
    %399 = vector.multi_reduction <maximumf>, %398, %cst_217 [1] : vector<5x5xf32> to vector<5xf32>
    %400 = vector.shape_cast %399 : vector<5xf32> to vector<5x1xf32>
    %401 = vector.broadcast %400 : vector<5x1xf32> to vector<5x5xf32>
    %402 = arith.subf %398, %401 : vector<5x5xf32>
    %403 = math.exp %402 : vector<5x5xf32>
    %cst_218 = arith.constant dense<0.000000e+00> : vector<5xf32>
    %404 = vector.multi_reduction <add>, %403, %cst_218 [1] : vector<5x5xf32> to vector<5xf32>
    %405 = vector.shape_cast %404 : vector<5xf32> to vector<5x1xf32>
    %406 = tpu.reciprocal %405 {approx = true} : vector<5x1xf32> -> vector<5x1xf32>
    %407 = vector.broadcast %406 : vector<5x1xf32> to vector<5x5xf32>
    %408 = arith.mulf %403, %407 : vector<5x5xf32>
    %cst_219 = arith.constant dense<0.000000e+00> : vector<5x16xf32>
    %409 = tpu.matmul %408, %395, %cst_219 {dimension_numbers = #tpu.dot_dimension_numbers<[1], [0], [0], [1], [0, 0, 1, 1], [], []>} : vector<5x5xf32>, vector<5x16xf32>, vector<5x16xf32> -> vector<5x16xf32>
    %410 = arith.truncf %409 : vector<5x16xf32> to vector<5x16xbf16>
    %c0_220 = arith.constant 0 : index
    %c1_221 = arith.constant 1 : index
    %c0_222 = arith.constant 0 : index
    %c0_223 = arith.constant 0 : index
    %411 = vector.load %arg13[%c0_220, %c1_221, %c0_222, %c0_223] : memref<1x2x16x32xbf16, #tpu.memory_space<vmem>>, vector<1x1x16x32xbf16>
    %412 = vector.shape_cast %411 : vector<1x1x16x32xbf16> to vector<16x32xbf16>
    %cst_224 = arith.constant dense<0.000000e+00> : vector<5x32xf32>
    %413 = tpu.matmul %410, %412, %cst_224 {dimension_numbers = #tpu.dot_dimension_numbers<[1], [0], [0], [1], [0, 0, 1, 1], [], []>} : vector<5x16xbf16>, vector<16x32xbf16>, vector<5x32xf32> -> vector<5x32xf32>
    %414 = arith.addf %392, %413 : vector<5x32xf32>
    %415 = tpu.concatenate %113, %156, %199, %242, %285, %328, %371, %414 in 0 : vector<5x32xf32>, vector<5x32xf32>, vector<5x32xf32>, vector<5x32xf32>, vector<5x32xf32>, vector<5x32xf32>, vector<5x32xf32>, vector<5x32xf32> -> vector<40x32xf32>
    %416 = arith.addf %3, %415 : vector<40x32xf32>
    %c0_225 = arith.constant 0 : index
    %c0_226 = arith.constant 0 : index
    %c0_227 = arith.constant 0 : index
    %417 = vector.load %arg14[%c0_225, %c0_226, %c0_227] : memref<1x1x32xf32, #tpu.memory_space<vmem>>, vector<1x1x32xf32>
    %418 = vector.shape_cast %417 : vector<1x1x32xf32> to vector<1x32xf32>
    %419 = vector.broadcast %418 : vector<1x32xf32> to vector<40x32xf32>
    %420 = arith.addf %416, %419 : vector<40x32xf32>
    %c0_228 = arith.constant 0 : index
    %c0_229 = arith.constant 0 : index
    %c0_230 = arith.constant 0 : index
    %421 = vector.load %arg15[%c0_228, %c0_229, %c0_230] : memref<1x1x32xf32, #tpu.memory_space<vmem>>, vector<1x1x32xf32>
    %422 = vector.shape_cast %421 : vector<1x1x32xf32> to vector<1x32xf32>
    %c0_231 = arith.constant 0 : index
    %c0_232 = arith.constant 0 : index
    %c0_233 = arith.constant 0 : index
    %423 = vector.load %arg16[%c0_231, %c0_232, %c0_233] : memref<1x1x32xf32, #tpu.memory_space<vmem>>, vector<1x1x32xf32>
    %424 = vector.shape_cast %423 : vector<1x1x32xf32> to vector<1x32xf32>
    %cst_234 = arith.constant dense<0.000000e+00> : vector<40xf32>
    %425 = vector.multi_reduction <add>, %420, %cst_234 [1] : vector<40x32xf32> to vector<40xf32>
    %426 = vector.shape_cast %425 : vector<40xf32> to vector<40x1xf32>
    %cst_235 = arith.constant 3.200000e+01 : f32
    %427 = vector.broadcast %cst_235 : f32 to vector<40x1xf32>
    %428 = arith.divf %426, %427 : vector<40x1xf32>
    %429 = vector.broadcast %428 : vector<40x1xf32> to vector<40x32xf32>
    %430 = arith.subf %420, %429 : vector<40x32xf32>
    %431 = arith.mulf %430, %430 : vector<40x32xf32>
    %cst_236 = arith.constant dense<0.000000e+00> : vector<40xf32>
    %432 = vector.multi_reduction <add>, %431, %cst_236 [1] : vector<40x32xf32> to vector<40xf32>
    %433 = vector.shape_cast %432 : vector<40xf32> to vector<40x1xf32>
    %cst_237 = arith.constant 3.200000e+01 : f32
    %434 = vector.broadcast %cst_237 : f32 to vector<40x1xf32>
    %435 = arith.divf %433, %434 : vector<40x1xf32>
    %cst_238 = arith.constant 9.99999997E-7 : f32
    %436 = vector.broadcast %cst_238 : f32 to vector<40x1xf32>
    %437 = arith.addf %435, %436 : vector<40x1xf32>
    %438 = math.rsqrt %437 : vector<40x1xf32>
    %439 = vector.broadcast %438 : vector<40x1xf32> to vector<40x32xf32>
    %440 = arith.mulf %430, %439 : vector<40x32xf32>
    %441 = vector.broadcast %422 : vector<1x32xf32> to vector<40x32xf32>
    %442 = arith.mulf %440, %441 : vector<40x32xf32>
    %443 = vector.broadcast %424 : vector<1x32xf32> to vector<40x32xf32>
    %444 = arith.addf %442, %443 : vector<40x32xf32>
    %445 = arith.truncf %444 : vector<40x32xf32> to vector<40x32xbf16>
    %c0_239 = arith.constant 0 : index
    %c0_240 = arith.constant 0 : index
    %c0_241 = arith.constant 0 : index
    %446 = vector.load %arg17[%c0_239, %c0_240, %c0_241] : memref<1x32x64xbf16, #tpu.memory_space<vmem>>, vector<1x32x64xbf16>
    %447 = vector.shape_cast %446 : vector<1x32x64xbf16> to vector<32x64xbf16>
    %cst_242 = arith.constant dense<0.000000e+00> : vector<40x64xf32>
    %448 = tpu.matmul %445, %447, %cst_242 {dimension_numbers = #tpu.dot_dimension_numbers<[1], [0], [0], [1], [0, 0, 1, 1], [], []>} : vector<40x32xbf16>, vector<32x64xbf16>, vector<40x64xf32> -> vector<40x64xf32>
    %c0_243 = arith.constant 0 : index
    %c0_244 = arith.constant 0 : index
    %c0_245 = arith.constant 0 : index
    %449 = vector.load %arg18[%c0_243, %c0_244, %c0_245] : memref<1x1x64xf32, #tpu.memory_space<vmem>>, vector<1x1x64xf32>
    %450 = vector.shape_cast %449 : vector<1x1x64xf32> to vector<1x64xf32>
    %451 = vector.broadcast %450 : vector<1x64xf32> to vector<40x64xf32>
    %452 = arith.addf %448, %451 : vector<40x64xf32>
    %cst_246 = arith.constant 5.000000e-01 : f32
    %453 = vector.broadcast %cst_246 : f32 to vector<40x64xf32>
    %454 = arith.mulf %453, %452 : vector<40x64xf32>
    %cst_247 = arith.constant 0.707106769 : f32
    %455 = vector.broadcast %cst_247 : f32 to vector<40x64xf32>
    %456 = arith.mulf %452, %455 : vector<40x64xf32>
    %457 = math.absf %456 : vector<40x64xf32>
    %cst_248 = arith.constant 0.327591091 : f32
    %458 = vector.broadcast %cst_248 : f32 to vector<40x64xf32>
    %459 = arith.mulf %458, %457 : vector<40x64xf32>
    %cst_249 = arith.constant 1.000000e+00 : f32
    %460 = vector.broadcast %cst_249 : f32 to vector<40x64xf32>
    %461 = arith.addf %460, %459 : vector<40x64xf32>
    %cst_250 = arith.constant 1.000000e+00 : f32
    %462 = vector.broadcast %cst_250 : f32 to vector<40x64xf32>
    %463 = arith.divf %462, %461 : vector<40x64xf32>
    %cst_251 = arith.constant 1.06140542 : f32
    %464 = vector.broadcast %cst_251 : f32 to vector<40x64xf32>
    %465 = arith.mulf %464, %463 : vector<40x64xf32>
    %cst_252 = arith.constant -1.45315206 : f32
    %466 = vector.broadcast %cst_252 : f32 to vector<40x64xf32>
    %467 = arith.addf %465, %466 : vector<40x64xf32>
    %468 = arith.mulf %467, %463 : vector<40x64xf32>
    %cst_253 = arith.constant 1.42141378 : f32
    %469 = vector.broadcast %cst_253 : f32 to vector<40x64xf32>
    %470 = arith.addf %468, %469 : vector<40x64xf32>
    %471 = arith.mulf %470, %463 : vector<40x64xf32>
    %cst_254 = arith.constant -0.284496725 : f32
    %472 = vector.broadcast %cst_254 : f32 to vector<40x64xf32>
    %473 = arith.addf %471, %472 : vector<40x64xf32>
    %474 = arith.mulf %473, %463 : vector<40x64xf32>
    %cst_255 = arith.constant 0.254829586 : f32
    %475 = vector.broadcast %cst_255 : f32 to vector<40x64xf32>
    %476 = arith.addf %474, %475 : vector<40x64xf32>
    %477 = arith.mulf %476, %463 : vector<40x64xf32>
    %cst_256 = arith.constant 0.000000e+00 : f32
    %478 = vector.broadcast %cst_256 : f32 to vector<40x64xf32>
    %479 = arith.subf %478, %457 : vector<40x64xf32>
    %480 = arith.mulf %479, %457 : vector<40x64xf32>
    %481 = math.exp %480 : vector<40x64xf32>
    %482 = arith.mulf %477, %481 : vector<40x64xf32>
    %cst_257 = arith.constant 1.000000e+00 : f32
    %483 = vector.broadcast %cst_257 : f32 to vector<40x64xf32>
    %484 = arith.subf %483, %482 : vector<40x64xf32>
    %cst_258 = arith.constant 0.000000e+00 : f32
    %485 = vector.broadcast %cst_258 : f32 to vector<40x64xf32>
    %486 = arith.cmpf olt, %456, %485 : vector<40x64xf32>
    %cst_259 = arith.constant 0.000000e+00 : f32
    %487 = vector.broadcast %cst_259 : f32 to vector<40x64xf32>
    %488 = arith.subf %487, %484 : vector<40x64xf32>
    %489 = arith.select %486, %488, %484 : vector<40x64xi1>, vector<40x64xf32>
    %cst_260 = arith.constant 1.000000e+00 : f32
    %490 = vector.broadcast %cst_260 : f32 to vector<40x64xf32>
    %491 = arith.addf %490, %489 : vector<40x64xf32>
    %492 = arith.mulf %454, %491 : vector<40x64xf32>
    %493 = arith.truncf %492 : vector<40x64xf32> to vector<40x64xbf16>
    %c0_261 = arith.constant 0 : index
    %c0_262 = arith.constant 0 : index
    %c0_263 = arith.constant 0 : index
    %494 = vector.load %arg19[%c0_261, %c0_262, %c0_263] : memref<1x64x32xbf16, #tpu.memory_space<vmem>>, vector<1x64x32xbf16>
    %495 = vector.shape_cast %494 : vector<1x64x32xbf16> to vector<64x32xbf16>
    %cst_264 = arith.constant dense<0.000000e+00> : vector<40x32xf32>
    %496 = tpu.matmul %493, %495, %cst_264 {dimension_numbers = #tpu.dot_dimension_numbers<[1], [0], [0], [1], [0, 0, 1, 1], [], []>} : vector<40x64xbf16>, vector<64x32xbf16>, vector<40x32xf32> -> vector<40x32xf32>
    %497 = arith.addf %420, %496 : vector<40x32xf32>
    %c0_265 = arith.constant 0 : index
    %c0_266 = arith.constant 0 : index
    %c0_267 = arith.constant 0 : index
    %498 = vector.load %arg20[%c0_265, %c0_266, %c0_267] : memref<1x1x32xf32, #tpu.memory_space<vmem>>, vector<1x1x32xf32>
    %499 = vector.shape_cast %498 : vector<1x1x32xf32> to vector<1x32xf32>
    %500 = vector.broadcast %499 : vector<1x32xf32> to vector<40x32xf32>
    %501 = arith.addf %497, %500 : vector<40x32xf32>
    %c0_268 = arith.constant 0 : index
    %c0_269 = arith.constant 0 : index
    %502 = vector.load %arg28[%c0_268, %c0_269] : memref<40x32xf32, #tpu.memory_space<vmem>>, vector<40x32xf32>
    tpu.vector_store %arg28[%c0_268, %c0_269], %501 {strides = array<i32>} : memref<40x32xf32, #tpu.memory_space<vmem>>, vector<40x32xf32>,
    %c1_i32 = arith.constant 1 : i32
    %503 = arith.cmpi eq, %arg1, %c1_i32 : i32
    %504 = arith.extui %503 : i1 to i32
    %c0_i32_270 = arith.constant 0 : i32
    %505 = arith.cmpi ne, %504, %c0_i32_270 : i32
    scf.if %505 {
      %506 = tpu.iota {dimensions = array<i32: 0>} : vector<8x40xi32>
      %507 = tpu.iota {dimensions = array<i32: 1>} : vector<8x40xi32>
      %c5_i32 = arith.constant 5 : i32
      %508 = vector.broadcast %c5_i32 : i32 to vector<8x40xi32>
      %509 = arith.muli %506, %508 : vector<8x40xi32>
      %510 = arith.cmpi eq, %507, %509 : vector<8x40xi32>
      %511 = arith.extui %510 : vector<8x40xi1> to vector<8x40xi32>
      %512 = arith.sitofp %511 : vector<8x40xi32> to vector<8x40xf32>
      %cst_271 = arith.constant dense<0.000000e+00> : vector<8x32xf32>
      %513 = tpu.matmul %512, %501, %cst_271 {dimension_numbers = #tpu.dot_dimension_numbers<[1], [0], [0], [1], [0, 0, 1, 1], [], []>} : vector<8x40xf32>, vector<40x32xf32>, vector<8x32xf32> -> vector<8x32xf32>
      %c0_272 = arith.constant 0 : index
      %c0_273 = arith.constant 0 : index
      %514 = vector.load %arg21[%c0_272, %c0_273] : memref<1x32xf32, #tpu.memory_space<vmem>>, vector<1x32xf32>
      %c0_274 = arith.constant 0 : index
      %c0_275 = arith.constant 0 : index
      %515 = vector.load %arg22[%c0_274, %c0_275] : memref<1x32xf32, #tpu.memory_space<vmem>>, vector<1x32xf32>
      %cst_276 = arith.constant dense<0.000000e+00> : vector<8xf32>
      %516 = vector.multi_reduction <add>, %513, %cst_276 [1] : vector<8x32xf32> to vector<8xf32>
      %517 = vector.shape_cast %516 : vector<8xf32> to vector<8x1xf32>
      %cst_277 = arith.constant 3.200000e+01 : f32
      %518 = vector.broadcast %cst_277 : f32 to vector<8x1xf32>
      %519 = arith.divf %517, %518 : vector<8x1xf32>
      %520 = vector.broadcast %519 : vector<8x1xf32> to vector<8x32xf32>
      %521 = arith.subf %513, %520 : vector<8x32xf32>
      %522 = arith.mulf %521, %521 : vector<8x32xf32>
      %cst_278 = arith.constant dense<0.000000e+00> : vector<8xf32>
      %523 = vector.multi_reduction <add>, %522, %cst_278 [1] : vector<8x32xf32> to vector<8xf32>
      %524 = vector.shape_cast %523 : vector<8xf32> to vector<8x1xf32>
      %cst_279 = arith.constant 3.200000e+01 : f32
      %525 = vector.broadcast %cst_279 : f32 to vector<8x1xf32>
      %526 = arith.divf %524, %525 : vector<8x1xf32>
      %cst_280 = arith.constant 9.99999997E-7 : f32
      %527 = vector.broadcast %cst_280 : f32 to vector<8x1xf32>
      %528 = arith.addf %526, %527 : vector<8x1xf32>
      %529 = math.rsqrt %528 : vector<8x1xf32>
      %530 = vector.broadcast %529 : vector<8x1xf32> to vector<8x32xf32>
      %531 = arith.mulf %521, %530 : vector<8x32xf32>
      %532 = vector.broadcast %514 : vector<1x32xf32> to vector<8x32xf32>
      %533 = arith.mulf %531, %532 : vector<8x32xf32>
      %534 = vector.broadcast %515 : vector<1x32xf32> to vector<8x32xf32>
      %535 = arith.addf %533, %534 : vector<8x32xf32>
      %536 = vector.extract_strided_slice %535 {offsets = [0, 0], sizes = [4, 32], strides = [1, 1]} : vector<8x32xf32> to vector<4x32xf32>
      %c0_281 = arith.constant 0 : index
      %c0_282 = arith.constant 0 : index
      %537 = vector.load %arg23[%c0_281, %c0_282] : memref<1x32xf32, #tpu.memory_space<vmem>>, vector<1x32xf32>
      %cst_283 = arith.constant dense<0.000000e+00> : vector<1x4xf32>
      %538 = tpu.matmul %537, %536, %cst_283 {dimension_numbers = #tpu.dot_dimension_numbers<[1], [1], [0], [0], [0, 0, 1, 0], [], []>} : vector<1x32xf32>, vector<4x32xf32>, vector<1x4xf32> -> vector<1x4xf32>
      %c0_284 = arith.constant 0 : index
      %c0_285 = arith.constant 0 : index
      %539 = vector.load %arg24[%c0_284, %c0_285] : memref<1x1xf32, #tpu.memory_space<vmem>>, vector<1x1xf32>
      %540 = vector.broadcast %539 : vector<1x1xf32> to vector<1x4xf32>
      %541 = arith.addf %538, %540 : vector<1x4xf32>
      %cst_286 = arith.constant dense<0xFF800000> : vector<1xf32>
      %542 = vector.multi_reduction <maximumf>, %541, %cst_286 [1] : vector<1x4xf32> to vector<1xf32>
      %543 = vector.shape_cast %542 : vector<1xf32> to vector<1x1xf32>
      %544 = vector.broadcast %543 : vector<1x1xf32> to vector<1x4xf32>
      %545 = arith.subf %541, %544 : vector<1x4xf32>
      %546 = math.exp %545 : vector<1x4xf32>
      %cst_287 = arith.constant dense<0.000000e+00> : vector<1xf32>
      %547 = vector.multi_reduction <add>, %546, %cst_287 [1] : vector<1x4xf32> to vector<1xf32>
      %548 = vector.shape_cast %547 : vector<1xf32> to vector<1x1xf32>
      %549 = vector.broadcast %548 : vector<1x1xf32> to vector<1x4xf32>
      %550 = arith.divf %546, %549 : vector<1x4xf32>
      %cst_288 = arith.constant dense<0.000000e+00> : vector<1x32xf32>
      %551 = tpu.matmul %550, %536, %cst_288 {dimension_numbers = #tpu.dot_dimension_numbers<[1], [0], [0], [1], [0, 0, 1, 1], [], []>} : vector<1x4xf32>, vector<4x32xf32>, vector<1x32xf32> -> vector<1x32xf32>
      %c0_289 = arith.constant 0 : index
      %c0_290 = arith.constant 0 : index
      %552 = vector.load %arg25[%c0_289, %c0_290] : memref<32x2xf32, #tpu.memory_space<vmem>>, vector<32x2xf32>
      %cst_291 = arith.constant dense<0.000000e+00> : vector<1x2xf32>
      %553 = tpu.matmul %551, %552, %cst_291 {dimension_numbers = #tpu.dot_dimension_numbers<[1], [0], [0], [1], [0, 0, 1, 1], [], []>} : vector<1x32xf32>, vector<32x2xf32>, vector<1x2xf32> -> vector<1x2xf32>
      %c0_292 = arith.constant 0 : index
      %c0_293 = arith.constant 0 : index
      %554 = vector.load %arg26[%c0_292, %c0_293] : memref<1x2xf32, #tpu.memory_space<vmem>>, vector<1x2xf32>
      %555 = arith.addf %553, %554 : vector<1x2xf32>
      %cst_294 = arith.constant 0.000000e+00 : f32
      %556 = vector.broadcast %cst_294 : f32 to vector<1x122xf32>
      %557 = tpu.concatenate %555, %550, %556 in 1 : vector<1x2xf32>, vector<1x4xf32>, vector<1x122xf32> -> vector<1x128xf32>
      %558 = vector.extract_strided_slice %535 {offsets = [4, 0], sizes = [4, 32], strides = [1, 1]} : vector<8x32xf32> to vector<4x32xf32>
      %c0_295 = arith.constant 0 : index
      %c0_296 = arith.constant 0 : index
      %559 = vector.load %arg23[%c0_295, %c0_296] : memref<1x32xf32, #tpu.memory_space<vmem>>, vector<1x32xf32>
      %cst_297 = arith.constant dense<0.000000e+00> : vector<1x4xf32>
      %560 = tpu.matmul %559, %558, %cst_297 {dimension_numbers = #tpu.dot_dimension_numbers<[1], [1], [0], [0], [0, 0, 1, 0], [], []>} : vector<1x32xf32>, vector<4x32xf32>, vector<1x4xf32> -> vector<1x4xf32>
      %c0_298 = arith.constant 0 : index
      %c0_299 = arith.constant 0 : index
      %561 = vector.load %arg24[%c0_298, %c0_299] : memref<1x1xf32, #tpu.memory_space<vmem>>, vector<1x1xf32>
      %562 = vector.broadcast %561 : vector<1x1xf32> to vector<1x4xf32>
      %563 = arith.addf %560, %562 : vector<1x4xf32>
      %cst_300 = arith.constant dense<0xFF800000> : vector<1xf32>
      %564 = vector.multi_reduction <maximumf>, %563, %cst_300 [1] : vector<1x4xf32> to vector<1xf32>
      %565 = vector.shape_cast %564 : vector<1xf32> to vector<1x1xf32>
      %566 = vector.broadcast %565 : vector<1x1xf32> to vector<1x4xf32>
      %567 = arith.subf %563, %566 : vector<1x4xf32>
      %568 = math.exp %567 : vector<1x4xf32>
      %cst_301 = arith.constant dense<0.000000e+00> : vector<1xf32>
      %569 = vector.multi_reduction <add>, %568, %cst_301 [1] : vector<1x4xf32> to vector<1xf32>
      %570 = vector.shape_cast %569 : vector<1xf32> to vector<1x1xf32>
      %571 = vector.broadcast %570 : vector<1x1xf32> to vector<1x4xf32>
      %572 = arith.divf %568, %571 : vector<1x4xf32>
      %cst_302 = arith.constant dense<0.000000e+00> : vector<1x32xf32>
      %573 = tpu.matmul %572, %558, %cst_302 {dimension_numbers = #tpu.dot_dimension_numbers<[1], [0], [0], [1], [0, 0, 1, 1], [], []>} : vector<1x4xf32>, vector<4x32xf32>, vector<1x32xf32> -> vector<1x32xf32>
      %c0_303 = arith.constant 0 : index
      %c0_304 = arith.constant 0 : index
      %574 = vector.load %arg25[%c0_303, %c0_304] : memref<32x2xf32, #tpu.memory_space<vmem>>, vector<32x2xf32>
      %cst_305 = arith.constant dense<0.000000e+00> : vector<1x2xf32>
      %575 = tpu.matmul %573, %574, %cst_305 {dimension_numbers = #tpu.dot_dimension_numbers<[1], [0], [0], [1], [0, 0, 1, 1], [], []>} : vector<1x32xf32>, vector<32x2xf32>, vector<1x2xf32> -> vector<1x2xf32>
      %c0_306 = arith.constant 0 : index
      %c0_307 = arith.constant 0 : index
      %576 = vector.load %arg26[%c0_306, %c0_307] : memref<1x2xf32, #tpu.memory_space<vmem>>, vector<1x2xf32>
      %577 = arith.addf %575, %576 : vector<1x2xf32>
      %cst_308 = arith.constant 0.000000e+00 : f32
      %578 = vector.broadcast %cst_308 : f32 to vector<1x122xf32>
      %579 = tpu.concatenate %577, %572, %578 in 1 : vector<1x2xf32>, vector<1x4xf32>, vector<1x122xf32> -> vector<1x128xf32>
      %580 = tpu.concatenate %557, %579 in 0 : vector<1x128xf32>, vector<1x128xf32> -> vector<2x128xf32>
      %c0_309 = arith.constant 0 : index
      %c0_310 = arith.constant 0 : index
      %c0_311 = arith.constant 0 : index
      %581 = vector.load %arg27[%c0_309, %c0_310, %c0_311] : memref<1x2x128xf32, #tpu.memory_space<vmem>>, vector<1x2x128xf32>
      %582 = vector.shape_cast %581 : vector<1x2x128xf32> to vector<2x128xf32>
      %583 = vector.shape_cast %580 : vector<2x128xf32> to vector<1x2x128xf32>
      tpu.vector_store %arg27[%c0_309, %c0_310, %c0_311], %583 {strides = array<i32>} : memref<1x2x128xf32, #tpu.memory_space<vmem>>, vector<1x2x128xf32>,
    } else {
    }
    return
  }
  func.func @transform_0(%arg0: i32, %arg1: i32) -> (i32, i32, i32) {
    %c0_i32 = arith.constant 0 : i32
    %c0_i32_0 = arith.constant 0 : i32
    %c0_i32_1 = arith.constant 0 : i32
    return %arg0, %c0_i32, %c0_i32_0 : i32, i32, i32
  }
  func.func @transform_1(%arg0: i32, %arg1: i32) -> (i32, i32) {
    %c0_i32 = arith.constant 0 : i32
    %c0_i32_0 = arith.constant 0 : i32
    %c0_i32_1 = arith.constant 0 : i32
    return %c0_i32, %c0_i32_0 : i32, i32
  }
  func.func @transform_2(%arg0: i32, %arg1: i32) -> (i32, i32) {
    %c0_i32 = arith.constant 0 : i32
    %c0_i32_0 = arith.constant 0 : i32
    %c0_i32_1 = arith.constant 0 : i32
    return %c0_i32, %c0_i32_0 : i32, i32
  }
  func.func @transform_3(%arg0: i32, %arg1: i32) -> (i32, i32, i32) {
    %c0_i32 = arith.constant 0 : i32
    %c0_i32_0 = arith.constant 0 : i32
    %c0_i32_1 = arith.constant 0 : i32
    return %arg1, %c0_i32, %c0_i32_0 : i32, i32, i32
  }
  func.func @transform_4(%arg0: i32, %arg1: i32) -> (i32, i32, i32) {
    %c0_i32 = arith.constant 0 : i32
    %c0_i32_0 = arith.constant 0 : i32
    %c0_i32_1 = arith.constant 0 : i32
    return %arg1, %c0_i32, %c0_i32_0 : i32, i32, i32
  }
  func.func @transform_5(%arg0: i32, %arg1: i32) -> (i32, i32, i32, i32) {
    %c0_i32 = arith.constant 0 : i32
    %c0_i32_0 = arith.constant 0 : i32
    %c0_i32_1 = arith.constant 0 : i32
    %c0_i32_2 = arith.constant 0 : i32
    return %arg1, %c0_i32, %c0_i32_0, %c0_i32_1 : i32, i32, i32, i32
  }
  func.func @transform_6(%arg0: i32, %arg1: i32) -> (i32, i32, i32, i32) {
    %c0_i32 = arith.constant 0 : i32
    %c0_i32_0 = arith.constant 0 : i32
    %c0_i32_1 = arith.constant 0 : i32
    %c0_i32_2 = arith.constant 0 : i32
    return %arg1, %c0_i32, %c0_i32_0, %c0_i32_1 : i32, i32, i32, i32
  }
  func.func @transform_7(%arg0: i32, %arg1: i32) -> (i32, i32, i32, i32) {
    %c0_i32 = arith.constant 0 : i32
    %c0_i32_0 = arith.constant 0 : i32
    %c0_i32_1 = arith.constant 0 : i32
    %c0_i32_2 = arith.constant 0 : i32
    return %arg1, %c0_i32, %c0_i32_0, %c0_i32_1 : i32, i32, i32, i32
  }
  func.func @transform_8(%arg0: i32, %arg1: i32) -> (i32, i32, i32, i32) {
    %c0_i32 = arith.constant 0 : i32
    %c0_i32_0 = arith.constant 0 : i32
    %c0_i32_1 = arith.constant 0 : i32
    %c0_i32_2 = arith.constant 0 : i32
    return %arg1, %c0_i32, %c0_i32_0, %c0_i32_1 : i32, i32, i32, i32
  }
  func.func @transform_9(%arg0: i32, %arg1: i32) -> (i32, i32, i32, i32) {
    %c0_i32 = arith.constant 0 : i32
    %c0_i32_0 = arith.constant 0 : i32
    %c0_i32_1 = arith.constant 0 : i32
    %c0_i32_2 = arith.constant 0 : i32
    return %arg1, %c0_i32, %c0_i32_0, %c0_i32_1 : i32, i32, i32, i32
  }
  func.func @transform_10(%arg0: i32, %arg1: i32) -> (i32, i32, i32, i32) {
    %c0_i32 = arith.constant 0 : i32
    %c0_i32_0 = arith.constant 0 : i32
    %c0_i32_1 = arith.constant 0 : i32
    %c0_i32_2 = arith.constant 0 : i32
    return %arg1, %c0_i32, %c0_i32_0, %c0_i32_1 : i32, i32, i32, i32
  }
  func.func @transform_11(%arg0: i32, %arg1: i32) -> (i32, i32, i32, i32) {
    %c0_i32 = arith.constant 0 : i32
    %c0_i32_0 = arith.constant 0 : i32
    %c0_i32_1 = arith.constant 0 : i32
    %c0_i32_2 = arith.constant 0 : i32
    return %arg1, %c0_i32, %c0_i32_0, %c0_i32_1 : i32, i32, i32, i32
  }
  func.func @transform_12(%arg0: i32, %arg1: i32) -> (i32, i32, i32) {
    %c0_i32 = arith.constant 0 : i32
    %c0_i32_0 = arith.constant 0 : i32
    %c0_i32_1 = arith.constant 0 : i32
    return %arg1, %c0_i32, %c0_i32_0 : i32, i32, i32
  }
  func.func @transform_13(%arg0: i32, %arg1: i32) -> (i32, i32, i32) {
    %c0_i32 = arith.constant 0 : i32
    %c0_i32_0 = arith.constant 0 : i32
    %c0_i32_1 = arith.constant 0 : i32
    return %arg1, %c0_i32, %c0_i32_0 : i32, i32, i32
  }
  func.func @transform_14(%arg0: i32, %arg1: i32) -> (i32, i32, i32) {
    %c0_i32 = arith.constant 0 : i32
    %c0_i32_0 = arith.constant 0 : i32
    %c0_i32_1 = arith.constant 0 : i32
    return %arg1, %c0_i32, %c0_i32_0 : i32, i32, i32
  }
  func.func @transform_15(%arg0: i32, %arg1: i32) -> (i32, i32, i32) {
    %c0_i32 = arith.constant 0 : i32
    %c0_i32_0 = arith.constant 0 : i32
    %c0_i32_1 = arith.constant 0 : i32
    return %arg1, %c0_i32, %c0_i32_0 : i32, i32, i32
  }
  func.func @transform_16(%arg0: i32, %arg1: i32) -> (i32, i32, i32) {
    %c0_i32 = arith.constant 0 : i32
    %c0_i32_0 = arith.constant 0 : i32
    %c0_i32_1 = arith.constant 0 : i32
    return %arg1, %c0_i32, %c0_i32_0 : i32, i32, i32
  }
  func.func @transform_17(%arg0: i32, %arg1: i32) -> (i32, i32, i32) {
    %c0_i32 = arith.constant 0 : i32
    %c0_i32_0 = arith.constant 0 : i32
    %c0_i32_1 = arith.constant 0 : i32
    return %arg1, %c0_i32, %c0_i32_0 : i32, i32, i32
  }
  func.func @transform_18(%arg0: i32, %arg1: i32) -> (i32, i32, i32) {
    %c0_i32 = arith.constant 0 : i32
    %c0_i32_0 = arith.constant 0 : i32
    %c0_i32_1 = arith.constant 0 : i32
    return %arg1, %c0_i32, %c0_i32_0 : i32, i32, i32
  }
  func.func @transform_19(%arg0: i32, %arg1: i32) -> (i32, i32) {
    %c0_i32 = arith.constant 0 : i32
    %c0_i32_0 = arith.constant 0 : i32
    %c0_i32_1 = arith.constant 0 : i32
    return %c0_i32, %c0_i32_0 : i32, i32
  }
  func.func @transform_20(%arg0: i32, %arg1: i32) -> (i32, i32) {
    %c0_i32 = arith.constant 0 : i32
    %c0_i32_0 = arith.constant 0 : i32
    %c0_i32_1 = arith.constant 0 : i32
    return %c0_i32, %c0_i32_0 : i32, i32
  }
  func.func @transform_21(%arg0: i32, %arg1: i32) -> (i32, i32) {
    %c0_i32 = arith.constant 0 : i32
    %c0_i32_0 = arith.constant 0 : i32
    %c0_i32_1 = arith.constant 0 : i32
    return %c0_i32, %c0_i32_0 : i32, i32
  }
  func.func @transform_22(%arg0: i32, %arg1: i32) -> (i32, i32) {
    %c0_i32 = arith.constant 0 : i32
    %c0_i32_0 = arith.constant 0 : i32
    %c0_i32_1 = arith.constant 0 : i32
    return %c0_i32, %c0_i32_0 : i32, i32
  }
  func.func @transform_23(%arg0: i32, %arg1: i32) -> (i32, i32) {
    %c0_i32 = arith.constant 0 : i32
    %c0_i32_0 = arith.constant 0 : i32
    %c0_i32_1 = arith.constant 0 : i32
    return %c0_i32, %c0_i32_0 : i32, i32
  }
  func.func @transform_24(%arg0: i32, %arg1: i32) -> (i32, i32) {
    %c0_i32 = arith.constant 0 : i32
    %c0_i32_0 = arith.constant 0 : i32
    %c0_i32_1 = arith.constant 0 : i32
    return %c0_i32, %c0_i32_0 : i32, i32
  }
  func.func @transform_25(%arg0: i32, %arg1: i32) -> (i32, i32, i32) {
    %c0_i32 = arith.constant 0 : i32
    %c0_i32_0 = arith.constant 0 : i32
    %c0_i32_1 = arith.constant 0 : i32
    return %arg0, %c0_i32, %c0_i32_0 : i32, i32, i32
  }
}

</mosaic_0001>

<llo_original>
// kernel: vit_mil_forward.1
$region0: #{vit_mil_forward.1}
  #allocation0 [shape = 'u32[]', space=smem, size = 0x4, offset = 0x4, fixed_abs, tag = 'smem constant byte address 0x4 - core index']
  #allocation1 [shape = 'u32[144,128]{1,0:T(1,128)}', space=vmem, size = 0x12000, scoped, tag = 'internal scratch']
  #allocation2 [shape = 'f32[40,32]{1,0:T(8,128)}', space=vmem, size = 0x5000, scoped, tag = 'scratch operand']
  #allocation3 [shape = 'f32[1,1]{1,0:T(1,128)S(1)}', space=vmem, size = 0x200, scoped, tag = 'scoped memory for vit_mil_forward.1']
  %s0 = inlined_call_operand.vmem [shape: bf16[1,40,768], index: 0, kind: input, shape index: {}]
  %s1 = inlined_call_operand.vmem [shape: bf16[768,32], index: 1, kind: input, shape index: {}]
  %s2 = inlined_call_operand.vmem [shape: f32[5,32], index: 2, kind: input, shape index: {}]
  %s3 = inlined_call_operand.vmem [shape: f32[2,1,32], index: 3, kind: input, shape index: {}]
  %s4 = inlined_call_operand.vmem [shape: f32[2,1,32], index: 4, kind: input, shape index: {}]
  %s5 = inlined_call_operand.vmem [shape: bf16[2,2,32,16], index: 5, kind: input, shape index: {}]
  %s6 = inlined_call_operand.vmem [shape: bf16[2,2,32,16], index: 6, kind: input, shape index: {}]
  %s7 = inlined_call_operand.vmem [shape: bf16[2,2,32,16], index: 7, kind: input, shape index: {}]
  %s8 = inlined_call_operand.vmem [shape: f32[2,2,1,16], index: 8, kind: input, shape index: {}]
  %s9 = inlined_call_operand.vmem [shape: f32[2,2,1,16], index: 9, kind: input, shape index: {}]
  %s10 = inlined_call_operand.vmem [shape: f32[2,2,1,16], index: 10, kind: input, shape index: {}]
  %s11 = inlined_call_operand.vmem [shape: bf16[2,2,16,32], index: 11, kind: input, shape index: {}]
  %s12 = inlined_call_operand.vmem [shape: f32[2,1,32], index: 12, kind: input, shape index: {}]
  %s13 = inlined_call_operand.vmem [shape: f32[2,1,32], index: 13, kind: input, shape index: {}]
  %s14 = inlined_call_operand.vmem [shape: f32[2,1,32], index: 14, kind: input, shape index: {}]
  %s15 = inlined_call_operand.vmem [shape: bf16[2,32,64], index: 15, kind: input, shape index: {}]
  %s16 = inlined_call_operand.vmem [shape: f32[2,1,64], index: 16, kind: input, shape index: {}]
  %s17 = inlined_call_operand.vmem [shape: bf16[2,64,32], index: 17, kind: input, shape index: {}]
  %s18 = inlined_call_operand.vmem [shape: f32[2,1,32], index: 18, kind: input, shape index: {}]
  %s19 = inlined_call_operand.vmem [shape: f32[1,32], index: 19, kind: input, shape index: {}]
  %s20 = inlined_call_operand.vmem [shape: f32[1,32], index: 20, kind: input, shape index: {}]
  %s21 = inlined_call_operand.vmem [shape: f32[1,32], index: 21, kind: input, shape index: {}]
  %s22 = inlined_call_operand.<no memory space> [shape: f32[1,1], index: 22, kind: input, shape index: {}]
  %s23 = inlined_call_operand.vmem [shape: f32[32,2], index: 23, kind: input, shape index: {}]
  %s24 = inlined_call_operand.vmem [shape: f32[1,2], index: 24, kind: input, shape index: {}]
  %s25 = inlined_call_operand.vmem [shape: f32[1,2,128], index: 25, kind: output, shape index: {}]
  %s26 = sld [smem:[#allocation0]]
  $region141: #{vit_mil_forward.1} parent=0
    _
  %s28 = ssub.s32 1, %s26
  %s29 = scalar_select 0, %s28, %s26
  %v30 = vstv %s22
  %31 = vst [vmem:[#allocation3] sm:$0x1] %v30
  loop: start=0, step=1, limit=4
  $region2: #{vit_mil_forward.1} parent=0 // loop_pre_header
    _
  $region3: #{vit_mil_forward.1} parent=0 // loop_header
    %s33 = sphi 0, %s37
    %p34 = scmp.ge.s32.totalorder %s33, 4
    %s40 = sphi 0, %s52
    %s41 = sphi 0, %s48
    %s42 = sphi 0, %s40
    %s43 = sphi 0, %s41
    %s44 = sphi 0, %s42
    %s45 = sphi 0, %s43
    %s55 = sphi 0, %s57
    %s58 = sphi 0, %s55
    %s59 = sphi 0, %s58
    %s75 = sphi 0, %s59
    %s79 = sphi 0, %s79
    %s81 = sphi 0, %s79
    %s82 = sphi 0, %s81
    %s96 = sphi 0, %s82
    %s100 = sphi 0, %s100
    %s102 = sphi 0, %s100
    %s103 = sphi 0, %s102
    %s117 = sphi 0, %s103
    %s123 = sphi 0, %s125
    %s126 = sphi 0, %s123
    %s127 = sphi 0, %s126
    %s143 = sphi 0, %s127
    %s149 = sphi 0, %s151
    %s152 = sphi 0, %s149
    %s153 = sphi 0, %s152
    %s169 = sphi 0, %s153
    %s175 = sphi 0, %s177
    %s178 = sphi 0, %s175
    %s179 = sphi 0, %s178
    %s195 = sphi 0, %s179
    %s201 = sphi 0, %s203
    %s204 = sphi 0, %s201
    %s205 = sphi 0, %s204
    %s221 = sphi 0, %s205
    %s227 = sphi 0, %s229
    %s230 = sphi 0, %s227
    %s231 = sphi 0, %s230
    %s247 = sphi 0, %s231
    %s253 = sphi 0, %s255
    %s256 = sphi 0, %s253
    %s257 = sphi 0, %s256
    %s273 = sphi 0, %s257
    %s279 = sphi 0, %s281
    %s282 = sphi 0, %s279
    %s283 = sphi 0, %s282
    %s299 = sphi 0, %s283
    %s305 = sphi 0, %s307
    %s308 = sphi 0, %s305
    %s309 = sphi 0, %s308
    %s325 = sphi 0, %s309
    %s331 = sphi 0, %s333
    %s334 = sphi 0, %s331
    %s335 = sphi 0, %s334
    %s351 = sphi 0, %s335
    %s357 = sphi 0, %s359
    %s360 = sphi 0, %s357
    %s361 = sphi 0, %s360
    %s377 = sphi 0, %s361
    %s383 = sphi 0, %s385
    %s386 = sphi 0, %s383
    %s387 = sphi 0, %s386
    %s403 = sphi 0, %s387
    %s409 = sphi 0, %s411
    %s412 = sphi 0, %s409
    %s413 = sphi 0, %s412
    %s429 = sphi 0, %s413
    %s435 = sphi 0, %s437
    %s438 = sphi 0, %s435
    %s439 = sphi 0, %s438
    %s455 = sphi 0, %s439
    %s461 = sphi 0, %s463
    %s464 = sphi 0, %s461
    %s465 = sphi 0, %s464
    %s481 = sphi 0, %s465
    %s487 = sphi 0, %s489
    %s490 = sphi 0, %s487
    %s491 = sphi 0, %s490
    %s507 = sphi 0, %s491
    %s513 = sphi 0, %s515
    %s516 = sphi 0, %s513
    %s517 = sphi 0, %s516
    %s533 = sphi 0, %s517
    %s537 = sphi 0, %s537
    %s539 = sphi 0, %s537
    %s540 = sphi 0, %s539
    %s554 = sphi 0, %s540
    %s558 = sphi 0, %s558
    %s560 = sphi 0, %s558
    %s561 = sphi 0, %s560
    %s575 = sphi 0, %s561
    %s579 = sphi 0, %s579
    %s581 = sphi 0, %s579
    %s582 = sphi 0, %s581
    %s596 = sphi 0, %s582
    %s600 = sphi 0, %s600
    %s602 = sphi 0, %s600
    %s603 = sphi 0, %s602
    %s617 = sphi 0, %s603
    %s621 = sphi 0, %s621
    %s623 = sphi 0, %s621
    %s624 = sphi 0, %s623
    %s638 = sphi 0, %s624
    %s642 = sphi 0, %s642
    %s644 = sphi 0, %s642
    %s645 = sphi 0, %s644
    %s659 = sphi 0, %s645
    %s665 = sphi 0, %s667
    %s668 = sphi 0, %s665
    %s669 = sphi 0, %s668
    %s685 = sphi 0, %s669
  $region4: #{vit_mil_forward.1} parent=0 // loop_header_branch
    %36 = sbr.rel (%p34) target = $region8
  $region5: #{vit_mil_forward.1} parent=0 // loop_body
    %s38 = ssub.s32 %s33, 1
    %s39 = ssub.s32 %s33, 2
    %s46 = sadd.s32 1, %s41
    %p47 = scmp.ge.s32.totalorder %s46, 2
    %s48 = scalar_select %p47, 0, %s46
    %s49 = sadd.s32 1, %s40
    %s50 = scalar_select %p47, %s49, %s40
    %p51 = scmp.ge.s32.totalorder %s50, 1
    %s52 = scalar_select %p51, 0, %s50
    %s53 = ssub.s32 %s40, %s52
    %p54 = scmp.eq.s32.totalorder %s53, 0
    %s56 = sadd.s32 %s55, 1
    %s57 = scalar_select %p54, %s55, %s56
    %p60 = pneg %p54
    %p61 = scmp.eq.s32.totalorder %s33, 1
    %p62 = por %p60, %p61
    %p63 = scmp.ne.s32.totalorder %s55, %s58
    %p64 = scmp.eq.s32.totalorder %s33, 0
    %p65 = por %p63, %p64
    %p66 = scmp.ne.s32.totalorder %s55, %s58
    %p67 = scmp.eq.s32.totalorder %s38, 1
    %p68 = por %p66, %p67
    %p69 = scmp.ne.s32.totalorder %s58, %s59
    %p70 = scmp.eq.s32.totalorder %s38, 0
    %p71 = por %p69, %p70
    %p72 = scmp.ne.s32.totalorder %s58, %s59
    %p73 = scmp.eq.s32.totalorder %s39, 1
    %p74 = por %p72, %p73
    %p76 = scmp.ne.s32.totalorder %s59, %s75
    %p77 = scmp.eq.s32.totalorder %s39, 0
    %p78 = por %p76, %p77
    %s80 = sadd.s32 %s79, 1
    %p83 = scmp.eq.s32.totalorder %s33, 1
    %p84 = scmp.ne.s32.totalorder %s79, %s81
    %p85 = scmp.eq.s32.totalorder %s33, 0
    %p86 = por %p84, %p85
    %p87 = scmp.ne.s32.totalorder %s79, %s81
    %p88 = scmp.eq.s32.totalorder %s38, 1
    %p89 = por %p87, %p88
    %p90 = scmp.ne.s32.totalorder %s81, %s82
    %p91 = scmp.eq.s32.totalorder %s38, 0
    %p92 = por %p90, %p91
    %p93 = scmp.ne.s32.totalorder %s81, %s82
    %p94 = scmp.eq.s32.totalorder %s39, 1
    %p95 = por %p93, %p94
    %p97 = scmp.ne.s32.totalorder %s82, %s96
    %p98 = scmp.eq.s32.totalorder %s39, 0
    %p99 = por %p97, %p98
    %s101 = sadd.s32 %s100, 1
    %p104 = scmp.eq.s32.totalorder %s33, 1
    %p105 = scmp.ne.s32.totalorder %s100, %s102
    %p106 = scmp.eq.s32.totalorder %s33, 0
    %p107 = por %p105, %p106
    %p108 = scmp.ne.s32.totalorder %s100, %s102
    %p109 = scmp.eq.s32.totalorder %s38, 1
    %p110 = por %p108, %p109
    %p111 = scmp.ne.s32.totalorder %s102, %s103
    %p112 = scmp.eq.s32.totalorder %s38, 0
    %p113 = por %p111, %p112
    %p114 = scmp.ne.s32.totalorder %s102, %s103
    %p115 = scmp.eq.s32.totalorder %s39, 1
    %p116 = por %p114, %p115
    %p118 = scmp.ne.s32.totalorder %s103, %s117
    %p119 = scmp.eq.s32.totalorder %s39, 0
    %p120 = por %p118, %p119
    %s121 = ssub.s32 %s41, %s48
    %p122 = scmp.eq.s32.totalorder %s121, 0
    %s124 = sadd.s32 %s123, 1
    %s125 = scalar_select %p122, %s123, %s124
    %p128 = pneg %p122
    %p129 = scmp.eq.s32.totalorder %s33, 1
    %p130 = por %p128, %p129
    %p131 = scmp.ne.s32.totalorder %s123, %s126
    %p132 = scmp.eq.s32.totalorder %s33, 0
    %p133 = por %p131, %p132
    %p134 = scmp.ne.s32.totalorder %s123, %s126
    %p135 = scmp.eq.s32.totalorder %s38, 1
    %p136 = por %p134, %p135
    %p137 = scmp.ne.s32.totalorder %s126, %s127
    %p138 = scmp.eq.s32.totalorder %s38, 0
    %p139 = por %p137, %p138
    %p140 = scmp.ne.s32.totalorder %s126, %s127
    %p141 = scmp.eq.s32.totalorder %s39, 1
    %p142 = por %p140, %p141
    %p144 = scmp.ne.s32.totalorder %s127, %s143
    %p145 = scmp.eq.s32.totalorder %s39, 0
    %p146 = por %p144, %p145
    %s147 = ssub.s32 %s41, %s48
    %p148 = scmp.eq.s32.totalorder %s147, 0
    %s150 = sadd.s32 %s149, 1
    %s151 = scalar_select %p148, %s149, %s150
    %p154 = pneg %p148
    %p155 = scmp.eq.s32.totalorder %s33, 1
    %p156 = por %p154, %p155
    %p157 = scmp.ne.s32.totalorder %s149, %s152
    %p158 = scmp.eq.s32.totalorder %s33, 0
    %p159 = por %p157, %p158
    %p160 = scmp.ne.s32.totalorder %s149, %s152
    %p161 = scmp.eq.s32.totalorder %s38, 1
    %p162 = por %p160, %p161
    %p163 = scmp.ne.s32.totalorder %s152, %s153
    %p164 = scmp.eq.s32.totalorder %s38, 0
    %p165 = por %p163, %p164
    %p166 = scmp.ne.s32.totalorder %s152, %s153
    %p167 = scmp.eq.s32.totalorder %s39, 1
    %p168 = por %p166, %p167
    %p170 = scmp.ne.s32.totalorder %s153, %s169
    %p171 = scmp.eq.s32.totalorder %s39, 0
    %p172 = por %p170, %p171
    %s173 = ssub.s32 %s41, %s48
    %p174 = scmp.eq.s32.totalorder %s173, 0
    %s176 = sadd.s32 %s175, 1
    %s177 = scalar_select %p174, %s175, %s176
    %p180 = pneg %p174
    %p181 = scmp.eq.s32.totalorder %s33, 1
    %p182 = por %p180, %p181
    %p183 = scmp.ne.s32.totalorder %s175, %s178
    %p184 = scmp.eq.s32.totalorder %s33, 0
    %p185 = por %p183, %p184
    %p186 = scmp.ne.s32.totalorder %s175, %s178
    %p187 = scmp.eq.s32.totalorder %s38, 1
    %p188 = por %p186, %p187
    %p189 = scmp.ne.s32.totalorder %s178, %s179
    %p190 = scmp.eq.s32.totalorder %s38, 0
    %p191 = por %p189, %p190
    %p192 = scmp.ne.s32.totalorder %s178, %s179
    %p193 = scmp.eq.s32.totalorder %s39, 1
    %p194 = por %p192, %p193
    %p196 = scmp.ne.s32.totalorder %s179, %s195
    %p197 = scmp.eq.s32.totalorder %s39, 0
    %p198 = por %p196, %p197
    %s199 = ssub.s32 %s41, %s48
    %p200 = scmp.eq.s32.totalorder %s199, 0
    %s202 = sadd.s32 %s201, 1
    %s203 = scalar_select %p200, %s201, %s202
    %p206 = pneg %p200
    %p207 = scmp.eq.s32.totalorder %s33, 1
    %p208 = por %p206, %p207
    %p209 = scmp.ne.s32.totalorder %s201, %s204
    %p210 = scmp.eq.s32.totalorder %s33, 0
    %p211 = por %p209, %p210
    %p212 = scmp.ne.s32.totalorder %s201, %s204
    %p213 = scmp.eq.s32.totalorder %s38, 1
    %p214 = por %p212, %p213
    %p215 = scmp.ne.s32.totalorder %s204, %s205
    %p216 = scmp.eq.s32.totalorder %s38, 0
    %p217 = por %p215, %p216
    %p218 = scmp.ne.s32.totalorder %s204, %s205
    %p219 = scmp.eq.s32.totalorder %s39, 1
    %p220 = por %p218, %p219
    %p222 = scmp.ne.s32.totalorder %s205, %s221
    %p223 = scmp.eq.s32.totalorder %s39, 0
    %p224 = por %p222, %p223
    %s225 = ssub.s32 %s41, %s48
    %p226 = scmp.eq.s32.totalorder %s225, 0
    %s228 = sadd.s32 %s227, 1
    %s229 = scalar_select %p226, %s227, %s228
    %p232 = pneg %p226
    %p233 = scmp.eq.s32.totalorder %s33, 1
    %p234 = por %p232, %p233
    %p235 = scmp.ne.s32.totalorder %s227, %s230
    %p236 = scmp.eq.s32.totalorder %s33, 0
    %p237 = por %p235, %p236
    %p238 = scmp.ne.s32.totalorder %s227, %s230
    %p239 = scmp.eq.s32.totalorder %s38, 1
    %p240 = por %p238, %p239
    %p241 = scmp.ne.s32.totalorder %s230, %s231
    %p242 = scmp.eq.s32.totalorder %s38, 0
    %p243 = por %p241, %p242
    %p244 = scmp.ne.s32.totalorder %s230, %s231
    %p245 = scmp.eq.s32.totalorder %s39, 1
    %p246 = por %p244, %p245
    %p248 = scmp.ne.s32.totalorder %s231, %s247
    %p249 = scmp.eq.s32.totalorder %s39, 0
    %p250 = por %p248, %p249
    %s251 = ssub.s32 %s41, %s48
    %p252 = scmp.eq.s32.totalorder %s251, 0
    %s254 = sadd.s32 %s253, 1
    %s255 = scalar_select %p252, %s253, %s254
    %p258 = pneg %p252
    %p259 = scmp.eq.s32.totalorder %s33, 1
    %p260 = por %p258, %p259
    %p261 = scmp.ne.s32.totalorder %s253, %s256
    %p262 = scmp.eq.s32.totalorder %s33, 0
    %p263 = por %p261, %p262
    %p264 = scmp.ne.s32.totalorder %s253, %s256
    %p265 = scmp.eq.s32.totalorder %s38, 1
    %p266 = por %p264, %p265
    %p267 = scmp.ne.s32.totalorder %s256, %s257
    %p268 = scmp.eq.s32.totalorder %s38, 0
    %p269 = por %p267, %p268
    %p270 = scmp.ne.s32.totalorder %s256, %s257
    %p271 = scmp.eq.s32.totalorder %s39, 1
    %p272 = por %p270, %p271
    %p274 = scmp.ne.s32.totalorder %s257, %s273
    %p275 = scmp.eq.s32.totalorder %s39, 0
    %p276 = por %p274, %p275
    %s277 = ssub.s32 %s41, %s48
    %p278 = scmp.eq.s32.totalorder %s277, 0
    %s280 = sadd.s32 %s279, 1
    %s281 = scalar_select %p278, %s279, %s280
    %p284 = pneg %p278
    %p285 = scmp.eq.s32.totalorder %s33, 1
    %p286 = por %p284, %p285
    %p287 = scmp.ne.s32.totalorder %s279, %s282
    %p288 = scmp.eq.s32.totalorder %s33, 0
    %p289 = por %p287, %p288
    %p290 = scmp.ne.s32.totalorder %s279, %s282
    %p291 = scmp.eq.s32.totalorder %s38, 1
    %p292 = por %p290, %p291
    %p293 = scmp.ne.s32.totalorder %s282, %s283
    %p294 = scmp.eq.s32.totalorder %s38, 0
    %p295 = por %p293, %p294
    %p296 = scmp.ne.s32.totalorder %s282, %s283
    %p297 = scmp.eq.s32.totalorder %s39, 1
    %p298 = por %p296, %p297
    %p300 = scmp.ne.s32.totalorder %s283, %s299
    %p301 = scmp.eq.s32.totalorder %s39, 0
    %p302 = por %p300, %p301
    %s303 = ssub.s32 %s41, %s48
    %p304 = scmp.eq.s32.totalorder %s303, 0
    %s306 = sadd.s32 %s305, 1
    %s307 = scalar_select %p304, %s305, %s306
    %p310 = pneg %p304
    %p311 = scmp.eq.s32.totalorder %s33, 1
    %p312 = por %p310, %p311
    %p313 = scmp.ne.s32.totalorder %s305, %s308
    %p314 = scmp.eq.s32.totalorder %s33, 0
    %p315 = por %p313, %p314
    %p316 = scmp.ne.s32.totalorder %s305, %s308
    %p317 = scmp.eq.s32.totalorder %s38, 1
    %p318 = por %p316, %p317
    %p319 = scmp.ne.s32.totalorder %s308, %s309
    %p320 = scmp.eq.s32.totalorder %s38, 0
    %p321 = por %p319, %p320
    %p322 = scmp.ne.s32.totalorder %s308, %s309
    %p323 = scmp.eq.s32.totalorder %s39, 1
    %p324 = por %p322, %p323
    %p326 = scmp.ne.s32.totalorder %s309, %s325
    %p327 = scmp.eq.s32.totalorder %s39, 0
    %p328 = por %p326, %p327
    %s329 = ssub.s32 %s41, %s48
    %p330 = scmp.eq.s32.totalorder %s329, 0
    %s332 = sadd.s32 %s331, 1
    %s333 = scalar_select %p330, %s331, %s332
    %p336 = pneg %p330
    %p337 = scmp.eq.s32.totalorder %s33, 1
    %p338 = por %p336, %p337
    %p339 = scmp.ne.s32.totalorder %s331, %s334
    %p340 = scmp.eq.s32.totalorder %s33, 0
    %p341 = por %p339, %p340
    %p342 = scmp.ne.s32.totalorder %s331, %s334
    %p343 = scmp.eq.s32.totalorder %s38, 1
    %p344 = por %p342, %p343
    %p345 = scmp.ne.s32.totalorder %s334, %s335
    %p346 = scmp.eq.s32.totalorder %s38, 0
    %p347 = por %p345, %p346
    %p348 = scmp.ne.s32.totalorder %s334, %s335
    %p349 = scmp.eq.s32.totalorder %s39, 1
    %p350 = por %p348, %p349
    %p352 = scmp.ne.s32.totalorder %s335, %s351
    %p353 = scmp.eq.s32.totalorder %s39, 0
    %p354 = por %p352, %p353
    %s355 = ssub.s32 %s41, %s48
    %p356 = scmp.eq.s32.totalorder %s355, 0
    %s358 = sadd.s32 %s357, 1
    %s359 = scalar_select %p356, %s357, %s358
    %p362 = pneg %p356
    %p363 = scmp.eq.s32.totalorder %s33, 1
    %p364 = por %p362, %p363
    %p365 = scmp.ne.s32.totalorder %s357, %s360
    %p366 = scmp.eq.s32.totalorder %s33, 0
    %p367 = por %p365, %p366
    %p368 = scmp.ne.s32.totalorder %s357, %s360
    %p369 = scmp.eq.s32.totalorder %s38, 1
    %p370 = por %p368, %p369
    %p371 = scmp.ne.s32.totalorder %s360, %s361
    %p372 = scmp.eq.s32.totalorder %s38, 0
    %p373 = por %p371, %p372
    %p374 = scmp.ne.s32.totalorder %s360, %s361
    %p375 = scmp.eq.s32.totalorder %s39, 1
    %p376 = por %p374, %p375
    %p378 = scmp.ne.s32.totalorder %s361, %s377
    %p379 = scmp.eq.s32.totalorder %s39, 0
    %p380 = por %p378, %p379
    %s381 = ssub.s32 %s41, %s48
    %p382 = scmp.eq.s32.totalorder %s381, 0
    %s384 = sadd.s32 %s383, 1
    %s385 = scalar_select %p382, %s383, %s384
    %p388 = pneg %p382
    %p389 = scmp.eq.s32.totalorder %s33, 1
    %p390 = por %p388, %p389
    %p391 = scmp.ne.s32.totalorder %s383, %s386
    %p392 = scmp.eq.s32.totalorder %s33, 0
    %p393 = por %p391, %p392
    %p394 = scmp.ne.s32.totalorder %s383, %s386
    %p395 = scmp.eq.s32.totalorder %s38, 1
    %p396 = por %p394, %p395
    %p397 = scmp.ne.s32.totalorder %s386, %s387
    %p398 = scmp.eq.s32.totalorder %s38, 0
    %p399 = por %p397, %p398
    %p400 = scmp.ne.s32.totalorder %s386, %s387
    %p401 = scmp.eq.s32.totalorder %s39, 1
    %p402 = por %p400, %p401
    %p404 = scmp.ne.s32.totalorder %s387, %s403
    %p405 = scmp.eq.s32.totalorder %s39, 0
    %p406 = por %p404, %p405
    %s407 = ssub.s32 %s41, %s48
    %p408 = scmp.eq.s32.totalorder %s407, 0
    %s410 = sadd.s32 %s409, 1
    %s411 = scalar_select %p408, %s409, %s410
    %p414 = pneg %p408
    %p415 = scmp.eq.s32.totalorder %s33, 1
    %p416 = por %p414, %p415
    %p417 = scmp.ne.s32.totalorder %s409, %s412
    %p418 = scmp.eq.s32.totalorder %s33, 0
    %p419 = por %p417, %p418
    %p420 = scmp.ne.s32.totalorder %s409, %s412
    %p421 = scmp.eq.s32.totalorder %s38, 1
    %p422 = por %p420, %p421
    %p423 = scmp.ne.s32.totalorder %s412, %s413
    %p424 = scmp.eq.s32.totalorder %s38, 0
    %p425 = por %p423, %p424
    %p426 = scmp.ne.s32.totalorder %s412, %s413
    %p427 = scmp.eq.s32.totalorder %s39, 1
    %p428 = por %p426, %p427
    %p430 = scmp.ne.s32.totalorder %s413, %s429
    %p431 = scmp.eq.s32.totalorder %s39, 0
    %p432 = por %p430, %p431
    %s433 = ssub.s32 %s41, %s48
    %p434 = scmp.eq.s32.totalorder %s433, 0
    %s436 = sadd.s32 %s435, 1
    %s437 = scalar_select %p434, %s435, %s436
    %p440 = pneg %p434
    %p441 = scmp.eq.s32.totalorder %s33, 1
    %p442 = por %p440, %p441
    %p443 = scmp.ne.s32.totalorder %s435, %s438
    %p444 = scmp.eq.s32.totalorder %s33, 0
    %p445 = por %p443, %p444
    %p446 = scmp.ne.s32.totalorder %s435, %s438
    %p447 = scmp.eq.s32.totalorder %s38, 1
    %p448 = por %p446, %p447
    %p449 = scmp.ne.s32.totalorder %s438, %s439
    %p450 = scmp.eq.s32.totalorder %s38, 0
    %p451 = por %p449, %p450
    %p452 = scmp.ne.s32.totalorder %s438, %s439
    %p453 = scmp.eq.s32.totalorder %s39, 1
    %p454 = por %p452, %p453
    %p456 = scmp.ne.s32.totalorder %s439, %s455
    %p457 = scmp.eq.s32.totalorder %s39, 0
    %p458 = por %p456, %p457
    %s459 = ssub.s32 %s41, %s48
    %p460 = scmp.eq.s32.totalorder %s459, 0
    %s462 = sadd.s32 %s461, 1
    %s463 = scalar_select %p460, %s461, %s462
    %p466 = pneg %p460
    %p467 = scmp.eq.s32.totalorder %s33, 1
    %p468 = por %p466, %p467
    %p469 = scmp.ne.s32.totalorder %s461, %s464
    %p470 = scmp.eq.s32.totalorder %s33, 0
    %p471 = por %p469, %p470
    %p472 = scmp.ne.s32.totalorder %s461, %s464
    %p473 = scmp.eq.s32.totalorder %s38, 1
    %p474 = por %p472, %p473
    %p475 = scmp.ne.s32.totalorder %s464, %s465
    %p476 = scmp.eq.s32.totalorder %s38, 0
    %p477 = por %p475, %p476
    %p478 = scmp.ne.s32.totalorder %s464, %s465
    %p479 = scmp.eq.s32.totalorder %s39, 1
    %p480 = por %p478, %p479
    %p482 = scmp.ne.s32.totalorder %s465, %s481
    %p483 = scmp.eq.s32.totalorder %s39, 0
    %p484 = por %p482, %p483
    %s485 = ssub.s32 %s41, %s48
    %p486 = scmp.eq.s32.totalorder %s485, 0
    %s488 = sadd.s32 %s487, 1
    %s489 = scalar_select %p486, %s487, %s488
    %p492 = pneg %p486
    %p493 = scmp.eq.s32.totalorder %s33, 1
    %p494 = por %p492, %p493
    %p495 = scmp.ne.s32.totalorder %s487, %s490
    %p496 = scmp.eq.s32.totalorder %s33, 0
    %p497 = por %p495, %p496
    %p498 = scmp.ne.s32.totalorder %s487, %s490
    %p499 = scmp.eq.s32.totalorder %s38, 1
    %p500 = por %p498, %p499
    %p501 = scmp.ne.s32.totalorder %s490, %s491
    %p502 = scmp.eq.s32.totalorder %s38, 0
    %p503 = por %p501, %p502
    %p504 = scmp.ne.s32.totalorder %s490, %s491
    %p505 = scmp.eq.s32.totalorder %s39, 1
    %p506 = por %p504, %p505
    %p508 = scmp.ne.s32.totalorder %s491, %s507
    %p509 = scmp.eq.s32.totalorder %s39, 0
    %p510 = por %p508, %p509
    %s511 = ssub.s32 %s41, %s48
    %p512 = scmp.eq.s32.totalorder %s511, 0
    %s514 = sadd.s32 %s513, 1
    %s515 = scalar_select %p512, %s513, %s514
    %p518 = pneg %p512
    %p519 = scmp.eq.s32.totalorder %s33, 1
    %p520 = por %p518, %p519
    %p521 = scmp.ne.s32.totalorder %s513, %s516
    %p522 = scmp.eq.s32.totalorder %s33, 0
    %p523 = por %p521, %p522
    %p524 = scmp.ne.s32.totalorder %s513, %s516
    %p525 = scmp.eq.s32.totalorder %s38, 1
    %p526 = por %p524, %p525
    %p527 = scmp.ne.s32.totalorder %s516, %s517
    %p528 = scmp.eq.s32.totalorder %s38, 0
    %p529 = por %p527, %p528
    %p530 = scmp.ne.s32.totalorder %s516, %s517
    %p531 = scmp.eq.s32.totalorder %s39, 1
    %p532 = por %p530, %p531
    %p534 = scmp.ne.s32.totalorder %s517, %s533
    %p535 = scmp.eq.s32.totalorder %s39, 0
    %p536 = por %p534, %p535
    %s538 = sadd.s32 %s537, 1
    %p541 = scmp.eq.s32.totalorder %s33, 1
    %p542 = scmp.ne.s32.totalorder %s537, %s539
    %p543 = scmp.eq.s32.totalorder %s33, 0
    %p544 = por %p542, %p543
    %p545 = scmp.ne.s32.totalorder %s537, %s539
    %p546 = scmp.eq.s32.totalorder %s38, 1
    %p547 = por %p545, %p546
    %p548 = scmp.ne.s32.totalorder %s539, %s540
    %p549 = scmp.eq.s32.totalorder %s38, 0
    %p550 = por %p548, %p549
    %p551 = scmp.ne.s32.totalorder %s539, %s540
    %p552 = scmp.eq.s32.totalorder %s39, 1
    %p553 = por %p551, %p552
    %p555 = scmp.ne.s32.totalorder %s540, %s554
    %p556 = scmp.eq.s32.totalorder %s39, 0
    %p557 = por %p555, %p556
    %s559 = sadd.s32 %s558, 1
    %p562 = scmp.eq.s32.totalorder %s33, 1
    %p563 = scmp.ne.s32.totalorder %s558, %s560
    %p564 = scmp.eq.s32.totalorder %s33, 0
    %p565 = por %p563, %p564
    %p566 = scmp.ne.s32.totalorder %s558, %s560
    %p567 = scmp.eq.s32.totalorder %s38, 1
    %p568 = por %p566, %p567
    %p569 = scmp.ne.s32.totalorder %s560, %s561
    %p570 = scmp.eq.s32.totalorder %s38, 0
    %p571 = por %p569, %p570
    %p572 = scmp.ne.s32.totalorder %s560, %s561
    %p573 = scmp.eq.s32.totalorder %s39, 1
    %p574 = por %p572, %p573
    %p576 = scmp.ne.s32.totalorder %s561, %s575
    %p577 = scmp.eq.s32.totalorder %s39, 0
    %p578 = por %p576, %p577
    %s580 = sadd.s32 %s579, 1
    %p583 = scmp.eq.s32.totalorder %s33, 1
    %p584 = scmp.ne.s32.totalorder %s579, %s581
    %p585 = scmp.eq.s32.totalorder %s33, 0
    %p586 = por %p584, %p585
    %p587 = scmp.ne.s32.totalorder %s579, %s581
    %p588 = scmp.eq.s32.totalorder %s38, 1
    %p589 = por %p587, %p588
    %p590 = scmp.ne.s32.totalorder %s581, %s582
    %p591 = scmp.eq.s32.totalorder %s38, 0
    %p592 = por %p590, %p591
    %p593 = scmp.ne.s32.totalorder %s581, %s582
    %p594 = scmp.eq.s32.totalorder %s39, 1
    %p595 = por %p593, %p594
    %p597 = scmp.ne.s32.totalorder %s582, %s596
    %p598 = scmp.eq.s32.totalorder %s39, 0
    %p599 = por %p597, %p598
    %s601 = sadd.s32 %s600, 1
    %p604 = scmp.eq.s32.totalorder %s33, 1
    %p605 = scmp.ne.s32.totalorder %s600, %s602
    %p606 = scmp.eq.s32.totalorder %s33, 0
    %p607 = por %p605, %p606
    %p608 = scmp.ne.s32.totalorder %s600, %s602
    %p609 = scmp.eq.s32.totalorder %s38, 1
    %p610 = por %p608, %p609
    %p611 = scmp.ne.s32.totalorder %s602, %s603
    %p612 = scmp.eq.s32.totalorder %s38, 0
    %p613 = por %p611, %p612
    %p614 = scmp.ne.s32.totalorder %s602, %s603
    %p615 = scmp.eq.s32.totalorder %s39, 1
    %p616 = por %p614, %p615
    %p618 = scmp.ne.s32.totalorder %s603, %s617
    %p619 = scmp.eq.s32.totalorder %s39, 0
    %p620 = por %p618, %p619
    %s622 = sadd.s32 %s621, 1
    %p625 = scmp.eq.s32.totalorder %s33, 1
    %p626 = scmp.ne.s32.totalorder %s621, %s623
    %p627 = scmp.eq.s32.totalorder %s33, 0
    %p628 = por %p626, %p627
    %p629 = scmp.ne.s32.totalorder %s621, %s623
    %p630 = scmp.eq.s32.totalorder %s38, 1
    %p631 = por %p629, %p630
    %p632 = scmp.ne.s32.totalorder %s623, %s624
    %p633 = scmp.eq.s32.totalorder %s38, 0
    %p634 = por %p632, %p633
    %p635 = scmp.ne.s32.totalorder %s623, %s624
    %p636 = scmp.eq.s32.totalorder %s39, 1
    %p637 = por %p635, %p636
    %p639 = scmp.ne.s32.totalorder %s624, %s638
    %p640 = scmp.eq.s32.totalorder %s39, 0
    %p641 = por %p639, %p640
    %s643 = sadd.s32 %s642, 1
    %p646 = scmp.eq.s32.totalorder %s33, 1
    %p647 = scmp.ne.s32.totalorder %s642, %s644
    %p648 = scmp.eq.s32.totalorder %s33, 0
    %p649 = por %p647, %p648
    %p650 = scmp.ne.s32.totalorder %s642, %s644
    %p651 = scmp.eq.s32.totalorder %s38, 1
    %p652 = por %p650, %p651
    %p653 = scmp.ne.s32.totalorder %s644, %s645
    %p654 = scmp.eq.s32.totalorder %s38, 0
    %p655 = por %p653, %p654
    %p656 = scmp.ne.s32.totalorder %s644, %s645
    %p657 = scmp.eq.s32.totalorder %s39, 1
    %p658 = por %p656, %p657
    %p660 = scmp.ne.s32.totalorder %s645, %s659
    %p661 = scmp.eq.s32.totalorder %s39, 0
    %p662 = por %p660, %p661
    %s663 = ssub.s32 %s40, %s52
    %p664 = scmp.eq.s32.totalorder %s663, 0
    %s666 = sadd.s32 %s665, 1
    %s667 = scalar_select %p664, %s665, %s666
    %p670 = pneg %p664
    %p671 = scmp.eq.s32.totalorder %s33, 1
    %p672 = por %p670, %p671
    %p673 = scmp.ne.s32.totalorder %s665, %s668
    %p674 = scmp.eq.s32.totalorder %s33, 0
    %p675 = por %p673, %p674
    %p676 = scmp.ne.s32.totalorder %s665, %s668
    %p677 = scmp.eq.s32.totalorder %s38, 1
    %p678 = por %p676, %p677
    %p679 = scmp.ne.s32.totalorder %s668, %s669
    %p680 = scmp.eq.s32.totalorder %s38, 0
    %p681 = por %p679, %p680
    %p682 = scmp.ne.s32.totalorder %s668, %s669
    %p683 = scmp.eq.s32.totalorder %s39, 1
    %p684 = por %p682, %p683
    %p686 = scmp.ne.s32.totalorder %s669, %s685
    %p687 = scmp.eq.s32.totalorder %s39, 0
    %p688 = por %p686, %p687
    %p689 = scmp.le.s32.totalorder 1, %s33
    %p690 = scmp.lt.s32.totalorder %s33, 3
    %p691 = pnand %p689, %p690
    %p692 = pneg %p691
    // Predicated region
    $region9: #{vit_mil_forward.1} parent=5 // pred_check
      _
    $region10: #{vit_mil_forward.1} parent=5 // pred_check_branch
      %694 = sbr.rel (%p691) target = $region12
    $region11: #{vit_mil_forward.1} parent=5 // pred_region
      %s695 = ssub.s32 %s33, 1
      // Predicated region
      $region13: #{vit_mil_forward.1} parent=11 // pred_check
        %p696 = pneg %p71
      $region14: #{vit_mil_forward.1} parent=11 // pred_check_branch
        %698 = sbr.rel (%p696) target = $region16
      $region15: #{vit_mil_forward.1} parent=11 // pred_region
        %p699 = scmp.lt.s32.totalorder %s42, 0
        %s700 = scalar_select %p699, %s42, 0
        %s701 = smul.addr %s700, 30
        %s702 = smul.addr %s701, 4
        %s703 = scalar_lea.vmem %s0, %s702
      $region16: #{vit_mil_forward.1} parent=11 // pred_fallthru
        _
      // Predicated region
      $region17: #{vit_mil_forward.1} parent=11 // pred_check
        %p704 = pneg %p92
      $region18: #{vit_mil_forward.1} parent=11 // pred_check_branch
        %706 = sbr.rel (%p704) target = $region20
      $region19: #{vit_mil_forward.1} parent=11 // pred_region
        _
      $region20: #{vit_mil_forward.1} parent=11 // pred_fallthru
        _
      // Predicated region
      $region21: #{vit_mil_forward.1} parent=11 // pred_check
        %p707 = pneg %p113
      $region22: #{vit_mil_forward.1} parent=11 // pred_check_branch
        %709 = sbr.rel (%p707) target = $region24
      $region23: #{vit_mil_forward.1} parent=11 // pred_region
        _
      $region24: #{vit_mil_forward.1} parent=11 // pred_fallthru
        _
      // Predicated region
      $region25: #{vit_mil_forward.1} parent=11 // pred_check
        %p710 = pneg %p550
      $region26: #{vit_mil_forward.1} parent=11 // pred_check_branch
        %712 = sbr.rel (%p710) target = $region28
      $region27: #{vit_mil_forward.1} parent=11 // pred_region
        _
      $region28: #{vit_mil_forward.1} parent=11 // pred_fallthru
        _
      // Predicated region
      $region29: #{vit_mil_forward.1} parent=11 // pred_check
        %p713 = pneg %p571
      $region30: #{vit_mil_forward.1} parent=11 // pred_check_branch
        %715 = sbr.rel (%p713) target = $region32
      $region31: #{vit_mil_forward.1} parent=11 // pred_region
        _
      $region32: #{vit_mil_forward.1} parent=11 // pred_fallthru
        _
      // Predicated region
      $region33: #{vit_mil_forward.1} parent=11 // pred_check
        %p716 = pneg %p592
      $region34: #{vit_mil_forward.1} parent=11 // pred_check_branch
        %718 = sbr.rel (%p716) target = $region36
      $region35: #{vit_mil_forward.1} parent=11 // pred_region
        _
      $region36: #{vit_mil_forward.1} parent=11 // pred_fallthru
        _
      // Predicated region
      $region37: #{vit_mil_forward.1} parent=11 // pred_check
        %p719 = pneg %p613
      $region38: #{vit_mil_forward.1} parent=11 // pred_check_branch
        %721 = sbr.rel (%p719) target = $region40
      $region39: #{vit_mil_forward.1} parent=11 // pred_region
        _
      $region40: #{vit_mil_forward.1} parent=11 // pred_fallthru
        _
      // Predicated region
      $region41: #{vit_mil_forward.1} parent=11 // pred_check
        %p722 = pneg %p634
      $region42: #{vit_mil_forward.1} parent=11 // pred_check_branch
        %724 = sbr.rel (%p722) target = $region44
      $region43: #{vit_mil_forward.1} parent=11 // pred_region
        _
      $region44: #{vit_mil_forward.1} parent=11 // pred_fallthru
        _
      // Predicated region
      $region45: #{vit_mil_forward.1} parent=11 // pred_check
        %p725 = pneg %p655
      $region46: #{vit_mil_forward.1} parent=11 // pred_check_branch
        %727 = sbr.rel (%p725) target = $region48
      $region47: #{vit_mil_forward.1} parent=11 // pred_region
        _
      $region48: #{vit_mil_forward.1} parent=11 // pred_fallthru
        _
    $region12: #{vit_mil_forward.1} parent=5 // pred_fallthru
      _
    %p728 = scmp.lt.s32.totalorder %s33, 2
    // Predicated region
    $region49: #{vit_mil_forward.1} parent=5 // pred_check
      %p729 = pneg %p728
    $region50: #{vit_mil_forward.1} parent=5 // pred_check_branch
      %731 = sbr.rel (%p729) target = $region52
    $region51: #{vit_mil_forward.1} parent=5 // pred_region
      // Predicated region
      $region53: #{vit_mil_forward.1} parent=51 // pred_check
        %p732 = pneg %p133
      $region54: #{vit_mil_forward.1} parent=51 // pred_check_branch
        %734 = sbr.rel (%p732) target = $region56
      $region55: #{vit_mil_forward.1} parent=51 // pred_region
        %p735 = scmp.lt.s32.totalorder %s41, 1
        %s736 = scalar_select %p735, %s41, 1
        %s737 = scalar_lea.vmem %s3, %s736
      $region56: #{vit_mil_forward.1} parent=51 // pred_fallthru
        _
      // Predicated region
      $region57: #{vit_mil_forward.1} parent=51 // pred_check
        %p738 = pneg %p159
      $region58: #{vit_mil_forward.1} parent=51 // pred_check_branch
        %740 = sbr.rel (%p738) target = $region60
      $region59: #{vit_mil_forward.1} parent=51 // pred_region
        %p741 = scmp.lt.s32.totalorder %s41, 1
        %s742 = scalar_select %p741, %s41, 1
        %s743 = scalar_lea.vmem %s4, %s742
      $region60: #{vit_mil_forward.1} parent=51 // pred_fallthru
        _
      // Predicated region
      $region61: #{vit_mil_forward.1} parent=51 // pred_check
        %p744 = pneg %p185
      $region62: #{vit_mil_forward.1} parent=51 // pred_check_branch
        %746 = sbr.rel (%p744) target = $region64
      $region63: #{vit_mil_forward.1} parent=51 // pred_region
        %p747 = scmp.lt.s32.totalorder %s41, 1
        %s748 = scalar_select %p747, %s41, 1
        %s749 = smul.addr %s748, 8
        %s750 = smul.addr %s749, 4
        %s751 = scalar_lea.vmem %s5, %s750
      $region64: #{vit_mil_forward.1} parent=51 // pred_fallthru
        _
      // Predicated region
      $region65: #{vit_mil_forward.1} parent=51 // pred_check
        %p752 = pneg %p211
      $region66: #{vit_mil_forward.1} parent=51 // pred_check_branch
        %754 = sbr.rel (%p752) target = $region68
      $region67: #{vit_mil_forward.1} parent=51 // pred_region
        %p755 = scmp.lt.s32.totalorder %s41, 1
        %s756 = scalar_select %p755, %s41, 1
        %s757 = smul.addr %s756, 8
        %s758 = smul.addr %s757, 4
        %s759 = scalar_lea.vmem %s6, %s758
      $region68: #{vit_mil_forward.1} parent=51 // pred_fallthru
        _
      // Predicated region
      $region69: #{vit_mil_forward.1} parent=51 // pred_check
        %p760 = pneg %p237
      $region70: #{vit_mil_forward.1} parent=51 // pred_check_branch
        %762 = sbr.rel (%p760) target = $region72
      $region71: #{vit_mil_forward.1} parent=51 // pred_region
        %p763 = scmp.lt.s32.totalorder %s41, 1
        %s764 = scalar_select %p763, %s41, 1
        %s765 = smul.addr %s764, 8
        %s766 = smul.addr %s765, 4
        %s767 = scalar_lea.vmem %s7, %s766
      $region72: #{vit_mil_forward.1} parent=51 // pred_fallthru
        _
      // Predicated region
      $region73: #{vit_mil_forward.1} parent=51 // pred_check
        %p768 = pneg %p263
      $region74: #{vit_mil_forward.1} parent=51 // pred_check_branch
        %770 = sbr.rel (%p768) target = $region76
      $region75: #{vit_mil_forward.1} parent=51 // pred_region
        %p771 = scmp.lt.s32.totalorder %s41, 1
        %s772 = scalar_select %p771, %s41, 1
        %s773 = smul.addr %s772, 2
        %s774 = scalar_lea.vmem %s8, %s773
      $region76: #{vit_mil_forward.1} parent=51 // pred_fallthru
        _
      // Predicated region
      $region77: #{vit_mil_forward.1} parent=51 // pred_check
        %p775 = pneg %p289
      $region78: #{vit_mil_forward.1} parent=51 // pred_check_branch
        %777 = sbr.rel (%p775) target = $region80
      $region79: #{vit_mil_forward.1} parent=51 // pred_region
        %p778 = scmp.lt.s32.totalorder %s41, 1
        %s779 = scalar_select %p778, %s41, 1
        %s780 = smul.addr %s779, 2
        %s781 = scalar_lea.vmem %s9, %s780
      $region80: #{vit_mil_forward.1} parent=51 // pred_fallthru
        _
      // Predicated region
      $region81: #{vit_mil_forward.1} parent=51 // pred_check
        %p782 = pneg %p315
      $region82: #{vit_mil_forward.1} parent=51 // pred_check_branch
        %784 = sbr.rel (%p782) target = $region84
      $region83: #{vit_mil_forward.1} parent=51 // pred_region
        %p785 = scmp.lt.s32.totalorder %s41, 1
        %s786 = scalar_select %p785, %s41, 1
        %s787 = smul.addr %s786, 2
        %s788 = scalar_lea.vmem %s10, %s787
      $region84: #{vit_mil_forward.1} parent=51 // pred_fallthru
        _
      // Predicated region
      $region85: #{vit_mil_forward.1} parent=51 // pred_check
        %p789 = pneg %p341
      $region86: #{vit_mil_forward.1} parent=51 // pred_check_branch
        %791 = sbr.rel (%p789) target = $region88
      $region87: #{vit_mil_forward.1} parent=51 // pred_region
        %p792 = scmp.lt.s32.totalorder %s41, 1
        %s793 = scalar_select %p792, %s41, 1
        %s794 = smul.addr %s793, 4
        %s795 = smul.addr %s794, 4
        %s796 = scalar_lea.vmem %s11, %s795
      $region88: #{vit_mil_forward.1} parent=51 // pred_fallthru
        _
      // Predicated region
      $region89: #{vit_mil_forward.1} parent=51 // pred_check
        %p797 = pneg %p367
      $region90: #{vit_mil_forward.1} parent=51 // pred_check_branch
        %799 = sbr.rel (%p797) target = $region92
      $region91: #{vit_mil_forward.1} parent=51 // pred_region
        %p800 = scmp.lt.s32.totalorder %s41, 1
        %s801 = scalar_select %p800, %s41, 1
        %s802 = scalar_lea.vmem %s12, %s801
      $region92: #{vit_mil_forward.1} parent=51 // pred_fallthru
        _
      // Predicated region
      $region93: #{vit_mil_forward.1} parent=51 // pred_check
        %p803 = pneg %p393
      $region94: #{vit_mil_forward.1} parent=51 // pred_check_branch
        %805 = sbr.rel (%p803) target = $region96
      $region95: #{vit_mil_forward.1} parent=51 // pred_region
        %p806 = scmp.lt.s32.totalorder %s41, 1
        %s807 = scalar_select %p806, %s41, 1
        %s808 = scalar_lea.vmem %s13, %s807
      $region96: #{vit_mil_forward.1} parent=51 // pred_fallthru
        _
      // Predicated region
      $region97: #{vit_mil_forward.1} parent=51 // pred_check
        %p809 = pneg %p419
      $region98: #{vit_mil_forward.1} parent=51 // pred_check_branch
        %811 = sbr.rel (%p809) target = $region100
      $region99: #{vit_mil_forward.1} parent=51 // pred_region
        %p812 = scmp.lt.s32.totalorder %s41, 1
        %s813 = scalar_select %p812, %s41, 1
        %s814 = scalar_lea.vmem %s14, %s813
      $region100: #{vit_mil_forward.1} parent=51 // pred_fallthru
        _
      // Predicated region
      $region101: #{vit_mil_forward.1} parent=51 // pred_check
        %p815 = pneg %p445
      $region102: #{vit_mil_forward.1} parent=51 // pred_check_branch
        %817 = sbr.rel (%p815) target = $region104
      $region103: #{vit_mil_forward.1} parent=51 // pred_region
        %p818 = scmp.lt.s32.totalorder %s41, 1
        %s819 = scalar_select %p818, %s41, 1
        %s820 = smul.addr %s819, 4
        %s821 = smul.addr %s820, 4
        %s822 = scalar_lea.vmem %s15, %s821
      $region104: #{vit_mil_forward.1} parent=51 // pred_fallthru
        _
      // Predicated region
      $region105: #{vit_mil_forward.1} parent=51 // pred_check
        %p823 = pneg %p471
      $region106: #{vit_mil_forward.1} parent=51 // pred_check_branch
        %825 = sbr.rel (%p823) target = $region108
      $region107: #{vit_mil_forward.1} parent=51 // pred_region
        %p826 = scmp.lt.s32.totalorder %s41, 1
        %s827 = scalar_select %p826, %s41, 1
        %s828 = scalar_lea.vmem %s16, %s827
      $region108: #{vit_mil_forward.1} parent=51 // pred_fallthru
        _
      // Predicated region
      $region109: #{vit_mil_forward.1} parent=51 // pred_check
        %p829 = pneg %p497
      $region110: #{vit_mil_forward.1} parent=51 // pred_check_branch
        %831 = sbr.rel (%p829) target = $region112
      $region111: #{vit_mil_forward.1} parent=51 // pred_region
        %p832 = scmp.lt.s32.totalorder %s41, 1
        %s833 = scalar_select %p832, %s41, 1
        %s834 = smul.addr %s833, 8
        %s835 = smul.addr %s834, 4
        %s836 = scalar_lea.vmem %s17, %s835
      $region112: #{vit_mil_forward.1} parent=51 // pred_fallthru
        _
      // Predicated region
      $region113: #{vit_mil_forward.1} parent=51 // pred_check
        %p837 = pneg %p523
      $region114: #{vit_mil_forward.1} parent=51 // pred_check_branch
        %839 = sbr.rel (%p837) target = $region116
      $region115: #{vit_mil_forward.1} parent=51 // pred_region
        %p840 = scmp.lt.s32.totalorder %s41, 1
        %s841 = scalar_select %p840, %s41, 1
        %s842 = scalar_lea.vmem %s18, %s841
      $region116: #{vit_mil_forward.1} parent=51 // pred_fallthru
        _
    $region52: #{vit_mil_forward.1} parent=5 // pred_fallthru
      _
    %p843 = scmp.le.s32.totalorder 1, %s33
    %p844 = scmp.lt.s32.totalorder %s33, 3
    %p845 = pnand %p843, %p844
    %p846 = pneg %p845
    // Predicated region
    $region117: #{vit_mil_forward.1} parent=5 // pred_check
      _
    $region118: #{vit_mil_forward.1} parent=5 // pred_check_branch
      %848 = sbr.rel (%p845) target = $region120
    $region119: #{vit_mil_forward.1} parent=5 // pred_region
      %s849 = ssub.s32 %s33, 1
      %p850 = scmp.lt.s32.totalorder %s42, 0
      %s851 = scalar_select %p850, %s42, 0
      %s852 = smul.addr %s851, 30
      %s853 = smul.addr %s852, 4
      %s854 = scalar_lea.vmem %s0, %s853
      %p855 = pneg %p71
      %p856 = pneg %p68
      %p857 = pneg %p92
      %p858 = pneg %p89
      %p859 = pneg %p113
      %p860 = pneg %p110
      %p861 = scmp.lt.s32.totalorder %s43, 1
      %s862 = scalar_select %p861, %s43, 1
      %s863 = scalar_lea.vmem %s3, %s862
      %p864 = pneg %p139
      %p865 = pneg %p136
      %p866 = scmp.lt.s32.totalorder %s43, 1
      %s867 = scalar_select %p866, %s43, 1
      %s868 = scalar_lea.vmem %s4, %s867
      %p869 = pneg %p165
      %p870 = pneg %p162
      %p871 = scmp.lt.s32.totalorder %s43, 1
      %s872 = scalar_select %p871, %s43, 1
      %s873 = smul.addr %s872, 8
      %s874 = smul.addr %s873, 4
      %s875 = scalar_lea.vmem %s5, %s874
      %p876 = pneg %p191
      %p877 = pneg %p188
      %p878 = scmp.lt.s32.totalorder %s43, 1
      %s879 = scalar_select %p878, %s43, 1
      %s880 = smul.addr %s879, 8
      %s881 = smul.addr %s880, 4
      %s882 = scalar_lea.vmem %s6, %s881
      %p883 = pneg %p217
      %p884 = pneg %p214
      %p885 = scmp.lt.s32.totalorder %s43, 1
      %s886 = scalar_select %p885, %s43, 1
      %s887 = smul.addr %s886, 8
      %s888 = smul.addr %s887, 4
      %s889 = scalar_lea.vmem %s7, %s888
      %p890 = pneg %p243
      %p891 = pneg %p240
      %p892 = scmp.lt.s32.totalorder %s43, 1
      %s893 = scalar_select %p892, %s43, 1
      %s894 = smul.addr %s893, 2
      %s895 = scalar_lea.vmem %s8, %s894
      %p896 = pneg %p269
      %p897 = pneg %p266
      %p898 = scmp.lt.s32.totalorder %s43, 1
      %s899 = scalar_select %p898, %s43, 1
      %s900 = smul.addr %s899, 2
      %s901 = scalar_lea.vmem %s9, %s900
      %p902 = pneg %p295
      %p903 = pneg %p292
      %p904 = scmp.lt.s32.totalorder %s43, 1
      %s905 = scalar_select %p904, %s43, 1
      %s906 = smul.addr %s905, 2
      %s907 = scalar_lea.vmem %s10, %s906
      %p908 = pneg %p321
      %p909 = pneg %p318
      %p910 = scmp.lt.s32.totalorder %s43, 1
      %s911 = scalar_select %p910, %s43, 1
      %s912 = smul.addr %s911, 4
      %s913 = smul.addr %s912, 4
      %s914 = scalar_lea.vmem %s11, %s913
      %p915 = pneg %p347
      %p916 = pneg %p344
      %p917 = scmp.lt.s32.totalorder %s43, 1
      %s918 = scalar_select %p917, %s43, 1
      %s919 = scalar_lea.vmem %s12, %s918
      %p920 = pneg %p373
      %p921 = pneg %p370
      %p922 = scmp.lt.s32.totalorder %s43, 1
      %s923 = scalar_select %p922, %s43, 1
      %s924 = scalar_lea.vmem %s13, %s923
      %p925 = pneg %p399
      %p926 = pneg %p396
      %p927 = scmp.lt.s32.totalorder %s43, 1
      %s928 = scalar_select %p927, %s43, 1
      %s929 = scalar_lea.vmem %s14, %s928
      %p930 = pneg %p425
      %p931 = pneg %p422
      %p932 = scmp.lt.s32.totalorder %s43, 1
      %s933 = scalar_select %p932, %s43, 1
      %s934 = smul.addr %s933, 4
      %s935 = smul.addr %s934, 4
      %s936 = scalar_lea.vmem %s15, %s935
      %p937 = pneg %p451
      %p938 = pneg %p448
      %p939 = scmp.lt.s32.totalorder %s43, 1
      %s940 = scalar_select %p939, %s43, 1
      %s941 = scalar_lea.vmem %s16, %s940
      %p942 = pneg %p477
      %p943 = pneg %p474
      %p944 = scmp.lt.s32.totalorder %s43, 1
      %s945 = scalar_select %p944, %s43, 1
      %s946 = smul.addr %s945, 8
      %s947 = smul.addr %s946, 4
      %s948 = scalar_lea.vmem %s17, %s947
      %p949 = pneg %p503
      %p950 = pneg %p500
      %p951 = scmp.lt.s32.totalorder %s43, 1
      %s952 = scalar_select %p951, %s43, 1
      %s953 = scalar_lea.vmem %s18, %s952
      %p954 = pneg %p529
      %p955 = pneg %p526
      %p956 = pneg %p550
      %p957 = pneg %p547
      %p958 = pneg %p571
      %p959 = pneg %p568
      %p960 = pneg %p592
      %p961 = pneg %p589
      %p962 = pneg %p613
      %p963 = pneg %p610
      %p964 = pneg %p634
      %p965 = pneg %p631
      %p966 = pneg %p655
      %p967 = pneg %p652
      %p968 = pneg %p681
      %p969 = pneg %p678
      %p970 = scmp.lt.s32.totalorder %s42, 0
      %s971 = scalar_select %p970, %s42, 0
      %s972 = smul.addr %s971, 2
      %s973 = scalar_lea.vmem %s25, %s972
      %p974 = scmp.lt.s32.totalorder %s42, 0
      %s975 = scalar_select %p974, %s42, 0
      %s976 = smul.addr %s975, 30
      %s977 = smul.addr %s976, 4
      %s978 = scalar_lea.vmem %s0, %s977
      %p979 = scmp.lt.s32.totalorder %s43, 1
      %s980 = scalar_select %p979, %s43, 1
      %s981 = scalar_lea.vmem %s3, %s980
      %p982 = scmp.lt.s32.totalorder %s43, 1
      %s983 = scalar_select %p982, %s43, 1
      %s984 = scalar_lea.vmem %s4, %s983
      %p985 = scmp.lt.s32.totalorder %s43, 1
      %s986 = scalar_select %p985, %s43, 1
      %s987 = smul.addr %s986, 8
      %s988 = smul.addr %s987, 4
      %s989 = scalar_lea.vmem %s5, %s988
      %p990 = scmp.lt.s32.totalorder %s43, 1
      %s991 = scalar_select %p990, %s43, 1
      %s992 = smul.addr %s991, 8
      %s993 = smul.addr %s992, 4
      %s994 = scalar_lea.vmem %s6, %s993
      %p995 = scmp.lt.s32.totalorder %s43, 1
      %s996 = scalar_select %p995, %s43, 1
      %s997 = smul.addr %s996, 8
      %s998 = smul.addr %s997, 4
      %s999 = scalar_lea.vmem %s7, %s998
      %p1000 = scmp.lt.s32.totalorder %s43, 1
      %s1001 = scalar_select %p1000, %s43, 1
      %s1002 = smul.addr %s1001, 2
      %s1003 = scalar_lea.vmem %s8, %s1002
      %p1004 = scmp.lt.s32.totalorder %s43, 1
      %s1005 = scalar_select %p1004, %s43, 1
      %s1006 = smul.addr %s1005, 2
      %s1007 = scalar_lea.vmem %s9, %s1006
      %p1008 = scmp.lt.s32.totalorder %s43, 1
      %s1009 = scalar_select %p1008, %s43, 1
      %s1010 = smul.addr %s1009, 2
      %s1011 = scalar_lea.vmem %s10, %s1010
      %p1012 = scmp.lt.s32.totalorder %s43, 1
      %s1013 = scalar_select %p1012, %s43, 1
      %s1014 = smul.addr %s1013, 4
      %s1015 = smul.addr %s1014, 4
      %s1016 = scalar_lea.vmem %s11, %s1015
      %p1017 = scmp.lt.s32.totalorder %s43, 1
      %s1018 = scalar_select %p1017, %s43, 1
      %s1019 = scalar_lea.vmem %s12, %s1018
      %p1020 = scmp.lt.s32.totalorder %s43, 1
      %s1021 = scalar_select %p1020, %s43, 1
      %s1022 = scalar_lea.vmem %s13, %s1021
      %p1023 = scmp.lt.s32.totalorder %s43, 1
      %s1024 = scalar_select %p1023, %s43, 1
      %s1025 = scalar_lea.vmem %s14, %s1024
      %p1026 = scmp.lt.s32.totalorder %s43, 1
      %s1027 = scalar_select %p1026, %s43, 1
      %s1028 = smul.addr %s1027, 4
      %s1029 = smul.addr %s1028, 4
      %s1030 = scalar_lea.vmem %s15, %s1029
      %p1031 = scmp.lt.s32.totalorder %s43, 1
      %s1032 = scalar_select %p1031, %s43, 1
      %s1033 = scalar_lea.vmem %s16, %s1032
      %p1034 = scmp.lt.s32.totalorder %s43, 1
      %s1035 = scalar_select %p1034, %s43, 1
      %s1036 = smul.addr %s1035, 8
      %s1037 = smul.addr %s1036, 4
      %s1038 = scalar_lea.vmem %s17, %s1037
      %p1039 = scmp.lt.s32.totalorder %s43, 1
      %s1040 = scalar_select %p1039, %s43, 1
      %s1041 = scalar_lea.vmem %s18, %s1040
      %p1042 = scmp.lt.s32.totalorder %s42, 0
      %s1043 = scalar_select %p1042, %s42, 0
      %s1044 = smul.addr %s1043, 2
      %s1045 = scalar_lea.vmem %s25, %s1044
      %p1047 = scmp.eq.s32.totalorder %s43, 0
      // Predicated region
      $region121: #{vit_mil_forward.1} parent=119 // pred_check
        %p1048 = pneg %p1047
      $region122: #{vit_mil_forward.1} parent=119 // pred_check_branch
        %1050 = sbr.rel (%p1048) target = $region124
      $region123: #{vit_mil_forward.1} parent=119 // pred_region
        %v1051 = vld [vmem:[%s978] sm:$0xff]
        %v1052 = vld [vmem:[%s978 + $0x8] sm:$0xff]
        %v1053 = vld [vmem:[%s978 + $0x10] sm:$0xff]
        %v1054 = vld [vmem:[%s978 + $0x18] sm:$0xff]
        %v1055 = vld [vmem:[%s978 + $0x20] sm:$0xff]
        %v1056 = vld [vmem:[%s978 + $0x28] sm:$0xff]
        %v1057 = vld [vmem:[%s978 + $0x30] sm:$0xff]
        %v1058 = vld [vmem:[%s978 + $0x38] sm:$0xff]
        %v1059 = vld [vmem:[%s978 + $0x40] sm:$0xff]
        %v1060 = vld [vmem:[%s978 + $0x48] sm:$0xff]
        %v1061 = vld [vmem:[%s978 + $0x50] sm:$0xff]
        %v1062 = vld [vmem:[%s978 + $0x58] sm:$0xff]
        %v1063 = vld [vmem:[%s978 + $0x60] sm:$0xff]
        %v1064 = vld [vmem:[%s978 + $0x68] sm:$0xff]
        %v1065 = vld [vmem:[%s978 + $0x70] sm:$0xff]
        %v1066 = vld [vmem:[%s1] sm:$0xf]
        %v1067 = vld [vmem:[%s1 + $0x4] sm:$0xf]
        %v1068 = vld [vmem:[%s1 + $0x8] sm:$0xf]
        %v1069 = vld [vmem:[%s1 + $0xc] sm:$0xf]
        %v1070 = vld [vmem:[%s1 + $0x10] sm:$0xf]
        %v1071 = vld [vmem:[%s1 + $0x14] sm:$0xf]
        %v1072 = vld [vmem:[%s1 + $0x18] sm:$0xf]
        %v1073 = vld [vmem:[%s1 + $0x1c] sm:$0xf]
        %v1074 = vld [vmem:[%s1 + $0x20] sm:$0xf]
        %v1075 = vld [vmem:[%s1 + $0x24] sm:$0xf]
        %v1076 = vld [vmem:[%s1 + $0x28] sm:$0xf]
        %v1077 = vld [vmem:[%s1 + $0x2c] sm:$0xf]
        %v1078 = vld [vmem:[%s1 + $0x30] sm:$0xf]
        %v1079 = vld [vmem:[%s1 + $0x34] sm:$0xf]
        %v1080 = vld [vmem:[%s1 + $0x38] sm:$0xf]
        %v1081 = vld [vmem:[%s1 + $0x3c] sm:$0xf]
        %v1082 = vld [vmem:[%s1 + $0x40] sm:$0xf]
        %v1083 = vld [vmem:[%s1 + $0x44] sm:$0xf]
        %v1084 = vld [vmem:[%s1 + $0x48] sm:$0xf]
        %v1085 = vld [vmem:[%s1 + $0x4c] sm:$0xf]
        %v1086 = vld [vmem:[%s1 + $0x50] sm:$0xf]
        %v1087 = vld [vmem:[%s1 + $0x54] sm:$0xf]
        %v1088 = vld [vmem:[%s1 + $0x58] sm:$0xf]
        %v1089 = vld [vmem:[%s1 + $0x5c] sm:$0xf]
        %v1090 = vld [vmem:[%s1 + $0x60] sm:$0xf]
        %v1091 = vld [vmem:[%s1 + $0x64] sm:$0xf]
        %v1092 = vld [vmem:[%s1 + $0x68] sm:$0xf]
        %v1093 = vld [vmem:[%s1 + $0x6c] sm:$0xf]
        %v1094 = vld [vmem:[%s1 + $0x70] sm:$0xf]
        %v1095 = vld [vmem:[%s1 + $0x74] sm:$0xf]
        %v1096 = vld [vmem:[%s1 + $0x78] sm:$0xf]
        %v1097 = vld [vmem:[%s1 + $0x7c] sm:$0xf]
        %v1098 = vld [vmem:[%s1 + $0x80] sm:$0xf]
        %v1099 = vld [vmem:[%s1 + $0x84] sm:$0xf]
        %v1100 = vld [vmem:[%s1 + $0x88] sm:$0xf]
        %v1101 = vld [vmem:[%s1 + $0x8c] sm:$0xf]
        %v1102 = vld [vmem:[%s1 + $0x90] sm:$0xf]
        %v1103 = vld [vmem:[%s1 + $0x94] sm:$0xf]
        %v1104 = vld [vmem:[%s1 + $0x98] sm:$0xf]
        %v1105 = vld [vmem:[%s1 + $0x9c] sm:$0xf]
        %v1106 = vld [vmem:[%s1 + $0xa0] sm:$0xf]
        %v1107 = vld [vmem:[%s1 + $0xa4] sm:$0xf]
        %v1108 = vld [vmem:[%s1 + $0xa8] sm:$0xf]
        %v1109 = vld [vmem:[%s1 + $0xac] sm:$0xf]
        %v1110 = vld [vmem:[%s1 + $0xb0] sm:$0xf]
        %v1111 = vld [vmem:[%s1 + $0xb4] sm:$0xf]
        %v1112 = vld [vmem:[%s1 + $0xb8] sm:$0xf]
        %v1113 = vld [vmem:[%s1 + $0xbc] sm:$0xf]
        %v1114 = vld [vmem:[%s1 + $0xc0] sm:$0xf]
        %v1115 = vld [vmem:[%s1 + $0xc4] sm:$0xf]
        %v1116 = vld [vmem:[%s1 + $0xc8] sm:$0xf]
        %v1117 = vld [vmem:[%s1 + $0xcc] sm:$0xf]
        %v1118 = vld [vmem:[%s1 + $0xd0] sm:$0xf]
        %v1119 = vld [vmem:[%s1 + $0xd4] sm:$0xf]
        %v1120 = vld [vmem:[%s1 + $0xd8] sm:$0xf]
        %v1121 = vld [vmem:[%s1 + $0xdc] sm:$0xf]
        %v1122 = vld [vmem:[%s1 + $0xe0] sm:$0xf]
        %v1123 = vld [vmem:[%s1 + $0xe4] sm:$0xf]
        %v1124 = vld [vmem:[%s1 + $0xe8] sm:$0xf]
        %v1125 = vld [vmem:[%s1 + $0xec] sm:$0xf]
        %v1126 = vld [vmem:[%s1 + $0xf0] sm:$0xf]
        %v1127 = vld [vmem:[%s1 + $0xf4] sm:$0xf]
        %v1128 = vld [vmem:[%s1 + $0xf8] sm:$0xf]
        %v1129 = vld [vmem:[%s1 + $0xfc] sm:$0xf]
        %v1130 = vld [vmem:[%s1 + $0x100] sm:$0xf]
        %v1131 = vld [vmem:[%s1 + $0x104] sm:$0xf]
        %v1132 = vld [vmem:[%s1 + $0x108] sm:$0xf]
        %v1133 = vld [vmem:[%s1 + $0x10c] sm:$0xf]
        %v1134 = vld [vmem:[%s1 + $0x110] sm:$0xf]
        %v1135 = vld [vmem:[%s1 + $0x114] sm:$0xf]
        %v1136 = vld [vmem:[%s1 + $0x118] sm:$0xf]
        %v1137 = vld [vmem:[%s1 + $0x11c] sm:$0xf]
        %v1138 = vld [vmem:[%s1 + $0x120] sm:$0xf]
        %v1139 = vld [vmem:[%s1 + $0x124] sm:$0xf]
        %v1140 = vld [vmem:[%s1 + $0x128] sm:$0xf]
        %v1141 = vld [vmem:[%s1 + $0x12c] sm:$0xf]
        %v1142 = vld [vmem:[%s1 + $0x130] sm:$0xf]
        %v1143 = vld [vmem:[%s1 + $0x134] sm:$0xf]
        %v1144 = vld [vmem:[%s1 + $0x138] sm:$0xf]
        %v1145 = vld [vmem:[%s1 + $0x13c] sm:$0xf]
        %v1146 = vld [vmem:[%s1 + $0x140] sm:$0xf]
        %v1147 = vld [vmem:[%s1 + $0x144] sm:$0xf]
        %v1148 = vld [vmem:[%s1 + $0x148] sm:$0xf]
        %v1149 = vld [vmem:[%s1 + $0x14c] sm:$0xf]
        %v1150 = vld [vmem:[%s1 + $0x150] sm:$0xf]
        %v1151 = vld [vmem:[%s1 + $0x154] sm:$0xf]
        %v1152 = vld [vmem:[%s1 + $0x158] sm:$0xf]
        %v1153 = vld [vmem:[%s1 + $0x15c] sm:$0xf]
        %v1154 = vld [vmem:[%s1 + $0x160] sm:$0xf]
        %v1155 = vld [vmem:[%s1 + $0x164] sm:$0xf]
        %v1156 = vld [vmem:[%s1 + $0x168] sm:$0xf]
        %v1157 = vld [vmem:[%s1 + $0x16c] sm:$0xf]
        %v1158 = vld [vmem:[%s1 + $0x170] sm:$0xf]
        %v1159 = vld [vmem:[%s1 + $0x174] sm:$0xf]
        %v1160 = vld [vmem:[%s1 + $0x178] sm:$0xf]
        %v1161 = vld [vmem:[%s1 + $0x17c] sm:$0xf]
        %v1162 = vld [vmem:[%s2] sm:$0x1f]
        %v1164 = vrot.slane %v1162, 3
        %v1166 = vrot.slane %v1162, 6
        %v1168 = vrot.slane %v1162, 1
        %v1170 = vrot.slane %v1162, 4
        %v1172 = vrot.slane %v1162, 7
        %v1174 = vrot.slane %v1162, 2
        %v1176 = vrot.slane %v1162, 5
        %vm1178 = vcmask 1044480
        %v1179 = vsel %vm1178, %v1162, %v1164
        %vm1180 = vcmask 1041408
        %v1181 = vsel %vm1180, %v1164, %v1166
        %vm1182 = vcmask 1046528
        %v1183 = vsel %vm1182, %v1181, %v1168
        %vm1184 = vcmask 1043456
        %v1185 = vsel %vm1184, %v1168, %v1170
        %vm1186 = vcmask 1040384
        %v1187 = vsel %vm1186, %v1170, %v1172
        %vm1188 = vcmask 1045504
        %v1189 = vsel %vm1188, %v1187, %v1174
        %vm1190 = vcmask 1042432
        %v1191 = vsel %vm1190, %v1174, %v1176
        %v1207 = vunpack.c.l.b16 %v1051
        %v1208 = vunpack.c.h.b16 %v1051
        %v1209 = vunpack.c.l.b16 %v1052
        %v1210 = vunpack.c.h.b16 %v1052
        %v1211 = vunpack.c.l.b16 %v1053
        %v1212 = vunpack.c.h.b16 %v1053
        %v1213 = vunpack.c.l.b16 %v1054
        %v1214 = vunpack.c.h.b16 %v1054
        %v1215 = vunpack.c.l.b16 %v1055
        %v1216 = vunpack.c.h.b16 %v1055
        %v1217 = vunpack.c.l.b16 %v1056
        %v1218 = vunpack.c.h.b16 %v1056
        %v1219 = vunpack.c.l.b16 %v1057
        %v1220 = vunpack.c.h.b16 %v1057
        %v1221 = vunpack.c.l.b16 %v1058
        %v1222 = vunpack.c.h.b16 %v1058
        %v1223 = vunpack.c.l.b16 %v1059
        %v1224 = vunpack.c.h.b16 %v1059
        %v1225 = vunpack.c.l.b16 %v1060
        %v1226 = vunpack.c.h.b16 %v1060
        %v1227 = vunpack.c.l.b16 %v1061
        %v1228 = vunpack.c.h.b16 %v1061
        %v1229 = vunpack.c.l.b16 %v1062
        %v1230 = vunpack.c.h.b16 %v1062
        %v1231 = vunpack.c.l.b16 %v1063
        %v1232 = vunpack.c.h.b16 %v1063
        %v1233 = vunpack.c.l.b16 %v1064
        %v1234 = vunpack.c.h.b16 %v1064
        %v1235 = vunpack.c.l.b16 %v1065
        %v1236 = vunpack.c.h.b16 %v1065
        %v1237 = vpack.c.b16 %v1213, %v1207
        %v1238 = vpack.c.b16 %v1214, %v1208
        %v1239 = vpack.c.b16 %v1215, %v1209
        %v1240 = vpack.c.b16 %v1216, %v1210
        %v1241 = vpack.c.b16 %v1217, %v1211
        %v1242 = vpack.c.b16 %v1218, %v1212
        %v1243 = vpack.c.b16 %v1225, %v1219
        %v1244 = vpack.c.b16 %v1226, %v1220
        %v1245 = vpack.c.b16 %v1227, %v1221
        %v1246 = vpack.c.b16 %v1228, %v1222
        %v1247 = vpack.c.b16 %v1229, %v1223
        %v1248 = vpack.c.b16 %v1230, %v1224
        %v1249 = vpack.c.b16 %v1231, %v1231
        %v1250 = vpack.c.b16 %v1232, %v1232
        %v1251 = vpack.c.b16 %v1233, %v1233
        %v1252 = vpack.c.b16 %v1234, %v1234
        %v1253 = vpack.c.b16 %v1235, %v1235
        %v1254 = vpack.c.b16 %v1236, %v1236
        %v1369 = vunpack.c.l.b16 %v1066
        %v1370 = vunpack.c.l.b16 %v1067
        %v1371 = vunpack.c.l.b16 %v1068
        %v1372 = vunpack.c.l.b16 %v1069
        %v1373 = vunpack.c.l.b16 %v1070
        %v1374 = vunpack.c.l.b16 %v1071
        %v1375 = vunpack.c.l.b16 %v1072
        %v1376 = vunpack.c.l.b16 %v1073
        %v1377 = vunpack.c.l.b16 %v1074
        %v1378 = vunpack.c.l.b16 %v1075
        %v1379 = vunpack.c.l.b16 %v1076
        %v1380 = vunpack.c.l.b16 %v1077
        %v1381 = vunpack.c.l.b16 %v1078
        %v1382 = vunpack.c.l.b16 %v1079
        %v1383 = vunpack.c.l.b16 %v1080
        %v1384 = vunpack.c.l.b16 %v1081
        %v1385 = vunpack.c.l.b16 %v1082
        %v1386 = vunpack.c.l.b16 %v1083
        %v1387 = vunpack.c.l.b16 %v1084
        %v1388 = vunpack.c.l.b16 %v1085
        %v1389 = vunpack.c.l.b16 %v1086
        %v1390 = vunpack.c.l.b16 %v1087
        %v1391 = vunpack.c.l.b16 %v1088
        %v1392 = vunpack.c.l.b16 %v1089
        %v1393 = vunpack.c.l.b16 %v1090
        %v1394 = vunpack.c.l.b16 %v1091
        %v1395 = vunpack.c.l.b16 %v1092
        %v1396 = vunpack.c.l.b16 %v1093
        %v1397 = vunpack.c.l.b16 %v1094
        %v1398 = vunpack.c.l.b16 %v1095
        %v1399 = vunpack.c.l.b16 %v1096
        %v1400 = vunpack.c.l.b16 %v1097
        %v1401 = vunpack.c.l.b16 %v1098
        %v1402 = vunpack.c.l.b16 %v1099
        %v1403 = vunpack.c.l.b16 %v1100
        %v1404 = vunpack.c.l.b16 %v1101
        %v1405 = vunpack.c.l.b16 %v1102
        %v1406 = vunpack.c.l.b16 %v1103
        %v1407 = vunpack.c.l.b16 %v1104
        %v1408 = vunpack.c.l.b16 %v1105
        %v1409 = vunpack.c.l.b16 %v1106
        %v1410 = vunpack.c.l.b16 %v1107
        %v1411 = vunpack.c.l.b16 %v1108
        %v1412 = vunpack.c.l.b16 %v1109
        %v1413 = vunpack.c.l.b16 %v1110
        %v1414 = vunpack.c.l.b16 %v1111
        %v1415 = vunpack.c.l.b16 %v1112
        %v1416 = vunpack.c.l.b16 %v1113
        %v1417 = vunpack.c.l.b16 %v1114
        %v1418 = vunpack.c.l.b16 %v1115
        %v1419 = vunpack.c.l.b16 %v1116
        %v1420 = vunpack.c.l.b16 %v1117
        %v1421 = vunpack.c.l.b16 %v1118
        %v1422 = vunpack.c.l.b16 %v1119
        %v1423 = vunpack.c.l.b16 %v1120
        %v1424 = vunpack.c.l.b16 %v1121
        %v1425 = vunpack.c.l.b16 %v1122
        %v1426 = vunpack.c.l.b16 %v1123
        %v1427 = vunpack.c.l.b16 %v1124
        %v1428 = vunpack.c.l.b16 %v1125
        %v1429 = vunpack.c.l.b16 %v1126
        %v1430 = vunpack.c.l.b16 %v1127
        %v1431 = vunpack.c.l.b16 %v1128
        %v1432 = vunpack.c.l.b16 %v1129
        %v1433 = vunpack.c.l.b16 %v1130
        %v1434 = vunpack.c.l.b16 %v1131
        %v1435 = vunpack.c.l.b16 %v1132
        %v1436 = vunpack.c.l.b16 %v1133
        %v1437 = vunpack.c.l.b16 %v1134
        %v1438 = vunpack.c.l.b16 %v1135
        %v1439 = vunpack.c.l.b16 %v1136
        %v1440 = vunpack.c.l.b16 %v1137
        %v1441 = vunpack.c.l.b16 %v1138
        %v1442 = vunpack.c.l.b16 %v1139
        %v1443 = vunpack.c.l.b16 %v1140
        %v1444 = vunpack.c.l.b16 %v1141
        %v1445 = vunpack.c.l.b16 %v1142
        %v1446 = vunpack.c.l.b16 %v1143
        %v1447 = vunpack.c.l.b16 %v1144
        %v1448 = vunpack.c.l.b16 %v1145
        %v1449 = vunpack.c.l.b16 %v1146
        %v1450 = vunpack.c.l.b16 %v1147
        %v1451 = vunpack.c.l.b16 %v1148
        %v1452 = vunpack.c.l.b16 %v1149
        %v1453 = vunpack.c.l.b16 %v1150
        %v1454 = vunpack.c.l.b16 %v1151
        %v1455 = vunpack.c.l.b16 %v1152
        %v1456 = vunpack.c.l.b16 %v1153
        %v1457 = vunpack.c.l.b16 %v1154
        %v1458 = vunpack.c.l.b16 %v1155
        %v1459 = vunpack.c.l.b16 %v1156
        %v1460 = vunpack.c.l.b16 %v1157
        %v1461 = vunpack.c.l.b16 %v1158
        %v1462 = vunpack.c.l.b16 %v1159
        %v1463 = vunpack.c.l.b16 %v1160
        %v1464 = vunpack.c.l.b16 %v1161
        %v1465 = vpack.c.b16 %v1370, %v1369
        %v1466 = vpack.c.b16 %v1372, %v1371
        %v1467 = vpack.c.b16 %v1374, %v1373
        %v1468 = vpack.c.b16 %v1376, %v1375
        %v1469 = vpack.c.b16 %v1378, %v1377
        %v1470 = vpack.c.b16 %v1380, %v1379
        %v1471 = vpack.c.b16 %v1382, %v1381
        %v1472 = vpack.c.b16 %v1384, %v1383
        %v1473 = vpack.c.b16 %v1386, %v1385
        %v1474 = vpack.c.b16 %v1388, %v1387
        %v1475 = vpack.c.b16 %v1390, %v1389
        %v1476 = vpack.c.b16 %v1392, %v1391
        %v1477 = vpack.c.b16 %v1394, %v1393
        %v1478 = vpack.c.b16 %v1396, %v1395
        %v1479 = vpack.c.b16 %v1398, %v1397
        %v1480 = vpack.c.b16 %v1400, %v1399
        %v1481 = vpack.c.b16 %v1402, %v1401
        %v1482 = vpack.c.b16 %v1404, %v1403
        %v1483 = vpack.c.b16 %v1406, %v1405
        %v1484 = vpack.c.b16 %v1408, %v1407
        %v1485 = vpack.c.b16 %v1410, %v1409
        %v1486 = vpack.c.b16 %v1412, %v1411
        %v1487 = vpack.c.b16 %v1414, %v1413
        %v1488 = vpack.c.b16 %v1416, %v1415
        %v1489 = vpack.c.b16 %v1418, %v1417
        %v1490 = vpack.c.b16 %v1420, %v1419
        %v1491 = vpack.c.b16 %v1422, %v1421
        %v1492 = vpack.c.b16 %v1424, %v1423
        %v1493 = vpack.c.b16 %v1426, %v1425
        %v1494 = vpack.c.b16 %v1428, %v1427
        %v1495 = vpack.c.b16 %v1430, %v1429
        %v1496 = vpack.c.b16 %v1432, %v1431
        %v1497 = vpack.c.b16 %v1434, %v1433
        %v1498 = vpack.c.b16 %v1436, %v1435
        %v1499 = vpack.c.b16 %v1438, %v1437
        %v1500 = vpack.c.b16 %v1440, %v1439
        %v1501 = vpack.c.b16 %v1442, %v1441
        %v1502 = vpack.c.b16 %v1444, %v1443
        %v1503 = vpack.c.b16 %v1446, %v1445
        %v1504 = vpack.c.b16 %v1448, %v1447
        %v1505 = vpack.c.b16 %v1450, %v1449
        %v1506 = vpack.c.b16 %v1452, %v1451
        %v1507 = vpack.c.b16 %v1454, %v1453
        %v1508 = vpack.c.b16 %v1456, %v1455
        %v1509 = vpack.c.b16 %v1458, %v1457
        %v1510 = vpack.c.b16 %v1460, %v1459
        %v1511 = vpack.c.b16 %v1462, %v1461
        %v1512 = vpack.c.b16 %v1464, %v1463
        %1561 = vmatprep.subr.bf16.mxu0 0
        %1562 = vmatpush1.bf16.msra.mxu0 %v1465
        %1563 = vmatprep.subr.bf16.mxu0 0
        %1564 = vmatpush1.bf16.msra.mxu0 %v1466
        %1565 = vmatprep.subr.bf16.mxu0 0
        %1566 = vmatpush1.bf16.msra.mxu0 %v1467
        %1567 = vmatprep.subr.bf16.mxu0 0
        %1568 = vmatpush1.bf16.msra.mxu0 %v1468
        %1569 = vmatprep.subr.bf16.mxu0 0
        %1570 = vmatpush1.bf16.msra.mxu0 %v1469
        %1571 = vmatprep.subr.bf16.mxu0 0
        %1572 = vmatpush1.bf16.msra.mxu0 %v1470
        %1573 = vmatprep.subr.bf16.mxu0 0
        %1574 = vmatpush1.bf16.msra.mxu0 %v1471
        %1575 = vmatprep.subr.bf16.mxu0 0
        %1576 = vmatpush1.bf16.msra.mxu0 %v1472
        %1577 = vmatprep.subr.bf16.mxu0 0
        %1578 = vmatpush1.bf16.msra.mxu0 %v1473
        %1579 = vmatprep.subr.bf16.mxu0 0
        %1580 = vmatpush1.bf16.msra.mxu0 %v1474
        %1581 = vmatprep.subr.bf16.mxu0 0
        %1582 = vmatpush1.bf16.msra.mxu0 %v1475
        %1583 = vmatprep.subr.bf16.mxu0 0
        %1584 = vmatpush1.bf16.msra.mxu0 %v1476
        %1585 = vmatprep.subr.bf16.mxu0 0
        %1586 = vmatpush1.bf16.msra.mxu0 %v1477
        %1587 = vmatprep.subr.bf16.mxu0 0
        %1588 = vmatpush1.bf16.msra.mxu0 %v1478
        %1589 = vmatprep.subr.bf16.mxu0 0
        %1590 = vmatpush1.bf16.msra.mxu0 %v1479
        %1591 = vmatprep.subr.bf16.mxu0 0
        %1592 = vmatpush1.bf16.msra.mxu0 %v1480
        %1593 = vmatprep.mubr.bf16.mxu0 %v1238
        %1594 = vmatmul.mubr.bf16.gmra.mrb[0].mxu0 %v1237
        %v1595 = vpop.f32.mrb[0].mxu0
        %v1596 = vadd.f32 %v1179, %v1595
        %v1597 = vpop.f32.mrb[0].mxu0
        %v1598 = vpop.f32.mrb[0].mxu0
        %v1599 = vadd.f32 %v1183, %v1598
        %v1600 = vpop.f32.mrb[0].mxu0
        %1601 = vmatprep.mubr.bf16.mxu0 %v1244
        %1602 = vmatmul.mubr.bf16.gmra.mrb[0].mxu0 %v1243
        %v1603 = vpop.f32.mrb[0].mxu0
        %v1604 = vadd.f32 %v1185, %v1603
        %v1605 = vpop.f32.mrb[0].mxu0
        %v1606 = vpop.f32.mrb[0].mxu0
        %v1607 = vadd.f32 %v1189, %v1606
        %v1608 = vpop.f32.mrb[0].mxu0
        %1609 = vmatprep.mubr.bf16.mxu0 %v1250
        %1610 = vmatmul.mubr.bf16.gmra.mrb[0].mxu0 %v1249
        %v1611 = vpop.f32.mrb[0].mxu0
        %v1612 = vadd.f32 %v1191, %v1611
        %v1613 = vpop.f32.mrb[0].mxu0
        %v1614 = vpop.f32.mrb[0].mxu0
        %v1615 = vpop.f32.mrb[0].mxu0
        %1616 = vdwg.mxu0
        %1617 = vmatprep.subr.bf16.mxu0 0
        %1618 = vmatpush1.bf16.msra.mxu0 %v1481
        %1619 = vmatprep.subr.bf16.mxu0 0
        %1620 = vmatpush1.bf16.msra.mxu0 %v1482
        %1621 = vmatprep.subr.bf16.mxu0 0
        %1622 = vmatpush1.bf16.msra.mxu0 %v1483
        %1623 = vmatprep.subr.bf16.mxu0 0
        %1624 = vmatpush1.bf16.msra.mxu0 %v1484
        %1625 = vmatprep.subr.bf16.mxu0 0
        %1626 = vmatpush1.bf16.msra.mxu0 %v1485
        %1627 = vmatprep.subr.bf16.mxu0 0
        %1628 = vmatpush1.bf16.msra.mxu0 %v1486
        %1629 = vmatprep.subr.bf16.mxu0 0
        %1630 = vmatpush1.bf16.msra.mxu0 %v1487
        %1631 = vmatprep.subr.bf16.mxu0 0
        %1632 = vmatpush1.bf16.msra.mxu0 %v1488
        %1633 = vmatprep.subr.bf16.mxu0 0
        %1634 = vmatpush1.bf16.msra.mxu0 %v1489
        %1635 = vmatprep.subr.bf16.mxu0 0
        %1636 = vmatpush1.bf16.msra.mxu0 %v1490
        %1637 = vmatprep.subr.bf16.mxu0 0
        %1638 = vmatpush1.bf16.msra.mxu0 %v1491
        %1639 = vmatprep.subr.bf16.mxu0 0
        %1640 = vmatpush1.bf16.msra.mxu0 %v1492
        %1641 = vmatprep.subr.bf16.mxu0 0
        %1642 = vmatpush1.bf16.msra.mxu0 %v1493
        %1643 = vmatprep.subr.bf16.mxu0 0
        %1644 = vmatpush1.bf16.msra.mxu0 %v1494
        %1645 = vmatprep.subr.bf16.mxu0 0
        %1646 = vmatpush1.bf16.msra.mxu0 %v1495
        %1647 = vmatprep.subr.bf16.mxu0 0
        %1648 = vmatpush1.bf16.msra.mxu0 %v1496
        %1649 = vmatprep.mubr.bf16.mxu0 %v1240
        %1650 = vmatmul.mubr.bf16.gmra.mrb[0].mxu0 %v1239
        %v1651 = vpop.f32.mrb[0].mxu0
        %v1652 = vadd.f32 %v1596, %v1651
        %v1653 = vpop.f32.mrb[0].mxu0
        %v1654 = vpop.f32.mrb[0].mxu0
        %v1655 = vadd.f32 %v1599, %v1654
        %v1656 = vpop.f32.mrb[0].mxu0
        %1657 = vmatprep.mubr.bf16.mxu0 %v1246
        %1658 = vmatmul.mubr.bf16.gmra.mrb[0].mxu0 %v1245
        %v1659 = vpop.f32.mrb[0].mxu0
        %v1660 = vadd.f32 %v1604, %v1659
        %v1661 = vpop.f32.mrb[0].mxu0
        %v1662 = vpop.f32.mrb[0].mxu0
        %v1663 = vadd.f32 %v1607, %v1662
        %v1664 = vpop.f32.mrb[0].mxu0
        %1665 = vmatprep.mubr.bf16.mxu0 %v1252
        %1666 = vmatmul.mubr.bf16.gmra.mrb[0].mxu0 %v1251
        %v1667 = vpop.f32.mrb[0].mxu0
        %v1668 = vadd.f32 %v1612, %v1667
        %v1669 = vpop.f32.mrb[0].mxu0
        %v1670 = vpop.f32.mrb[0].mxu0
        %v1671 = vpop.f32.mrb[0].mxu0
        %1672 = vdwg.mxu0
        %1673 = vmatprep.subr.bf16.mxu0 0
        %1674 = vmatpush1.bf16.msra.mxu0 %v1497
        %1675 = vmatprep.subr.bf16.mxu0 0
        %1676 = vmatpush1.bf16.msra.mxu0 %v1498
        %1677 = vmatprep.subr.bf16.mxu0 0
        %1678 = vmatpush1.bf16.msra.mxu0 %v1499
        %1679 = vmatprep.subr.bf16.mxu0 0
        %1680 = vmatpush1.bf16.msra.mxu0 %v1500
        %1681 = vmatprep.subr.bf16.mxu0 0
        %1682 = vmatpush1.bf16.msra.mxu0 %v1501
        %1683 = vmatprep.subr.bf16.mxu0 0
        %1684 = vmatpush1.bf16.msra.mxu0 %v1502
        %1685 = vmatprep.subr.bf16.mxu0 0
        %1686 = vmatpush1.bf16.msra.mxu0 %v1503
        %1687 = vmatprep.subr.bf16.mxu0 0
        %1688 = vmatpush1.bf16.msra.mxu0 %v1504
        %1689 = vmatprep.subr.bf16.mxu0 0
        %1690 = vmatpush1.bf16.msra.mxu0 %v1505
        %1691 = vmatprep.subr.bf16.mxu0 0
        %1692 = vmatpush1.bf16.msra.mxu0 %v1506
        %1693 = vmatprep.subr.bf16.mxu0 0
        %1694 = vmatpush1.bf16.msra.mxu0 %v1507
        %1695 = vmatprep.subr.bf16.mxu0 0
        %1696 = vmatpush1.bf16.msra.mxu0 %v1508
        %1697 = vmatprep.subr.bf16.mxu0 0
        %1698 = vmatpush1.bf16.msra.mxu0 %v1509
        %1699 = vmatprep.subr.bf16.mxu0 0
        %1700 = vmatpush1.bf16.msra.mxu0 %v1510
        %1701 = vmatprep.subr.bf16.mxu0 0
        %1702 = vmatpush1.bf16.msra.mxu0 %v1511
        %1703 = vmatprep.subr.bf16.mxu0 0
        %1704 = vmatpush1.bf16.msra.mxu0 %v1512
        %1705 = vmatprep.mubr.bf16.mxu0 %v1242
        %1706 = vmatmul.mubr.bf16.gmra.mrb[0].mxu0 %v1241
        %v1707 = vpop.f32.mrb[0].mxu0
        %v1708 = vadd.f32 %v1652, %v1707
        %v1709 = vpop.f32.mrb[0].mxu0
        %v1710 = vpop.f32.mrb[0].mxu0
        %v1711 = vadd.f32 %v1655, %v1710
        %v1712 = vpop.f32.mrb[0].mxu0
        %1713 = vmatprep.mubr.bf16.mxu0 %v1248
        %1714 = vmatmul.mubr.bf16.gmra.mrb[0].mxu0 %v1247
        %v1715 = vpop.f32.mrb[0].mxu0
        %v1716 = vadd.f32 %v1660, %v1715
        %v1717 = vpop.f32.mrb[0].mxu0
        %v1718 = vpop.f32.mrb[0].mxu0
        %v1719 = vadd.f32 %v1663, %v1718
        %v1720 = vpop.f32.mrb[0].mxu0
        %1721 = vmatprep.mubr.bf16.mxu0 %v1254
        %1722 = vmatmul.mubr.bf16.gmra.mrb[0].mxu0 %v1253
        %v1723 = vpop.f32.mrb[0].mxu0
        %v1724 = vadd.f32 %v1668, %v1723
        %v1725 = vpop.f32.mrb[0].mxu0
        %v1726 = vpop.f32.mrb[0].mxu0
        %v1727 = vpop.f32.mrb[0].mxu0
        %1728 = vdwg.mxu0
        %vm1729 = vcmask 261120
        %1730 = vst.msk [vmem:[#allocation2] sm:$0xff] %vm1729, %v1708
        %1731 = vst.msk [vmem:[#allocation2 + $0x8] sm:$0xff] %vm1729, %v1711
        %1732 = vst.msk [vmem:[#allocation2 + $0x10] sm:$0xff] %vm1729, %v1716
        %1733 = vst.msk [vmem:[#allocation2 + $0x18] sm:$0xff] %vm1729, %v1719
        %1734 = vst.msk [vmem:[#allocation2 + $0x20] sm:$0xff] %vm1729, %v1724
      $region124: #{vit_mil_forward.1} parent=119 // pred_fallthru
        _
      %v1735 = vld [vmem:[#allocation2] sm:$0xff]
      %v1736 = vld [vmem:[#allocation2 + $0x8] sm:$0xff]
      %v1737 = vld [vmem:[#allocation2 + $0x10] sm:$0xff]
      %v1738 = vld [vmem:[#allocation2 + $0x18] sm:$0xff]
      %v1739 = vld [vmem:[#allocation2 + $0x20] sm:$0xff]
      %v1740 = vld [vmem:[%s981] sm:$0x1]
      %v1741 = vld [vmem:[%s984] sm:$0x1]
      %vm1742 = vcmask 261120
      %v1743 = vsel %vm1742, %v1735, 0.0
      %1744 = vadd.xlane.f32.xlu0 %v1743
      %v1745 = vpop.xlane.xlu0 %1744
      %v1746 = vsel %vm1742, %v1736, 0.0
      %1747 = vadd.xlane.f32.xlu0 %v1746
      %v1748 = vpop.xlane.xlu0 %1747
      %v1749 = vsel %vm1742, %v1737, 0.0
      %1750 = vadd.xlane.f32.xlu0 %v1749
      %v1751 = vpop.xlane.xlu0 %1750
      %v1752 = vsel %vm1742, %v1738, 0.0
      %1753 = vadd.xlane.f32.xlu0 %v1752
      %v1754 = vpop.xlane.xlu0 %1753
      %v1755 = vsel %vm1742, %v1739, 0.0
      %1756 = vadd.xlane.f32.xlu0 %v1755
      %v1757 = vpop.xlane.xlu0 %1756
      %v1758 = vrcp.pop 32.0
      %v1759 = vmul.f32 %v1745, %v1758
      %v1760 = vmul.f32 %v1748, %v1758
      %v1761 = vmul.f32 %v1751, %v1758
      %v1762 = vmul.f32 %v1754, %v1758
      %v1763 = vmul.f32 %v1757, %v1758
      %v1764 = vsub.f32 %v1735, %v1759
      %v1765 = vsub.f32 %v1736, %v1760
      %v1766 = vsub.f32 %v1737, %v1761
      %v1767 = vsub.f32 %v1738, %v1762
      %v1768 = vsub.f32 %v1739, %v1763
      %v1769 = vmul.f32 %v1764, %v1764
      %v1770 = vmul.f32 %v1765, %v1765
      %v1771 = vmul.f32 %v1766, %v1766
      %v1772 = vmul.f32 %v1767, %v1767
      %v1773 = vmul.f32 %v1768, %v1768
      %v1774 = vsel %vm1742, %v1769, 0.0
      %1775 = vadd.xlane.f32.xlu0 %v1774
      %v1776 = vpop.xlane.xlu0 %1775
      %v1777 = vsel %vm1742, %v1770, 0.0
      %1778 = vadd.xlane.f32.xlu0 %v1777
      %v1779 = vpop.xlane.xlu0 %1778
      %v1780 = vsel %vm1742, %v1771, 0.0
      %1781 = vadd.xlane.f32.xlu0 %v1780
      %v1782 = vpop.xlane.xlu0 %1781
      %v1783 = vsel %vm1742, %v1772, 0.0
      %1784 = vadd.xlane.f32.xlu0 %v1783
      %v1785 = vpop.xlane.xlu0 %1784
      %v1786 = vsel %vm1742, %v1773, 0.0
      %1787 = vadd.xlane.f32.xlu0 %v1786
      %v1788 = vpop.xlane.xlu0 %1787
      %v1789 = vmul.f32 %v1776, %v1758
      %v1790 = vmul.f32 %v1779, %v1758
      %v1791 = vmul.f32 %v1782, %v1758
      %v1792 = vmul.f32 %v1785, %v1758
      %v1793 = vmul.f32 %v1788, %v1758
      %v1794 = vadd.f32 %v1789, 1e-06
      %v1795 = vadd.f32 %v1790, 1e-06
      %v1796 = vadd.f32 %v1791, 1e-06
      %v1797 = vadd.f32 %v1792, 1e-06
      %v1798 = vadd.f32 %v1793, 1e-06
      %v1799 = vrsqrt.pop %v1794
      %v1800 = vrsqrt.pop %v1795
      %v1801 = vrsqrt.pop %v1796
      %v1802 = vrsqrt.pop %v1797
      %v1803 = vrsqrt.pop %v1798
      %v1804 = vmul.f32 %v1764, %v1799
      %v1805 = vmul.f32 %v1765, %v1800
      %v1806 = vmul.f32 %v1766, %v1801
      %v1807 = vmul.f32 %v1767, %v1802
      %v1808 = vmul.f32 %v1768, %v1803
      %v1810 = vlaneseq
      %v1811 = vshrl.u32 %v1810, 7
      %v1812 = vsub.s32 0, %v1811
      %v1813 = vrot.slane %v1740, %v1812
      %v1815 = vmul.f32 %v1804, %v1813
      %v1816 = vmul.f32 %v1805, %v1813
      %v1817 = vmul.f32 %v1806, %v1813
      %v1818 = vmul.f32 %v1807, %v1813
      %v1819 = vmul.f32 %v1808, %v1813
      %v1821 = vlaneseq
      %v1822 = vshrl.u32 %v1821, 7
      %v1823 = vsub.s32 0, %v1822
      %v1824 = vrot.slane %v1741, %v1823
      %v1826 = vadd.f32 %v1815, %v1824
      %v1827 = vadd.f32 %v1816, %v1824
      %v1828 = vadd.f32 %v1817, %v1824
      %v1829 = vadd.f32 %v1818, %v1824
      %v1830 = vadd.f32 %v1819, %v1824
      %v1831 = vpack.c.bf16 %v1827, %v1826
      %v1832 = vpack.c.bf16 %v1829, %v1828
      %v1833 = vpack.c.bf16 %v1830, %v1830
      %v1834 = vld [vmem:[%s989] sm:$0xf]
      %v1835 = vld [vmem:[%s989 + $0x4] sm:$0xf]
      %v1836 = vld [vmem:[%s989 + $0x8] sm:$0xf]
      %v1837 = vld [vmem:[%s989 + $0xc] sm:$0xf]
      %v1838 = vld [vmem:[%s1003] sm:$0x1]
      %v1840 = vlaneseq
      %v1841 = vshrl.u32 %v1840, 7
      %v1842 = vsub.s32 0, %v1841
      %v1843 = vrot.slane %v1838, %v1842
      %v1849 = vunpack.c.l.b16 %v1834
      %v1850 = vunpack.c.l.b16 %v1835
      %v1851 = vunpack.c.l.b16 %v1836
      %v1852 = vunpack.c.l.b16 %v1837
      %v1853 = vpack.c.b16 %v1850, %v1849
      %v1854 = vpack.c.b16 %v1852, %v1851
      %v1858 = vsel %vm1742, %v1831, 0
      %v1861 = vsel %vm1742, %v1832, 0
      %v1864 = vsel %vm1742, %v1833, 0
      %1866 = vmatprep.subr.bf16.mxu0 0
      %1867 = vmatpush1.bf16.msra.mxu0 %v1853
      %1868 = vmatprep.subr.bf16.mxu0 0
      %1869 = vmatpush1.bf16.msra.mxu0 %v1854
      %1870 = vmatprep.subr.bf16.mxu0 0
      %1871 = vmatpush1.bf16.msra.mxu0 0
      %1872 = vmatprep.subr.bf16.mxu0 0
      %1873 = vmatpush1.bf16.msra.mxu0 0
      %1874 = vmatprep.subr.bf16.mxu0 0
      %1875 = vmatpush1.bf16.msra.mxu0 0
      %1876 = vmatprep.subr.bf16.mxu0 0
      %1877 = vmatpush1.bf16.msra.mxu0 0
      %1878 = vmatprep.subr.bf16.mxu0 0
      %1879 = vmatpush1.bf16.msra.mxu0 0
      %1880 = vmatprep.subr.bf16.mxu0 0
      %1881 = vmatpush1.bf16.msra.mxu0 0
      %1882 = vmatprep.subr.bf16.mxu0 0
      %1883 = vmatpush1.bf16.msra.mxu0 0
      %1884 = vmatprep.subr.bf16.mxu0 0
      %1885 = vmatpush1.bf16.msra.mxu0 0
      %1886 = vmatprep.subr.bf16.mxu0 0
      %1887 = vmatpush1.bf16.msra.mxu0 0
      %1888 = vmatprep.subr.bf16.mxu0 0
      %1889 = vmatpush1.bf16.msra.mxu0 0
      %1890 = vmatprep.subr.bf16.mxu0 0
      %1891 = vmatpush1.bf16.msra.mxu0 0
      %1892 = vmatprep.subr.bf16.mxu0 0
      %1893 = vmatpush1.bf16.msra.mxu0 0
      %1894 = vmatprep.subr.bf16.mxu0 0
      %1895 = vmatpush1.bf16.msra.mxu0 0
      %1896 = vmatprep.subr.bf16.mxu0 0
      %1897 = vmatpush1.bf16.msra.mxu0 0
      %1898 = vmatprep.mubr.bf16.mxu0 0
      %1899 = vmatmul.mubr.bf16.gmra.mrb[0].mxu0 %v1858
      %v1900 = vpop.f32.mrb[0].mxu0
      %v1901 = vadd.f32 %v1843, %v1900
      %v1902 = vpop.f32.mrb[0].mxu0
      %v1903 = vpop.f32.mrb[0].mxu0
      %v1904 = vadd.f32 %v1843, %v1903
      %v1905 = vpop.f32.mrb[0].mxu0
      %1906 = vmatprep.mubr.bf16.mxu0 0
      %1907 = vmatmul.mubr.bf16.gmra.mrb[0].mxu0 %v1861
      %v1908 = vpop.f32.mrb[0].mxu0
      %v1909 = vadd.f32 %v1843, %v1908
      %v1910 = vpop.f32.mrb[0].mxu0
      %v1911 = vpop.f32.mrb[0].mxu0
      %v1912 = vadd.f32 %v1843, %v1911
      %v1913 = vpop.f32.mrb[0].mxu0
      %1914 = vmatprep.mubr.bf16.mxu0 0
      %1915 = vmatmul.mubr.bf16.gmra.mrb[0].mxu0 %v1864
      %v1916 = vpop.f32.mrb[0].mxu0
      %v1917 = vadd.f32 %v1843, %v1916
      %v1918 = vpop.f32.mrb[0].mxu0
      %v1919 = vpop.f32.mrb[0].mxu0
      %v1920 = vpop.f32.mrb[0].mxu0
      %1921 = vdwg.mxu0
      %v1922 = vld [vmem:[%s994] sm:$0xf]
      %v1923 = vld [vmem:[%s994 + $0x4] sm:$0xf]
      %v1924 = vld [vmem:[%s994 + $0x8] sm:$0xf]
      %v1925 = vld [vmem:[%s994 + $0xc] sm:$0xf]
      %v1926 = vld [vmem:[%s1007] sm:$0x1]
      %v1928 = vlaneseq
      %v1929 = vshrl.u32 %v1928, 7
      %v1930 = vsub.s32 0, %v1929
      %v1931 = vrot.slane %v1926, %v1930
      %v1937 = vunpack.c.l.b16 %v1922
      %v1938 = vunpack.c.l.b16 %v1923
      %v1939 = vunpack.c.l.b16 %v1924
      %v1940 = vunpack.c.l.b16 %v1925
      %v1941 = vpack.c.b16 %v1938, %v1937
      %v1942 = vpack.c.b16 %v1940, %v1939
      %1945 = vmatprep.subr.bf16.mxu0 0
      %1946 = vmatpush1.bf16.msra.mxu0 %v1941
      %1947 = vmatprep.subr.bf16.mxu0 0
      %1948 = vmatpush1.bf16.msra.mxu0 %v1942
      %1949 = vmatprep.subr.bf16.mxu0 0
      %1950 = vmatpush1.bf16.msra.mxu0 0
      %1951 = vmatprep.subr.bf16.mxu0 0
      %1952 = vmatpush1.bf16.msra.mxu0 0
      %1953 = vmatprep.subr.bf16.mxu0 0
      %1954 = vmatpush1.bf16.msra.mxu0 0
      %1955 = vmatprep.subr.bf16.mxu0 0
      %1956 = vmatpush1.bf16.msra.mxu0 0
      %1957 = vmatprep.subr.bf16.mxu0 0
      %1958 = vmatpush1.bf16.msra.mxu0 0
      %1959 = vmatprep.subr.bf16.mxu0 0
      %1960 = vmatpush1.bf16.msra.mxu0 0
      %1961 = vmatprep.subr.bf16.mxu0 0
      %1962 = vmatpush1.bf16.msra.mxu0 0
      %1963 = vmatprep.subr.bf16.mxu0 0
      %1964 = vmatpush1.bf16.msra.mxu0 0
      %1965 = vmatprep.subr.bf16.mxu0 0
      %1966 = vmatpush1.bf16.msra.mxu0 0
      %1967 = vmatprep.subr.bf16.mxu0 0
      %1968 = vmatpush1.bf16.msra.mxu0 0
      %1969 = vmatprep.subr.bf16.mxu0 0
      %1970 = vmatpush1.bf16.msra.mxu0 0
      %1971 = vmatprep.subr.bf16.mxu0 0
      %1972 = vmatpush1.bf16.msra.mxu0 0
      %1973 = vmatprep.subr.bf16.mxu0 0
      %1974 = vmatpush1.bf16.msra.mxu0 0
      %1975 = vmatprep.subr.bf16.mxu0 0
      %1976 = vmatpush1.bf16.msra.mxu0 0
      %1977 = vmatprep.mubr.bf16.mxu0 0
      %1978 = vmatmul.mubr.bf16.gmra.mrb[0].mxu0 %v1858
      %v1979 = vpop.f32.mrb[0].mxu0
      %v1980 = vadd.f32 %v1931, %v1979
      %v1981 = vpop.f32.mrb[0].mxu0
      %v1982 = vpop.f32.mrb[0].mxu0
      %v1983 = vadd.f32 %v1931, %v1982
      %v1984 = vpop.f32.mrb[0].mxu0
      %1985 = vmatprep.mubr.bf16.mxu0 0
      %1986 = vmatmul.mubr.bf16.gmra.mrb[0].mxu0 %v1861
      %v1987 = vpop.f32.mrb[0].mxu0
      %v1988 = vadd.f32 %v1931, %v1987
      %v1989 = vpop.f32.mrb[0].mxu0
      %v1990 = vpop.f32.mrb[0].mxu0
      %v1991 = vadd.f32 %v1931, %v1990
      %v1992 = vpop.f32.mrb[0].mxu0
      %1993 = vmatprep.mubr.bf16.mxu0 0
      %1994 = vmatmul.mubr.bf16.gmra.mrb[0].mxu0 %v1864
      %v1995 = vpop.f32.mrb[0].mxu0
      %v1996 = vadd.f32 %v1931, %v1995
      %v1997 = vpop.f32.mrb[0].mxu0
      %v1998 = vpop.f32.mrb[0].mxu0
      %v1999 = vpop.f32.mrb[0].mxu0
      %2000 = vdwg.mxu0
      %v2001 = vld [vmem:[%s999] sm:$0xf]
      %v2002 = vld [vmem:[%s999 + $0x4] sm:$0xf]
      %v2003 = vld [vmem:[%s999 + $0x8] sm:$0xf]
      %v2004 = vld [vmem:[%s999 + $0xc] sm:$0xf]
      %v2005 = vld [vmem:[%s1011] sm:$0x1]
      %v2007 = vlaneseq
      %v2008 = vshrl.u32 %v2007, 7
      %v2009 = vsub.s32 0, %v2008
      %v2010 = vrot.slane %v2005, %v2009
      %v2016 = vunpack.c.l.b16 %v2001
      %v2017 = vunpack.c.l.b16 %v2002
      %v2018 = vunpack.c.l.b16 %v2003
      %v2019 = vunpack.c.l.b16 %v2004
      %v2020 = vpack.c.b16 %v2017, %v2016
      %v2021 = vpack.c.b16 %v2019, %v2018
      %2024 = vmatprep.subr.bf16.mxu0 0
      %2025 = vmatpush1.bf16.msra.mxu0 %v2020
      %2026 = vmatprep.subr.bf16.mxu0 0
      %2027 = vmatpush1.bf16.msra.mxu0 %v2021
      %2028 = vmatprep.subr.bf16.mxu0 0
      %2029 = vmatpush1.bf16.msra.mxu0 0
      %2030 = vmatprep.subr.bf16.mxu0 0
      %2031 = vmatpush1.bf16.msra.mxu0 0
      %2032 = vmatprep.subr.bf16.mxu0 0
      %2033 = vmatpush1.bf16.msra.mxu0 0
      %2034 = vmatprep.subr.bf16.mxu0 0
      %2035 = vmatpush1.bf16.msra.mxu0 0
      %2036 = vmatprep.subr.bf16.mxu0 0
      %2037 = vmatpush1.bf16.msra.mxu0 0
      %2038 = vmatprep.subr.bf16.mxu0 0
      %2039 = vmatpush1.bf16.msra.mxu0 0
      %2040 = vmatprep.subr.bf16.mxu0 0
      %2041 = vmatpush1.bf16.msra.mxu0 0
      %2042 = vmatprep.subr.bf16.mxu0 0
      %2043 = vmatpush1.bf16.msra.mxu0 0
      %2044 = vmatprep.subr.bf16.mxu0 0
      %2045 = vmatpush1.bf16.msra.mxu0 0
      %2046 = vmatprep.subr.bf16.mxu0 0
      %2047 = vmatpush1.bf16.msra.mxu0 0
      %2048 = vmatprep.subr.bf16.mxu0 0
      %2049 = vmatpush1.bf16.msra.mxu0 0
      %2050 = vmatprep.subr.bf16.mxu0 0
      %2051 = vmatpush1.bf16.msra.mxu0 0
      %2052 = vmatprep.subr.bf16.mxu0 0
      %2053 = vmatpush1.bf16.msra.mxu0 0
      %2054 = vmatprep.subr.bf16.mxu0 0
      %2055 = vmatpush1.bf16.msra.mxu0 0
      %2056 = vmatprep.mubr.bf16.mxu0 0
      %2057 = vmatmul.mubr.bf16.gmra.mrb[0].mxu0 %v1858
      %v2058 = vpop.f32.mrb[0].mxu0
      %v2059 = vadd.f32 %v2010, %v2058
      %v2060 = vpop.f32.mrb[0].mxu0
      %v2061 = vpop.f32.mrb[0].mxu0
      %v2062 = vadd.f32 %v2010, %v2061
      %v2063 = vpop.f32.mrb[0].mxu0
      %2064 = vmatprep.mubr.bf16.mxu0 0
      %2065 = vmatmul.mubr.bf16.gmra.mrb[0].mxu0 %v1861
      %v2066 = vpop.f32.mrb[0].mxu0
      %v2067 = vadd.f32 %v2010, %v2066
      %v2068 = vpop.f32.mrb[0].mxu0
      %v2069 = vpop.f32.mrb[0].mxu0
      %v2070 = vadd.f32 %v2010, %v2069
      %v2071 = vpop.f32.mrb[0].mxu0
      %2072 = vmatprep.mubr.bf16.mxu0 0
      %2073 = vmatmul.mubr.bf16.gmra.mrb[0].mxu0 %v1864
      %v2074 = vpop.f32.mrb[0].mxu0
      %v2075 = vadd.f32 %v2010, %v2074
      %v2076 = vpop.f32.mrb[0].mxu0
      %v2077 = vpop.f32.mrb[0].mxu0
      %v2078 = vpop.f32.mrb[0].mxu0
      %2079 = vdwg.mxu0
      %s2080 = scalar_lea.vmem %s989, 16
      %v2081 = vld [vmem:[%s2080] sm:$0xf]
      %v2082 = vld [vmem:[%s2080 + $0x4] sm:$0xf]
      %v2083 = vld [vmem:[%s2080 + $0x8] sm:$0xf]
      %v2084 = vld [vmem:[%s2080 + $0xc] sm:$0xf]
      %s2085 = scalar_lea.vmem %s1003, 1
      %v2086 = vld [vmem:[%s2085] sm:$0x1]
      %v2088 = vlaneseq
      %v2089 = vshrl.u32 %v2088, 7
      %v2090 = vsub.s32 0, %v2089
      %v2091 = vrot.slane %v2086, %v2090
      %v2097 = vunpack.c.l.b16 %v2081
      %v2098 = vunpack.c.l.b16 %v2082
      %v2099 = vunpack.c.l.b16 %v2083
      %v2100 = vunpack.c.l.b16 %v2084
      %v2101 = vpack.c.b16 %v2098, %v2097
      %v2102 = vpack.c.b16 %v2100, %v2099
      %2105 = vmatprep.subr.bf16.mxu0 0
      %2106 = vmatpush1.bf16.msra.mxu0 %v2101
      %2107 = vmatprep.subr.bf16.mxu0 0
      %2108 = vmatpush1.bf16.msra.mxu0 %v2102
      %2109 = vmatprep.subr.bf16.mxu0 0
      %2110 = vmatpush1.bf16.msra.mxu0 0
      %2111 = vmatprep.subr.bf16.mxu0 0
      %2112 = vmatpush1.bf16.msra.mxu0 0
      %2113 = vmatprep.subr.bf16.mxu0 0
      %2114 = vmatpush1.bf16.msra.mxu0 0
      %2115 = vmatprep.subr.bf16.mxu0 0
      %2116 = vmatpush1.bf16.msra.mxu0 0
      %2117 = vmatprep.subr.bf16.mxu0 0
      %2118 = vmatpush1.bf16.msra.mxu0 0
      %2119 = vmatprep.subr.bf16.mxu0 0
      %2120 = vmatpush1.bf16.msra.mxu0 0
      %2121 = vmatprep.subr.bf16.mxu0 0
      %2122 = vmatpush1.bf16.msra.mxu0 0
      %2123 = vmatprep.subr.bf16.mxu0 0
      %2124 = vmatpush1.bf16.msra.mxu0 0
      %2125 = vmatprep.subr.bf16.mxu0 0
      %2126 = vmatpush1.bf16.msra.mxu0 0
      %2127 = vmatprep.subr.bf16.mxu0 0
      %2128 = vmatpush1.bf16.msra.mxu0 0
      %2129 = vmatprep.subr.bf16.mxu0 0
      %2130 = vmatpush1.bf16.msra.mxu0 0
      %2131 = vmatprep.subr.bf16.mxu0 0
      %2132 = vmatpush1.bf16.msra.mxu0 0
      %2133 = vmatprep.subr.bf16.mxu0 0
      %2134 = vmatpush1.bf16.msra.mxu0 0
      %2135 = vmatprep.subr.bf16.mxu0 0
      %2136 = vmatpush1.bf16.msra.mxu0 0
      %2137 = vmatprep.mubr.bf16.mxu0 0
      %2138 = vmatmul.mubr.bf16.gmra.mrb[0].mxu0 %v1858
      %v2139 = vpop.f32.mrb[0].mxu0
      %v2140 = vadd.f32 %v2091, %v2139
      %v2141 = vpop.f32.mrb[0].mxu0
      %v2142 = vpop.f32.mrb[0].mxu0
      %v2143 = vadd.f32 %v2091, %v2142
      %v2144 = vpop.f32.mrb[0].mxu0
      %2145 = vmatprep.mubr.bf16.mxu0 0
      %2146 = vmatmul.mubr.bf16.gmra.mrb[0].mxu0 %v1861
      %v2147 = vpop.f32.mrb[0].mxu0
      %v2148 = vadd.f32 %v2091, %v2147
      %v2149 = vpop.f32.mrb[0].mxu0
      %v2150 = vpop.f32.mrb[0].mxu0
      %v2151 = vadd.f32 %v2091, %v2150
      %v2152 = vpop.f32.mrb[0].mxu0
      %2153 = vmatprep.mubr.bf16.mxu0 0
      %2154 = vmatmul.mubr.bf16.gmra.mrb[0].mxu0 %v1864
      %v2155 = vpop.f32.mrb[0].mxu0
      %v2156 = vadd.f32 %v2091, %v2155
      %v2157 = vpop.f32.mrb[0].mxu0
      %v2158 = vpop.f32.mrb[0].mxu0
      %v2159 = vpop.f32.mrb[0].mxu0
      %2160 = vdwg.mxu0
      %s2161 = scalar_lea.vmem %s994, 16
      %v2162 = vld [vmem:[%s2161] sm:$0xf]
      %v2163 = vld [vmem:[%s2161 + $0x4] sm:$0xf]
      %v2164 = vld [vmem:[%s2161 + $0x8] sm:$0xf]
      %v2165 = vld [vmem:[%s2161 + $0xc] sm:$0xf]
      %s2166 = scalar_lea.vmem %s1007, 1
      %v2167 = vld [vmem:[%s2166] sm:$0x1]
      %v2169 = vlaneseq
      %v2170 = vshrl.u32 %v2169, 7
      %v2171 = vsub.s32 0, %v2170
      %v2172 = vrot.slane %v2167, %v2171
      %v2178 = vunpack.c.l.b16 %v2162
      %v2179 = vunpack.c.l.b16 %v2163
      %v2180 = vunpack.c.l.b16 %v2164
      %v2181 = vunpack.c.l.b16 %v2165
      %v2182 = vpack.c.b16 %v2179, %v2178
      %v2183 = vpack.c.b16 %v2181, %v2180
      %2186 = vmatprep.subr.bf16.mxu0 0
      %2187 = vmatpush1.bf16.msra.mxu0 %v2182
      %2188 = vmatprep.subr.bf16.mxu0 0
      %2189 = vmatpush1.bf16.msra.mxu0 %v2183
      %2190 = vmatprep.subr.bf16.mxu0 0
      %2191 = vmatpush1.bf16.msra.mxu0 0
      %2192 = vmatprep.subr.bf16.mxu0 0
      %2193 = vmatpush1.bf16.msra.mxu0 0
      %2194 = vmatprep.subr.bf16.mxu0 0
      %2195 = vmatpush1.bf16.msra.mxu0 0
      %2196 = vmatprep.subr.bf16.mxu0 0
      %2197 = vmatpush1.bf16.msra.mxu0 0
      %2198 = vmatprep.subr.bf16.mxu0 0
      %2199 = vmatpush1.bf16.msra.mxu0 0
      %2200 = vmatprep.subr.bf16.mxu0 0
      %2201 = vmatpush1.bf16.msra.mxu0 0
      %2202 = vmatprep.subr.bf16.mxu0 0
      %2203 = vmatpush1.bf16.msra.mxu0 0
      %2204 = vmatprep.subr.bf16.mxu0 0
      %2205 = vmatpush1.bf16.msra.mxu0 0
      %2206 = vmatprep.subr.bf16.mxu0 0
      %2207 = vmatpush1.bf16.msra.mxu0 0
      %2208 = vmatprep.subr.bf16.mxu0 0
      %2209 = vmatpush1.bf16.msra.mxu0 0
      %2210 = vmatprep.subr.bf16.mxu0 0
      %2211 = vmatpush1.bf16.msra.mxu0 0
      %2212 = vmatprep.subr.bf16.mxu0 0
      %2213 = vmatpush1.bf16.msra.mxu0 0
      %2214 = vmatprep.subr.bf16.mxu0 0
      %2215 = vmatpush1.bf16.msra.mxu0 0
      %2216 = vmatprep.subr.bf16.mxu0 0
      %2217 = vmatpush1.bf16.msra.mxu0 0
      %2218 = vmatprep.mubr.bf16.mxu0 0
      %2219 = vmatmul.mubr.bf16.gmra.mrb[0].mxu0 %v1858
      %v2220 = vpop.f32.mrb[0].mxu0
      %v2221 = vadd.f32 %v2172, %v2220
      %v2222 = vpop.f32.mrb[0].mxu0
      %v2223 = vpop.f32.mrb[0].mxu0
      %v2224 = vadd.f32 %v2172, %v2223
      %v2225 = vpop.f32.mrb[0].mxu0
      %2226 = vmatprep.mubr.bf16.mxu0 0
      %2227 = vmatmul.mubr.bf16.gmra.mrb[0].mxu0 %v1861
      %v2228 = vpop.f32.mrb[0].mxu0
      %v2229 = vadd.f32 %v2172, %v2228
      %v2230 = vpop.f32.mrb[0].mxu0
      %v2231 = vpop.f32.mrb[0].mxu0
      %v2232 = vadd.f32 %v2172, %v2231
      %v2233 = vpop.f32.mrb[0].mxu0
      %2234 = vmatprep.mubr.bf16.mxu0 0
      %2235 = vmatmul.mubr.bf16.gmra.mrb[0].mxu0 %v1864
      %v2236 = vpop.f32.mrb[0].mxu0
      %v2237 = vadd.f32 %v2172, %v2236
      %v2238 = vpop.f32.mrb[0].mxu0
      %v2239 = vpop.f32.mrb[0].mxu0
      %v2240 = vpop.f32.mrb[0].mxu0
      %2241 = vdwg.mxu0
      %s2242 = scalar_lea.vmem %s999, 16
      %v2243 = vld [vmem:[%s2242] sm:$0xf]
      %v2244 = vld [vmem:[%s2242 + $0x4] sm:$0xf]
      %v2245 = vld [vmem:[%s2242 + $0x8] sm:$0xf]
      %v2246 = vld [vmem:[%s2242 + $0xc] sm:$0xf]
      %s2247 = scalar_lea.vmem %s1011, 1
      %v2248 = vld [vmem:[%s2247] sm:$0x1]
      %v2250 = vlaneseq
      %v2251 = vshrl.u32 %v2250, 7
      %v2252 = vsub.s32 0, %v2251
      %v2253 = vrot.slane %v2248, %v2252
      %v2259 = vunpack.c.l.b16 %v2243
      %v2260 = vunpack.c.l.b16 %v2244
      %v2261 = vunpack.c.l.b16 %v2245
      %v2262 = vunpack.c.l.b16 %v2246
      %v2263 = vpack.c.b16 %v2260, %v2259
      %v2264 = vpack.c.b16 %v2262, %v2261
      %2267 = vmatprep.subr.bf16.mxu0 0
      %2268 = vmatpush1.bf16.msra.mxu0 %v2263
      %2269 = vmatprep.subr.bf16.mxu0 0
      %2270 = vmatpush1.bf16.msra.mxu0 %v2264
      %2271 = vmatprep.subr.bf16.mxu0 0
      %2272 = vmatpush1.bf16.msra.mxu0 0
      %2273 = vmatprep.subr.bf16.mxu0 0
      %2274 = vmatpush1.bf16.msra.mxu0 0
      %2275 = vmatprep.subr.bf16.mxu0 0
      %2276 = vmatpush1.bf16.msra.mxu0 0
      %2277 = vmatprep.subr.bf16.mxu0 0
      %2278 = vmatpush1.bf16.msra.mxu0 0
      %2279 = vmatprep.subr.bf16.mxu0 0
      %2280 = vmatpush1.bf16.msra.mxu0 0
      %2281 = vmatprep.subr.bf16.mxu0 0
      %2282 = vmatpush1.bf16.msra.mxu0 0
      %2283 = vmatprep.subr.bf16.mxu0 0
      %2284 = vmatpush1.bf16.msra.mxu0 0
      %2285 = vmatprep.subr.bf16.mxu0 0
      %2286 = vmatpush1.bf16.msra.mxu0 0
      %2287 = vmatprep.subr.bf16.mxu0 0
      %2288 = vmatpush1.bf16.msra.mxu0 0
      %2289 = vmatprep.subr.bf16.mxu0 0
      %2290 = vmatpush1.bf16.msra.mxu0 0
      %2291 = vmatprep.subr.bf16.mxu0 0
      %2292 = vmatpush1.bf16.msra.mxu0 0
      %2293 = vmatprep.subr.bf16.mxu0 0
      %2294 = vmatpush1.bf16.msra.mxu0 0
      %2295 = vmatprep.subr.bf16.mxu0 0
      %2296 = vmatpush1.bf16.msra.mxu0 0
      %2297 = vmatprep.subr.bf16.mxu0 0
      %2298 = vmatpush1.bf16.msra.mxu0 0
      %2299 = vmatprep.mubr.bf16.mxu0 0
      %2300 = vmatmul.mubr.bf16.gmra.mrb[0].mxu0 %v1858
      %v2301 = vpop.f32.mrb[0].mxu0
      %v2302 = vadd.f32 %v2253, %v2301
      %v2303 = vpop.f32.mrb[0].mxu0
      %v2304 = vpop.f32.mrb[0].mxu0
      %v2305 = vadd.f32 %v2253, %v2304
      %v2306 = vpop.f32.mrb[0].mxu0
      %2307 = vmatprep.mubr.bf16.mxu0 0
      %2308 = vmatmul.mubr.bf16.gmra.mrb[0].mxu0 %v1861
      %v2309 = vpop.f32.mrb[0].mxu0
      %v2310 = vadd.f32 %v2253, %v2309
      %v2311 = vpop.f32.mrb[0].mxu0
      %v2312 = vpop.f32.mrb[0].mxu0
      %v2313 = vadd.f32 %v2253, %v2312
      %v2314 = vpop.f32.mrb[0].mxu0
      %2315 = vmatprep.mubr.bf16.mxu0 0
      %2316 = vmatmul.mubr.bf16.gmra.mrb[0].mxu0 %v1864
      %v2317 = vpop.f32.mrb[0].mxu0
      %v2318 = vadd.f32 %v2253, %v2317
      %v2319 = vpop.f32.mrb[0].mxu0
      %v2320 = vpop.f32.mrb[0].mxu0
      %v2321 = vpop.f32.mrb[0].mxu0
      %2322 = vdwg.mxu0
      %vm2323 = vcmask 130048
      %v2325 = vsel %vm2323, %v1901, 0
      %v2328 = vsel %vm2323, %v1980, 0
      %2330 = vmatprep.subr.mxu0 0.0
      %2331 = vmatpush1.xpose.msra.mxu0 %v2328
      %2332 = vmatprep.subr.mxu0 0.0
      %2333 = vmatpush1.xpose.msra.mxu0 0.0
      %2334 = vmatprep.subr.mxu0 0.0
      %2335 = vmatpush1.xpose.msra.mxu0 0.0
      %2336 = vmatprep.subr.mxu0 0.0
      %2337 = vmatpush1.xpose.msra.mxu0 0.0
      %2338 = vmatprep.subr.mxu0 0.0
      %2339 = vmatpush1.xpose.msra.mxu0 0.0
      %2340 = vmatprep.subr.mxu0 0.0
      %2341 = vmatpush1.xpose.msra.mxu0 0.0
      %2342 = vmatprep.subr.mxu0 0.0
      %2343 = vmatpush1.xpose.msra.mxu0 0.0
      %2344 = vmatprep.subr.mxu0 0.0
      %2345 = vmatpush1.xpose.msra.mxu0 0.0
      %2346 = vmatprep.subr.mxu0 0.0
      %2347 = vmatpush1.xpose.msra.mxu0 0.0
      %2348 = vmatprep.subr.mxu0 0.0
      %2349 = vmatpush1.xpose.msra.mxu0 0.0
      %2350 = vmatprep.subr.mxu0 0.0
      %2351 = vmatpush1.xpose.msra.mxu0 0.0
      %2352 = vmatprep.subr.mxu0 0.0
      %2353 = vmatpush1.xpose.msra.mxu0 0.0
      %2354 = vmatprep.subr.mxu0 0.0
      %2355 = vmatpush1.xpose.msra.mxu0 0.0
      %2356 = vmatprep.subr.mxu0 0.0
      %2357 = vmatpush1.xpose.msra.mxu0 0.0
      %2358 = vmatprep.subr.mxu0 0.0
      %2359 = vmatpush1.xpose.msra.mxu0 0.0
      %2360 = vmatprep.subr.mxu0 0.0
      %2361 = vmatpush1.xpose.msra.mxu0 0.0
      %2362 = vmatprep.subr.mxu0 0.0
      %2363 = vmatpush1.xpose.msra.mxu0 0.0
      %2364 = vmatprep.subr.mxu0 0.0
      %2365 = vmatpush1.xpose.msra.mxu0 0.0
      %2366 = vmatprep.subr.mxu0 0.0
      %2367 = vmatpush1.xpose.msra.mxu0 0.0
      %2368 = vmatprep.subr.mxu0 0.0
      %2369 = vmatpush1.xpose.msra.mxu0 0.0
      %2370 = vmatprep.subr.mxu0 0.0
      %2371 = vmatpush1.xpose.msra.mxu0 0.0
      %2372 = vmatprep.subr.mxu0 0.0
      %2373 = vmatpush1.xpose.msra.mxu0 0.0
      %2374 = vmatprep.subr.mxu0 0.0
      %2375 = vmatpush1.xpose.msra.mxu0 0.0
      %2376 = vmatprep.subr.mxu0 0.0
      %2377 = vmatpush1.xpose.msra.mxu0 0.0
      %2378 = vmatprep.subr.mxu0 0.0
      %2379 = vmatpush1.xpose.msra.mxu0 0.0
      %2380 = vmatprep.subr.mxu0 0.0
      %2381 = vmatpush1.xpose.msra.mxu0 0.0
      %2382 = vmatprep.subr.mxu0 0.0
      %2383 = vmatpush1.xpose.msra.mxu0 0.0
      %2384 = vmatprep.subr.mxu0 0.0
      %2385 = vmatpush1.xpose.msra.mxu0 0.0
      %2386 = vmatprep.subr.mxu0 0.0
      %2387 = vmatpush1.xpose.msra.mxu0 0.0
      %2388 = vmatprep.subr.mxu0 0.0
      %2389 = vmatpush1.xpose.msra.mxu0 0.0
      %2390 = vmatprep.subr.mxu0 0.0
      %2391 = vmatpush1.xpose.msra.mxu0 0.0
      %2392 = vmatprep.subr.mxu0 0.0
      %2393 = vmatpush1.xpose.msra.mxu0 0.0
      %2394 = vmatprep.mubr.f32.mxu0 0.0
      %2395 = vmatmul.mubr.f32.gmra.mrb[0].mxu0 %v2325
      %v2396 = vpop.f32.mrb[0].mxu0
      %v2397 = vadd.f32 0.0, %v2396
      %v2398 = vpop.f32.mrb[0].mxu0
      %2399 = vdwg.mxu0
      %v2400 = vmul.f32 %v2397, 0.25
      %vm2401 = vcmask 36864
      %v2402 = vsel %vm2401, %v2400, -inf
      %2403 = vmax.xlane.f32.xlu0 %v2402
      %v2404 = vpop.xlane.xlu0 %2403
      %v2405 = vsub.f32 %v2400, %v2404
      %v2406 = vmul.f32 %v2405, 1.442695
      %v2407 = vpow.pop %v2406
      %v2408 = vsel %vm2401, %v2407, 0.0
      %2409 = vadd.xlane.f32.xlu0 %v2408
      %v2410 = vpop.xlane.xlu0 %2409
      %v2411 = vrcp.pop %v2410
      %v2412 = vmul.f32 %v2407, %v2411
      %vm2413 = vcmask 39936
      %v2415 = vsel %vm2413, %v2412, 0
      %vm2417 = vcmask 1044480
      %v2419 = vsel %vm2417, %v2059, 0
      %2421 = vmatprep.subr.mxu0 0.0
      %2422 = vmatpush1.msra.mxu0 %v2419
      %2423 = vmatprep.subr.mxu0 0.0
      %2424 = vmatpush1.msra.mxu0 0.0
      %2425 = vmatprep.subr.mxu0 0.0
      %2426 = vmatpush1.msra.mxu0 0.0
      %2427 = vmatprep.subr.mxu0 0.0
      %2428 = vmatpush1.msra.mxu0 0.0
      %2429 = vmatprep.subr.mxu0 0.0
      %2430 = vmatpush1.msra.mxu0 0.0
      %2431 = vmatprep.subr.mxu0 0.0
      %2432 = vmatpush1.msra.mxu0 0.0
      %2433 = vmatprep.subr.mxu0 0.0
      %2434 = vmatpush1.msra.mxu0 0.0
      %2435 = vmatprep.subr.mxu0 0.0
      %2436 = vmatpush1.msra.mxu0 0.0
      %2437 = vmatprep.subr.mxu0 0.0
      %2438 = vmatpush1.msra.mxu0 0.0
      %2439 = vmatprep.subr.mxu0 0.0
      %2440 = vmatpush1.msra.mxu0 0.0
      %2441 = vmatprep.subr.mxu0 0.0
      %2442 = vmatpush1.msra.mxu0 0.0
      %2443 = vmatprep.subr.mxu0 0.0
      %2444 = vmatpush1.msra.mxu0 0.0
      %2445 = vmatprep.subr.mxu0 0.0
      %2446 = vmatpush1.msra.mxu0 0.0
      %2447 = vmatprep.subr.mxu0 0.0
      %2448 = vmatpush1.msra.mxu0 0.0
      %2449 = vmatprep.subr.mxu0 0.0
      %2450 = vmatpush1.msra.mxu0 0.0
      %2451 = vmatprep.subr.mxu0 0.0
      %2452 = vmatpush1.msra.mxu0 0.0
      %2453 = vmatprep.subr.mxu0 0.0
      %2454 = vmatpush1.msra.mxu0 0.0
      %2455 = vmatprep.subr.mxu0 0.0
      %2456 = vmatpush1.msra.mxu0 0.0
      %2457 = vmatprep.subr.mxu0 0.0
      %2458 = vmatpush1.msra.mxu0 0.0
      %2459 = vmatprep.subr.mxu0 0.0
      %2460 = vmatpush1.msra.mxu0 0.0
      %2461 = vmatprep.subr.mxu0 0.0
      %2462 = vmatpush1.msra.mxu0 0.0
      %2463 = vmatprep.subr.mxu0 0.0
      %2464 = vmatpush1.msra.mxu0 0.0
      %2465 = vmatprep.subr.mxu0 0.0
      %2466 = vmatpush1.msra.mxu0 0.0
      %2467 = vmatprep.subr.mxu0 0.0
      %2468 = vmatpush1.msra.mxu0 0.0
      %2469 = vmatprep.subr.mxu0 0.0
      %2470 = vmatpush1.msra.mxu0 0.0
      %2471 = vmatprep.subr.mxu0 0.0
      %2472 = vmatpush1.msra.mxu0 0.0
      %2473 = vmatprep.subr.mxu0 0.0
      %2474 = vmatpush1.msra.mxu0 0.0
      %2475 = vmatprep.subr.mxu0 0.0
      %2476 = vmatpush1.msra.mxu0 0.0
      %2477 = vmatprep.subr.mxu0 0.0
      %2478 = vmatpush1.msra.mxu0 0.0
      %2479 = vmatprep.subr.mxu0 0.0
      %2480 = vmatpush1.msra.mxu0 0.0
      %2481 = vmatprep.subr.mxu0 0.0
      %2482 = vmatpush1.msra.mxu0 0.0
      %2483 = vmatprep.subr.mxu0 0.0
      %2484 = vmatpush1.msra.mxu0 0.0
      %2485 = vmatprep.mubr.f32.mxu0 0.0
      %2486 = vmatmul.mubr.f32.gmra.mrb[0].mxu0 %v2415
      %v2487 = vpop.f32.mrb[0].mxu0
      %v2488 = vadd.f32 0.0, %v2487
      %v2489 = vpop.f32.mrb[0].mxu0
      %2490 = vdwg.mxu0
      %v2491 = vpack.c.bf16 %v2488, %v2488
      %v2492 = vld [vmem:[%s1016] sm:$0xf]
      %v2493 = vld [vmem:[%s1016 + $0x4] sm:$0xf]
      %v2495 = vsel %vm2323, %v2140, 0
      %v2498 = vsel %vm2323, %v2221, 0
      %2500 = vmatprep.subr.mxu0 0.0
      %2501 = vmatpush1.xpose.msra.mxu0 %v2498
      %2502 = vmatprep.subr.mxu0 0.0
      %2503 = vmatpush1.xpose.msra.mxu0 0.0
      %2504 = vmatprep.subr.mxu0 0.0
      %2505 = vmatpush1.xpose.msra.mxu0 0.0
      %2506 = vmatprep.subr.mxu0 0.0
      %2507 = vmatpush1.xpose.msra.mxu0 0.0
      %2508 = vmatprep.subr.mxu0 0.0
      %2509 = vmatpush1.xpose.msra.mxu0 0.0
      %2510 = vmatprep.subr.mxu0 0.0
      %2511 = vmatpush1.xpose.msra.mxu0 0.0
      %2512 = vmatprep.subr.mxu0 0.0
      %2513 = vmatpush1.xpose.msra.mxu0 0.0
      %2514 = vmatprep.subr.mxu0 0.0
      %2515 = vmatpush1.xpose.msra.mxu0 0.0
      %2516 = vmatprep.subr.mxu0 0.0
      %2517 = vmatpush1.xpose.msra.mxu0 0.0
      %2518 = vmatprep.subr.mxu0 0.0
      %2519 = vmatpush1.xpose.msra.mxu0 0.0
      %2520 = vmatprep.subr.mxu0 0.0
      %2521 = vmatpush1.xpose.msra.mxu0 0.0
      %2522 = vmatprep.subr.mxu0 0.0
      %2523 = vmatpush1.xpose.msra.mxu0 0.0
      %2524 = vmatprep.subr.mxu0 0.0
      %2525 = vmatpush1.xpose.msra.mxu0 0.0
      %2526 = vmatprep.subr.mxu0 0.0
      %2527 = vmatpush1.xpose.msra.mxu0 0.0
      %2528 = vmatprep.subr.mxu0 0.0
      %2529 = vmatpush1.xpose.msra.mxu0 0.0
      %2530 = vmatprep.subr.mxu0 0.0
      %2531 = vmatpush1.xpose.msra.mxu0 0.0
      %2532 = vmatprep.subr.mxu0 0.0
      %2533 = vmatpush1.xpose.msra.mxu0 0.0
      %2534 = vmatprep.subr.mxu0 0.0
      %2535 = vmatpush1.xpose.msra.mxu0 0.0
      %2536 = vmatprep.subr.mxu0 0.0
      %2537 = vmatpush1.xpose.msra.mxu0 0.0
      %2538 = vmatprep.subr.mxu0 0.0
      %2539 = vmatpush1.xpose.msra.mxu0 0.0
      %2540 = vmatprep.subr.mxu0 0.0
      %2541 = vmatpush1.xpose.msra.mxu0 0.0
      %2542 = vmatprep.subr.mxu0 0.0
      %2543 = vmatpush1.xpose.msra.mxu0 0.0
      %2544 = vmatprep.subr.mxu0 0.0
      %2545 = vmatpush1.xpose.msra.mxu0 0.0
      %2546 = vmatprep.subr.mxu0 0.0
      %2547 = vmatpush1.xpose.msra.mxu0 0.0
      %2548 = vmatprep.subr.mxu0 0.0
      %2549 = vmatpush1.xpose.msra.mxu0 0.0
      %2550 = vmatprep.subr.mxu0 0.0
      %2551 = vmatpush1.xpose.msra.mxu0 0.0
      %2552 = vmatprep.subr.mxu0 0.0
      %2553 = vmatpush1.xpose.msra.mxu0 0.0
      %2554 = vmatprep.subr.mxu0 0.0
      %2555 = vmatpush1.xpose.msra.mxu0 0.0
      %2556 = vmatprep.subr.mxu0 0.0
      %2557 = vmatpush1.xpose.msra.mxu0 0.0
      %2558 = vmatprep.subr.mxu0 0.0
      %2559 = vmatpush1.xpose.msra.mxu0 0.0
      %2560 = vmatprep.subr.mxu0 0.0
      %2561 = vmatpush1.xpose.msra.mxu0 0.0
      %2562 = vmatprep.subr.mxu0 0.0
      %2563 = vmatpush1.xpose.msra.mxu0 0.0
      %2564 = vmatprep.mubr.f32.mxu0 0.0
      %2565 = vmatmul.mubr.f32.gmra.mrb[0].mxu0 %v2495
      %v2566 = vpop.f32.mrb[0].mxu0
      %v2567 = vadd.f32 0.0, %v2566
      %v2568 = vpop.f32.mrb[0].mxu0
      %2569 = vdwg.mxu0
      %v2570 = vmul.f32 %v2567, 0.25
      %v2571 = vsel %vm2401, %v2570, -inf
      %2572 = vmax.xlane.f32.xlu0 %v2571
      %v2573 = vpop.xlane.xlu0 %2572
      %v2574 = vsub.f32 %v2570, %v2573
      %v2575 = vmul.f32 %v2574, 1.442695
      %v2576 = vpow.pop %v2575
      %v2577 = vsel %vm2401, %v2576, 0.0
      %2578 = vadd.xlane.f32.xlu0 %v2577
      %v2579 = vpop.xlane.xlu0 %2578
      %v2580 = vrcp.pop %v2579
      %v2581 = vmul.f32 %v2576, %v2580
      %v2583 = vsel %vm2413, %v2581, 0
      %v2586 = vsel %vm2417, %v2302, 0
      %2588 = vmatprep.subr.mxu0 0.0
      %2589 = vmatpush1.msra.mxu0 %v2586
      %2590 = vmatprep.subr.mxu0 0.0
      %2591 = vmatpush1.msra.mxu0 0.0
      %2592 = vmatprep.subr.mxu0 0.0
      %2593 = vmatpush1.msra.mxu0 0.0
      %2594 = vmatprep.subr.mxu0 0.0
      %2595 = vmatpush1.msra.mxu0 0.0
      %2596 = vmatprep.subr.mxu0 0.0
      %2597 = vmatpush1.msra.mxu0 0.0
      %2598 = vmatprep.subr.mxu0 0.0
      %2599 = vmatpush1.msra.mxu0 0.0
      %2600 = vmatprep.subr.mxu0 0.0
      %2601 = vmatpush1.msra.mxu0 0.0
      %2602 = vmatprep.subr.mxu0 0.0
      %2603 = vmatpush1.msra.mxu0 0.0
      %2604 = vmatprep.subr.mxu0 0.0
      %2605 = vmatpush1.msra.mxu0 0.0
      %2606 = vmatprep.subr.mxu0 0.0
      %2607 = vmatpush1.msra.mxu0 0.0
      %2608 = vmatprep.subr.mxu0 0.0
      %2609 = vmatpush1.msra.mxu0 0.0
      %2610 = vmatprep.subr.mxu0 0.0
      %2611 = vmatpush1.msra.mxu0 0.0
      %2612 = vmatprep.subr.mxu0 0.0
      %2613 = vmatpush1.msra.mxu0 0.0
      %2614 = vmatprep.subr.mxu0 0.0
      %2615 = vmatpush1.msra.mxu0 0.0
      %2616 = vmatprep.subr.mxu0 0.0
      %2617 = vmatpush1.msra.mxu0 0.0
      %2618 = vmatprep.subr.mxu0 0.0
      %2619 = vmatpush1.msra.mxu0 0.0
      %2620 = vmatprep.subr.mxu0 0.0
      %2621 = vmatpush1.msra.mxu0 0.0
      %2622 = vmatprep.subr.mxu0 0.0
      %2623 = vmatpush1.msra.mxu0 0.0
      %2624 = vmatprep.subr.mxu0 0.0
      %2625 = vmatpush1.msra.mxu0 0.0
      %2626 = vmatprep.subr.mxu0 0.0
      %2627 = vmatpush1.msra.mxu0 0.0
      %2628 = vmatprep.subr.mxu0 0.0
      %2629 = vmatpush1.msra.mxu0 0.0
      %2630 = vmatprep.subr.mxu0 0.0
      %2631 = vmatpush1.msra.mxu0 0.0
      %2632 = vmatprep.subr.mxu0 0.0
      %2633 = vmatpush1.msra.mxu0 0.0
      %2634 = vmatprep.subr.mxu0 0.0
      %2635 = vmatpush1.msra.mxu0 0.0
      %2636 = vmatprep.subr.mxu0 0.0
      %2637 = vmatpush1.msra.mxu0 0.0
      %2638 = vmatprep.subr.mxu0 0.0
      %2639 = vmatpush1.msra.mxu0 0.0
      %2640 = vmatprep.subr.mxu0 0.0
      %2641 = vmatpush1.msra.mxu0 0.0
      %2642 = vmatprep.subr.mxu0 0.0
      %2643 = vmatpush1.msra.mxu0 0.0
      %2644 = vmatprep.subr.mxu0 0.0
      %2645 = vmatpush1.msra.mxu0 0.0
      %2646 = vmatprep.subr.mxu0 0.0
      %2647 = vmatpush1.msra.mxu0 0.0
      %2648 = vmatprep.subr.mxu0 0.0
      %2649 = vmatpush1.msra.mxu0 0.0
      %2650 = vmatprep.subr.mxu0 0.0
      %2651 = vmatpush1.msra.mxu0 0.0
      %2652 = vmatprep.mubr.f32.mxu0 0.0
      %2653 = vmatmul.mubr.f32.gmra.mrb[0].mxu0 %v2583
      %v2654 = vpop.f32.mrb[0].mxu0
      %v2655 = vadd.f32 0.0, %v2654
      %v2656 = vpop.f32.mrb[0].mxu0
      %2657 = vdwg.mxu0
      %v2658 = vpack.c.bf16 %v2655, %v2655
      %s2659 = scalar_lea.vmem %s1016, 8
      %v2660 = vld [vmem:[%s2659] sm:$0xf]
      %v2661 = vld [vmem:[%s2659 + $0x4] sm:$0xf]
      %v2664 = vunpack.c.l.b16 %v2660
      %v2665 = vunpack.c.l.b16 %v2661
      %v2666 = vpack.c.b16 %v2665, %v2664
      %v2669 = vsel %vm2323, %v2658, 0
      %2671 = vmatprep.subr.bf16.mxu0 0
      %2672 = vmatpush1.bf16.msra.mxu0 %v2666
      %2673 = vmatprep.subr.bf16.mxu0 0
      %2674 = vmatpush1.bf16.msra.mxu0 0
      %2675 = vmatprep.subr.bf16.mxu0 0
      %2676 = vmatpush1.bf16.msra.mxu0 0
      %2677 = vmatprep.subr.bf16.mxu0 0
      %2678 = vmatpush1.bf16.msra.mxu0 0
      %2679 = vmatprep.subr.bf16.mxu0 0
      %2680 = vmatpush1.bf16.msra.mxu0 0
      %2681 = vmatprep.subr.bf16.mxu0 0
      %2682 = vmatpush1.bf16.msra.mxu0 0
      %2683 = vmatprep.subr.bf16.mxu0 0
      %2684 = vmatpush1.bf16.msra.mxu0 0
      %2685 = vmatprep.subr.bf16.mxu0 0
      %2686 = vmatpush1.bf16.msra.mxu0 0
      %2687 = vmatprep.subr.bf16.mxu0 0
      %2688 = vmatpush1.bf16.msra.mxu0 0
      %2689 = vmatprep.subr.bf16.mxu0 0
      %2690 = vmatpush1.bf16.msra.mxu0 0
      %2691 = vmatprep.subr.bf16.mxu0 0
      %2692 = vmatpush1.bf16.msra.mxu0 0
      %2693 = vmatprep.subr.bf16.mxu0 0
      %2694 = vmatpush1.bf16.msra.mxu0 0
      %2695 = vmatprep.subr.bf16.mxu0 0
      %2696 = vmatpush1.bf16.msra.mxu0 0
      %2697 = vmatprep.subr.bf16.mxu0 0
      %2698 = vmatpush1.bf16.msra.mxu0 0
      %2699 = vmatprep.subr.bf16.mxu0 0
      %2700 = vmatpush1.bf16.msra.mxu0 0
      %2701 = vmatprep.subr.bf16.mxu0 0
      %2702 = vmatpush1.bf16.msra.mxu0 0
      %2703 = vmatprep.mubr.bf16.mxu0 0
      %2704 = vmatmul.mubr.bf16.gmra.mrb[0].mxu0 %v2669
      %v2705 = vpop.f32.mrb[0].mxu0
      %v2706 = vadd.f32 0.0, %v2705
      %v2707 = vpop.f32.mrb[0].mxu0
      %v2708 = vpop.f32.mrb[0].mxu0
      %v2709 = vpop.f32.mrb[0].mxu0
      %2710 = vdwg.mxu0
      %v2713 = vunpack.c.l.b16 %v2492
      %v2714 = vunpack.c.l.b16 %v2493
      %v2715 = vpack.c.b16 %v2714, %v2713
      %v2718 = vsel %vm2323, %v2491, 0
      %2720 = vmatprep.subr.bf16.mxu0 0
      %2721 = vmatpush1.bf16.msra.mxu0 %v2715
      %2722 = vmatprep.subr.bf16.mxu0 0
      %2723 = vmatpush1.bf16.msra.mxu0 0
      %2724 = vmatprep.subr.bf16.mxu0 0
      %2725 = vmatpush1.bf16.msra.mxu0 0
      %2726 = vmatprep.subr.bf16.mxu0 0
      %2727 = vmatpush1.bf16.msra.mxu0 0
      %2728 = vmatprep.subr.bf16.mxu0 0
      %2729 = vmatpush1.bf16.msra.mxu0 0
      %2730 = vmatprep.subr.bf16.mxu0 0
      %2731 = vmatpush1.bf16.msra.mxu0 0
      %2732 = vmatprep.subr.bf16.mxu0 0
      %2733 = vmatpush1.bf16.msra.mxu0 0
      %2734 = vmatprep.subr.bf16.mxu0 0
      %2735 = vmatpush1.bf16.msra.mxu0 0
      %2736 = vmatprep.subr.bf16.mxu0 0
      %2737 = vmatpush1.bf16.msra.mxu0 0
      %2738 = vmatprep.subr.bf16.mxu0 0
      %2739 = vmatpush1.bf16.msra.mxu0 0
      %2740 = vmatprep.subr.bf16.mxu0 0
      %2741 = vmatpush1.bf16.msra.mxu0 0
      %2742 = vmatprep.subr.bf16.mxu0 0
      %2743 = vmatpush1.bf16.msra.mxu0 0
      %2744 = vmatprep.subr.bf16.mxu0 0
      %2745 = vmatpush1.bf16.msra.mxu0 0
      %2746 = vmatprep.subr.bf16.mxu0 0
      %2747 = vmatpush1.bf16.msra.mxu0 0
      %2748 = vmatprep.subr.bf16.mxu0 0
      %2749 = vmatpush1.bf16.msra.mxu0 0
      %2750 = vmatprep.subr.bf16.mxu0 0
      %2751 = vmatpush1.bf16.msra.mxu0 0
      %2752 = vmatprep.mubr.bf16.mxu0 0
      %2753 = vmatmul.mubr.bf16.gmra.mrb[0].mxu0 %v2718
      %v2754 = vpop.f32.mrb[0].mxu0
      %v2755 = vadd.f32 %v2706, %v2754
      %v2756 = vpop.f32.mrb[0].mxu0
      %v2757 = vpop.f32.mrb[0].mxu0
      %v2758 = vpop.f32.mrb[0].mxu0
      %2759 = vdwg.mxu0
      %vm2761 = vcmask 1042432
      %v2762 = vrot.slane %v1901, 5
      %v2763 = vrot.slane %v1904, 5
      %v2764 = vsel %vm2761, %v2762, %v2763
      %v2766 = vrot.slane %v1980, 5
      %v2767 = vrot.slane %v1983, 5
      %v2768 = vsel %vm2761, %v2766, %v2767
      %v2769 = vsel %vm2323, %v2764, 0
      %v2771 = vsel %vm2323, %v2768, 0
      %2773 = vmatprep.subr.mxu0 0.0
      %2774 = vmatpush1.xpose.msra.mxu0 %v2771
      %2775 = vmatprep.subr.mxu0 0.0
      %2776 = vmatpush1.xpose.msra.mxu0 0.0
      %2777 = vmatprep.subr.mxu0 0.0
      %2778 = vmatpush1.xpose.msra.mxu0 0.0
      %2779 = vmatprep.subr.mxu0 0.0
      %2780 = vmatpush1.xpose.msra.mxu0 0.0
      %2781 = vmatprep.subr.mxu0 0.0
      %2782 = vmatpush1.xpose.msra.mxu0 0.0
      %2783 = vmatprep.subr.mxu0 0.0
      %2784 = vmatpush1.xpose.msra.mxu0 0.0
      %2785 = vmatprep.subr.mxu0 0.0
      %2786 = vmatpush1.xpose.msra.mxu0 0.0
      %2787 = vmatprep.subr.mxu0 0.0
      %2788 = vmatpush1.xpose.msra.mxu0 0.0
      %2789 = vmatprep.subr.mxu0 0.0
      %2790 = vmatpush1.xpose.msra.mxu0 0.0
      %2791 = vmatprep.subr.mxu0 0.0
      %2792 = vmatpush1.xpose.msra.mxu0 0.0
      %2793 = vmatprep.subr.mxu0 0.0
      %2794 = vmatpush1.xpose.msra.mxu0 0.0
      %2795 = vmatprep.subr.mxu0 0.0
      %2796 = vmatpush1.xpose.msra.mxu0 0.0
      %2797 = vmatprep.subr.mxu0 0.0
      %2798 = vmatpush1.xpose.msra.mxu0 0.0
      %2799 = vmatprep.subr.mxu0 0.0
      %2800 = vmatpush1.xpose.msra.mxu0 0.0
      %2801 = vmatprep.subr.mxu0 0.0
      %2802 = vmatpush1.xpose.msra.mxu0 0.0
      %2803 = vmatprep.subr.mxu0 0.0
      %2804 = vmatpush1.xpose.msra.mxu0 0.0
      %2805 = vmatprep.subr.mxu0 0.0
      %2806 = vmatpush1.xpose.msra.mxu0 0.0
      %2807 = vmatprep.subr.mxu0 0.0
      %2808 = vmatpush1.xpose.msra.mxu0 0.0
      %2809 = vmatprep.subr.mxu0 0.0
      %2810 = vmatpush1.xpose.msra.mxu0 0.0
      %2811 = vmatprep.subr.mxu0 0.0
      %2812 = vmatpush1.xpose.msra.mxu0 0.0
      %2813 = vmatprep.subr.mxu0 0.0
      %2814 = vmatpush1.xpose.msra.mxu0 0.0
      %2815 = vmatprep.subr.mxu0 0.0
      %2816 = vmatpush1.xpose.msra.mxu0 0.0
      %2817 = vmatprep.subr.mxu0 0.0
      %2818 = vmatpush1.xpose.msra.mxu0 0.0
      %2819 = vmatprep.subr.mxu0 0.0
      %2820 = vmatpush1.xpose.msra.mxu0 0.0
      %2821 = vmatprep.subr.mxu0 0.0
      %2822 = vmatpush1.xpose.msra.mxu0 0.0
      %2823 = vmatprep.subr.mxu0 0.0
      %2824 = vmatpush1.xpose.msra.mxu0 0.0
      %2825 = vmatprep.subr.mxu0 0.0
      %2826 = vmatpush1.xpose.msra.mxu0 0.0
      %2827 = vmatprep.subr.mxu0 0.0
      %2828 = vmatpush1.xpose.msra.mxu0 0.0
      %2829 = vmatprep.subr.mxu0 0.0
      %2830 = vmatpush1.xpose.msra.mxu0 0.0
      %2831 = vmatprep.subr.mxu0 0.0
      %2832 = vmatpush1.xpose.msra.mxu0 0.0
      %2833 = vmatprep.subr.mxu0 0.0
      %2834 = vmatpush1.xpose.msra.mxu0 0.0
      %2835 = vmatprep.subr.mxu0 0.0
      %2836 = vmatpush1.xpose.msra.mxu0 0.0
      %2837 = vmatprep.mubr.f32.mxu0 0.0
      %2838 = vmatmul.mubr.f32.gmra.mrb[0].mxu0 %v2769
      %v2839 = vpop.f32.mrb[0].mxu0
      %v2840 = vadd.f32 0.0, %v2839
      %v2841 = vpop.f32.mrb[0].mxu0
      %2842 = vdwg.mxu0
      %v2843 = vmul.f32 %v2840, 0.25
      %v2844 = vsel %vm2401, %v2843, -inf
      %2845 = vmax.xlane.f32.xlu0 %v2844
      %v2846 = vpop.xlane.xlu0 %2845
      %v2847 = vsub.f32 %v2843, %v2846
      %v2848 = vmul.f32 %v2847, 1.442695
      %v2849 = vpow.pop %v2848
      %v2850 = vsel %vm2401, %v2849, 0.0
      %2851 = vadd.xlane.f32.xlu0 %v2850
      %v2852 = vpop.xlane.xlu0 %2851
      %v2853 = vrcp.pop %v2852
      %v2854 = vmul.f32 %v2849, %v2853
      %v2856 = vrot.slane %v2059, 5
      %v2857 = vrot.slane %v2062, 5
      %v2858 = vsel %vm2761, %v2856, %v2857
      %v2860 = vsel %vm2413, %v2854, 0
      %v2862 = vsel %vm2417, %v2858, 0
      %2864 = vmatprep.subr.mxu0 0.0
      %2865 = vmatpush1.msra.mxu0 %v2862
      %2866 = vmatprep.subr.mxu0 0.0
      %2867 = vmatpush1.msra.mxu0 0.0
      %2868 = vmatprep.subr.mxu0 0.0
      %2869 = vmatpush1.msra.mxu0 0.0
      %2870 = vmatprep.subr.mxu0 0.0
      %2871 = vmatpush1.msra.mxu0 0.0
      %2872 = vmatprep.subr.mxu0 0.0
      %2873 = vmatpush1.msra.mxu0 0.0
      %2874 = vmatprep.subr.mxu0 0.0
      %2875 = vmatpush1.msra.mxu0 0.0
      %2876 = vmatprep.subr.mxu0 0.0
      %2877 = vmatpush1.msra.mxu0 0.0
      %2878 = vmatprep.subr.mxu0 0.0
      %2879 = vmatpush1.msra.mxu0 0.0
      %2880 = vmatprep.subr.mxu0 0.0
      %2881 = vmatpush1.msra.mxu0 0.0
      %2882 = vmatprep.subr.mxu0 0.0
      %2883 = vmatpush1.msra.mxu0 0.0
      %2884 = vmatprep.subr.mxu0 0.0
      %2885 = vmatpush1.msra.mxu0 0.0
      %2886 = vmatprep.subr.mxu0 0.0
      %2887 = vmatpush1.msra.mxu0 0.0
      %2888 = vmatprep.subr.mxu0 0.0
      %2889 = vmatpush1.msra.mxu0 0.0
      %2890 = vmatprep.subr.mxu0 0.0
      %2891 = vmatpush1.msra.mxu0 0.0
      %2892 = vmatprep.subr.mxu0 0.0
      %2893 = vmatpush1.msra.mxu0 0.0
      %2894 = vmatprep.subr.mxu0 0.0
      %2895 = vmatpush1.msra.mxu0 0.0
      %2896 = vmatprep.subr.mxu0 0.0
      %2897 = vmatpush1.msra.mxu0 0.0
      %2898 = vmatprep.subr.mxu0 0.0
      %2899 = vmatpush1.msra.mxu0 0.0
      %2900 = vmatprep.subr.mxu0 0.0
      %2901 = vmatpush1.msra.mxu0 0.0
      %2902 = vmatprep.subr.mxu0 0.0
      %2903 = vmatpush1.msra.mxu0 0.0
      %2904 = vmatprep.subr.mxu0 0.0
      %2905 = vmatpush1.msra.mxu0 0.0
      %2906 = vmatprep.subr.mxu0 0.0
      %2907 = vmatpush1.msra.mxu0 0.0
      %2908 = vmatprep.subr.mxu0 0.0
      %2909 = vmatpush1.msra.mxu0 0.0
      %2910 = vmatprep.subr.mxu0 0.0
      %2911 = vmatpush1.msra.mxu0 0.0
      %2912 = vmatprep.subr.mxu0 0.0
      %2913 = vmatpush1.msra.mxu0 0.0
      %2914 = vmatprep.subr.mxu0 0.0
      %2915 = vmatpush1.msra.mxu0 0.0
      %2916 = vmatprep.subr.mxu0 0.0
      %2917 = vmatpush1.msra.mxu0 0.0
      %2918 = vmatprep.subr.mxu0 0.0
      %2919 = vmatpush1.msra.mxu0 0.0
      %2920 = vmatprep.subr.mxu0 0.0
      %2921 = vmatpush1.msra.mxu0 0.0
      %2922 = vmatprep.subr.mxu0 0.0
      %2923 = vmatpush1.msra.mxu0 0.0
      %2924 = vmatprep.subr.mxu0 0.0
      %2925 = vmatpush1.msra.mxu0 0.0
      %2926 = vmatprep.subr.mxu0 0.0
      %2927 = vmatpush1.msra.mxu0 0.0
      %2928 = vmatprep.mubr.f32.mxu0 0.0
      %2929 = vmatmul.mubr.f32.gmra.mrb[0].mxu0 %v2860
      %v2930 = vpop.f32.mrb[0].mxu0
      %v2931 = vadd.f32 0.0, %v2930
      %v2932 = vpop.f32.mrb[0].mxu0
      %2933 = vdwg.mxu0
      %v2934 = vpack.c.bf16 %v2931, %v2931
      %v2936 = vrot.slane %v2140, 5
      %v2937 = vrot.slane %v2143, 5
      %v2938 = vsel %vm2761, %v2936, %v2937
      %v2940 = vrot.slane %v2221, 5
      %v2941 = vrot.slane %v2224, 5
      %v2942 = vsel %vm2761, %v2940, %v2941
      %v2943 = vsel %vm2323, %v2938, 0
      %v2945 = vsel %vm2323, %v2942, 0
      %2947 = vmatprep.subr.mxu0 0.0
      %2948 = vmatpush1.xpose.msra.mxu0 %v2945
      %2949 = vmatprep.subr.mxu0 0.0
      %2950 = vmatpush1.xpose.msra.mxu0 0.0
      %2951 = vmatprep.subr.mxu0 0.0
      %2952 = vmatpush1.xpose.msra.mxu0 0.0
      %2953 = vmatprep.subr.mxu0 0.0
      %2954 = vmatpush1.xpose.msra.mxu0 0.0
      %2955 = vmatprep.subr.mxu0 0.0
      %2956 = vmatpush1.xpose.msra.mxu0 0.0
      %2957 = vmatprep.subr.mxu0 0.0
      %2958 = vmatpush1.xpose.msra.mxu0 0.0
      %2959 = vmatprep.subr.mxu0 0.0
      %2960 = vmatpush1.xpose.msra.mxu0 0.0
      %2961 = vmatprep.subr.mxu0 0.0
      %2962 = vmatpush1.xpose.msra.mxu0 0.0
      %2963 = vmatprep.subr.mxu0 0.0
      %2964 = vmatpush1.xpose.msra.mxu0 0.0
      %2965 = vmatprep.subr.mxu0 0.0
      %2966 = vmatpush1.xpose.msra.mxu0 0.0
      %2967 = vmatprep.subr.mxu0 0.0
      %2968 = vmatpush1.xpose.msra.mxu0 0.0
      %2969 = vmatprep.subr.mxu0 0.0
      %2970 = vmatpush1.xpose.msra.mxu0 0.0
      %2971 = vmatprep.subr.mxu0 0.0
      %2972 = vmatpush1.xpose.msra.mxu0 0.0
      %2973 = vmatprep.subr.mxu0 0.0
      %2974 = vmatpush1.xpose.msra.mxu0 0.0
      %2975 = vmatprep.subr.mxu0 0.0
      %2976 = vmatpush1.xpose.msra.mxu0 0.0
      %2977 = vmatprep.subr.mxu0 0.0
      %2978 = vmatpush1.xpose.msra.mxu0 0.0
      %2979 = vmatprep.subr.mxu0 0.0
      %2980 = vmatpush1.xpose.msra.mxu0 0.0
      %2981 = vmatprep.subr.mxu0 0.0
      %2982 = vmatpush1.xpose.msra.mxu0 0.0
      %2983 = vmatprep.subr.mxu0 0.0
      %2984 = vmatpush1.xpose.msra.mxu0 0.0
      %2985 = vmatprep.subr.mxu0 0.0
      %2986 = vmatpush1.xpose.msra.mxu0 0.0
      %2987 = vmatprep.subr.mxu0 0.0
      %2988 = vmatpush1.xpose.msra.mxu0 0.0
      %2989 = vmatprep.subr.mxu0 0.0
      %2990 = vmatpush1.xpose.msra.mxu0 0.0
      %2991 = vmatprep.subr.mxu0 0.0
      %2992 = vmatpush1.xpose.msra.mxu0 0.0
      %2993 = vmatprep.subr.mxu0 0.0
      %2994 = vmatpush1.xpose.msra.mxu0 0.0
      %2995 = vmatprep.subr.mxu0 0.0
      %2996 = vmatpush1.xpose.msra.mxu0 0.0
      %2997 = vmatprep.subr.mxu0 0.0
      %2998 = vmatpush1.xpose.msra.mxu0 0.0
      %2999 = vmatprep.subr.mxu0 0.0
      %3000 = vmatpush1.xpose.msra.mxu0 0.0
      %3001 = vmatprep.subr.mxu0 0.0
      %3002 = vmatpush1.xpose.msra.mxu0 0.0
      %3003 = vmatprep.subr.mxu0 0.0
      %3004 = vmatpush1.xpose.msra.mxu0 0.0
      %3005 = vmatprep.subr.mxu0 0.0
      %3006 = vmatpush1.xpose.msra.mxu0 0.0
      %3007 = vmatprep.subr.mxu0 0.0
      %3008 = vmatpush1.xpose.msra.mxu0 0.0
      %3009 = vmatprep.subr.mxu0 0.0
      %3010 = vmatpush1.xpose.msra.mxu0 0.0
      %3011 = vmatprep.mubr.f32.mxu0 0.0
      %3012 = vmatmul.mubr.f32.gmra.mrb[0].mxu0 %v2943
      %v3013 = vpop.f32.mrb[0].mxu0
      %v3014 = vadd.f32 0.0, %v3013
      %v3015 = vpop.f32.mrb[0].mxu0
      %3016 = vdwg.mxu0
      %v3017 = vmul.f32 %v3014, 0.25
      %v3018 = vsel %vm2401, %v3017, -inf
      %3019 = vmax.xlane.f32.xlu0 %v3018
      %v3020 = vpop.xlane.xlu0 %3019
      %v3021 = vsub.f32 %v3017, %v3020
      %v3022 = vmul.f32 %v3021, 1.442695
      %v3023 = vpow.pop %v3022
      %v3024 = vsel %vm2401, %v3023, 0.0
      %3025 = vadd.xlane.f32.xlu0 %v3024
      %v3026 = vpop.xlane.xlu0 %3025
      %v3027 = vrcp.pop %v3026
      %v3028 = vmul.f32 %v3023, %v3027
      %v3030 = vrot.slane %v2302, 5
      %v3031 = vrot.slane %v2305, 5
      %v3032 = vsel %vm2761, %v3030, %v3031
      %v3034 = vsel %vm2413, %v3028, 0
      %v3036 = vsel %vm2417, %v3032, 0
      %3038 = vmatprep.subr.mxu0 0.0
      %3039 = vmatpush1.msra.mxu0 %v3036
      %3040 = vmatprep.subr.mxu0 0.0
      %3041 = vmatpush1.msra.mxu0 0.0
      %3042 = vmatprep.subr.mxu0 0.0
      %3043 = vmatpush1.msra.mxu0 0.0
      %3044 = vmatprep.subr.mxu0 0.0
      %3045 = vmatpush1.msra.mxu0 0.0
      %3046 = vmatprep.subr.mxu0 0.0
      %3047 = vmatpush1.msra.mxu0 0.0
      %3048 = vmatprep.subr.mxu0 0.0
      %3049 = vmatpush1.msra.mxu0 0.0
      %3050 = vmatprep.subr.mxu0 0.0
      %3051 = vmatpush1.msra.mxu0 0.0
      %3052 = vmatprep.subr.mxu0 0.0
      %3053 = vmatpush1.msra.mxu0 0.0
      %3054 = vmatprep.subr.mxu0 0.0
      %3055 = vmatpush1.msra.mxu0 0.0
      %3056 = vmatprep.subr.mxu0 0.0
      %3057 = vmatpush1.msra.mxu0 0.0
      %3058 = vmatprep.subr.mxu0 0.0
      %3059 = vmatpush1.msra.mxu0 0.0
      %3060 = vmatprep.subr.mxu0 0.0
      %3061 = vmatpush1.msra.mxu0 0.0
      %3062 = vmatprep.subr.mxu0 0.0
      %3063 = vmatpush1.msra.mxu0 0.0
      %3064 = vmatprep.subr.mxu0 0.0
      %3065 = vmatpush1.msra.mxu0 0.0
      %3066 = vmatprep.subr.mxu0 0.0
      %3067 = vmatpush1.msra.mxu0 0.0
      %3068 = vmatprep.subr.mxu0 0.0
      %3069 = vmatpush1.msra.mxu0 0.0
      %3070 = vmatprep.subr.mxu0 0.0
      %3071 = vmatpush1.msra.mxu0 0.0
      %3072 = vmatprep.subr.mxu0 0.0
      %3073 = vmatpush1.msra.mxu0 0.0
      %3074 = vmatprep.subr.mxu0 0.0
      %3075 = vmatpush1.msra.mxu0 0.0
      %3076 = vmatprep.subr.mxu0 0.0
      %3077 = vmatpush1.msra.mxu0 0.0
      %3078 = vmatprep.subr.mxu0 0.0
      %3079 = vmatpush1.msra.mxu0 0.0
      %3080 = vmatprep.subr.mxu0 0.0
      %3081 = vmatpush1.msra.mxu0 0.0
      %3082 = vmatprep.subr.mxu0 0.0
      %3083 = vmatpush1.msra.mxu0 0.0
      %3084 = vmatprep.subr.mxu0 0.0
      %3085 = vmatpush1.msra.mxu0 0.0
      %3086 = vmatprep.subr.mxu0 0.0
      %3087 = vmatpush1.msra.mxu0 0.0
      %3088 = vmatprep.subr.mxu0 0.0
      %3089 = vmatpush1.msra.mxu0 0.0
      %3090 = vmatprep.subr.mxu0 0.0
      %3091 = vmatpush1.msra.mxu0 0.0
      %3092 = vmatprep.subr.mxu0 0.0
      %3093 = vmatpush1.msra.mxu0 0.0
      %3094 = vmatprep.subr.mxu0 0.0
      %3095 = vmatpush1.msra.mxu0 0.0
      %3096 = vmatprep.subr.mxu0 0.0
      %3097 = vmatpush1.msra.mxu0 0.0
      %3098 = vmatprep.subr.mxu0 0.0
      %3099 = vmatpush1.msra.mxu0 0.0
      %3100 = vmatprep.subr.mxu0 0.0
      %3101 = vmatpush1.msra.mxu0 0.0
      %3102 = vmatprep.mubr.f32.mxu0 0.0
      %3103 = vmatmul.mubr.f32.gmra.mrb[0].mxu0 %v3034
      %v3104 = vpop.f32.mrb[0].mxu0
      %v3105 = vadd.f32 0.0, %v3104
      %v3106 = vpop.f32.mrb[0].mxu0
      %3107 = vdwg.mxu0
      %v3108 = vpack.c.bf16 %v3105, %v3105
      %v3110 = vsel %vm2323, %v3108, 0
      %3112 = vmatprep.subr.bf16.mxu0 0
      %3113 = vmatpush1.bf16.msra.mxu0 %v2666
      %3114 = vmatprep.subr.bf16.mxu0 0
      %3115 = vmatpush1.bf16.msra.mxu0 0
      %3116 = vmatprep.subr.bf16.mxu0 0
      %3117 = vmatpush1.bf16.msra.mxu0 0
      %3118 = vmatprep.subr.bf16.mxu0 0
      %3119 = vmatpush1.bf16.msra.mxu0 0
      %3120 = vmatprep.subr.bf16.mxu0 0
      %3121 = vmatpush1.bf16.msra.mxu0 0
      %3122 = vmatprep.subr.bf16.mxu0 0
      %3123 = vmatpush1.bf16.msra.mxu0 0
      %3124 = vmatprep.subr.bf16.mxu0 0
      %3125 = vmatpush1.bf16.msra.mxu0 0
      %3126 = vmatprep.subr.bf16.mxu0 0
      %3127 = vmatpush1.bf16.msra.mxu0 0
      %3128 = vmatprep.subr.bf16.mxu0 0
      %3129 = vmatpush1.bf16.msra.mxu0 0
      %3130 = vmatprep.subr.bf16.mxu0 0
      %3131 = vmatpush1.bf16.msra.mxu0 0
      %3132 = vmatprep.subr.bf16.mxu0 0
      %3133 = vmatpush1.bf16.msra.mxu0 0
      %3134 = vmatprep.subr.bf16.mxu0 0
      %3135 = vmatpush1.bf16.msra.mxu0 0
      %3136 = vmatprep.subr.bf16.mxu0 0
      %3137 = vmatpush1.bf16.msra.mxu0 0
      %3138 = vmatprep.subr.bf16.mxu0 0
      %3139 = vmatpush1.bf16.msra.mxu0 0
      %3140 = vmatprep.subr.bf16.mxu0 0
      %3141 = vmatpush1.bf16.msra.mxu0 0
      %3142 = vmatprep.subr.bf16.mxu0 0
      %3143 = vmatpush1.bf16.msra.mxu0 0
      %3144 = vmatprep.mubr.bf16.mxu0 0
      %3145 = vmatmul.mubr.bf16.gmra.mrb[0].mxu0 %v3110
      %v3146 = vpop.f32.mrb[0].mxu0
      %v3147 = vadd.f32 0.0, %v3146
      %v3148 = vpop.f32.mrb[0].mxu0
      %v3149 = vpop.f32.mrb[0].mxu0
      %v3150 = vpop.f32.mrb[0].mxu0
      %3151 = vdwg.mxu0
      %v3153 = vsel %vm2323, %v2934, 0
      %3155 = vmatprep.subr.bf16.mxu0 0
      %3156 = vmatpush1.bf16.msra.mxu0 %v2715
      %3157 = vmatprep.subr.bf16.mxu0 0
      %3158 = vmatpush1.bf16.msra.mxu0 0
      %3159 = vmatprep.subr.bf16.mxu0 0
      %3160 = vmatpush1.bf16.msra.mxu0 0
      %3161 = vmatprep.subr.bf16.mxu0 0
      %3162 = vmatpush1.bf16.msra.mxu0 0
      %3163 = vmatprep.subr.bf16.mxu0 0
      %3164 = vmatpush1.bf16.msra.mxu0 0
      %3165 = vmatprep.subr.bf16.mxu0 0
      %3166 = vmatpush1.bf16.msra.mxu0 0
      %3167 = vmatprep.subr.bf16.mxu0 0
      %3168 = vmatpush1.bf16.msra.mxu0 0
      %3169 = vmatprep.subr.bf16.mxu0 0
      %3170 = vmatpush1.bf16.msra.mxu0 0
      %3171 = vmatprep.subr.bf16.mxu0 0
      %3172 = vmatpush1.bf16.msra.mxu0 0
      %3173 = vmatprep.subr.bf16.mxu0 0
      %3174 = vmatpush1.bf16.msra.mxu0 0
      %3175 = vmatprep.subr.bf16.mxu0 0
      %3176 = vmatpush1.bf16.msra.mxu0 0
      %3177 = vmatprep.subr.bf16.mxu0 0
      %3178 = vmatpush1.bf16.msra.mxu0 0
      %3179 = vmatprep.subr.bf16.mxu0 0
      %3180 = vmatpush1.bf16.msra.mxu0 0
      %3181 = vmatprep.subr.bf16.mxu0 0
      %3182 = vmatpush1.bf16.msra.mxu0 0
      %3183 = vmatprep.subr.bf16.mxu0 0
      %3184 = vmatpush1.bf16.msra.mxu0 0
      %3185 = vmatprep.subr.bf16.mxu0 0
      %3186 = vmatpush1.bf16.msra.mxu0 0
      %3187 = vmatprep.mubr.bf16.mxu0 0
      %3188 = vmatmul.mubr.bf16.gmra.mrb[0].mxu0 %v3153
      %v3189 = vpop.f32.mrb[0].mxu0
      %v3190 = vadd.f32 %v3147, %v3189
      %v3191 = vpop.f32.mrb[0].mxu0
      %v3192 = vpop.f32.mrb[0].mxu0
      %v3193 = vpop.f32.mrb[0].mxu0
      %3194 = vdwg.mxu0
      %v3195 = vrot.slane %v1904, 2
      %v3196 = vrot.slane %v1983, 2
      %v3197 = vsel %vm2323, %v3195, 0
      %v3199 = vsel %vm2323, %v3196, 0
      %3201 = vmatprep.subr.mxu0 0.0
      %3202 = vmatpush1.xpose.msra.mxu0 %v3199
      %3203 = vmatprep.subr.mxu0 0.0
      %3204 = vmatpush1.xpose.msra.mxu0 0.0
      %3205 = vmatprep.subr.mxu0 0.0
      %3206 = vmatpush1.xpose.msra.mxu0 0.0
      %3207 = vmatprep.subr.mxu0 0.0
      %3208 = vmatpush1.xpose.msra.mxu0 0.0
      %3209 = vmatprep.subr.mxu0 0.0
      %3210 = vmatpush1.xpose.msra.mxu0 0.0
      %3211 = vmatprep.subr.mxu0 0.0
      %3212 = vmatpush1.xpose.msra.mxu0 0.0
      %3213 = vmatprep.subr.mxu0 0.0
      %3214 = vmatpush1.xpose.msra.mxu0 0.0
      %3215 = vmatprep.subr.mxu0 0.0
      %3216 = vmatpush1.xpose.msra.mxu0 0.0
      %3217 = vmatprep.subr.mxu0 0.0
      %3218 = vmatpush1.xpose.msra.mxu0 0.0
      %3219 = vmatprep.subr.mxu0 0.0
      %3220 = vmatpush1.xpose.msra.mxu0 0.0
      %3221 = vmatprep.subr.mxu0 0.0
      %3222 = vmatpush1.xpose.msra.mxu0 0.0
      %3223 = vmatprep.subr.mxu0 0.0
      %3224 = vmatpush1.xpose.msra.mxu0 0.0
      %3225 = vmatprep.subr.mxu0 0.0
      %3226 = vmatpush1.xpose.msra.mxu0 0.0
      %3227 = vmatprep.subr.mxu0 0.0
      %3228 = vmatpush1.xpose.msra.mxu0 0.0
      %3229 = vmatprep.subr.mxu0 0.0
      %3230 = vmatpush1.xpose.msra.mxu0 0.0
      %3231 = vmatprep.subr.mxu0 0.0
      %3232 = vmatpush1.xpose.msra.mxu0 0.0
      %3233 = vmatprep.subr.mxu0 0.0
      %3234 = vmatpush1.xpose.msra.mxu0 0.0
      %3235 = vmatprep.subr.mxu0 0.0
      %3236 = vmatpush1.xpose.msra.mxu0 0.0
      %3237 = vmatprep.subr.mxu0 0.0
      %3238 = vmatpush1.xpose.msra.mxu0 0.0
      %3239 = vmatprep.subr.mxu0 0.0
      %3240 = vmatpush1.xpose.msra.mxu0 0.0
      %3241 = vmatprep.subr.mxu0 0.0
      %3242 = vmatpush1.xpose.msra.mxu0 0.0
      %3243 = vmatprep.subr.mxu0 0.0
      %3244 = vmatpush1.xpose.msra.mxu0 0.0
      %3245 = vmatprep.subr.mxu0 0.0
      %3246 = vmatpush1.xpose.msra.mxu0 0.0
      %3247 = vmatprep.subr.mxu0 0.0
      %3248 = vmatpush1.xpose.msra.mxu0 0.0
      %3249 = vmatprep.subr.mxu0 0.0
      %3250 = vmatpush1.xpose.msra.mxu0 0.0
      %3251 = vmatprep.subr.mxu0 0.0
      %3252 = vmatpush1.xpose.msra.mxu0 0.0
      %3253 = vmatprep.subr.mxu0 0.0
      %3254 = vmatpush1.xpose.msra.mxu0 0.0
      %3255 = vmatprep.subr.mxu0 0.0
      %3256 = vmatpush1.xpose.msra.mxu0 0.0
      %3257 = vmatprep.subr.mxu0 0.0
      %3258 = vmatpush1.xpose.msra.mxu0 0.0
      %3259 = vmatprep.subr.mxu0 0.0
      %3260 = vmatpush1.xpose.msra.mxu0 0.0
      %3261 = vmatprep.subr.mxu0 0.0
      %3262 = vmatpush1.xpose.msra.mxu0 0.0
      %3263 = vmatprep.subr.mxu0 0.0
      %3264 = vmatpush1.xpose.msra.mxu0 0.0
      %3265 = vmatprep.mubr.f32.mxu0 0.0
      %3266 = vmatmul.mubr.f32.gmra.mrb[0].mxu0 %v3197
      %v3267 = vpop.f32.mrb[0].mxu0
      %v3268 = vadd.f32 0.0, %v3267
      %v3269 = vpop.f32.mrb[0].mxu0
      %3270 = vdwg.mxu0
      %v3271 = vmul.f32 %v3268, 0.25
      %v3272 = vsel %vm2401, %v3271, -inf
      %3273 = vmax.xlane.f32.xlu0 %v3272
      %v3274 = vpop.xlane.xlu0 %3273
      %v3275 = vsub.f32 %v3271, %v3274
      %v3276 = vmul.f32 %v3275, 1.442695
      %v3277 = vpow.pop %v3276
      %v3278 = vsel %vm2401, %v3277, 0.0
      %3279 = vadd.xlane.f32.xlu0 %v3278
      %v3280 = vpop.xlane.xlu0 %3279
      %v3281 = vrcp.pop %v3280
      %v3282 = vmul.f32 %v3277, %v3281
      %v3283 = vrot.slane %v2062, 2
      %v3285 = vsel %vm2413, %v3282, 0
      %v3287 = vsel %vm2417, %v3283, 0
      %3289 = vmatprep.subr.mxu0 0.0
      %3290 = vmatpush1.msra.mxu0 %v3287
      %3291 = vmatprep.subr.mxu0 0.0
      %3292 = vmatpush1.msra.mxu0 0.0
      %3293 = vmatprep.subr.mxu0 0.0
      %3294 = vmatpush1.msra.mxu0 0.0
      %3295 = vmatprep.subr.mxu0 0.0
      %3296 = vmatpush1.msra.mxu0 0.0
      %3297 = vmatprep.subr.mxu0 0.0
      %3298 = vmatpush1.msra.mxu0 0.0
      %3299 = vmatprep.subr.mxu0 0.0
      %3300 = vmatpush1.msra.mxu0 0.0
      %3301 = vmatprep.subr.mxu0 0.0
      %3302 = vmatpush1.msra.mxu0 0.0
      %3303 = vmatprep.subr.mxu0 0.0
      %3304 = vmatpush1.msra.mxu0 0.0
      %3305 = vmatprep.subr.mxu0 0.0
      %3306 = vmatpush1.msra.mxu0 0.0
      %3307 = vmatprep.subr.mxu0 0.0
      %3308 = vmatpush1.msra.mxu0 0.0
      %3309 = vmatprep.subr.mxu0 0.0
      %3310 = vmatpush1.msra.mxu0 0.0
      %3311 = vmatprep.subr.mxu0 0.0
      %3312 = vmatpush1.msra.mxu0 0.0
      %3313 = vmatprep.subr.mxu0 0.0
      %3314 = vmatpush1.msra.mxu0 0.0
      %3315 = vmatprep.subr.mxu0 0.0
      %3316 = vmatpush1.msra.mxu0 0.0
      %3317 = vmatprep.subr.mxu0 0.0
      %3318 = vmatpush1.msra.mxu0 0.0
      %3319 = vmatprep.subr.mxu0 0.0
      %3320 = vmatpush1.msra.mxu0 0.0
      %3321 = vmatprep.subr.mxu0 0.0
      %3322 = vmatpush1.msra.mxu0 0.0
      %3323 = vmatprep.subr.mxu0 0.0
      %3324 = vmatpush1.msra.mxu0 0.0
      %3325 = vmatprep.subr.mxu0 0.0
      %3326 = vmatpush1.msra.mxu0 0.0
      %3327 = vmatprep.subr.mxu0 0.0
      %3328 = vmatpush1.msra.mxu0 0.0
      %3329 = vmatprep.subr.mxu0 0.0
      %3330 = vmatpush1.msra.mxu0 0.0
      %3331 = vmatprep.subr.mxu0 0.0
      %3332 = vmatpush1.msra.mxu0 0.0
      %3333 = vmatprep.subr.mxu0 0.0
      %3334 = vmatpush1.msra.mxu0 0.0
      %3335 = vmatprep.subr.mxu0 0.0
      %3336 = vmatpush1.msra.mxu0 0.0
      %3337 = vmatprep.subr.mxu0 0.0
      %3338 = vmatpush1.msra.mxu0 0.0
      %3339 = vmatprep.subr.mxu0 0.0
      %3340 = vmatpush1.msra.mxu0 0.0
      %3341 = vmatprep.subr.mxu0 0.0
      %3342 = vmatpush1.msra.mxu0 0.0
      %3343 = vmatprep.subr.mxu0 0.0
      %3344 = vmatpush1.msra.mxu0 0.0
      %3345 = vmatprep.subr.mxu0 0.0
      %3346 = vmatpush1.msra.mxu0 0.0
      %3347 = vmatprep.subr.mxu0 0.0
      %3348 = vmatpush1.msra.mxu0 0.0
      %3349 = vmatprep.subr.mxu0 0.0
      %3350 = vmatpush1.msra.mxu0 0.0
      %3351 = vmatprep.subr.mxu0 0.0
      %3352 = vmatpush1.msra.mxu0 0.0
      %3353 = vmatprep.mubr.f32.mxu0 0.0
      %3354 = vmatmul.mubr.f32.gmra.mrb[0].mxu0 %v3285
      %v3355 = vpop.f32.mrb[0].mxu0
      %v3356 = vadd.f32 0.0, %v3355
      %v3357 = vpop.f32.mrb[0].mxu0
      %3358 = vdwg.mxu0
      %v3359 = vpack.c.bf16 %v3356, %v3356
      %v3360 = vrot.slane %v2143, 2
      %v3361 = vrot.slane %v2224, 2
      %v3362 = vsel %vm2323, %v3360, 0
      %v3364 = vsel %vm2323, %v3361, 0
      %3366 = vmatprep.subr.mxu0 0.0
      %3367 = vmatpush1.xpose.msra.mxu0 %v3364
      %3368 = vmatprep.subr.mxu0 0.0
      %3369 = vmatpush1.xpose.msra.mxu0 0.0
      %3370 = vmatprep.subr.mxu0 0.0
      %3371 = vmatpush1.xpose.msra.mxu0 0.0
      %3372 = vmatprep.subr.mxu0 0.0
      %3373 = vmatpush1.xpose.msra.mxu0 0.0
      %3374 = vmatprep.subr.mxu0 0.0
      %3375 = vmatpush1.xpose.msra.mxu0 0.0
      %3376 = vmatprep.subr.mxu0 0.0
      %3377 = vmatpush1.xpose.msra.mxu0 0.0
      %3378 = vmatprep.subr.mxu0 0.0
      %3379 = vmatpush1.xpose.msra.mxu0 0.0
      %3380 = vmatprep.subr.mxu0 0.0
      %3381 = vmatpush1.xpose.msra.mxu0 0.0
      %3382 = vmatprep.subr.mxu0 0.0
      %3383 = vmatpush1.xpose.msra.mxu0 0.0
      %3384 = vmatprep.subr.mxu0 0.0
      %3385 = vmatpush1.xpose.msra.mxu0 0.0
      %3386 = vmatprep.subr.mxu0 0.0
      %3387 = vmatpush1.xpose.msra.mxu0 0.0
      %3388 = vmatprep.subr.mxu0 0.0
      %3389 = vmatpush1.xpose.msra.mxu0 0.0
      %3390 = vmatprep.subr.mxu0 0.0
      %3391 = vmatpush1.xpose.msra.mxu0 0.0
      %3392 = vmatprep.subr.mxu0 0.0
      %3393 = vmatpush1.xpose.msra.mxu0 0.0
      %3394 = vmatprep.subr.mxu0 0.0
      %3395 = vmatpush1.xpose.msra.mxu0 0.0
      %3396 = vmatprep.subr.mxu0 0.0
      %3397 = vmatpush1.xpose.msra.mxu0 0.0
      %3398 = vmatprep.subr.mxu0 0.0
      %3399 = vmatpush1.xpose.msra.mxu0 0.0
      %3400 = vmatprep.subr.mxu0 0.0
      %3401 = vmatpush1.xpose.msra.mxu0 0.0
      %3402 = vmatprep.subr.mxu0 0.0
      %3403 = vmatpush1.xpose.msra.mxu0 0.0
      %3404 = vmatprep.subr.mxu0 0.0
      %3405 = vmatpush1.xpose.msra.mxu0 0.0
      %3406 = vmatprep.subr.mxu0 0.0
      %3407 = vmatpush1.xpose.msra.mxu0 0.0
      %3408 = vmatprep.subr.mxu0 0.0
      %3409 = vmatpush1.xpose.msra.mxu0 0.0
      %3410 = vmatprep.subr.mxu0 0.0
      %3411 = vmatpush1.xpose.msra.mxu0 0.0
      %3412 = vmatprep.subr.mxu0 0.0
      %3413 = vmatpush1.xpose.msra.mxu0 0.0
      %3414 = vmatprep.subr.mxu0 0.0
      %3415 = vmatpush1.xpose.msra.mxu0 0.0
      %3416 = vmatprep.subr.mxu0 0.0
      %3417 = vmatpush1.xpose.msra.mxu0 0.0
      %3418 = vmatprep.subr.mxu0 0.0
      %3419 = vmatpush1.xpose.msra.mxu0 0.0
      %3420 = vmatprep.subr.mxu0 0.0
      %3421 = vmatpush1.xpose.msra.mxu0 0.0
      %3422 = vmatprep.subr.mxu0 0.0
      %3423 = vmatpush1.xpose.msra.mxu0 0.0
      %3424 = vmatprep.subr.mxu0 0.0
      %3425 = vmatpush1.xpose.msra.mxu0 0.0
      %3426 = vmatprep.subr.mxu0 0.0
      %3427 = vmatpush1.xpose.msra.mxu0 0.0
      %3428 = vmatprep.subr.mxu0 0.0
      %3429 = vmatpush1.xpose.msra.mxu0 0.0
      %3430 = vmatprep.mubr.f32.mxu0 0.0
      %3431 = vmatmul.mubr.f32.gmra.mrb[0].mxu0 %v3362
      %v3432 = vpop.f32.mrb[0].mxu0
      %v3433 = vadd.f32 0.0, %v3432
      %v3434 = vpop.f32.mrb[0].mxu0
      %3435 = vdwg.mxu0
      %v3436 = vmul.f32 %v3433, 0.25
      %v3437 = vsel %vm2401, %v3436, -inf
      %3438 = vmax.xlane.f32.xlu0 %v3437
      %v3439 = vpop.xlane.xlu0 %3438
      %v3440 = vsub.f32 %v3436, %v3439
      %v3441 = vmul.f32 %v3440, 1.442695
      %v3442 = vpow.pop %v3441
      %v3443 = vsel %vm2401, %v3442, 0.0
      %3444 = vadd.xlane.f32.xlu0 %v3443
      %v3445 = vpop.xlane.xlu0 %3444
      %v3446 = vrcp.pop %v3445
      %v3447 = vmul.f32 %v3442, %v3446
      %v3448 = vrot.slane %v2305, 2
      %v3450 = vsel %vm2413, %v3447, 0
      %v3452 = vsel %vm2417, %v3448, 0
      %3454 = vmatprep.subr.mxu0 0.0
      %3455 = vmatpush1.msra.mxu0 %v3452
      %3456 = vmatprep.subr.mxu0 0.0
      %3457 = vmatpush1.msra.mxu0 0.0
      %3458 = vmatprep.subr.mxu0 0.0
      %3459 = vmatpush1.msra.mxu0 0.0
      %3460 = vmatprep.subr.mxu0 0.0
      %3461 = vmatpush1.msra.mxu0 0.0
      %3462 = vmatprep.subr.mxu0 0.0
      %3463 = vmatpush1.msra.mxu0 0.0
      %3464 = vmatprep.subr.mxu0 0.0
      %3465 = vmatpush1.msra.mxu0 0.0
      %3466 = vmatprep.subr.mxu0 0.0
      %3467 = vmatpush1.msra.mxu0 0.0
      %3468 = vmatprep.subr.mxu0 0.0
      %3469 = vmatpush1.msra.mxu0 0.0
      %3470 = vmatprep.subr.mxu0 0.0
      %3471 = vmatpush1.msra.mxu0 0.0
      %3472 = vmatprep.subr.mxu0 0.0
      %3473 = vmatpush1.msra.mxu0 0.0
      %3474 = vmatprep.subr.mxu0 0.0
      %3475 = vmatpush1.msra.mxu0 0.0
      %3476 = vmatprep.subr.mxu0 0.0
      %3477 = vmatpush1.msra.mxu0 0.0
      %3478 = vmatprep.subr.mxu0 0.0
      %3479 = vmatpush1.msra.mxu0 0.0
      %3480 = vmatprep.subr.mxu0 0.0
      %3481 = vmatpush1.msra.mxu0 0.0
      %3482 = vmatprep.subr.mxu0 0.0
      %3483 = vmatpush1.msra.mxu0 0.0
      %3484 = vmatprep.subr.mxu0 0.0
      %3485 = vmatpush1.msra.mxu0 0.0
      %3486 = vmatprep.subr.mxu0 0.0
      %3487 = vmatpush1.msra.mxu0 0.0
      %3488 = vmatprep.subr.mxu0 0.0
      %3489 = vmatpush1.msra.mxu0 0.0
      %3490 = vmatprep.subr.mxu0 0.0
      %3491 = vmatpush1.msra.mxu0 0.0
      %3492 = vmatprep.subr.mxu0 0.0
      %3493 = vmatpush1.msra.mxu0 0.0
      %3494 = vmatprep.subr.mxu0 0.0
      %3495 = vmatpush1.msra.mxu0 0.0
      %3496 = vmatprep.subr.mxu0 0.0
      %3497 = vmatpush1.msra.mxu0 0.0
      %3498 = vmatprep.subr.mxu0 0.0
      %3499 = vmatpush1.msra.mxu0 0.0
      %3500 = vmatprep.subr.mxu0 0.0
      %3501 = vmatpush1.msra.mxu0 0.0
      %3502 = vmatprep.subr.mxu0 0.0
      %3503 = vmatpush1.msra.mxu0 0.0
      %3504 = vmatprep.subr.mxu0 0.0
      %3505 = vmatpush1.msra.mxu0 0.0
      %3506 = vmatprep.subr.mxu0 0.0
      %3507 = vmatpush1.msra.mxu0 0.0
      %3508 = vmatprep.subr.mxu0 0.0
      %3509 = vmatpush1.msra.mxu0 0.0
      %3510 = vmatprep.subr.mxu0 0.0
      %3511 = vmatpush1.msra.mxu0 0.0
      %3512 = vmatprep.subr.mxu0 0.0
      %3513 = vmatpush1.msra.mxu0 0.0
      %3514 = vmatprep.subr.mxu0 0.0
      %3515 = vmatpush1.msra.mxu0 0.0
      %3516 = vmatprep.subr.mxu0 0.0
      %3517 = vmatpush1.msra.mxu0 0.0
      %3518 = vmatprep.mubr.f32.mxu0 0.0
      %3519 = vmatmul.mubr.f32.gmra.mrb[0].mxu0 %v3450
      %v3520 = vpop.f32.mrb[0].mxu0
      %v3521 = vadd.f32 0.0, %v3520
      %v3522 = vpop.f32.mrb[0].mxu0
      %3523 = vdwg.mxu0
      %v3524 = vpack.c.bf16 %v3521, %v3521
      %v3526 = vsel %vm2323, %v3524, 0
      %3528 = vmatprep.subr.bf16.mxu0 0
      %3529 = vmatpush1.bf16.msra.mxu0 %v2666
      %3530 = vmatprep.subr.bf16.mxu0 0
      %3531 = vmatpush1.bf16.msra.mxu0 0
      %3532 = vmatprep.subr.bf16.mxu0 0
      %3533 = vmatpush1.bf16.msra.mxu0 0
      %3534 = vmatprep.subr.bf16.mxu0 0
      %3535 = vmatpush1.bf16.msra.mxu0 0
      %3536 = vmatprep.subr.bf16.mxu0 0
      %3537 = vmatpush1.bf16.msra.mxu0 0
      %3538 = vmatprep.subr.bf16.mxu0 0
      %3539 = vmatpush1.bf16.msra.mxu0 0
      %3540 = vmatprep.subr.bf16.mxu0 0
      %3541 = vmatpush1.bf16.msra.mxu0 0
      %3542 = vmatprep.subr.bf16.mxu0 0
      %3543 = vmatpush1.bf16.msra.mxu0 0
      %3544 = vmatprep.subr.bf16.mxu0 0
      %3545 = vmatpush1.bf16.msra.mxu0 0
      %3546 = vmatprep.subr.bf16.mxu0 0
      %3547 = vmatpush1.bf16.msra.mxu0 0
      %3548 = vmatprep.subr.bf16.mxu0 0
      %3549 = vmatpush1.bf16.msra.mxu0 0
      %3550 = vmatprep.subr.bf16.mxu0 0
      %3551 = vmatpush1.bf16.msra.mxu0 0
      %3552 = vmatprep.subr.bf16.mxu0 0
      %3553 = vmatpush1.bf16.msra.mxu0 0
      %3554 = vmatprep.subr.bf16.mxu0 0
      %3555 = vmatpush1.bf16.msra.mxu0 0
      %3556 = vmatprep.subr.bf16.mxu0 0
      %3557 = vmatpush1.bf16.msra.mxu0 0
      %3558 = vmatprep.subr.bf16.mxu0 0
      %3559 = vmatpush1.bf16.msra.mxu0 0
      %3560 = vmatprep.mubr.bf16.mxu0 0
      %3561 = vmatmul.mubr.bf16.gmra.mrb[0].mxu0 %v3526
      %v3562 = vpop.f32.mrb[0].mxu0
      %v3563 = vadd.f32 0.0, %v3562
      %v3564 = vpop.f32.mrb[0].mxu0
      %v3565 = vpop.f32.mrb[0].mxu0
      %v3566 = vpop.f32.mrb[0].mxu0
      %3567 = vdwg.mxu0
      %v3569 = vsel %vm2323, %v3359, 0
      %3571 = vmatprep.subr.bf16.mxu0 0
      %3572 = vmatpush1.bf16.msra.mxu0 %v2715
      %3573 = vmatprep.subr.bf16.mxu0 0
      %3574 = vmatpush1.bf16.msra.mxu0 0
      %3575 = vmatprep.subr.bf16.mxu0 0
      %3576 = vmatpush1.bf16.msra.mxu0 0
      %3577 = vmatprep.subr.bf16.mxu0 0
      %3578 = vmatpush1.bf16.msra.mxu0 0
      %3579 = vmatprep.subr.bf16.mxu0 0
      %3580 = vmatpush1.bf16.msra.mxu0 0
      %3581 = vmatprep.subr.bf16.mxu0 0
      %3582 = vmatpush1.bf16.msra.mxu0 0
      %3583 = vmatprep.subr.bf16.mxu0 0
      %3584 = vmatpush1.bf16.msra.mxu0 0
      %3585 = vmatprep.subr.bf16.mxu0 0
      %3586 = vmatpush1.bf16.msra.mxu0 0
      %3587 = vmatprep.subr.bf16.mxu0 0
      %3588 = vmatpush1.bf16.msra.mxu0 0
      %3589 = vmatprep.subr.bf16.mxu0 0
      %3590 = vmatpush1.bf16.msra.mxu0 0
      %3591 = vmatprep.subr.bf16.mxu0 0
      %3592 = vmatpush1.bf16.msra.mxu0 0
      %3593 = vmatprep.subr.bf16.mxu0 0
      %3594 = vmatpush1.bf16.msra.mxu0 0
      %3595 = vmatprep.subr.bf16.mxu0 0
      %3596 = vmatpush1.bf16.msra.mxu0 0
      %3597 = vmatprep.subr.bf16.mxu0 0
      %3598 = vmatpush1.bf16.msra.mxu0 0
      %3599 = vmatprep.subr.bf16.mxu0 0
      %3600 = vmatpush1.bf16.msra.mxu0 0
      %3601 = vmatprep.subr.bf16.mxu0 0
      %3602 = vmatpush1.bf16.msra.mxu0 0
      %3603 = vmatprep.mubr.bf16.mxu0 0
      %3604 = vmatmul.mubr.bf16.gmra.mrb[0].mxu0 %v3569
      %v3605 = vpop.f32.mrb[0].mxu0
      %v3606 = vadd.f32 %v3563, %v3605
      %v3607 = vpop.f32.mrb[0].mxu0
      %v3608 = vpop.f32.mrb[0].mxu0
      %v3609 = vpop.f32.mrb[0].mxu0
      %3610 = vdwg.mxu0
      %vm3612 = vcmask 1040384
      %v3613 = vrot.slane %v1904, 7
      %v3614 = vrot.slane %v1909, 7
      %v3615 = vsel %vm3612, %v3613, %v3614
      %v3617 = vrot.slane %v1983, 7
      %v3618 = vrot.slane %v1988, 7
      %v3619 = vsel %vm3612, %v3617, %v3618
      %v3620 = vsel %vm2323, %v3615, 0
      %v3622 = vsel %vm2323, %v3619, 0
      %3624 = vmatprep.subr.mxu0 0.0
      %3625 = vmatpush1.xpose.msra.mxu0 %v3622
      %3626 = vmatprep.subr.mxu0 0.0
      %3627 = vmatpush1.xpose.msra.mxu0 0.0
      %3628 = vmatprep.subr.mxu0 0.0
      %3629 = vmatpush1.xpose.msra.mxu0 0.0
      %3630 = vmatprep.subr.mxu0 0.0
      %3631 = vmatpush1.xpose.msra.mxu0 0.0
      %3632 = vmatprep.subr.mxu0 0.0
      %3633 = vmatpush1.xpose.msra.mxu0 0.0
      %3634 = vmatprep.subr.mxu0 0.0
      %3635 = vmatpush1.xpose.msra.mxu0 0.0
      %3636 = vmatprep.subr.mxu0 0.0
      %3637 = vmatpush1.xpose.msra.mxu0 0.0
      %3638 = vmatprep.subr.mxu0 0.0
      %3639 = vmatpush1.xpose.msra.mxu0 0.0
      %3640 = vmatprep.subr.mxu0 0.0
      %3641 = vmatpush1.xpose.msra.mxu0 0.0
      %3642 = vmatprep.subr.mxu0 0.0
      %3643 = vmatpush1.xpose.msra.mxu0 0.0
      %3644 = vmatprep.subr.mxu0 0.0
      %3645 = vmatpush1.xpose.msra.mxu0 0.0
      %3646 = vmatprep.subr.mxu0 0.0
      %3647 = vmatpush1.xpose.msra.mxu0 0.0
      %3648 = vmatprep.subr.mxu0 0.0
      %3649 = vmatpush1.xpose.msra.mxu0 0.0
      %3650 = vmatprep.subr.mxu0 0.0
      %3651 = vmatpush1.xpose.msra.mxu0 0.0
      %3652 = vmatprep.subr.mxu0 0.0
      %3653 = vmatpush1.xpose.msra.mxu0 0.0
      %3654 = vmatprep.subr.mxu0 0.0
      %3655 = vmatpush1.xpose.msra.mxu0 0.0
      %3656 = vmatprep.subr.mxu0 0.0
      %3657 = vmatpush1.xpose.msra.mxu0 0.0
      %3658 = vmatprep.subr.mxu0 0.0
      %3659 = vmatpush1.xpose.msra.mxu0 0.0
      %3660 = vmatprep.subr.mxu0 0.0
      %3661 = vmatpush1.xpose.msra.mxu0 0.0
      %3662 = vmatprep.subr.mxu0 0.0
      %3663 = vmatpush1.xpose.msra.mxu0 0.0
      %3664 = vmatprep.subr.mxu0 0.0
      %3665 = vmatpush1.xpose.msra.mxu0 0.0
      %3666 = vmatprep.subr.mxu0 0.0
      %3667 = vmatpush1.xpose.msra.mxu0 0.0
      %3668 = vmatprep.subr.mxu0 0.0
      %3669 = vmatpush1.xpose.msra.mxu0 0.0
      %3670 = vmatprep.subr.mxu0 0.0
      %3671 = vmatpush1.xpose.msra.mxu0 0.0
      %3672 = vmatprep.subr.mxu0 0.0
      %3673 = vmatpush1.xpose.msra.mxu0 0.0
      %3674 = vmatprep.subr.mxu0 0.0
      %3675 = vmatpush1.xpose.msra.mxu0 0.0
      %3676 = vmatprep.subr.mxu0 0.0
      %3677 = vmatpush1.xpose.msra.mxu0 0.0
      %3678 = vmatprep.subr.mxu0 0.0
      %3679 = vmatpush1.xpose.msra.mxu0 0.0
      %3680 = vmatprep.subr.mxu0 0.0
      %3681 = vmatpush1.xpose.msra.mxu0 0.0
      %3682 = vmatprep.subr.mxu0 0.0
      %3683 = vmatpush1.xpose.msra.mxu0 0.0
      %3684 = vmatprep.subr.mxu0 0.0
      %3685 = vmatpush1.xpose.msra.mxu0 0.0
      %3686 = vmatprep.subr.mxu0 0.0
      %3687 = vmatpush1.xpose.msra.mxu0 0.0
      %3688 = vmatprep.mubr.f32.mxu0 0.0
      %3689 = vmatmul.mubr.f32.gmra.mrb[0].mxu0 %v3620
      %v3690 = vpop.f32.mrb[0].mxu0
      %v3691 = vadd.f32 0.0, %v3690
      %v3692 = vpop.f32.mrb[0].mxu0
      %3693 = vdwg.mxu0
      %v3694 = vmul.f32 %v3691, 0.25
      %v3695 = vsel %vm2401, %v3694, -inf
      %3696 = vmax.xlane.f32.xlu0 %v3695
      %v3697 = vpop.xlane.xlu0 %3696
      %v3698 = vsub.f32 %v3694, %v3697
      %v3699 = vmul.f32 %v3698, 1.442695
      %v3700 = vpow.pop %v3699
      %v3701 = vsel %vm2401, %v3700, 0.0
      %3702 = vadd.xlane.f32.xlu0 %v3701
      %v3703 = vpop.xlane.xlu0 %3702
      %v3704 = vrcp.pop %v3703
      %v3705 = vmul.f32 %v3700, %v3704
      %v3707 = vrot.slane %v2062, 7
      %v3708 = vrot.slane %v2067, 7
      %v3709 = vsel %vm3612, %v3707, %v3708
      %v3711 = vsel %vm2413, %v3705, 0
      %v3713 = vsel %vm2417, %v3709, 0
      %3715 = vmatprep.subr.mxu0 0.0
      %3716 = vmatpush1.msra.mxu0 %v3713
      %3717 = vmatprep.subr.mxu0 0.0
      %3718 = vmatpush1.msra.mxu0 0.0
      %3719 = vmatprep.subr.mxu0 0.0
      %3720 = vmatpush1.msra.mxu0 0.0
      %3721 = vmatprep.subr.mxu0 0.0
      %3722 = vmatpush1.msra.mxu0 0.0
      %3723 = vmatprep.subr.mxu0 0.0
      %3724 = vmatpush1.msra.mxu0 0.0
      %3725 = vmatprep.subr.mxu0 0.0
      %3726 = vmatpush1.msra.mxu0 0.0
      %3727 = vmatprep.subr.mxu0 0.0
      %3728 = vmatpush1.msra.mxu0 0.0
      %3729 = vmatprep.subr.mxu0 0.0
      %3730 = vmatpush1.msra.mxu0 0.0
      %3731 = vmatprep.subr.mxu0 0.0
      %3732 = vmatpush1.msra.mxu0 0.0
      %3733 = vmatprep.subr.mxu0 0.0
      %3734 = vmatpush1.msra.mxu0 0.0
      %3735 = vmatprep.subr.mxu0 0.0
      %3736 = vmatpush1.msra.mxu0 0.0
      %3737 = vmatprep.subr.mxu0 0.0
      %3738 = vmatpush1.msra.mxu0 0.0
      %3739 = vmatprep.subr.mxu0 0.0
      %3740 = vmatpush1.msra.mxu0 0.0
      %3741 = vmatprep.subr.mxu0 0.0
      %3742 = vmatpush1.msra.mxu0 0.0
      %3743 = vmatprep.subr.mxu0 0.0
      %3744 = vmatpush1.msra.mxu0 0.0
      %3745 = vmatprep.subr.mxu0 0.0
      %3746 = vmatpush1.msra.mxu0 0.0
      %3747 = vmatprep.subr.mxu0 0.0
      %3748 = vmatpush1.msra.mxu0 0.0
      %3749 = vmatprep.subr.mxu0 0.0
      %3750 = vmatpush1.msra.mxu0 0.0
      %3751 = vmatprep.subr.mxu0 0.0
      %3752 = vmatpush1.msra.mxu0 0.0
      %3753 = vmatprep.subr.mxu0 0.0
      %3754 = vmatpush1.msra.mxu0 0.0
      %3755 = vmatprep.subr.mxu0 0.0
      %3756 = vmatpush1.msra.mxu0 0.0
      %3757 = vmatprep.subr.mxu0 0.0
      %3758 = vmatpush1.msra.mxu0 0.0
      %3759 = vmatprep.subr.mxu0 0.0
      %3760 = vmatpush1.msra.mxu0 0.0
      %3761 = vmatprep.subr.mxu0 0.0
      %3762 = vmatpush1.msra.mxu0 0.0
      %3763 = vmatprep.subr.mxu0 0.0
      %3764 = vmatpush1.msra.mxu0 0.0
      %3765 = vmatprep.subr.mxu0 0.0
      %3766 = vmatpush1.msra.mxu0 0.0
      %3767 = vmatprep.subr.mxu0 0.0
      %3768 = vmatpush1.msra.mxu0 0.0
      %3769 = vmatprep.subr.mxu0 0.0
      %3770 = vmatpush1.msra.mxu0 0.0
      %3771 = vmatprep.subr.mxu0 0.0
      %3772 = vmatpush1.msra.mxu0 0.0
      %3773 = vmatprep.subr.mxu0 0.0
      %3774 = vmatpush1.msra.mxu0 0.0
      %3775 = vmatprep.subr.mxu0 0.0
      %3776 = vmatpush1.msra.mxu0 0.0
      %3777 = vmatprep.subr.mxu0 0.0
      %3778 = vmatpush1.msra.mxu0 0.0
      %3779 = vmatprep.mubr.f32.mxu0 0.0
      %3780 = vmatmul.mubr.f32.gmra.mrb[0].mxu0 %v3711
      %v3781 = vpop.f32.mrb[0].mxu0
      %v3782 = vadd.f32 0.0, %v3781
      %v3783 = vpop.f32.mrb[0].mxu0
      %3784 = vdwg.mxu0
      %v3785 = vpack.c.bf16 %v3782, %v3782
      %v3787 = vrot.slane %v2143, 7
      %v3788 = vrot.slane %v2148, 7
      %v3789 = vsel %vm3612, %v3787, %v3788
      %v3791 = vrot.slane %v2224, 7
      %v3792 = vrot.slane %v2229, 7
      %v3793 = vsel %vm3612, %v3791, %v3792
      %v3794 = vsel %vm2323, %v3789, 0
      %v3796 = vsel %vm2323, %v3793, 0
      %3798 = vmatprep.subr.mxu0 0.0
      %3799 = vmatpush1.xpose.msra.mxu0 %v3796
      %3800 = vmatprep.subr.mxu0 0.0
      %3801 = vmatpush1.xpose.msra.mxu0 0.0
      %3802 = vmatprep.subr.mxu0 0.0
      %3803 = vmatpush1.xpose.msra.mxu0 0.0
      %3804 = vmatprep.subr.mxu0 0.0
      %3805 = vmatpush1.xpose.msra.mxu0 0.0
      %3806 = vmatprep.subr.mxu0 0.0
      %3807 = vmatpush1.xpose.msra.mxu0 0.0
      %3808 = vmatprep.subr.mxu0 0.0
      %3809 = vmatpush1.xpose.msra.mxu0 0.0
      %3810 = vmatprep.subr.mxu0 0.0
      %3811 = vmatpush1.xpose.msra.mxu0 0.0
      %3812 = vmatprep.subr.mxu0 0.0
      %3813 = vmatpush1.xpose.msra.mxu0 0.0
      %3814 = vmatprep.subr.mxu0 0.0
      %3815 = vmatpush1.xpose.msra.mxu0 0.0
      %3816 = vmatprep.subr.mxu0 0.0
      %3817 = vmatpush1.xpose.msra.mxu0 0.0
      %3818 = vmatprep.subr.mxu0 0.0
      %3819 = vmatpush1.xpose.msra.mxu0 0.0
      %3820 = vmatprep.subr.mxu0 0.0
      %3821 = vmatpush1.xpose.msra.mxu0 0.0
      %3822 = vmatprep.subr.mxu0 0.0
      %3823 = vmatpush1.xpose.msra.mxu0 0.0
      %3824 = vmatprep.subr.mxu0 0.0
      %3825 = vmatpush1.xpose.msra.mxu0 0.0
      %3826 = vmatprep.subr.mxu0 0.0
      %3827 = vmatpush1.xpose.msra.mxu0 0.0
      %3828 = vmatprep.subr.mxu0 0.0
      %3829 = vmatpush1.xpose.msra.mxu0 0.0
      %3830 = vmatprep.subr.mxu0 0.0
      %3831 = vmatpush1.xpose.msra.mxu0 0.0
      %3832 = vmatprep.subr.mxu0 0.0
      %3833 = vmatpush1.xpose.msra.mxu0 0.0
      %3834 = vmatprep.subr.mxu0 0.0
      %3835 = vmatpush1.xpose.msra.mxu0 0.0
      %3836 = vmatprep.subr.mxu0 0.0
      %3837 = vmatpush1.xpose.msra.mxu0 0.0
      %3838 = vmatprep.subr.mxu0 0.0
      %3839 = vmatpush1.xpose.msra.mxu0 0.0
      %3840 = vmatprep.subr.mxu0 0.0
      %3841 = vmatpush1.xpose.msra.mxu0 0.0
      %3842 = vmatprep.subr.mxu0 0.0
      %3843 = vmatpush1.xpose.msra.mxu0 0.0
      %3844 = vmatprep.subr.mxu0 0.0
      %3845 = vmatpush1.xpose.msra.mxu0 0.0
      %3846 = vmatprep.subr.mxu0 0.0
      %3847 = vmatpush1.xpose.msra.mxu0 0.0
      %3848 = vmatprep.subr.mxu0 0.0
      %3849 = vmatpush1.xpose.msra.mxu0 0.0
      %3850 = vmatprep.subr.mxu0 0.0
      %3851 = vmatpush1.xpose.msra.mxu0 0.0
      %3852 = vmatprep.subr.mxu0 0.0
      %3853 = vmatpush1.xpose.msra.mxu0 0.0
      %3854 = vmatprep.subr.mxu0 0.0
      %3855 = vmatpush1.xpose.msra.mxu0 0.0
      %3856 = vmatprep.subr.mxu0 0.0
      %3857 = vmatpush1.xpose.msra.mxu0 0.0
      %3858 = vmatprep.subr.mxu0 0.0
      %3859 = vmatpush1.xpose.msra.mxu0 0.0
      %3860 = vmatprep.subr.mxu0 0.0
      %3861 = vmatpush1.xpose.msra.mxu0 0.0
      %3862 = vmatprep.mubr.f32.mxu0 0.0
      %3863 = vmatmul.mubr.f32.gmra.mrb[0].mxu0 %v3794
      %v3864 = vpop.f32.mrb[0].mxu0
      %v3865 = vadd.f32 0.0, %v3864
      %v3866 = vpop.f32.mrb[0].mxu0
      %3867 = vdwg.mxu0
      %v3868 = vmul.f32 %v3865, 0.25
      %v3869 = vsel %vm2401, %v3868, -inf
      %3870 = vmax.xlane.f32.xlu0 %v3869
      %v3871 = vpop.xlane.xlu0 %3870
      %v3872 = vsub.f32 %v3868, %v3871
      %v3873 = vmul.f32 %v3872, 1.442695
      %v3874 = vpow.pop %v3873
      %v3875 = vsel %vm2401, %v3874, 0.0
      %3876 = vadd.xlane.f32.xlu0 %v3875
      %v3877 = vpop.xlane.xlu0 %3876
      %v3878 = vrcp.pop %v3877
      %v3879 = vmul.f32 %v3874, %v3878
      %v3881 = vrot.slane %v2305, 7
      %v3882 = vrot.slane %v2310, 7
      %v3883 = vsel %vm3612, %v3881, %v3882
      %v3885 = vsel %vm2413, %v3879, 0
      %v3887 = vsel %vm2417, %v3883, 0
      %3889 = vmatprep.subr.mxu0 0.0
      %3890 = vmatpush1.msra.mxu0 %v3887
      %3891 = vmatprep.subr.mxu0 0.0
      %3892 = vmatpush1.msra.mxu0 0.0
      %3893 = vmatprep.subr.mxu0 0.0
      %3894 = vmatpush1.msra.mxu0 0.0
      %3895 = vmatprep.subr.mxu0 0.0
      %3896 = vmatpush1.msra.mxu0 0.0
      %3897 = vmatprep.subr.mxu0 0.0
      %3898 = vmatpush1.msra.mxu0 0.0
      %3899 = vmatprep.subr.mxu0 0.0
      %3900 = vmatpush1.msra.mxu0 0.0
      %3901 = vmatprep.subr.mxu0 0.0
      %3902 = vmatpush1.msra.mxu0 0.0
      %3903 = vmatprep.subr.mxu0 0.0
      %3904 = vmatpush1.msra.mxu0 0.0
      %3905 = vmatprep.subr.mxu0 0.0
      %3906 = vmatpush1.msra.mxu0 0.0
      %3907 = vmatprep.subr.mxu0 0.0
      %3908 = vmatpush1.msra.mxu0 0.0
      %3909 = vmatprep.subr.mxu0 0.0
      %3910 = vmatpush1.msra.mxu0 0.0
      %3911 = vmatprep.subr.mxu0 0.0
      %3912 = vmatpush1.msra.mxu0 0.0
      %3913 = vmatprep.subr.mxu0 0.0
      %3914 = vmatpush1.msra.mxu0 0.0
      %3915 = vmatprep.subr.mxu0 0.0
      %3916 = vmatpush1.msra.mxu0 0.0
      %3917 = vmatprep.subr.mxu0 0.0
      %3918 = vmatpush1.msra.mxu0 0.0
      %3919 = vmatprep.subr.mxu0 0.0
      %3920 = vmatpush1.msra.mxu0 0.0
      %3921 = vmatprep.subr.mxu0 0.0
      %3922 = vmatpush1.msra.mxu0 0.0
      %3923 = vmatprep.subr.mxu0 0.0
      %3924 = vmatpush1.msra.mxu0 0.0
      %3925 = vmatprep.subr.mxu0 0.0
      %3926 = vmatpush1.msra.mxu0 0.0
      %3927 = vmatprep.subr.mxu0 0.0
      %3928 = vmatpush1.msra.mxu0 0.0
      %3929 = vmatprep.subr.mxu0 0.0
      %3930 = vmatpush1.msra.mxu0 0.0
      %3931 = vmatprep.subr.mxu0 0.0
      %3932 = vmatpush1.msra.mxu0 0.0
      %3933 = vmatprep.subr.mxu0 0.0
      %3934 = vmatpush1.msra.mxu0 0.0
      %3935 = vmatprep.subr.mxu0 0.0
      %3936 = vmatpush1.msra.mxu0 0.0
      %3937 = vmatprep.subr.mxu0 0.0
      %3938 = vmatpush1.msra.mxu0 0.0
      %3939 = vmatprep.subr.mxu0 0.0
      %3940 = vmatpush1.msra.mxu0 0.0
      %3941 = vmatprep.subr.mxu0 0.0
      %3942 = vmatpush1.msra.mxu0 0.0
      %3943 = vmatprep.subr.mxu0 0.0
      %3944 = vmatpush1.msra.mxu0 0.0
      %3945 = vmatprep.subr.mxu0 0.0
      %3946 = vmatpush1.msra.mxu0 0.0
      %3947 = vmatprep.subr.mxu0 0.0
      %3948 = vmatpush1.msra.mxu0 0.0
      %3949 = vmatprep.subr.mxu0 0.0
      %3950 = vmatpush1.msra.mxu0 0.0
      %3951 = vmatprep.subr.mxu0 0.0
      %3952 = vmatpush1.msra.mxu0 0.0
      %3953 = vmatprep.mubr.f32.mxu0 0.0
      %3954 = vmatmul.mubr.f32.gmra.mrb[0].mxu0 %v3885
      %v3955 = vpop.f32.mrb[0].mxu0
      %v3956 = vadd.f32 0.0, %v3955
      %v3957 = vpop.f32.mrb[0].mxu0
      %3958 = vdwg.mxu0
      %v3959 = vpack.c.bf16 %v3956, %v3956
      %v3961 = vsel %vm2323, %v3959, 0
      %3963 = vmatprep.subr.bf16.mxu0 0
      %3964 = vmatpush1.bf16.msra.mxu0 %v2666
      %3965 = vmatprep.subr.bf16.mxu0 0
      %3966 = vmatpush1.bf16.msra.mxu0 0
      %3967 = vmatprep.subr.bf16.mxu0 0
      %3968 = vmatpush1.bf16.msra.mxu0 0
      %3969 = vmatprep.subr.bf16.mxu0 0
      %3970 = vmatpush1.bf16.msra.mxu0 0
      %3971 = vmatprep.subr.bf16.mxu0 0
      %3972 = vmatpush1.bf16.msra.mxu0 0
      %3973 = vmatprep.subr.bf16.mxu0 0
      %3974 = vmatpush1.bf16.msra.mxu0 0
      %3975 = vmatprep.subr.bf16.mxu0 0
      %3976 = vmatpush1.bf16.msra.mxu0 0
      %3977 = vmatprep.subr.bf16.mxu0 0
      %3978 = vmatpush1.bf16.msra.mxu0 0
      %3979 = vmatprep.subr.bf16.mxu0 0
      %3980 = vmatpush1.bf16.msra.mxu0 0
      %3981 = vmatprep.subr.bf16.mxu0 0
      %3982 = vmatpush1.bf16.msra.mxu0 0
      %3983 = vmatprep.subr.bf16.mxu0 0
      %3984 = vmatpush1.bf16.msra.mxu0 0
      %3985 = vmatprep.subr.bf16.mxu0 0
      %3986 = vmatpush1.bf16.msra.mxu0 0
      %3987 = vmatprep.subr.bf16.mxu0 0
      %3988 = vmatpush1.bf16.msra.mxu0 0
      %3989 = vmatprep.subr.bf16.mxu0 0
      %3990 = vmatpush1.bf16.msra.mxu0 0
      %3991 = vmatprep.subr.bf16.mxu0 0
      %3992 = vmatpush1.bf16.msra.mxu0 0
      %3993 = vmatprep.subr.bf16.mxu0 0
      %3994 = vmatpush1.bf16.msra.mxu0 0
      %3995 = vmatprep.mubr.bf16.mxu0 0
      %3996 = vmatmul.mubr.bf16.gmra.mrb[0].mxu0 %v3961
      %v3997 = vpop.f32.mrb[0].mxu0
      %v3998 = vadd.f32 0.0, %v3997
      %v3999 = vpop.f32.mrb[0].mxu0
      %v4000 = vpop.f32.mrb[0].mxu0
      %v4001 = vpop.f32.mrb[0].mxu0
      %4002 = vdwg.mxu0
      %v4004 = vsel %vm2323, %v3785, 0
      %4006 = vmatprep.subr.bf16.mxu0 0
      %4007 = vmatpush1.bf16.msra.mxu0 %v2715
      %4008 = vmatprep.subr.bf16.mxu0 0
      %4009 = vmatpush1.bf16.msra.mxu0 0
      %4010 = vmatprep.subr.bf16.mxu0 0
      %4011 = vmatpush1.bf16.msra.mxu0 0
      %4012 = vmatprep.subr.bf16.mxu0 0
      %4013 = vmatpush1.bf16.msra.mxu0 0
      %4014 = vmatprep.subr.bf16.mxu0 0
      %4015 = vmatpush1.bf16.msra.mxu0 0
      %4016 = vmatprep.subr.bf16.mxu0 0
      %4017 = vmatpush1.bf16.msra.mxu0 0
      %4018 = vmatprep.subr.bf16.mxu0 0
      %4019 = vmatpush1.bf16.msra.mxu0 0
      %4020 = vmatprep.subr.bf16.mxu0 0
      %4021 = vmatpush1.bf16.msra.mxu0 0
      %4022 = vmatprep.subr.bf16.mxu0 0
      %4023 = vmatpush1.bf16.msra.mxu0 0
      %4024 = vmatprep.subr.bf16.mxu0 0
      %4025 = vmatpush1.bf16.msra.mxu0 0
      %4026 = vmatprep.subr.bf16.mxu0 0
      %4027 = vmatpush1.bf16.msra.mxu0 0
      %4028 = vmatprep.subr.bf16.mxu0 0
      %4029 = vmatpush1.bf16.msra.mxu0 0
      %4030 = vmatprep.subr.bf16.mxu0 0
      %4031 = vmatpush1.bf16.msra.mxu0 0
      %4032 = vmatprep.subr.bf16.mxu0 0
      %4033 = vmatpush1.bf16.msra.mxu0 0
      %4034 = vmatprep.subr.bf16.mxu0 0
      %4035 = vmatpush1.bf16.msra.mxu0 0
      %4036 = vmatprep.subr.bf16.mxu0 0
      %4037 = vmatpush1.bf16.msra.mxu0 0
      %4038 = vmatprep.mubr.bf16.mxu0 0
      %4039 = vmatmul.mubr.bf16.gmra.mrb[0].mxu0 %v4004
      %v4040 = vpop.f32.mrb[0].mxu0
      %v4041 = vadd.f32 %v3998, %v4040
      %v4042 = vpop.f32.mrb[0].mxu0
      %v4043 = vpop.f32.mrb[0].mxu0
      %v4044 = vpop.f32.mrb[0].mxu0
      %4045 = vdwg.mxu0
      %vm4047 = vcmask 1043456
      %v4048 = vrot.slane %v1909, 4
      %v4049 = vrot.slane %v1912, 4
      %v4050 = vsel %vm4047, %v4048, %v4049
      %v4052 = vrot.slane %v1988, 4
      %v4053 = vrot.slane %v1991, 4
      %v4054 = vsel %vm4047, %v4052, %v4053
      %v4055 = vsel %vm2323, %v4050, 0
      %v4057 = vsel %vm2323, %v4054, 0
      %4059 = vmatprep.subr.mxu0 0.0
      %4060 = vmatpush1.xpose.msra.mxu0 %v4057
      %4061 = vmatprep.subr.mxu0 0.0
      %4062 = vmatpush1.xpose.msra.mxu0 0.0
      %4063 = vmatprep.subr.mxu0 0.0
      %4064 = vmatpush1.xpose.msra.mxu0 0.0
      %4065 = vmatprep.subr.mxu0 0.0
      %4066 = vmatpush1.xpose.msra.mxu0 0.0
      %4067 = vmatprep.subr.mxu0 0.0
      %4068 = vmatpush1.xpose.msra.mxu0 0.0
      %4069 = vmatprep.subr.mxu0 0.0
      %4070 = vmatpush1.xpose.msra.mxu0 0.0
      %4071 = vmatprep.subr.mxu0 0.0
      %4072 = vmatpush1.xpose.msra.mxu0 0.0
      %4073 = vmatprep.subr.mxu0 0.0
      %4074 = vmatpush1.xpose.msra.mxu0 0.0
      %4075 = vmatprep.subr.mxu0 0.0
      %4076 = vmatpush1.xpose.msra.mxu0 0.0
      %4077 = vmatprep.subr.mxu0 0.0
      %4078 = vmatpush1.xpose.msra.mxu0 0.0
      %4079 = vmatprep.subr.mxu0 0.0
      %4080 = vmatpush1.xpose.msra.mxu0 0.0
      %4081 = vmatprep.subr.mxu0 0.0
      %4082 = vmatpush1.xpose.msra.mxu0 0.0
      %4083 = vmatprep.subr.mxu0 0.0
      %4084 = vmatpush1.xpose.msra.mxu0 0.0
      %4085 = vmatprep.subr.mxu0 0.0
      %4086 = vmatpush1.xpose.msra.mxu0 0.0
      %4087 = vmatprep.subr.mxu0 0.0
      %4088 = vmatpush1.xpose.msra.mxu0 0.0
      %4089 = vmatprep.subr.mxu0 0.0
      %4090 = vmatpush1.xpose.msra.mxu0 0.0
      %4091 = vmatprep.subr.mxu0 0.0
      %4092 = vmatpush1.xpose.msra.mxu0 0.0
      %4093 = vmatprep.subr.mxu0 0.0
      %4094 = vmatpush1.xpose.msra.mxu0 0.0
      %4095 = vmatprep.subr.mxu0 0.0
      %4096 = vmatpush1.xpose.msra.mxu0 0.0
      %4097 = vmatprep.subr.mxu0 0.0
      %4098 = vmatpush1.xpose.msra.mxu0 0.0
      %4099 = vmatprep.subr.mxu0 0.0
      %4100 = vmatpush1.xpose.msra.mxu0 0.0
      %4101 = vmatprep.subr.mxu0 0.0
      %4102 = vmatpush1.xpose.msra.mxu0 0.0
      %4103 = vmatprep.subr.mxu0 0.0
      %4104 = vmatpush1.xpose.msra.mxu0 0.0
      %4105 = vmatprep.subr.mxu0 0.0
      %4106 = vmatpush1.xpose.msra.mxu0 0.0
      %4107 = vmatprep.subr.mxu0 0.0
      %4108 = vmatpush1.xpose.msra.mxu0 0.0
      %4109 = vmatprep.subr.mxu0 0.0
      %4110 = vmatpush1.xpose.msra.mxu0 0.0
      %4111 = vmatprep.subr.mxu0 0.0
      %4112 = vmatpush1.xpose.msra.mxu0 0.0
      %4113 = vmatprep.subr.mxu0 0.0
      %4114 = vmatpush1.xpose.msra.mxu0 0.0
      %4115 = vmatprep.subr.mxu0 0.0
      %4116 = vmatpush1.xpose.msra.mxu0 0.0
      %4117 = vmatprep.subr.mxu0 0.0
      %4118 = vmatpush1.xpose.msra.mxu0 0.0
      %4119 = vmatprep.subr.mxu0 0.0
      %4120 = vmatpush1.xpose.msra.mxu0 0.0
      %4121 = vmatprep.subr.mxu0 0.0
      %4122 = vmatpush1.xpose.msra.mxu0 0.0
      %4123 = vmatprep.mubr.f32.mxu0 0.0
      %4124 = vmatmul.mubr.f32.gmra.mrb[0].mxu0 %v4055
      %v4125 = vpop.f32.mrb[0].mxu0
      %v4126 = vadd.f32 0.0, %v4125
      %v4127 = vpop.f32.mrb[0].mxu0
      %4128 = vdwg.mxu0
      %v4129 = vmul.f32 %v4126, 0.25
      %v4130 = vsel %vm2401, %v4129, -inf
      %4131 = vmax.xlane.f32.xlu0 %v4130
      %v4132 = vpop.xlane.xlu0 %4131
      %v4133 = vsub.f32 %v4129, %v4132
      %v4134 = vmul.f32 %v4133, 1.442695
      %v4135 = vpow.pop %v4134
      %v4136 = vsel %vm2401, %v4135, 0.0
      %4137 = vadd.xlane.f32.xlu0 %v4136
      %v4138 = vpop.xlane.xlu0 %4137
      %v4139 = vrcp.pop %v4138
      %v4140 = vmul.f32 %v4135, %v4139
      %v4142 = vrot.slane %v2067, 4
      %v4143 = vrot.slane %v2070, 4
      %v4144 = vsel %vm4047, %v4142, %v4143
      %v4146 = vsel %vm2413, %v4140, 0
      %v4148 = vsel %vm2417, %v4144, 0
      %4150 = vmatprep.subr.mxu0 0.0
      %4151 = vmatpush1.msra.mxu0 %v4148
      %4152 = vmatprep.subr.mxu0 0.0
      %4153 = vmatpush1.msra.mxu0 0.0
      %4154 = vmatprep.subr.mxu0 0.0
      %4155 = vmatpush1.msra.mxu0 0.0
      %4156 = vmatprep.subr.mxu0 0.0
      %4157 = vmatpush1.msra.mxu0 0.0
      %4158 = vmatprep.subr.mxu0 0.0
      %4159 = vmatpush1.msra.mxu0 0.0
      %4160 = vmatprep.subr.mxu0 0.0
      %4161 = vmatpush1.msra.mxu0 0.0
      %4162 = vmatprep.subr.mxu0 0.0
      %4163 = vmatpush1.msra.mxu0 0.0
      %4164 = vmatprep.subr.mxu0 0.0
      %4165 = vmatpush1.msra.mxu0 0.0
      %4166 = vmatprep.subr.mxu0 0.0
      %4167 = vmatpush1.msra.mxu0 0.0
      %4168 = vmatprep.subr.mxu0 0.0
      %4169 = vmatpush1.msra.mxu0 0.0
      %4170 = vmatprep.subr.mxu0 0.0
      %4171 = vmatpush1.msra.mxu0 0.0
      %4172 = vmatprep.subr.mxu0 0.0
      %4173 = vmatpush1.msra.mxu0 0.0
      %4174 = vmatprep.subr.mxu0 0.0
      %4175 = vmatpush1.msra.mxu0 0.0
      %4176 = vmatprep.subr.mxu0 0.0
      %4177 = vmatpush1.msra.mxu0 0.0
      %4178 = vmatprep.subr.mxu0 0.0
      %4179 = vmatpush1.msra.mxu0 0.0
      %4180 = vmatprep.subr.mxu0 0.0
      %4181 = vmatpush1.msra.mxu0 0.0
      %4182 = vmatprep.subr.mxu0 0.0
      %4183 = vmatpush1.msra.mxu0 0.0
      %4184 = vmatprep.subr.mxu0 0.0
      %4185 = vmatpush1.msra.mxu0 0.0
      %4186 = vmatprep.subr.mxu0 0.0
      %4187 = vmatpush1.msra.mxu0 0.0
      %4188 = vmatprep.subr.mxu0 0.0
      %4189 = vmatpush1.msra.mxu0 0.0
      %4190 = vmatprep.subr.mxu0 0.0
      %4191 = vmatpush1.msra.mxu0 0.0
      %4192 = vmatprep.subr.mxu0 0.0
      %4193 = vmatpush1.msra.mxu0 0.0
      %4194 = vmatprep.subr.mxu0 0.0
      %4195 = vmatpush1.msra.mxu0 0.0
      %4196 = vmatprep.subr.mxu0 0.0
      %4197 = vmatpush1.msra.mxu0 0.0
      %4198 = vmatprep.subr.mxu0 0.0
      %4199 = vmatpush1.msra.mxu0 0.0
      %4200 = vmatprep.subr.mxu0 0.0
      %4201 = vmatpush1.msra.mxu0 0.0
      %4202 = vmatprep.subr.mxu0 0.0
      %4203 = vmatpush1.msra.mxu0 0.0
      %4204 = vmatprep.subr.mxu0 0.0
      %4205 = vmatpush1.msra.mxu0 0.0
      %4206 = vmatprep.subr.mxu0 0.0
      %4207 = vmatpush1.msra.mxu0 0.0
      %4208 = vmatprep.subr.mxu0 0.0
      %4209 = vmatpush1.msra.mxu0 0.0
      %4210 = vmatprep.subr.mxu0 0.0
      %4211 = vmatpush1.msra.mxu0 0.0
      %4212 = vmatprep.subr.mxu0 0.0
      %4213 = vmatpush1.msra.mxu0 0.0
      %4214 = vmatprep.mubr.f32.mxu0 0.0
      %4215 = vmatmul.mubr.f32.gmra.mrb[0].mxu0 %v4146
      %v4216 = vpop.f32.mrb[0].mxu0
      %v4217 = vadd.f32 0.0, %v4216
      %v4218 = vpop.f32.mrb[0].mxu0
      %4219 = vdwg.mxu0
      %v4220 = vpack.c.bf16 %v4217, %v4217
      %v4222 = vrot.slane %v2148, 4
      %v4223 = vrot.slane %v2151, 4
      %v4224 = vsel %vm4047, %v4222, %v4223
      %v4226 = vrot.slane %v2229, 4
      %v4227 = vrot.slane %v2232, 4
      %v4228 = vsel %vm4047, %v4226, %v4227
      %v4229 = vsel %vm2323, %v4224, 0
      %v4231 = vsel %vm2323, %v4228, 0
      %4233 = vmatprep.subr.mxu0 0.0
      %4234 = vmatpush1.xpose.msra.mxu0 %v4231
      %4235 = vmatprep.subr.mxu0 0.0
      %4236 = vmatpush1.xpose.msra.mxu0 0.0
      %4237 = vmatprep.subr.mxu0 0.0
      %4238 = vmatpush1.xpose.msra.mxu0 0.0
      %4239 = vmatprep.subr.mxu0 0.0
      %4240 = vmatpush1.xpose.msra.mxu0 0.0
      %4241 = vmatprep.subr.mxu0 0.0
      %4242 = vmatpush1.xpose.msra.mxu0 0.0
      %4243 = vmatprep.subr.mxu0 0.0
      %4244 = vmatpush1.xpose.msra.mxu0 0.0
      %4245 = vmatprep.subr.mxu0 0.0
      %4246 = vmatpush1.xpose.msra.mxu0 0.0
      %4247 = vmatprep.subr.mxu0 0.0
      %4248 = vmatpush1.xpose.msra.mxu0 0.0
      %4249 = vmatprep.subr.mxu0 0.0
      %4250 = vmatpush1.xpose.msra.mxu0 0.0
      %4251 = vmatprep.subr.mxu0 0.0
      %4252 = vmatpush1.xpose.msra.mxu0 0.0
      %4253 = vmatprep.subr.mxu0 0.0
      %4254 = vmatpush1.xpose.msra.mxu0 0.0
      %4255 = vmatprep.subr.mxu0 0.0
      %4256 = vmatpush1.xpose.msra.mxu0 0.0
      %4257 = vmatprep.subr.mxu0 0.0
      %4258 = vmatpush1.xpose.msra.mxu0 0.0
      %4259 = vmatprep.subr.mxu0 0.0
      %4260 = vmatpush1.xpose.msra.mxu0 0.0
      %4261 = vmatprep.subr.mxu0 0.0
      %4262 = vmatpush1.xpose.msra.mxu0 0.0
      %4263 = vmatprep.subr.mxu0 0.0
      %4264 = vmatpush1.xpose.msra.mxu0 0.0
      %4265 = vmatprep.subr.mxu0 0.0
      %4266 = vmatpush1.xpose.msra.mxu0 0.0
      %4267 = vmatprep.subr.mxu0 0.0
      %4268 = vmatpush1.xpose.msra.mxu0 0.0
      %4269 = vmatprep.subr.mxu0 0.0
      %4270 = vmatpush1.xpose.msra.mxu0 0.0
      %4271 = vmatprep.subr.mxu0 0.0
      %4272 = vmatpush1.xpose.msra.mxu0 0.0
      %4273 = vmatprep.subr.mxu0 0.0
      %4274 = vmatpush1.xpose.msra.mxu0 0.0
      %4275 = vmatprep.subr.mxu0 0.0
      %4276 = vmatpush1.xpose.msra.mxu0 0.0
      %4277 = vmatprep.subr.mxu0 0.0
      %4278 = vmatpush1.xpose.msra.mxu0 0.0
      %4279 = vmatprep.subr.mxu0 0.0
      %4280 = vmatpush1.xpose.msra.mxu0 0.0
      %4281 = vmatprep.subr.mxu0 0.0
      %4282 = vmatpush1.xpose.msra.mxu0 0.0
      %4283 = vmatprep.subr.mxu0 0.0
      %4284 = vmatpush1.xpose.msra.mxu0 0.0
      %4285 = vmatprep.subr.mxu0 0.0
      %4286 = vmatpush1.xpose.msra.mxu0 0.0
      %4287 = vmatprep.subr.mxu0 0.0
      %4288 = vmatpush1.xpose.msra.mxu0 0.0
      %4289 = vmatprep.subr.mxu0 0.0
      %4290 = vmatpush1.xpose.msra.mxu0 0.0
      %4291 = vmatprep.subr.mxu0 0.0
      %4292 = vmatpush1.xpose.msra.mxu0 0.0
      %4293 = vmatprep.subr.mxu0 0.0
      %4294 = vmatpush1.xpose.msra.mxu0 0.0
      %4295 = vmatprep.subr.mxu0 0.0
      %4296 = vmatpush1.xpose.msra.mxu0 0.0
      %4297 = vmatprep.mubr.f32.mxu0 0.0
      %4298 = vmatmul.mubr.f32.gmra.mrb[0].mxu0 %v4229
      %v4299 = vpop.f32.mrb[0].mxu0
      %v4300 = vadd.f32 0.0, %v4299
      %v4301 = vpop.f32.mrb[0].mxu0
      %4302 = vdwg.mxu0
      %v4303 = vmul.f32 %v4300, 0.25
      %v4304 = vsel %vm2401, %v4303, -inf
      %4305 = vmax.xlane.f32.xlu0 %v4304
      %v4306 = vpop.xlane.xlu0 %4305
      %v4307 = vsub.f32 %v4303, %v4306
      %v4308 = vmul.f32 %v4307, 1.442695
      %v4309 = vpow.pop %v4308
      %v4310 = vsel %vm2401, %v4309, 0.0
      %4311 = vadd.xlane.f32.xlu0 %v4310
      %v4312 = vpop.xlane.xlu0 %4311
      %v4313 = vrcp.pop %v4312
      %v4314 = vmul.f32 %v4309, %v4313
      %v4316 = vrot.slane %v2310, 4
      %v4317 = vrot.slane %v2313, 4
      %v4318 = vsel %vm4047, %v4316, %v4317
      %v4320 = vsel %vm2413, %v4314, 0
      %v4322 = vsel %vm2417, %v4318, 0
      %4324 = vmatprep.subr.mxu0 0.0
      %4325 = vmatpush1.msra.mxu0 %v4322
      %4326 = vmatprep.subr.mxu0 0.0
      %4327 = vmatpush1.msra.mxu0 0.0
      %4328 = vmatprep.subr.mxu0 0.0
      %4329 = vmatpush1.msra.mxu0 0.0
      %4330 = vmatprep.subr.mxu0 0.0
      %4331 = vmatpush1.msra.mxu0 0.0
      %4332 = vmatprep.subr.mxu0 0.0
      %4333 = vmatpush1.msra.mxu0 0.0
      %4334 = vmatprep.subr.mxu0 0.0
      %4335 = vmatpush1.msra.mxu0 0.0
      %4336 = vmatprep.subr.mxu0 0.0
      %4337 = vmatpush1.msra.mxu0 0.0
      %4338 = vmatprep.subr.mxu0 0.0
      %4339 = vmatpush1.msra.mxu0 0.0
      %4340 = vmatprep.subr.mxu0 0.0
      %4341 = vmatpush1.msra.mxu0 0.0
      %4342 = vmatprep.subr.mxu0 0.0
      %4343 = vmatpush1.msra.mxu0 0.0
      %4344 = vmatprep.subr.mxu0 0.0
      %4345 = vmatpush1.msra.mxu0 0.0
      %4346 = vmatprep.subr.mxu0 0.0
      %4347 = vmatpush1.msra.mxu0 0.0
      %4348 = vmatprep.subr.mxu0 0.0
      %4349 = vmatpush1.msra.mxu0 0.0
      %4350 = vmatprep.subr.mxu0 0.0
      %4351 = vmatpush1.msra.mxu0 0.0
      %4352 = vmatprep.subr.mxu0 0.0
      %4353 = vmatpush1.msra.mxu0 0.0
      %4354 = vmatprep.subr.mxu0 0.0
      %4355 = vmatpush1.msra.mxu0 0.0
      %4356 = vmatprep.subr.mxu0 0.0
      %4357 = vmatpush1.msra.mxu0 0.0
      %4358 = vmatprep.subr.mxu0 0.0
      %4359 = vmatpush1.msra.mxu0 0.0
      %4360 = vmatprep.subr.mxu0 0.0
      %4361 = vmatpush1.msra.mxu0 0.0
      %4362 = vmatprep.subr.mxu0 0.0
      %4363 = vmatpush1.msra.mxu0 0.0
      %4364 = vmatprep.subr.mxu0 0.0
      %4365 = vmatpush1.msra.mxu0 0.0
      %4366 = vmatprep.subr.mxu0 0.0
      %4367 = vmatpush1.msra.mxu0 0.0
      %4368 = vmatprep.subr.mxu0 0.0
      %4369 = vmatpush1.msra.mxu0 0.0
      %4370 = vmatprep.subr.mxu0 0.0
      %4371 = vmatpush1.msra.mxu0 0.0
      %4372 = vmatprep.subr.mxu0 0.0
      %4373 = vmatpush1.msra.mxu0 0.0
      %4374 = vmatprep.subr.mxu0 0.0
      %4375 = vmatpush1.msra.mxu0 0.0
      %4376 = vmatprep.subr.mxu0 0.0
      %4377 = vmatpush1.msra.mxu0 0.0
      %4378 = vmatprep.subr.mxu0 0.0
      %4379 = vmatpush1.msra.mxu0 0.0
      %4380 = vmatprep.subr.mxu0 0.0
      %4381 = vmatpush1.msra.mxu0 0.0
      %4382 = vmatprep.subr.mxu0 0.0
      %4383 = vmatpush1.msra.mxu0 0.0
      %4384 = vmatprep.subr.mxu0 0.0
      %4385 = vmatpush1.msra.mxu0 0.0
      %4386 = vmatprep.subr.mxu0 0.0
      %4387 = vmatpush1.msra.mxu0 0.0
      %4388 = vmatprep.mubr.f32.mxu0 0.0
      %4389 = vmatmul.mubr.f32.gmra.mrb[0].mxu0 %v4320
      %v4390 = vpop.f32.mrb[0].mxu0
      %v4391 = vadd.f32 0.0, %v4390
      %v4392 = vpop.f32.mrb[0].mxu0
      %4393 = vdwg.mxu0
      %v4394 = vpack.c.bf16 %v4391, %v4391
      %v4396 = vsel %vm2323, %v4394, 0
      %4398 = vmatprep.subr.bf16.mxu0 0
      %4399 = vmatpush1.bf16.msra.mxu0 %v2666
      %4400 = vmatprep.subr.bf16.mxu0 0
      %4401 = vmatpush1.bf16.msra.mxu0 0
      %4402 = vmatprep.subr.bf16.mxu0 0
      %4403 = vmatpush1.bf16.msra.mxu0 0
      %4404 = vmatprep.subr.bf16.mxu0 0
      %4405 = vmatpush1.bf16.msra.mxu0 0
      %4406 = vmatprep.subr.bf16.mxu0 0
      %4407 = vmatpush1.bf16.msra.mxu0 0
      %4408 = vmatprep.subr.bf16.mxu0 0
      %4409 = vmatpush1.bf16.msra.mxu0 0
      %4410 = vmatprep.subr.bf16.mxu0 0
      %4411 = vmatpush1.bf16.msra.mxu0 0
      %4412 = vmatprep.subr.bf16.mxu0 0
      %4413 = vmatpush1.bf16.msra.mxu0 0
      %4414 = vmatprep.subr.bf16.mxu0 0
      %4415 = vmatpush1.bf16.msra.mxu0 0
      %4416 = vmatprep.subr.bf16.mxu0 0
      %4417 = vmatpush1.bf16.msra.mxu0 0
      %4418 = vmatprep.subr.bf16.mxu0 0
      %4419 = vmatpush1.bf16.msra.mxu0 0
      %4420 = vmatprep.subr.bf16.mxu0 0
      %4421 = vmatpush1.bf16.msra.mxu0 0
      %4422 = vmatprep.subr.bf16.mxu0 0
      %4423 = vmatpush1.bf16.msra.mxu0 0
      %4424 = vmatprep.subr.bf16.mxu0 0
      %4425 = vmatpush1.bf16.msra.mxu0 0
      %4426 = vmatprep.subr.bf16.mxu0 0
      %4427 = vmatpush1.bf16.msra.mxu0 0
      %4428 = vmatprep.subr.bf16.mxu0 0
      %4429 = vmatpush1.bf16.msra.mxu0 0
      %4430 = vmatprep.mubr.bf16.mxu0 0
      %4431 = vmatmul.mubr.bf16.gmra.mrb[0].mxu0 %v4396
      %v4432 = vpop.f32.mrb[0].mxu0
      %v4433 = vadd.f32 0.0, %v4432
      %v4434 = vpop.f32.mrb[0].mxu0
      %v4435 = vpop.f32.mrb[0].mxu0
      %v4436 = vpop.f32.mrb[0].mxu0
      %4437 = vdwg.mxu0
      %v4439 = vsel %vm2323, %v4220, 0
      %4441 = vmatprep.subr.bf16.mxu0 0
      %4442 = vmatpush1.bf16.msra.mxu0 %v2715
      %4443 = vmatprep.subr.bf16.mxu0 0
      %4444 = vmatpush1.bf16.msra.mxu0 0
      %4445 = vmatprep.subr.bf16.mxu0 0
      %4446 = vmatpush1.bf16.msra.mxu0 0
      %4447 = vmatprep.subr.bf16.mxu0 0
      %4448 = vmatpush1.bf16.msra.mxu0 0
      %4449 = vmatprep.subr.bf16.mxu0 0
      %4450 = vmatpush1.bf16.msra.mxu0 0
      %4451 = vmatprep.subr.bf16.mxu0 0
      %4452 = vmatpush1.bf16.msra.mxu0 0
      %4453 = vmatprep.subr.bf16.mxu0 0
      %4454 = vmatpush1.bf16.msra.mxu0 0
      %4455 = vmatprep.subr.bf16.mxu0 0
      %4456 = vmatpush1.bf16.msra.mxu0 0
      %4457 = vmatprep.subr.bf16.mxu0 0
      %4458 = vmatpush1.bf16.msra.mxu0 0
      %4459 = vmatprep.subr.bf16.mxu0 0
      %4460 = vmatpush1.bf16.msra.mxu0 0
      %4461 = vmatprep.subr.bf16.mxu0 0
      %4462 = vmatpush1.bf16.msra.mxu0 0
      %4463 = vmatprep.subr.bf16.mxu0 0
      %4464 = vmatpush1.bf16.msra.mxu0 0
      %4465 = vmatprep.subr.bf16.mxu0 0
      %4466 = vmatpush1.bf16.msra.mxu0 0
      %4467 = vmatprep.subr.bf16.mxu0 0
      %4468 = vmatpush1.bf16.msra.mxu0 0
      %4469 = vmatprep.subr.bf16.mxu0 0
      %4470 = vmatpush1.bf16.msra.mxu0 0
      %4471 = vmatprep.subr.bf16.mxu0 0
      %4472 = vmatpush1.bf16.msra.mxu0 0
      %4473 = vmatprep.mubr.bf16.mxu0 0
      %4474 = vmatmul.mubr.bf16.gmra.mrb[0].mxu0 %v4439
      %v4475 = vpop.f32.mrb[0].mxu0
      %v4476 = vadd.f32 %v4433, %v4475
      %v4477 = vpop.f32.mrb[0].mxu0
      %v4478 = vpop.f32.mrb[0].mxu0
      %v4479 = vpop.f32.mrb[0].mxu0
      %4480 = vdwg.mxu0
      %v4481 = vrot.slane %v1912, 1
      %v4482 = vrot.slane %v1991, 1
      %v4483 = vsel %vm2323, %v4481, 0
      %v4485 = vsel %vm2323, %v4482, 0
      %4487 = vmatprep.subr.mxu0 0.0
      %4488 = vmatpush1.xpose.msra.mxu0 %v4485
      %4489 = vmatprep.subr.mxu0 0.0
      %4490 = vmatpush1.xpose.msra.mxu0 0.0
      %4491 = vmatprep.subr.mxu0 0.0
      %4492 = vmatpush1.xpose.msra.mxu0 0.0
      %4493 = vmatprep.subr.mxu0 0.0
      %4494 = vmatpush1.xpose.msra.mxu0 0.0
      %4495 = vmatprep.subr.mxu0 0.0
      %4496 = vmatpush1.xpose.msra.mxu0 0.0
      %4497 = vmatprep.subr.mxu0 0.0
      %4498 = vmatpush1.xpose.msra.mxu0 0.0
      %4499 = vmatprep.subr.mxu0 0.0
      %4500 = vmatpush1.xpose.msra.mxu0 0.0
      %4501 = vmatprep.subr.mxu0 0.0
      %4502 = vmatpush1.xpose.msra.mxu0 0.0
      %4503 = vmatprep.subr.mxu0 0.0
      %4504 = vmatpush1.xpose.msra.mxu0 0.0
      %4505 = vmatprep.subr.mxu0 0.0
      %4506 = vmatpush1.xpose.msra.mxu0 0.0
      %4507 = vmatprep.subr.mxu0 0.0
      %4508 = vmatpush1.xpose.msra.mxu0 0.0
      %4509 = vmatprep.subr.mxu0 0.0
      %4510 = vmatpush1.xpose.msra.mxu0 0.0
      %4511 = vmatprep.subr.mxu0 0.0
      %4512 = vmatpush1.xpose.msra.mxu0 0.0
      %4513 = vmatprep.subr.mxu0 0.0
      %4514 = vmatpush1.xpose.msra.mxu0 0.0
      %4515 = vmatprep.subr.mxu0 0.0
      %4516 = vmatpush1.xpose.msra.mxu0 0.0
      %4517 = vmatprep.subr.mxu0 0.0
      %4518 = vmatpush1.xpose.msra.mxu0 0.0
      %4519 = vmatprep.subr.mxu0 0.0
      %4520 = vmatpush1.xpose.msra.mxu0 0.0
      %4521 = vmatprep.subr.mxu0 0.0
      %4522 = vmatpush1.xpose.msra.mxu0 0.0
      %4523 = vmatprep.subr.mxu0 0.0
      %4524 = vmatpush1.xpose.msra.mxu0 0.0
      %4525 = vmatprep.subr.mxu0 0.0
      %4526 = vmatpush1.xpose.msra.mxu0 0.0
      %4527 = vmatprep.subr.mxu0 0.0
      %4528 = vmatpush1.xpose.msra.mxu0 0.0
      %4529 = vmatprep.subr.mxu0 0.0
      %4530 = vmatpush1.xpose.msra.mxu0 0.0
      %4531 = vmatprep.subr.mxu0 0.0
      %4532 = vmatpush1.xpose.msra.mxu0 0.0
      %4533 = vmatprep.subr.mxu0 0.0
      %4534 = vmatpush1.xpose.msra.mxu0 0.0
      %4535 = vmatprep.subr.mxu0 0.0
      %4536 = vmatpush1.xpose.msra.mxu0 0.0
      %4537 = vmatprep.subr.mxu0 0.0
      %4538 = vmatpush1.xpose.msra.mxu0 0.0
      %4539 = vmatprep.subr.mxu0 0.0
      %4540 = vmatpush1.xpose.msra.mxu0 0.0
      %4541 = vmatprep.subr.mxu0 0.0
      %4542 = vmatpush1.xpose.msra.mxu0 0.0
      %4543 = vmatprep.subr.mxu0 0.0
      %4544 = vmatpush1.xpose.msra.mxu0 0.0
      %4545 = vmatprep.subr.mxu0 0.0
      %4546 = vmatpush1.xpose.msra.mxu0 0.0
      %4547 = vmatprep.subr.mxu0 0.0
      %4548 = vmatpush1.xpose.msra.mxu0 0.0
      %4549 = vmatprep.subr.mxu0 0.0
      %4550 = vmatpush1.xpose.msra.mxu0 0.0
      %4551 = vmatprep.mubr.f32.mxu0 0.0
      %4552 = vmatmul.mubr.f32.gmra.mrb[0].mxu0 %v4483
      %v4553 = vpop.f32.mrb[0].mxu0
      %v4554 = vadd.f32 0.0, %v4553
      %v4555 = vpop.f32.mrb[0].mxu0
      %4556 = vdwg.mxu0
      %v4557 = vmul.f32 %v4554, 0.25
      %v4558 = vsel %vm2401, %v4557, -inf
      %4559 = vmax.xlane.f32.xlu0 %v4558
      %v4560 = vpop.xlane.xlu0 %4559
      %v4561 = vsub.f32 %v4557, %v4560
      %v4562 = vmul.f32 %v4561, 1.442695
      %v4563 = vpow.pop %v4562
      %v4564 = vsel %vm2401, %v4563, 0.0
      %4565 = vadd.xlane.f32.xlu0 %v4564
      %v4566 = vpop.xlane.xlu0 %4565
      %v4567 = vrcp.pop %v4566
      %v4568 = vmul.f32 %v4563, %v4567
      %v4569 = vrot.slane %v2070, 1
      %v4571 = vsel %vm2413, %v4568, 0
      %v4573 = vsel %vm2417, %v4569, 0
      %4575 = vmatprep.subr.mxu0 0.0
      %4576 = vmatpush1.msra.mxu0 %v4573
      %4577 = vmatprep.subr.mxu0 0.0
      %4578 = vmatpush1.msra.mxu0 0.0
      %4579 = vmatprep.subr.mxu0 0.0
      %4580 = vmatpush1.msra.mxu0 0.0
      %4581 = vmatprep.subr.mxu0 0.0
      %4582 = vmatpush1.msra.mxu0 0.0
      %4583 = vmatprep.subr.mxu0 0.0
      %4584 = vmatpush1.msra.mxu0 0.0
      %4585 = vmatprep.subr.mxu0 0.0
      %4586 = vmatpush1.msra.mxu0 0.0
      %4587 = vmatprep.subr.mxu0 0.0
      %4588 = vmatpush1.msra.mxu0 0.0
      %4589 = vmatprep.subr.mxu0 0.0
      %4590 = vmatpush1.msra.mxu0 0.0
      %4591 = vmatprep.subr.mxu0 0.0
      %4592 = vmatpush1.msra.mxu0 0.0
      %4593 = vmatprep.subr.mxu0 0.0
      %4594 = vmatpush1.msra.mxu0 0.0
      %4595 = vmatprep.subr.mxu0 0.0
      %4596 = vmatpush1.msra.mxu0 0.0
      %4597 = vmatprep.subr.mxu0 0.0
      %4598 = vmatpush1.msra.mxu0 0.0
      %4599 = vmatprep.subr.mxu0 0.0
      %4600 = vmatpush1.msra.mxu0 0.0
      %4601 = vmatprep.subr.mxu0 0.0
      %4602 = vmatpush1.msra.mxu0 0.0
      %4603 = vmatprep.subr.mxu0 0.0
      %4604 = vmatpush1.msra.mxu0 0.0
      %4605 = vmatprep.subr.mxu0 0.0
      %4606 = vmatpush1.msra.mxu0 0.0
      %4607 = vmatprep.subr.mxu0 0.0
      %4608 = vmatpush1.msra.mxu0 0.0
      %4609 = vmatprep.subr.mxu0 0.0
      %4610 = vmatpush1.msra.mxu0 0.0
      %4611 = vmatprep.subr.mxu0 0.0
      %4612 = vmatpush1.msra.mxu0 0.0
      %4613 = vmatprep.subr.mxu0 0.0
      %4614 = vmatpush1.msra.mxu0 0.0
      %4615 = vmatprep.subr.mxu0 0.0
      %4616 = vmatpush1.msra.mxu0 0.0
      %4617 = vmatprep.subr.mxu0 0.0
      %4618 = vmatpush1.msra.mxu0 0.0
      %4619 = vmatprep.subr.mxu0 0.0
      %4620 = vmatpush1.msra.mxu0 0.0
      %4621 = vmatprep.subr.mxu0 0.0
      %4622 = vmatpush1.msra.mxu0 0.0
      %4623 = vmatprep.subr.mxu0 0.0
      %4624 = vmatpush1.msra.mxu0 0.0
      %4625 = vmatprep.subr.mxu0 0.0
      %4626 = vmatpush1.msra.mxu0 0.0
      %4627 = vmatprep.subr.mxu0 0.0
      %4628 = vmatpush1.msra.mxu0 0.0
      %4629 = vmatprep.subr.mxu0 0.0
      %4630 = vmatpush1.msra.mxu0 0.0
      %4631 = vmatprep.subr.mxu0 0.0
      %4632 = vmatpush1.msra.mxu0 0.0
      %4633 = vmatprep.subr.mxu0 0.0
      %4634 = vmatpush1.msra.mxu0 0.0
      %4635 = vmatprep.subr.mxu0 0.0
      %4636 = vmatpush1.msra.mxu0 0.0
      %4637 = vmatprep.subr.mxu0 0.0
      %4638 = vmatpush1.msra.mxu0 0.0
      %4639 = vmatprep.mubr.f32.mxu0 0.0
      %4640 = vmatmul.mubr.f32.gmra.mrb[0].mxu0 %v4571
      %v4641 = vpop.f32.mrb[0].mxu0
      %v4642 = vadd.f32 0.0, %v4641
      %v4643 = vpop.f32.mrb[0].mxu0
      %4644 = vdwg.mxu0
      %v4645 = vpack.c.bf16 %v4642, %v4642
      %v4646 = vrot.slane %v2151, 1
      %v4647 = vrot.slane %v2232, 1
      %v4648 = vsel %vm2323, %v4646, 0
      %v4650 = vsel %vm2323, %v4647, 0
      %4652 = vmatprep.subr.mxu0 0.0
      %4653 = vmatpush1.xpose.msra.mxu0 %v4650
      %4654 = vmatprep.subr.mxu0 0.0
      %4655 = vmatpush1.xpose.msra.mxu0 0.0
      %4656 = vmatprep.subr.mxu0 0.0
      %4657 = vmatpush1.xpose.msra.mxu0 0.0
      %4658 = vmatprep.subr.mxu0 0.0
      %4659 = vmatpush1.xpose.msra.mxu0 0.0
      %4660 = vmatprep.subr.mxu0 0.0
      %4661 = vmatpush1.xpose.msra.mxu0 0.0
      %4662 = vmatprep.subr.mxu0 0.0
      %4663 = vmatpush1.xpose.msra.mxu0 0.0
      %4664 = vmatprep.subr.mxu0 0.0
      %4665 = vmatpush1.xpose.msra.mxu0 0.0
      %4666 = vmatprep.subr.mxu0 0.0
      %4667 = vmatpush1.xpose.msra.mxu0 0.0
      %4668 = vmatprep.subr.mxu0 0.0
      %4669 = vmatpush1.xpose.msra.mxu0 0.0
      %4670 = vmatprep.subr.mxu0 0.0
      %4671 = vmatpush1.xpose.msra.mxu0 0.0
      %4672 = vmatprep.subr.mxu0 0.0
      %4673 = vmatpush1.xpose.msra.mxu0 0.0
      %4674 = vmatprep.subr.mxu0 0.0
      %4675 = vmatpush1.xpose.msra.mxu0 0.0
      %4676 = vmatprep.subr.mxu0 0.0
      %4677 = vmatpush1.xpose.msra.mxu0 0.0
      %4678 = vmatprep.subr.mxu0 0.0
      %4679 = vmatpush1.xpose.msra.mxu0 0.0
      %4680 = vmatprep.subr.mxu0 0.0
      %4681 = vmatpush1.xpose.msra.mxu0 0.0
      %4682 = vmatprep.subr.mxu0 0.0
      %4683 = vmatpush1.xpose.msra.mxu0 0.0
      %4684 = vmatprep.subr.mxu0 0.0
      %4685 = vmatpush1.xpose.msra.mxu0 0.0
      %4686 = vmatprep.subr.mxu0 0.0
      %4687 = vmatpush1.xpose.msra.mxu0 0.0
      %4688 = vmatprep.subr.mxu0 0.0
      %4689 = vmatpush1.xpose.msra.mxu0 0.0
      %4690 = vmatprep.subr.mxu0 0.0
      %4691 = vmatpush1.xpose.msra.mxu0 0.0
      %4692 = vmatprep.subr.mxu0 0.0
      %4693 = vmatpush1.xpose.msra.mxu0 0.0
      %4694 = vmatprep.subr.mxu0 0.0
      %4695 = vmatpush1.xpose.msra.mxu0 0.0
      %4696 = vmatprep.subr.mxu0 0.0
      %4697 = vmatpush1.xpose.msra.mxu0 0.0
      %4698 = vmatprep.subr.mxu0 0.0
      %4699 = vmatpush1.xpose.msra.mxu0 0.0
      %4700 = vmatprep.subr.mxu0 0.0
      %4701 = vmatpush1.xpose.msra.mxu0 0.0
      %4702 = vmatprep.subr.mxu0 0.0
      %4703 = vmatpush1.xpose.msra.mxu0 0.0
      %4704 = vmatprep.subr.mxu0 0.0
      %4705 = vmatpush1.xpose.msra.mxu0 0.0
      %4706 = vmatprep.subr.mxu0 0.0
      %4707 = vmatpush1.xpose.msra.mxu0 0.0
      %4708 = vmatprep.subr.mxu0 0.0
      %4709 = vmatpush1.xpose.msra.mxu0 0.0
      %4710 = vmatprep.subr.mxu0 0.0
      %4711 = vmatpush1.xpose.msra.mxu0 0.0
      %4712 = vmatprep.subr.mxu0 0.0
      %4713 = vmatpush1.xpose.msra.mxu0 0.0
      %4714 = vmatprep.subr.mxu0 0.0
      %4715 = vmatpush1.xpose.msra.mxu0 0.0
      %4716 = vmatprep.mubr.f32.mxu0 0.0
      %4717 = vmatmul.mubr.f32.gmra.mrb[0].mxu0 %v4648
      %v4718 = vpop.f32.mrb[0].mxu0
      %v4719 = vadd.f32 0.0, %v4718
      %v4720 = vpop.f32.mrb[0].mxu0
      %4721 = vdwg.mxu0
      %v4722 = vmul.f32 %v4719, 0.25
      %v4723 = vsel %vm2401, %v4722, -inf
      %4724 = vmax.xlane.f32.xlu0 %v4723
      %v4725 = vpop.xlane.xlu0 %4724
      %v4726 = vsub.f32 %v4722, %v4725
      %v4727 = vmul.f32 %v4726, 1.442695
      %v4728 = vpow.pop %v4727
      %v4729 = vsel %vm2401, %v4728, 0.0
      %4730 = vadd.xlane.f32.xlu0 %v4729
      %v4731 = vpop.xlane.xlu0 %4730
      %v4732 = vrcp.pop %v4731
      %v4733 = vmul.f32 %v4728, %v4732
      %v4734 = vrot.slane %v2313, 1
      %v4736 = vsel %vm2413, %v4733, 0
      %v4738 = vsel %vm2417, %v4734, 0
      %4740 = vmatprep.subr.mxu0 0.0
      %4741 = vmatpush1.msra.mxu0 %v4738
      %4742 = vmatprep.subr.mxu0 0.0
      %4743 = vmatpush1.msra.mxu0 0.0
      %4744 = vmatprep.subr.mxu0 0.0
      %4745 = vmatpush1.msra.mxu0 0.0
      %4746 = vmatprep.subr.mxu0 0.0
      %4747 = vmatpush1.msra.mxu0 0.0
      %4748 = vmatprep.subr.mxu0 0.0
      %4749 = vmatpush1.msra.mxu0 0.0
      %4750 = vmatprep.subr.mxu0 0.0
      %4751 = vmatpush1.msra.mxu0 0.0
      %4752 = vmatprep.subr.mxu0 0.0
      %4753 = vmatpush1.msra.mxu0 0.0
      %4754 = vmatprep.subr.mxu0 0.0
      %4755 = vmatpush1.msra.mxu0 0.0
      %4756 = vmatprep.subr.mxu0 0.0
      %4757 = vmatpush1.msra.mxu0 0.0
      %4758 = vmatprep.subr.mxu0 0.0
      %4759 = vmatpush1.msra.mxu0 0.0
      %4760 = vmatprep.subr.mxu0 0.0
      %4761 = vmatpush1.msra.mxu0 0.0
      %4762 = vmatprep.subr.mxu0 0.0
      %4763 = vmatpush1.msra.mxu0 0.0
      %4764 = vmatprep.subr.mxu0 0.0
      %4765 = vmatpush1.msra.mxu0 0.0
      %4766 = vmatprep.subr.mxu0 0.0
      %4767 = vmatpush1.msra.mxu0 0.0
      %4768 = vmatprep.subr.mxu0 0.0
      %4769 = vmatpush1.msra.mxu0 0.0
      %4770 = vmatprep.subr.mxu0 0.0
      %4771 = vmatpush1.msra.mxu0 0.0
      %4772 = vmatprep.subr.mxu0 0.0
      %4773 = vmatpush1.msra.mxu0 0.0
      %4774 = vmatprep.subr.mxu0 0.0
      %4775 = vmatpush1.msra.mxu0 0.0
      %4776 = vmatprep.subr.mxu0 0.0
      %4777 = vmatpush1.msra.mxu0 0.0
      %4778 = vmatprep.subr.mxu0 0.0
      %4779 = vmatpush1.msra.mxu0 0.0
      %4780 = vmatprep.subr.mxu0 0.0
      %4781 = vmatpush1.msra.mxu0 0.0
      %4782 = vmatprep.subr.mxu0 0.0
      %4783 = vmatpush1.msra.mxu0 0.0
      %4784 = vmatprep.subr.mxu0 0.0
      %4785 = vmatpush1.msra.mxu0 0.0
      %4786 = vmatprep.subr.mxu0 0.0
      %4787 = vmatpush1.msra.mxu0 0.0
      %4788 = vmatprep.subr.mxu0 0.0
      %4789 = vmatpush1.msra.mxu0 0.0
      %4790 = vmatprep.subr.mxu0 0.0
      %4791 = vmatpush1.msra.mxu0 0.0
      %4792 = vmatprep.subr.mxu0 0.0
      %4793 = vmatpush1.msra.mxu0 0.0
      %4794 = vmatprep.subr.mxu0 0.0
      %4795 = vmatpush1.msra.mxu0 0.0
      %4796 = vmatprep.subr.mxu0 0.0
      %4797 = vmatpush1.msra.mxu0 0.0
      %4798 = vmatprep.subr.mxu0 0.0
      %4799 = vmatpush1.msra.mxu0 0.0
      %4800 = vmatprep.subr.mxu0 0.0
      %4801 = vmatpush1.msra.mxu0 0.0
      %4802 = vmatprep.subr.mxu0 0.0
      %4803 = vmatpush1.msra.mxu0 0.0
      %4804 = vmatprep.mubr.f32.mxu0 0.0
      %4805 = vmatmul.mubr.f32.gmra.mrb[0].mxu0 %v4736
      %v4806 = vpop.f32.mrb[0].mxu0
      %v4807 = vadd.f32 0.0, %v4806
      %v4808 = vpop.f32.mrb[0].mxu0
      %4809 = vdwg.mxu0
      %v4810 = vpack.c.bf16 %v4807, %v4807
      %v4812 = vsel %vm2323, %v4810, 0
      %4814 = vmatprep.subr.bf16.mxu0 0
      %4815 = vmatpush1.bf16.msra.mxu0 %v2666
      %4816 = vmatprep.subr.bf16.mxu0 0
      %4817 = vmatpush1.bf16.msra.mxu0 0
      %4818 = vmatprep.subr.bf16.mxu0 0
      %4819 = vmatpush1.bf16.msra.mxu0 0
      %4820 = vmatprep.subr.bf16.mxu0 0
      %4821 = vmatpush1.bf16.msra.mxu0 0
      %4822 = vmatprep.subr.bf16.mxu0 0
      %4823 = vmatpush1.bf16.msra.mxu0 0
      %4824 = vmatprep.subr.bf16.mxu0 0
      %4825 = vmatpush1.bf16.msra.mxu0 0
      %4826 = vmatprep.subr.bf16.mxu0 0
      %4827 = vmatpush1.bf16.msra.mxu0 0
      %4828 = vmatprep.subr.bf16.mxu0 0
      %4829 = vmatpush1.bf16.msra.mxu0 0
      %4830 = vmatprep.subr.bf16.mxu0 0
      %4831 = vmatpush1.bf16.msra.mxu0 0
      %4832 = vmatprep.subr.bf16.mxu0 0
      %4833 = vmatpush1.bf16.msra.mxu0 0
      %4834 = vmatprep.subr.bf16.mxu0 0
      %4835 = vmatpush1.bf16.msra.mxu0 0
      %4836 = vmatprep.subr.bf16.mxu0 0
      %4837 = vmatpush1.bf16.msra.mxu0 0
      %4838 = vmatprep.subr.bf16.mxu0 0
      %4839 = vmatpush1.bf16.msra.mxu0 0
      %4840 = vmatprep.subr.bf16.mxu0 0
      %4841 = vmatpush1.bf16.msra.mxu0 0
      %4842 = vmatprep.subr.bf16.mxu0 0
      %4843 = vmatpush1.bf16.msra.mxu0 0
      %4844 = vmatprep.subr.bf16.mxu0 0
      %4845 = vmatpush1.bf16.msra.mxu0 0
      %4846 = vmatprep.mubr.bf16.mxu0 0
      %4847 = vmatmul.mubr.bf16.gmra.mrb[0].mxu0 %v4812
      %v4848 = vpop.f32.mrb[0].mxu0
      %v4849 = vadd.f32 0.0, %v4848
      %v4850 = vpop.f32.mrb[0].mxu0
      %v4851 = vpop.f32.mrb[0].mxu0
      %v4852 = vpop.f32.mrb[0].mxu0
      %4853 = vdwg.mxu0
      %v4855 = vsel %vm2323, %v4645, 0
      %4857 = vmatprep.subr.bf16.mxu0 0
      %4858 = vmatpush1.bf16.msra.mxu0 %v2715
      %4859 = vmatprep.subr.bf16.mxu0 0
      %4860 = vmatpush1.bf16.msra.mxu0 0
      %4861 = vmatprep.subr.bf16.mxu0 0
      %4862 = vmatpush1.bf16.msra.mxu0 0
      %4863 = vmatprep.subr.bf16.mxu0 0
      %4864 = vmatpush1.bf16.msra.mxu0 0
      %4865 = vmatprep.subr.bf16.mxu0 0
      %4866 = vmatpush1.bf16.msra.mxu0 0
      %4867 = vmatprep.subr.bf16.mxu0 0
      %4868 = vmatpush1.bf16.msra.mxu0 0
      %4869 = vmatprep.subr.bf16.mxu0 0
      %4870 = vmatpush1.bf16.msra.mxu0 0
      %4871 = vmatprep.subr.bf16.mxu0 0
      %4872 = vmatpush1.bf16.msra.mxu0 0
      %4873 = vmatprep.subr.bf16.mxu0 0
      %4874 = vmatpush1.bf16.msra.mxu0 0
      %4875 = vmatprep.subr.bf16.mxu0 0
      %4876 = vmatpush1.bf16.msra.mxu0 0
      %4877 = vmatprep.subr.bf16.mxu0 0
      %4878 = vmatpush1.bf16.msra.mxu0 0
      %4879 = vmatprep.subr.bf16.mxu0 0
      %4880 = vmatpush1.bf16.msra.mxu0 0
      %4881 = vmatprep.subr.bf16.mxu0 0
      %4882 = vmatpush1.bf16.msra.mxu0 0
      %4883 = vmatprep.subr.bf16.mxu0 0
      %4884 = vmatpush1.bf16.msra.mxu0 0
      %4885 = vmatprep.subr.bf16.mxu0 0
      %4886 = vmatpush1.bf16.msra.mxu0 0
      %4887 = vmatprep.subr.bf16.mxu0 0
      %4888 = vmatpush1.bf16.msra.mxu0 0
      %4889 = vmatprep.mubr.bf16.mxu0 0
      %4890 = vmatmul.mubr.bf16.gmra.mrb[0].mxu0 %v4855
      %v4891 = vpop.f32.mrb[0].mxu0
      %v4892 = vadd.f32 %v4849, %v4891
      %v4893 = vpop.f32.mrb[0].mxu0
      %v4894 = vpop.f32.mrb[0].mxu0
      %v4895 = vpop.f32.mrb[0].mxu0
      %4896 = vdwg.mxu0
      %vm4898 = vcmask 1041408
      %v4899 = vrot.slane %v1912, 6
      %v4900 = vrot.slane %v1917, 6
      %v4901 = vsel %vm4898, %v4899, %v4900
      %v4903 = vrot.slane %v1991, 6
      %v4904 = vrot.slane %v1996, 6
      %v4905 = vsel %vm4898, %v4903, %v4904
      %v4906 = vsel %vm2323, %v4901, 0
      %v4908 = vsel %vm2323, %v4905, 0
      %4910 = vmatprep.subr.mxu0 0.0
      %4911 = vmatpush1.xpose.msra.mxu0 %v4908
      %4912 = vmatprep.subr.mxu0 0.0
      %4913 = vmatpush1.xpose.msra.mxu0 0.0
      %4914 = vmatprep.subr.mxu0 0.0
      %4915 = vmatpush1.xpose.msra.mxu0 0.0
      %4916 = vmatprep.subr.mxu0 0.0
      %4917 = vmatpush1.xpose.msra.mxu0 0.0
      %4918 = vmatprep.subr.mxu0 0.0
      %4919 = vmatpush1.xpose.msra.mxu0 0.0
      %4920 = vmatprep.subr.mxu0 0.0
      %4921 = vmatpush1.xpose.msra.mxu0 0.0
      %4922 = vmatprep.subr.mxu0 0.0
      %4923 = vmatpush1.xpose.msra.mxu0 0.0
      %4924 = vmatprep.subr.mxu0 0.0
      %4925 = vmatpush1.xpose.msra.mxu0 0.0
      %4926 = vmatprep.subr.mxu0 0.0
      %4927 = vmatpush1.xpose.msra.mxu0 0.0
      %4928 = vmatprep.subr.mxu0 0.0
      %4929 = vmatpush1.xpose.msra.mxu0 0.0
      %4930 = vmatprep.subr.mxu0 0.0
      %4931 = vmatpush1.xpose.msra.mxu0 0.0
      %4932 = vmatprep.subr.mxu0 0.0
      %4933 = vmatpush1.xpose.msra.mxu0 0.0
      %4934 = vmatprep.subr.mxu0 0.0
      %4935 = vmatpush1.xpose.msra.mxu0 0.0
      %4936 = vmatprep.subr.mxu0 0.0
      %4937 = vmatpush1.xpose.msra.mxu0 0.0
      %4938 = vmatprep.subr.mxu0 0.0
      %4939 = vmatpush1.xpose.msra.mxu0 0.0
      %4940 = vmatprep.subr.mxu0 0.0
      %4941 = vmatpush1.xpose.msra.mxu0 0.0
      %4942 = vmatprep.subr.mxu0 0.0
      %4943 = vmatpush1.xpose.msra.mxu0 0.0
      %4944 = vmatprep.subr.mxu0 0.0
      %4945 = vmatpush1.xpose.msra.mxu0 0.0
      %4946 = vmatprep.subr.mxu0 0.0
      %4947 = vmatpush1.xpose.msra.mxu0 0.0
      %4948 = vmatprep.subr.mxu0 0.0
      %4949 = vmatpush1.xpose.msra.mxu0 0.0
      %4950 = vmatprep.subr.mxu0 0.0
      %4951 = vmatpush1.xpose.msra.mxu0 0.0
      %4952 = vmatprep.subr.mxu0 0.0
      %4953 = vmatpush1.xpose.msra.mxu0 0.0
      %4954 = vmatprep.subr.mxu0 0.0
      %4955 = vmatpush1.xpose.msra.mxu0 0.0
      %4956 = vmatprep.subr.mxu0 0.0
      %4957 = vmatpush1.xpose.msra.mxu0 0.0
      %4958 = vmatprep.subr.mxu0 0.0
      %4959 = vmatpush1.xpose.msra.mxu0 0.0
      %4960 = vmatprep.subr.mxu0 0.0
      %4961 = vmatpush1.xpose.msra.mxu0 0.0
      %4962 = vmatprep.subr.mxu0 0.0
      %4963 = vmatpush1.xpose.msra.mxu0 0.0
      %4964 = vmatprep.subr.mxu0 0.0
      %4965 = vmatpush1.xpose.msra.mxu0 0.0
      %4966 = vmatprep.subr.mxu0 0.0
      %4967 = vmatpush1.xpose.msra.mxu0 0.0
      %4968 = vmatprep.subr.mxu0 0.0
      %4969 = vmatpush1.xpose.msra.mxu0 0.0
      %4970 = vmatprep.subr.mxu0 0.0
      %4971 = vmatpush1.xpose.msra.mxu0 0.0
      %4972 = vmatprep.subr.mxu0 0.0
      %4973 = vmatpush1.xpose.msra.mxu0 0.0
      %4974 = vmatprep.mubr.f32.mxu0 0.0
      %4975 = vmatmul.mubr.f32.gmra.mrb[0].mxu0 %v4906
      %v4976 = vpop.f32.mrb[0].mxu0
      %v4977 = vadd.f32 0.0, %v4976
      %v4978 = vpop.f32.mrb[0].mxu0
      %4979 = vdwg.mxu0
      %v4980 = vmul.f32 %v4977, 0.25
      %v4981 = vsel %vm2401, %v4980, -inf
      %4982 = vmax.xlane.f32.xlu0 %v4981
      %v4983 = vpop.xlane.xlu0 %4982
      %v4984 = vsub.f32 %v4980, %v4983
      %v4985 = vmul.f32 %v4984, 1.442695
      %v4986 = vpow.pop %v4985
      %v4987 = vsel %vm2401, %v4986, 0.0
      %4988 = vadd.xlane.f32.xlu0 %v4987
      %v4989 = vpop.xlane.xlu0 %4988
      %v4990 = vrcp.pop %v4989
      %v4991 = vmul.f32 %v4986, %v4990
      %v4993 = vrot.slane %v2070, 6
      %v4994 = vrot.slane %v2075, 6
      %v4995 = vsel %vm4898, %v4993, %v4994
      %v4997 = vsel %vm2413, %v4991, 0
      %v4999 = vsel %vm2417, %v4995, 0
      %5001 = vmatprep.subr.mxu0 0.0
      %5002 = vmatpush1.msra.mxu0 %v4999
      %5003 = vmatprep.subr.mxu0 0.0
      %5004 = vmatpush1.msra.mxu0 0.0
      %5005 = vmatprep.subr.mxu0 0.0
      %5006 = vmatpush1.msra.mxu0 0.0
      %5007 = vmatprep.subr.mxu0 0.0
      %5008 = vmatpush1.msra.mxu0 0.0
      %5009 = vmatprep.subr.mxu0 0.0
      %5010 = vmatpush1.msra.mxu0 0.0
      %5011 = vmatprep.subr.mxu0 0.0
      %5012 = vmatpush1.msra.mxu0 0.0
      %5013 = vmatprep.subr.mxu0 0.0
      %5014 = vmatpush1.msra.mxu0 0.0
      %5015 = vmatprep.subr.mxu0 0.0
      %5016 = vmatpush1.msra.mxu0 0.0
      %5017 = vmatprep.subr.mxu0 0.0
      %5018 = vmatpush1.msra.mxu0 0.0
      %5019 = vmatprep.subr.mxu0 0.0
      %5020 = vmatpush1.msra.mxu0 0.0
      %5021 = vmatprep.subr.mxu0 0.0
      %5022 = vmatpush1.msra.mxu0 0.0
      %5023 = vmatprep.subr.mxu0 0.0
      %5024 = vmatpush1.msra.mxu0 0.0
      %5025 = vmatprep.subr.mxu0 0.0
      %5026 = vmatpush1.msra.mxu0 0.0
      %5027 = vmatprep.subr.mxu0 0.0
      %5028 = vmatpush1.msra.mxu0 0.0
      %5029 = vmatprep.subr.mxu0 0.0
      %5030 = vmatpush1.msra.mxu0 0.0
      %5031 = vmatprep.subr.mxu0 0.0
      %5032 = vmatpush1.msra.mxu0 0.0
      %5033 = vmatprep.subr.mxu0 0.0
      %5034 = vmatpush1.msra.mxu0 0.0
      %5035 = vmatprep.subr.mxu0 0.0
      %5036 = vmatpush1.msra.mxu0 0.0
      %5037 = vmatprep.subr.mxu0 0.0
      %5038 = vmatpush1.msra.mxu0 0.0
      %5039 = vmatprep.subr.mxu0 0.0
      %5040 = vmatpush1.msra.mxu0 0.0
      %5041 = vmatprep.subr.mxu0 0.0
      %5042 = vmatpush1.msra.mxu0 0.0
      %5043 = vmatprep.subr.mxu0 0.0
      %5044 = vmatpush1.msra.mxu0 0.0
      %5045 = vmatprep.subr.mxu0 0.0
      %5046 = vmatpush1.msra.mxu0 0.0
      %5047 = vmatprep.subr.mxu0 0.0
      %5048 = vmatpush1.msra.mxu0 0.0
      %5049 = vmatprep.subr.mxu0 0.0
      %5050 = vmatpush1.msra.mxu0 0.0
      %5051 = vmatprep.subr.mxu0 0.0
      %5052 = vmatpush1.msra.mxu0 0.0
      %5053 = vmatprep.subr.mxu0 0.0
      %5054 = vmatpush1.msra.mxu0 0.0
      %5055 = vmatprep.subr.mxu0 0.0
      %5056 = vmatpush1.msra.mxu0 0.0
      %5057 = vmatprep.subr.mxu0 0.0
      %5058 = vmatpush1.msra.mxu0 0.0
      %5059 = vmatprep.subr.mxu0 0.0
      %5060 = vmatpush1.msra.mxu0 0.0
      %5061 = vmatprep.subr.mxu0 0.0
      %5062 = vmatpush1.msra.mxu0 0.0
      %5063 = vmatprep.subr.mxu0 0.0
      %5064 = vmatpush1.msra.mxu0 0.0
      %5065 = vmatprep.mubr.f32.mxu0 0.0
      %5066 = vmatmul.mubr.f32.gmra.mrb[0].mxu0 %v4997
      %v5067 = vpop.f32.mrb[0].mxu0
      %v5068 = vadd.f32 0.0, %v5067
      %v5069 = vpop.f32.mrb[0].mxu0
      %5070 = vdwg.mxu0
      %v5071 = vpack.c.bf16 %v5068, %v5068
      %v5073 = vrot.slane %v2151, 6
      %v5074 = vrot.slane %v2156, 6
      %v5075 = vsel %vm4898, %v5073, %v5074
      %v5077 = vrot.slane %v2232, 6
      %v5078 = vrot.slane %v2237, 6
      %v5079 = vsel %vm4898, %v5077, %v5078
      %v5080 = vsel %vm2323, %v5075, 0
      %v5082 = vsel %vm2323, %v5079, 0
      %5084 = vmatprep.subr.mxu0 0.0
      %5085 = vmatpush1.xpose.msra.mxu0 %v5082
      %5086 = vmatprep.subr.mxu0 0.0
      %5087 = vmatpush1.xpose.msra.mxu0 0.0
      %5088 = vmatprep.subr.mxu0 0.0
      %5089 = vmatpush1.xpose.msra.mxu0 0.0
      %5090 = vmatprep.subr.mxu0 0.0
      %5091 = vmatpush1.xpose.msra.mxu0 0.0
      %5092 = vmatprep.subr.mxu0 0.0
      %5093 = vmatpush1.xpose.msra.mxu0 0.0
      %5094 = vmatprep.subr.mxu0 0.0
      %5095 = vmatpush1.xpose.msra.mxu0 0.0
      %5096 = vmatprep.subr.mxu0 0.0
      %5097 = vmatpush1.xpose.msra.mxu0 0.0
      %5098 = vmatprep.subr.mxu0 0.0
      %5099 = vmatpush1.xpose.msra.mxu0 0.0
      %5100 = vmatprep.subr.mxu0 0.0
      %5101 = vmatpush1.xpose.msra.mxu0 0.0
      %5102 = vmatprep.subr.mxu0 0.0
      %5103 = vmatpush1.xpose.msra.mxu0 0.0
      %5104 = vmatprep.subr.mxu0 0.0
      %5105 = vmatpush1.xpose.msra.mxu0 0.0
      %5106 = vmatprep.subr.mxu0 0.0
      %5107 = vmatpush1.xpose.msra.mxu0 0.0
      %5108 = vmatprep.subr.mxu0 0.0
      %5109 = vmatpush1.xpose.msra.mxu0 0.0
      %5110 = vmatprep.subr.mxu0 0.0
      %5111 = vmatpush1.xpose.msra.mxu0 0.0
      %5112 = vmatprep.subr.mxu0 0.0
      %5113 = vmatpush1.xpose.msra.mxu0 0.0
      %5114 = vmatprep.subr.mxu0 0.0
      %5115 = vmatpush1.xpose.msra.mxu0 0.0
      %5116 = vmatprep.subr.mxu0 0.0
      %5117 = vmatpush1.xpose.msra.mxu0 0.0
      %5118 = vmatprep.subr.mxu0 0.0
      %5119 = vmatpush1.xpose.msra.mxu0 0.0
      %5120 = vmatprep.subr.mxu0 0.0
      %5121 = vmatpush1.xpose.msra.mxu0 0.0
      %5122 = vmatprep.subr.mxu0 0.0
      %5123 = vmatpush1.xpose.msra.mxu0 0.0
      %5124 = vmatprep.subr.mxu0 0.0
      %5125 = vmatpush1.xpose.msra.mxu0 0.0
      %5126 = vmatprep.subr.mxu0 0.0
      %5127 = vmatpush1.xpose.msra.mxu0 0.0
      %5128 = vmatprep.subr.mxu0 0.0
      %5129 = vmatpush1.xpose.msra.mxu0 0.0
      %5130 = vmatprep.subr.mxu0 0.0
      %5131 = vmatpush1.xpose.msra.mxu0 0.0
      %5132 = vmatprep.subr.mxu0 0.0
      %5133 = vmatpush1.xpose.msra.mxu0 0.0
      %5134 = vmatprep.subr.mxu0 0.0
      %5135 = vmatpush1.xpose.msra.mxu0 0.0
      %5136 = vmatprep.subr.mxu0 0.0
      %5137 = vmatpush1.xpose.msra.mxu0 0.0
      %5138 = vmatprep.subr.mxu0 0.0
      %5139 = vmatpush1.xpose.msra.mxu0 0.0
      %5140 = vmatprep.subr.mxu0 0.0
      %5141 = vmatpush1.xpose.msra.mxu0 0.0
      %5142 = vmatprep.subr.mxu0 0.0
      %5143 = vmatpush1.xpose.msra.mxu0 0.0
      %5144 = vmatprep.subr.mxu0 0.0
      %5145 = vmatpush1.xpose.msra.mxu0 0.0
      %5146 = vmatprep.subr.mxu0 0.0
      %5147 = vmatpush1.xpose.msra.mxu0 0.0
      %5148 = vmatprep.mubr.f32.mxu0 0.0
      %5149 = vmatmul.mubr.f32.gmra.mrb[0].mxu0 %v5080
      %v5150 = vpop.f32.mrb[0].mxu0
      %v5151 = vadd.f32 0.0, %v5150
      %v5152 = vpop.f32.mrb[0].mxu0
      %5153 = vdwg.mxu0
      %v5154 = vmul.f32 %v5151, 0.25
      %v5155 = vsel %vm2401, %v5154, -inf
      %5156 = vmax.xlane.f32.xlu0 %v5155
      %v5157 = vpop.xlane.xlu0 %5156
      %v5158 = vsub.f32 %v5154, %v5157
      %v5159 = vmul.f32 %v5158, 1.442695
      %v5160 = vpow.pop %v5159
      %v5161 = vsel %vm2401, %v5160, 0.0
      %5162 = vadd.xlane.f32.xlu0 %v5161
      %v5163 = vpop.xlane.xlu0 %5162
      %v5164 = vrcp.pop %v5163
      %v5165 = vmul.f32 %v5160, %v5164
      %v5167 = vrot.slane %v2313, 6
      %v5168 = vrot.slane %v2318, 6
      %v5169 = vsel %vm4898, %v5167, %v5168
      %v5171 = vsel %vm2413, %v5165, 0
      %v5173 = vsel %vm2417, %v5169, 0
      %5175 = vmatprep.subr.mxu0 0.0
      %5176 = vmatpush1.msra.mxu0 %v5173
      %5177 = vmatprep.subr.mxu0 0.0
      %5178 = vmatpush1.msra.mxu0 0.0
      %5179 = vmatprep.subr.mxu0 0.0
      %5180 = vmatpush1.msra.mxu0 0.0
      %5181 = vmatprep.subr.mxu0 0.0
      %5182 = vmatpush1.msra.mxu0 0.0
      %5183 = vmatprep.subr.mxu0 0.0
      %5184 = vmatpush1.msra.mxu0 0.0
      %5185 = vmatprep.subr.mxu0 0.0
      %5186 = vmatpush1.msra.mxu0 0.0
      %5187 = vmatprep.subr.mxu0 0.0
      %5188 = vmatpush1.msra.mxu0 0.0
      %5189 = vmatprep.subr.mxu0 0.0
      %5190 = vmatpush1.msra.mxu0 0.0
      %5191 = vmatprep.subr.mxu0 0.0
      %5192 = vmatpush1.msra.mxu0 0.0
      %5193 = vmatprep.subr.mxu0 0.0
      %5194 = vmatpush1.msra.mxu0 0.0
      %5195 = vmatprep.subr.mxu0 0.0
      %5196 = vmatpush1.msra.mxu0 0.0
      %5197 = vmatprep.subr.mxu0 0.0
      %5198 = vmatpush1.msra.mxu0 0.0
      %5199 = vmatprep.subr.mxu0 0.0
      %5200 = vmatpush1.msra.mxu0 0.0
      %5201 = vmatprep.subr.mxu0 0.0
      %5202 = vmatpush1.msra.mxu0 0.0
      %5203 = vmatprep.subr.mxu0 0.0
      %5204 = vmatpush1.msra.mxu0 0.0
      %5205 = vmatprep.subr.mxu0 0.0
      %5206 = vmatpush1.msra.mxu0 0.0
      %5207 = vmatprep.subr.mxu0 0.0
      %5208 = vmatpush1.msra.mxu0 0.0
      %5209 = vmatprep.subr.mxu0 0.0
      %5210 = vmatpush1.msra.mxu0 0.0
      %5211 = vmatprep.subr.mxu0 0.0
      %5212 = vmatpush1.msra.mxu0 0.0
      %5213 = vmatprep.subr.mxu0 0.0
      %5214 = vmatpush1.msra.mxu0 0.0
      %5215 = vmatprep.subr.mxu0 0.0
      %5216 = vmatpush1.msra.mxu0 0.0
      %5217 = vmatprep.subr.mxu0 0.0
      %5218 = vmatpush1.msra.mxu0 0.0
      %5219 = vmatprep.subr.mxu0 0.0
      %5220 = vmatpush1.msra.mxu0 0.0
      %5221 = vmatprep.subr.mxu0 0.0
      %5222 = vmatpush1.msra.mxu0 0.0
      %5223 = vmatprep.subr.mxu0 0.0
      %5224 = vmatpush1.msra.mxu0 0.0
      %5225 = vmatprep.subr.mxu0 0.0
      %5226 = vmatpush1.msra.mxu0 0.0
      %5227 = vmatprep.subr.mxu0 0.0
      %5228 = vmatpush1.msra.mxu0 0.0
      %5229 = vmatprep.subr.mxu0 0.0
      %5230 = vmatpush1.msra.mxu0 0.0
      %5231 = vmatprep.subr.mxu0 0.0
      %5232 = vmatpush1.msra.mxu0 0.0
      %5233 = vmatprep.subr.mxu0 0.0
      %5234 = vmatpush1.msra.mxu0 0.0
      %5235 = vmatprep.subr.mxu0 0.0
      %5236 = vmatpush1.msra.mxu0 0.0
      %5237 = vmatprep.subr.mxu0 0.0
      %5238 = vmatpush1.msra.mxu0 0.0
      %5239 = vmatprep.mubr.f32.mxu0 0.0
      %5240 = vmatmul.mubr.f32.gmra.mrb[0].mxu0 %v5171
      %v5241 = vpop.f32.mrb[0].mxu0
      %v5242 = vadd.f32 0.0, %v5241
      %v5243 = vpop.f32.mrb[0].mxu0
      %5244 = vdwg.mxu0
      %v5245 = vpack.c.bf16 %v5242, %v5242
      %v5247 = vsel %vm2323, %v5245, 0
      %5249 = vmatprep.subr.bf16.mxu0 0
      %5250 = vmatpush1.bf16.msra.mxu0 %v2666
      %5251 = vmatprep.subr.bf16.mxu0 0
      %5252 = vmatpush1.bf16.msra.mxu0 0
      %5253 = vmatprep.subr.bf16.mxu0 0
      %5254 = vmatpush1.bf16.msra.mxu0 0
      %5255 = vmatprep.subr.bf16.mxu0 0
      %5256 = vmatpush1.bf16.msra.mxu0 0
      %5257 = vmatprep.subr.bf16.mxu0 0
      %5258 = vmatpush1.bf16.msra.mxu0 0
      %5259 = vmatprep.subr.bf16.mxu0 0
      %5260 = vmatpush1.bf16.msra.mxu0 0
      %5261 = vmatprep.subr.bf16.mxu0 0
      %5262 = vmatpush1.bf16.msra.mxu0 0
      %5263 = vmatprep.subr.bf16.mxu0 0
      %5264 = vmatpush1.bf16.msra.mxu0 0
      %5265 = vmatprep.subr.bf16.mxu0 0
      %5266 = vmatpush1.bf16.msra.mxu0 0
      %5267 = vmatprep.subr.bf16.mxu0 0
      %5268 = vmatpush1.bf16.msra.mxu0 0
      %5269 = vmatprep.subr.bf16.mxu0 0
      %5270 = vmatpush1.bf16.msra.mxu0 0
      %5271 = vmatprep.subr.bf16.mxu0 0
      %5272 = vmatpush1.bf16.msra.mxu0 0
      %5273 = vmatprep.subr.bf16.mxu0 0
      %5274 = vmatpush1.bf16.msra.mxu0 0
      %5275 = vmatprep.subr.bf16.mxu0 0
      %5276 = vmatpush1.bf16.msra.mxu0 0
      %5277 = vmatprep.subr.bf16.mxu0 0
      %5278 = vmatpush1.bf16.msra.mxu0 0
      %5279 = vmatprep.subr.bf16.mxu0 0
      %5280 = vmatpush1.bf16.msra.mxu0 0
      %5281 = vmatprep.mubr.bf16.mxu0 0
      %5282 = vmatmul.mubr.bf16.gmra.mrb[0].mxu0 %v5247
      %v5283 = vpop.f32.mrb[0].mxu0
      %v5284 = vadd.f32 0.0, %v5283
      %v5285 = vpop.f32.mrb[0].mxu0
      %v5286 = vpop.f32.mrb[0].mxu0
      %v5287 = vpop.f32.mrb[0].mxu0
      %5288 = vdwg.mxu0
      %v5290 = vsel %vm2323, %v5071, 0
      %5292 = vmatprep.subr.bf16.mxu0 0
      %5293 = vmatpush1.bf16.msra.mxu0 %v2715
      %5294 = vmatprep.subr.bf16.mxu0 0
      %5295 = vmatpush1.bf16.msra.mxu0 0
      %5296 = vmatprep.subr.bf16.mxu0 0
      %5297 = vmatpush1.bf16.msra.mxu0 0
      %5298 = vmatprep.subr.bf16.mxu0 0
      %5299 = vmatpush1.bf16.msra.mxu0 0
      %5300 = vmatprep.subr.bf16.mxu0 0
      %5301 = vmatpush1.bf16.msra.mxu0 0
      %5302 = vmatprep.subr.bf16.mxu0 0
      %5303 = vmatpush1.bf16.msra.mxu0 0
      %5304 = vmatprep.subr.bf16.mxu0 0
      %5305 = vmatpush1.bf16.msra.mxu0 0
      %5306 = vmatprep.subr.bf16.mxu0 0
      %5307 = vmatpush1.bf16.msra.mxu0 0
      %5308 = vmatprep.subr.bf16.mxu0 0
      %5309 = vmatpush1.bf16.msra.mxu0 0
      %5310 = vmatprep.subr.bf16.mxu0 0
      %5311 = vmatpush1.bf16.msra.mxu0 0
      %5312 = vmatprep.subr.bf16.mxu0 0
      %5313 = vmatpush1.bf16.msra.mxu0 0
      %5314 = vmatprep.subr.bf16.mxu0 0
      %5315 = vmatpush1.bf16.msra.mxu0 0
      %5316 = vmatprep.subr.bf16.mxu0 0
      %5317 = vmatpush1.bf16.msra.mxu0 0
      %5318 = vmatprep.subr.bf16.mxu0 0
      %5319 = vmatpush1.bf16.msra.mxu0 0
      %5320 = vmatprep.subr.bf16.mxu0 0
      %5321 = vmatpush1.bf16.msra.mxu0 0
      %5322 = vmatprep.subr.bf16.mxu0 0
      %5323 = vmatpush1.bf16.msra.mxu0 0
      %5324 = vmatprep.mubr.bf16.mxu0 0
      %5325 = vmatmul.mubr.bf16.gmra.mrb[0].mxu0 %v5290
      %v5326 = vpop.f32.mrb[0].mxu0
      %v5327 = vadd.f32 %v5284, %v5326
      %v5328 = vpop.f32.mrb[0].mxu0
      %v5329 = vpop.f32.mrb[0].mxu0
      %v5330 = vpop.f32.mrb[0].mxu0
      %5331 = vdwg.mxu0
      %v5332 = vrot.slane %v1917, 3
      %v5333 = vrot.slane %v1996, 3
      %v5334 = vsel %vm2323, %v5332, 0
      %v5336 = vsel %vm2323, %v5333, 0
      %5338 = vmatprep.subr.mxu0 0.0
      %5339 = vmatpush1.xpose.msra.mxu0 %v5336
      %5340 = vmatprep.subr.mxu0 0.0
      %5341 = vmatpush1.xpose.msra.mxu0 0.0
      %5342 = vmatprep.subr.mxu0 0.0
      %5343 = vmatpush1.xpose.msra.mxu0 0.0
      %5344 = vmatprep.subr.mxu0 0.0
      %5345 = vmatpush1.xpose.msra.mxu0 0.0
      %5346 = vmatprep.subr.mxu0 0.0
      %5347 = vmatpush1.xpose.msra.mxu0 0.0
      %5348 = vmatprep.subr.mxu0 0.0
      %5349 = vmatpush1.xpose.msra.mxu0 0.0
      %5350 = vmatprep.subr.mxu0 0.0
      %5351 = vmatpush1.xpose.msra.mxu0 0.0
      %5352 = vmatprep.subr.mxu0 0.0
      %5353 = vmatpush1.xpose.msra.mxu0 0.0
      %5354 = vmatprep.subr.mxu0 0.0
      %5355 = vmatpush1.xpose.msra.mxu0 0.0
      %5356 = vmatprep.subr.mxu0 0.0
      %5357 = vmatpush1.xpose.msra.mxu0 0.0
      %5358 = vmatprep.subr.mxu0 0.0
      %5359 = vmatpush1.xpose.msra.mxu0 0.0
      %5360 = vmatprep.subr.mxu0 0.0
      %5361 = vmatpush1.xpose.msra.mxu0 0.0
      %5362 = vmatprep.subr.mxu0 0.0
      %5363 = vmatpush1.xpose.msra.mxu0 0.0
      %5364 = vmatprep.subr.mxu0 0.0
      %5365 = vmatpush1.xpose.msra.mxu0 0.0
      %5366 = vmatprep.subr.mxu0 0.0
      %5367 = vmatpush1.xpose.msra.mxu0 0.0
      %5368 = vmatprep.subr.mxu0 0.0
      %5369 = vmatpush1.xpose.msra.mxu0 0.0
      %5370 = vmatprep.subr.mxu0 0.0
      %5371 = vmatpush1.xpose.msra.mxu0 0.0
      %5372 = vmatprep.subr.mxu0 0.0
      %5373 = vmatpush1.xpose.msra.mxu0 0.0
      %5374 = vmatprep.subr.mxu0 0.0
      %5375 = vmatpush1.xpose.msra.mxu0 0.0
      %5376 = vmatprep.subr.mxu0 0.0
      %5377 = vmatpush1.xpose.msra.mxu0 0.0
      %5378 = vmatprep.subr.mxu0 0.0
      %5379 = vmatpush1.xpose.msra.mxu0 0.0
      %5380 = vmatprep.subr.mxu0 0.0
      %5381 = vmatpush1.xpose.msra.mxu0 0.0
      %5382 = vmatprep.subr.mxu0 0.0
      %5383 = vmatpush1.xpose.msra.mxu0 0.0
      %5384 = vmatprep.subr.mxu0 0.0
      %5385 = vmatpush1.xpose.msra.mxu0 0.0
      %5386 = vmatprep.subr.mxu0 0.0
      %5387 = vmatpush1.xpose.msra.mxu0 0.0
      %5388 = vmatprep.subr.mxu0 0.0
      %5389 = vmatpush1.xpose.msra.mxu0 0.0
      %5390 = vmatprep.subr.mxu0 0.0
      %5391 = vmatpush1.xpose.msra.mxu0 0.0
      %5392 = vmatprep.subr.mxu0 0.0
      %5393 = vmatpush1.xpose.msra.mxu0 0.0
      %5394 = vmatprep.subr.mxu0 0.0
      %5395 = vmatpush1.xpose.msra.mxu0 0.0
      %5396 = vmatprep.subr.mxu0 0.0
      %5397 = vmatpush1.xpose.msra.mxu0 0.0
      %5398 = vmatprep.subr.mxu0 0.0
      %5399 = vmatpush1.xpose.msra.mxu0 0.0
      %5400 = vmatprep.subr.mxu0 0.0
      %5401 = vmatpush1.xpose.msra.mxu0 0.0
      %5402 = vmatprep.mubr.f32.mxu0 0.0
      %5403 = vmatmul.mubr.f32.gmra.mrb[0].mxu0 %v5334
      %v5404 = vpop.f32.mrb[0].mxu0
      %v5405 = vadd.f32 0.0, %v5404
      %v5406 = vpop.f32.mrb[0].mxu0
      %5407 = vdwg.mxu0
      %v5408 = vmul.f32 %v5405, 0.25
      %v5409 = vsel %vm2401, %v5408, -inf
      %5410 = vmax.xlane.f32.xlu0 %v5409
      %v5411 = vpop.xlane.xlu0 %5410
      %v5412 = vsub.f32 %v5408, %v5411
      %v5413 = vmul.f32 %v5412, 1.442695
      %v5414 = vpow.pop %v5413
      %v5415 = vsel %vm2401, %v5414, 0.0
      %5416 = vadd.xlane.f32.xlu0 %v5415
      %v5417 = vpop.xlane.xlu0 %5416
      %v5418 = vrcp.pop %v5417
      %v5419 = vmul.f32 %v5414, %v5418
      %v5420 = vrot.slane %v2075, 3
      %v5422 = vsel %vm2413, %v5419, 0
      %v5424 = vsel %vm2417, %v5420, 0
      %5426 = vmatprep.subr.mxu0 0.0
      %5427 = vmatpush1.msra.mxu0 %v5424
      %5428 = vmatprep.subr.mxu0 0.0
      %5429 = vmatpush1.msra.mxu0 0.0
      %5430 = vmatprep.subr.mxu0 0.0
      %5431 = vmatpush1.msra.mxu0 0.0
      %5432 = vmatprep.subr.mxu0 0.0
      %5433 = vmatpush1.msra.mxu0 0.0
      %5434 = vmatprep.subr.mxu0 0.0
      %5435 = vmatpush1.msra.mxu0 0.0
      %5436 = vmatprep.subr.mxu0 0.0
      %5437 = vmatpush1.msra.mxu0 0.0
      %5438 = vmatprep.subr.mxu0 0.0
      %5439 = vmatpush1.msra.mxu0 0.0
      %5440 = vmatprep.subr.mxu0 0.0
      %5441 = vmatpush1.msra.mxu0 0.0
      %5442 = vmatprep.subr.mxu0 0.0
      %5443 = vmatpush1.msra.mxu0 0.0
      %5444 = vmatprep.subr.mxu0 0.0
      %5445 = vmatpush1.msra.mxu0 0.0
      %5446 = vmatprep.subr.mxu0 0.0
      %5447 = vmatpush1.msra.mxu0 0.0
      %5448 = vmatprep.subr.mxu0 0.0
      %5449 = vmatpush1.msra.mxu0 0.0
      %5450 = vmatprep.subr.mxu0 0.0
      %5451 = vmatpush1.msra.mxu0 0.0
      %5452 = vmatprep.subr.mxu0 0.0
      %5453 = vmatpush1.msra.mxu0 0.0
      %5454 = vmatprep.subr.mxu0 0.0
      %5455 = vmatpush1.msra.mxu0 0.0
      %5456 = vmatprep.subr.mxu0 0.0
      %5457 = vmatpush1.msra.mxu0 0.0
      %5458 = vmatprep.subr.mxu0 0.0
      %5459 = vmatpush1.msra.mxu0 0.0
      %5460 = vmatprep.subr.mxu0 0.0
      %5461 = vmatpush1.msra.mxu0 0.0
      %5462 = vmatprep.subr.mxu0 0.0
      %5463 = vmatpush1.msra.mxu0 0.0
      %5464 = vmatprep.subr.mxu0 0.0
      %5465 = vmatpush1.msra.mxu0 0.0
      %5466 = vmatprep.subr.mxu0 0.0
      %5467 = vmatpush1.msra.mxu0 0.0
      %5468 = vmatprep.subr.mxu0 0.0
      %5469 = vmatpush1.msra.mxu0 0.0
      %5470 = vmatprep.subr.mxu0 0.0
      %5471 = vmatpush1.msra.mxu0 0.0
      %5472 = vmatprep.subr.mxu0 0.0
      %5473 = vmatpush1.msra.mxu0 0.0
      %5474 = vmatprep.subr.mxu0 0.0
      %5475 = vmatpush1.msra.mxu0 0.0
      %5476 = vmatprep.subr.mxu0 0.0
      %5477 = vmatpush1.msra.mxu0 0.0
      %5478 = vmatprep.subr.mxu0 0.0
      %5479 = vmatpush1.msra.mxu0 0.0
      %5480 = vmatprep.subr.mxu0 0.0
      %5481 = vmatpush1.msra.mxu0 0.0
      %5482 = vmatprep.subr.mxu0 0.0
      %5483 = vmatpush1.msra.mxu0 0.0
      %5484 = vmatprep.subr.mxu0 0.0
      %5485 = vmatpush1.msra.mxu0 0.0
      %5486 = vmatprep.subr.mxu0 0.0
      %5487 = vmatpush1.msra.mxu0 0.0
      %5488 = vmatprep.subr.mxu0 0.0
      %5489 = vmatpush1.msra.mxu0 0.0
      %5490 = vmatprep.mubr.f32.mxu0 0.0
      %5491 = vmatmul.mubr.f32.gmra.mrb[0].mxu0 %v5422
      %v5492 = vpop.f32.mrb[0].mxu0
      %v5493 = vadd.f32 0.0, %v5492
      %v5494 = vpop.f32.mrb[0].mxu0
      %5495 = vdwg.mxu0
      %v5496 = vpack.c.bf16 %v5493, %v5493
      %v5497 = vrot.slane %v2156, 3
      %v5498 = vrot.slane %v2237, 3
      %v5499 = vsel %vm2323, %v5497, 0
      %v5501 = vsel %vm2323, %v5498, 0
      %5503 = vmatprep.subr.mxu0 0.0
      %5504 = vmatpush1.xpose.msra.mxu0 %v5501
      %5505 = vmatprep.subr.mxu0 0.0
      %5506 = vmatpush1.xpose.msra.mxu0 0.0
      %5507 = vmatprep.subr.mxu0 0.0
      %5508 = vmatpush1.xpose.msra.mxu0 0.0
      %5509 = vmatprep.subr.mxu0 0.0
      %5510 = vmatpush1.xpose.msra.mxu0 0.0
      %5511 = vmatprep.subr.mxu0 0.0
      %5512 = vmatpush1.xpose.msra.mxu0 0.0
      %5513 = vmatprep.subr.mxu0 0.0
      %5514 = vmatpush1.xpose.msra.mxu0 0.0
      %5515 = vmatprep.subr.mxu0 0.0
      %5516 = vmatpush1.xpose.msra.mxu0 0.0
      %5517 = vmatprep.subr.mxu0 0.0
      %5518 = vmatpush1.xpose.msra.mxu0 0.0
      %5519 = vmatprep.subr.mxu0 0.0
      %5520 = vmatpush1.xpose.msra.mxu0 0.0
      %5521 = vmatprep.subr.mxu0 0.0
      %5522 = vmatpush1.xpose.msra.mxu0 0.0
      %5523 = vmatprep.subr.mxu0 0.0
      %5524 = vmatpush1.xpose.msra.mxu0 0.0
      %5525 = vmatprep.subr.mxu0 0.0
      %5526 = vmatpush1.xpose.msra.mxu0 0.0
      %5527 = vmatprep.subr.mxu0 0.0
      %5528 = vmatpush1.xpose.msra.mxu0 0.0
      %5529 = vmatprep.subr.mxu0 0.0
      %5530 = vmatpush1.xpose.msra.mxu0 0.0
      %5531 = vmatprep.subr.mxu0 0.0
      %5532 = vmatpush1.xpose.msra.mxu0 0.0
      %5533 = vmatprep.subr.mxu0 0.0
      %5534 = vmatpush1.xpose.msra.mxu0 0.0
      %5535 = vmatprep.subr.mxu0 0.0
      %5536 = vmatpush1.xpose.msra.mxu0 0.0
      %5537 = vmatprep.subr.mxu0 0.0
      %5538 = vmatpush1.xpose.msra.mxu0 0.0
      %5539 = vmatprep.subr.mxu0 0.0
      %5540 = vmatpush1.xpose.msra.mxu0 0.0
      %5541 = vmatprep.subr.mxu0 0.0
      %5542 = vmatpush1.xpose.msra.mxu0 0.0
      %5543 = vmatprep.subr.mxu0 0.0
      %5544 = vmatpush1.xpose.msra.mxu0 0.0
      %5545 = vmatprep.subr.mxu0 0.0
      %5546 = vmatpush1.xpose.msra.mxu0 0.0
      %5547 = vmatprep.subr.mxu0 0.0
      %5548 = vmatpush1.xpose.msra.mxu0 0.0
      %5549 = vmatprep.subr.mxu0 0.0
      %5550 = vmatpush1.xpose.msra.mxu0 0.0
      %5551 = vmatprep.subr.mxu0 0.0
      %5552 = vmatpush1.xpose.msra.mxu0 0.0
      %5553 = vmatprep.subr.mxu0 0.0
      %5554 = vmatpush1.xpose.msra.mxu0 0.0
      %5555 = vmatprep.subr.mxu0 0.0
      %5556 = vmatpush1.xpose.msra.mxu0 0.0
      %5557 = vmatprep.subr.mxu0 0.0
      %5558 = vmatpush1.xpose.msra.mxu0 0.0
      %5559 = vmatprep.subr.mxu0 0.0
      %5560 = vmatpush1.xpose.msra.mxu0 0.0
      %5561 = vmatprep.subr.mxu0 0.0
      %5562 = vmatpush1.xpose.msra.mxu0 0.0
      %5563 = vmatprep.subr.mxu0 0.0
      %5564 = vmatpush1.xpose.msra.mxu0 0.0
      %5565 = vmatprep.subr.mxu0 0.0
      %5566 = vmatpush1.xpose.msra.mxu0 0.0
      %5567 = vmatprep.mubr.f32.mxu0 0.0
      %5568 = vmatmul.mubr.f32.gmra.mrb[0].mxu0 %v5499
      %v5569 = vpop.f32.mrb[0].mxu0
      %v5570 = vadd.f32 0.0, %v5569
      %v5571 = vpop.f32.mrb[0].mxu0
      %5572 = vdwg.mxu0
      %v5573 = vmul.f32 %v5570, 0.25
      %v5574 = vsel %vm2401, %v5573, -inf
      %5575 = vmax.xlane.f32.xlu0 %v5574
      %v5576 = vpop.xlane.xlu0 %5575
      %v5577 = vsub.f32 %v5573, %v5576
      %v5578 = vmul.f32 %v5577, 1.442695
      %v5579 = vpow.pop %v5578
      %v5580 = vsel %vm2401, %v5579, 0.0
      %5581 = vadd.xlane.f32.xlu0 %v5580
      %v5582 = vpop.xlane.xlu0 %5581
      %v5583 = vrcp.pop %v5582
      %v5584 = vmul.f32 %v5579, %v5583
      %v5585 = vrot.slane %v2318, 3
      %v5587 = vsel %vm2413, %v5584, 0
      %v5589 = vsel %vm2417, %v5585, 0
      %5591 = vmatprep.subr.mxu0 0.0
      %5592 = vmatpush1.msra.mxu0 %v5589
      %5593 = vmatprep.subr.mxu0 0.0
      %5594 = vmatpush1.msra.mxu0 0.0
      %5595 = vmatprep.subr.mxu0 0.0
      %5596 = vmatpush1.msra.mxu0 0.0
      %5597 = vmatprep.subr.mxu0 0.0
      %5598 = vmatpush1.msra.mxu0 0.0
      %5599 = vmatprep.subr.mxu0 0.0
      %5600 = vmatpush1.msra.mxu0 0.0
      %5601 = vmatprep.subr.mxu0 0.0
      %5602 = vmatpush1.msra.mxu0 0.0
      %5603 = vmatprep.subr.mxu0 0.0
      %5604 = vmatpush1.msra.mxu0 0.0
      %5605 = vmatprep.subr.mxu0 0.0
      %5606 = vmatpush1.msra.mxu0 0.0
      %5607 = vmatprep.subr.mxu0 0.0
      %5608 = vmatpush1.msra.mxu0 0.0
      %5609 = vmatprep.subr.mxu0 0.0
      %5610 = vmatpush1.msra.mxu0 0.0
      %5611 = vmatprep.subr.mxu0 0.0
      %5612 = vmatpush1.msra.mxu0 0.0
      %5613 = vmatprep.subr.mxu0 0.0
      %5614 = vmatpush1.msra.mxu0 0.0
      %5615 = vmatprep.subr.mxu0 0.0
      %5616 = vmatpush1.msra.mxu0 0.0
      %5617 = vmatprep.subr.mxu0 0.0
      %5618 = vmatpush1.msra.mxu0 0.0
      %5619 = vmatprep.subr.mxu0 0.0
      %5620 = vmatpush1.msra.mxu0 0.0
      %5621 = vmatprep.subr.mxu0 0.0
      %5622 = vmatpush1.msra.mxu0 0.0
      %5623 = vmatprep.subr.mxu0 0.0
      %5624 = vmatpush1.msra.mxu0 0.0
      %5625 = vmatprep.subr.mxu0 0.0
      %5626 = vmatpush1.msra.mxu0 0.0
      %5627 = vmatprep.subr.mxu0 0.0
      %5628 = vmatpush1.msra.mxu0 0.0
      %5629 = vmatprep.subr.mxu0 0.0
      %5630 = vmatpush1.msra.mxu0 0.0
      %5631 = vmatprep.subr.mxu0 0.0
      %5632 = vmatpush1.msra.mxu0 0.0
      %5633 = vmatprep.subr.mxu0 0.0
      %5634 = vmatpush1.msra.mxu0 0.0
      %5635 = vmatprep.subr.mxu0 0.0
      %5636 = vmatpush1.msra.mxu0 0.0
      %5637 = vmatprep.subr.mxu0 0.0
      %5638 = vmatpush1.msra.mxu0 0.0
      %5639 = vmatprep.subr.mxu0 0.0
      %5640 = vmatpush1.msra.mxu0 0.0
      %5641 = vmatprep.subr.mxu0 0.0
      %5642 = vmatpush1.msra.mxu0 0.0
      %5643 = vmatprep.subr.mxu0 0.0
      %5644 = vmatpush1.msra.mxu0 0.0
      %5645 = vmatprep.subr.mxu0 0.0
      %5646 = vmatpush1.msra.mxu0 0.0
      %5647 = vmatprep.subr.mxu0 0.0
      %5648 = vmatpush1.msra.mxu0 0.0
      %5649 = vmatprep.subr.mxu0 0.0
      %5650 = vmatpush1.msra.mxu0 0.0
      %5651 = vmatprep.subr.mxu0 0.0
      %5652 = vmatpush1.msra.mxu0 0.0
      %5653 = vmatprep.subr.mxu0 0.0
      %5654 = vmatpush1.msra.mxu0 0.0
      %5655 = vmatprep.mubr.f32.mxu0 0.0
      %5656 = vmatmul.mubr.f32.gmra.mrb[0].mxu0 %v5587
      %v5657 = vpop.f32.mrb[0].mxu0
      %v5658 = vadd.f32 0.0, %v5657
      %v5659 = vpop.f32.mrb[0].mxu0
      %5660 = vdwg.mxu0
      %v5661 = vpack.c.bf16 %v5658, %v5658
      %v5663 = vsel %vm2323, %v5661, 0
      %5665 = vmatprep.subr.bf16.mxu0 0
      %5666 = vmatpush1.bf16.msra.mxu0 %v2666
      %5667 = vmatprep.subr.bf16.mxu0 0
      %5668 = vmatpush1.bf16.msra.mxu0 0
      %5669 = vmatprep.subr.bf16.mxu0 0
      %5670 = vmatpush1.bf16.msra.mxu0 0
      %5671 = vmatprep.subr.bf16.mxu0 0
      %5672 = vmatpush1.bf16.msra.mxu0 0
      %5673 = vmatprep.subr.bf16.mxu0 0
      %5674 = vmatpush1.bf16.msra.mxu0 0
      %5675 = vmatprep.subr.bf16.mxu0 0
      %5676 = vmatpush1.bf16.msra.mxu0 0
      %5677 = vmatprep.subr.bf16.mxu0 0
      %5678 = vmatpush1.bf16.msra.mxu0 0
      %5679 = vmatprep.subr.bf16.mxu0 0
      %5680 = vmatpush1.bf16.msra.mxu0 0
      %5681 = vmatprep.subr.bf16.mxu0 0
      %5682 = vmatpush1.bf16.msra.mxu0 0
      %5683 = vmatprep.subr.bf16.mxu0 0
      %5684 = vmatpush1.bf16.msra.mxu0 0
      %5685 = vmatprep.subr.bf16.mxu0 0
      %5686 = vmatpush1.bf16.msra.mxu0 0
      %5687 = vmatprep.subr.bf16.mxu0 0
      %5688 = vmatpush1.bf16.msra.mxu0 0
      %5689 = vmatprep.subr.bf16.mxu0 0
      %5690 = vmatpush1.bf16.msra.mxu0 0
      %5691 = vmatprep.subr.bf16.mxu0 0
      %5692 = vmatpush1.bf16.msra.mxu0 0
      %5693 = vmatprep.subr.bf16.mxu0 0
      %5694 = vmatpush1.bf16.msra.mxu0 0
      %5695 = vmatprep.subr.bf16.mxu0 0
      %5696 = vmatpush1.bf16.msra.mxu0 0
      %5697 = vmatprep.mubr.bf16.mxu0 0
      %5698 = vmatmul.mubr.bf16.gmra.mrb[0].mxu0 %v5663
      %v5699 = vpop.f32.mrb[0].mxu0
      %v5700 = vadd.f32 0.0, %v5699
      %v5701 = vpop.f32.mrb[0].mxu0
      %v5702 = vpop.f32.mrb[0].mxu0
      %v5703 = vpop.f32.mrb[0].mxu0
      %5704 = vdwg.mxu0
      %v5706 = vsel %vm2323, %v5496, 0
      %5708 = vmatprep.subr.bf16.mxu0 0
      %5709 = vmatpush1.bf16.msra.mxu0 %v2715
      %5710 = vmatprep.subr.bf16.mxu0 0
      %5711 = vmatpush1.bf16.msra.mxu0 0
      %5712 = vmatprep.subr.bf16.mxu0 0
      %5713 = vmatpush1.bf16.msra.mxu0 0
      %5714 = vmatprep.subr.bf16.mxu0 0
      %5715 = vmatpush1.bf16.msra.mxu0 0
      %5716 = vmatprep.subr.bf16.mxu0 0
      %5717 = vmatpush1.bf16.msra.mxu0 0
      %5718 = vmatprep.subr.bf16.mxu0 0
      %5719 = vmatpush1.bf16.msra.mxu0 0
      %5720 = vmatprep.subr.bf16.mxu0 0
      %5721 = vmatpush1.bf16.msra.mxu0 0
      %5722 = vmatprep.subr.bf16.mxu0 0
      %5723 = vmatpush1.bf16.msra.mxu0 0
      %5724 = vmatprep.subr.bf16.mxu0 0
      %5725 = vmatpush1.bf16.msra.mxu0 0
      %5726 = vmatprep.subr.bf16.mxu0 0
      %5727 = vmatpush1.bf16.msra.mxu0 0
      %5728 = vmatprep.subr.bf16.mxu0 0
      %5729 = vmatpush1.bf16.msra.mxu0 0
      %5730 = vmatprep.subr.bf16.mxu0 0
      %5731 = vmatpush1.bf16.msra.mxu0 0
      %5732 = vmatprep.subr.bf16.mxu0 0
      %5733 = vmatpush1.bf16.msra.mxu0 0
      %5734 = vmatprep.subr.bf16.mxu0 0
      %5735 = vmatpush1.bf16.msra.mxu0 0
      %5736 = vmatprep.subr.bf16.mxu0 0
      %5737 = vmatpush1.bf16.msra.mxu0 0
      %5738 = vmatprep.subr.bf16.mxu0 0
      %5739 = vmatpush1.bf16.msra.mxu0 0
      %5740 = vmatprep.mubr.bf16.mxu0 0
      %5741 = vmatmul.mubr.bf16.gmra.mrb[0].mxu0 %v5706
      %v5742 = vpop.f32.mrb[0].mxu0
      %v5743 = vadd.f32 %v5700, %v5742
      %v5744 = vpop.f32.mrb[0].mxu0
      %v5745 = vpop.f32.mrb[0].mxu0
      %v5746 = vpop.f32.mrb[0].mxu0
      %5747 = vdwg.mxu0
      %v5749 = vrot.slane %v3190, 3
      %v5752 = vrot.slane %v3606, 6
      %v5755 = vrot.slane %v4041, 1
      %v5758 = vrot.slane %v4476, 4
      %v5761 = vrot.slane %v4892, 7
      %v5764 = vrot.slane %v5327, 2
      %v5767 = vrot.slane %v5743, 5
      %v5769 = vsel %vm2417, %v2755, %v5749
      %v5770 = vsel %vm4898, %v5749, %v5752
      %vm5771 = vcmask 1046528
      %v5772 = vsel %vm5771, %v5770, %v5755
      %v5773 = vsel %vm4047, %v5755, %v5758
      %v5774 = vsel %vm3612, %v5758, %v5761
      %vm5775 = vcmask 1045504
      %v5776 = vsel %vm5775, %v5774, %v5764
      %v5777 = vsel %vm2761, %v5764, %v5767
      %v5778 = vadd.f32 %v1735, %v5769
      %v5779 = vadd.f32 %v1736, %v5772
      %v5780 = vadd.f32 %v1737, %v5773
      %v5781 = vadd.f32 %v1738, %v5776
      %v5782 = vadd.f32 %v1739, %v5777
      %v5783 = vld [vmem:[%s1019] sm:$0x1]
      %v5785 = vlaneseq
      %v5786 = vshrl.u32 %v5785, 7
      %v5787 = vsub.s32 0, %v5786
      %v5788 = vrot.slane %v5783, %v5787
      %v5790 = vadd.f32 %v5778, %v5788
      %v5791 = vadd.f32 %v5779, %v5788
      %v5792 = vadd.f32 %v5780, %v5788
      %v5793 = vadd.f32 %v5781, %v5788
      %v5794 = vadd.f32 %v5782, %v5788
      %v5795 = vld [vmem:[%s1022] sm:$0x1]
      %v5796 = vld [vmem:[%s1025] sm:$0x1]
      %v5797 = vsel %vm1742, %v5790, 0.0
      %5798 = vadd.xlane.f32.xlu0 %v5797
      %v5799 = vpop.xlane.xlu0 %5798
      %v5800 = vsel %vm1742, %v5791, 0.0
      %5801 = vadd.xlane.f32.xlu0 %v5800
      %v5802 = vpop.xlane.xlu0 %5801
      %v5803 = vsel %vm1742, %v5792, 0.0
      %5804 = vadd.xlane.f32.xlu0 %v5803
      %v5805 = vpop.xlane.xlu0 %5804
      %v5806 = vsel %vm1742, %v5793, 0.0
      %5807 = vadd.xlane.f32.xlu0 %v5806
      %v5808 = vpop.xlane.xlu0 %5807
      %v5809 = vsel %vm1742, %v5794, 0.0
      %5810 = vadd.xlane.f32.xlu0 %v5809
      %v5811 = vpop.xlane.xlu0 %5810
      %v5812 = vmul.f32 %v5799, %v1758
      %v5813 = vmul.f32 %v5802, %v1758
      %v5814 = vmul.f32 %v5805, %v1758
      %v5815 = vmul.f32 %v5808, %v1758
      %v5816 = vmul.f32 %v5811, %v1758
      %v5817 = vsub.f32 %v5790, %v5812
      %v5818 = vsub.f32 %v5791, %v5813
      %v5819 = vsub.f32 %v5792, %v5814
      %v5820 = vsub.f32 %v5793, %v5815
      %v5821 = vsub.f32 %v5794, %v5816
      %v5822 = vmul.f32 %v5817, %v5817
      %v5823 = vmul.f32 %v5818, %v5818
      %v5824 = vmul.f32 %v5819, %v5819
      %v5825 = vmul.f32 %v5820, %v5820
      %v5826 = vmul.f32 %v5821, %v5821
      %v5827 = vsel %vm1742, %v5822, 0.0
      %5828 = vadd.xlane.f32.xlu0 %v5827
      %v5829 = vpop.xlane.xlu0 %5828
      %v5830 = vsel %vm1742, %v5823, 0.0
      %5831 = vadd.xlane.f32.xlu0 %v5830
      %v5832 = vpop.xlane.xlu0 %5831
      %v5833 = vsel %vm1742, %v5824, 0.0
      %5834 = vadd.xlane.f32.xlu0 %v5833
      %v5835 = vpop.xlane.xlu0 %5834
      %v5836 = vsel %vm1742, %v5825, 0.0
      %5837 = vadd.xlane.f32.xlu0 %v5836
      %v5838 = vpop.xlane.xlu0 %5837
      %v5839 = vsel %vm1742, %v5826, 0.0
      %5840 = vadd.xlane.f32.xlu0 %v5839
      %v5841 = vpop.xlane.xlu0 %5840
      %v5842 = vmul.f32 %v5829, %v1758
      %v5843 = vmul.f32 %v5832, %v1758
      %v5844 = vmul.f32 %v5835, %v1758
      %v5845 = vmul.f32 %v5838, %v1758
      %v5846 = vmul.f32 %v5841, %v1758
      %v5847 = vadd.f32 %v5842, 1e-06
      %v5848 = vadd.f32 %v5843, 1e-06
      %v5849 = vadd.f32 %v5844, 1e-06
      %v5850 = vadd.f32 %v5845, 1e-06
      %v5851 = vadd.f32 %v5846, 1e-06
      %v5852 = vrsqrt.pop %v5847
      %v5853 = vrsqrt.pop %v5848
      %v5854 = vrsqrt.pop %v5849
      %v5855 = vrsqrt.pop %v5850
      %v5856 = vrsqrt.pop %v5851
      %v5857 = vmul.f32 %v5817, %v5852
      %v5858 = vmul.f32 %v5818, %v5853
      %v5859 = vmul.f32 %v5819, %v5854
      %v5860 = vmul.f32 %v5820, %v5855
      %v5861 = vmul.f32 %v5821, %v5856
      %v5863 = vlaneseq
      %v5864 = vshrl.u32 %v5863, 7
      %v5865 = vsub.s32 0, %v5864
      %v5866 = vrot.slane %v5795, %v5865
      %v5868 = vmul.f32 %v5857, %v5866
      %v5869 = vmul.f32 %v5858, %v5866
      %v5870 = vmul.f32 %v5859, %v5866
      %v5871 = vmul.f32 %v5860, %v5866
      %v5872 = vmul.f32 %v5861, %v5866
      %v5874 = vlaneseq
      %v5875 = vshrl.u32 %v5874, 7
      %v5876 = vsub.s32 0, %v5875
      %v5877 = vrot.slane %v5796, %v5876
      %v5879 = vadd.f32 %v5868, %v5877
      %v5880 = vadd.f32 %v5869, %v5877
      %v5881 = vadd.f32 %v5870, %v5877
      %v5882 = vadd.f32 %v5871, %v5877
      %v5883 = vadd.f32 %v5872, %v5877
      %v5884 = vpack.c.bf16 %v5880, %v5879
      %v5885 = vpack.c.bf16 %v5882, %v5881
      %v5886 = vpack.c.bf16 %v5883, %v5883
      %v5887 = vld [vmem:[%s1030] sm:$0xf]
      %v5888 = vld [vmem:[%s1030 + $0x4] sm:$0xf]
      %v5889 = vld [vmem:[%s1030 + $0x8] sm:$0xf]
      %v5890 = vld [vmem:[%s1030 + $0xc] sm:$0xf]
      %v5891 = vld [vmem:[%s1033] sm:$0x1]
      %v5893 = vlaneseq
      %v5894 = vshrl.u32 %v5893, 7
      %v5895 = vsub.s32 0, %v5894
      %v5896 = vrot.slane %v5891, %v5895
      %v5902 = vunpack.c.l.b16 %v5887
      %v5903 = vunpack.c.l.b16 %v5888
      %v5904 = vunpack.c.l.b16 %v5889
      %v5905 = vunpack.c.l.b16 %v5890
      %v5906 = vpack.c.b16 %v5903, %v5902
      %v5907 = vpack.c.b16 %v5905, %v5904
      %v5911 = vsel %vm1742, %v5884, 0
      %v5914 = vsel %vm1742, %v5885, 0
      %v5917 = vsel %vm1742, %v5886, 0
      %5919 = vmatprep.subr.bf16.mxu0 0
      %5920 = vmatpush1.bf16.msra.mxu0 %v5906
      %5921 = vmatprep.subr.bf16.mxu0 0
      %5922 = vmatpush1.bf16.msra.mxu0 %v5907
      %5923 = vmatprep.subr.bf16.mxu0 0
      %5924 = vmatpush1.bf16.msra.mxu0 0
      %5925 = vmatprep.subr.bf16.mxu0 0
      %5926 = vmatpush1.bf16.msra.mxu0 0
      %5927 = vmatprep.subr.bf16.mxu0 0
      %5928 = vmatpush1.bf16.msra.mxu0 0
      %5929 = vmatprep.subr.bf16.mxu0 0
      %5930 = vmatpush1.bf16.msra.mxu0 0
      %5931 = vmatprep.subr.bf16.mxu0 0
      %5932 = vmatpush1.bf16.msra.mxu0 0
      %5933 = vmatprep.subr.bf16.mxu0 0
      %5934 = vmatpush1.bf16.msra.mxu0 0
      %5935 = vmatprep.subr.bf16.mxu0 0
      %5936 = vmatpush1.bf16.msra.mxu0 0
      %5937 = vmatprep.subr.bf16.mxu0 0
      %5938 = vmatpush1.bf16.msra.mxu0 0
      %5939 = vmatprep.subr.bf16.mxu0 0
      %5940 = vmatpush1.bf16.msra.mxu0 0
      %5941 = vmatprep.subr.bf16.mxu0 0
      %5942 = vmatpush1.bf16.msra.mxu0 0
      %5943 = vmatprep.subr.bf16.mxu0 0
      %5944 = vmatpush1.bf16.msra.mxu0 0
      %5945 = vmatprep.subr.bf16.mxu0 0
      %5946 = vmatpush1.bf16.msra.mxu0 0
      %5947 = vmatprep.subr.bf16.mxu0 0
      %5948 = vmatpush1.bf16.msra.mxu0 0
      %5949 = vmatprep.subr.bf16.mxu0 0
      %5950 = vmatpush1.bf16.msra.mxu0 0
      %5951 = vmatprep.mubr.bf16.mxu0 0
      %5952 = vmatmul.mubr.bf16.gmra.mrb[0].mxu0 %v5911
      %v5953 = vpop.f32.mrb[0].mxu0
      %v5954 = vadd.f32 %v5896, %v5953
      %v5955 = vpop.f32.mrb[0].mxu0
      %v5956 = vpop.f32.mrb[0].mxu0
      %v5957 = vadd.f32 %v5896, %v5956
      %v5958 = vpop.f32.mrb[0].mxu0
      %5959 = vmatprep.mubr.bf16.mxu0 0
      %5960 = vmatmul.mubr.bf16.gmra.mrb[0].mxu0 %v5914
      %v5961 = vpop.f32.mrb[0].mxu0
      %v5962 = vadd.f32 %v5896, %v5961
      %v5963 = vpop.f32.mrb[0].mxu0
      %v5964 = vpop.f32.mrb[0].mxu0
      %v5965 = vadd.f32 %v5896, %v5964
      %v5966 = vpop.f32.mrb[0].mxu0
      %5967 = vmatprep.mubr.bf16.mxu0 0
      %5968 = vmatmul.mubr.bf16.gmra.mrb[0].mxu0 %v5917
      %v5969 = vpop.f32.mrb[0].mxu0
      %v5970 = vadd.f32 %v5896, %v5969
      %v5971 = vpop.f32.mrb[0].mxu0
      %v5972 = vpop.f32.mrb[0].mxu0
      %v5973 = vpop.f32.mrb[0].mxu0
      %5974 = vdwg.mxu0
      %v5975 = vmul.f32 %v5954, 0.5
      %v5976 = vmul.f32 %v5957, 0.5
      %v5977 = vmul.f32 %v5962, 0.5
      %v5978 = vmul.f32 %v5965, 0.5
      %v5979 = vmul.f32 %v5970, 0.5
      %v5980 = vmul.f32 %v5954, 0.70710677
      %v5981 = vmul.f32 %v5957, 0.70710677
      %v5982 = vmul.f32 %v5962, 0.70710677
      %v5983 = vmul.f32 %v5965, 0.70710677
      %v5984 = vmul.f32 %v5970, 0.70710677
      %v5985 = vand.u32 2147483647, %v5980
      %v5986 = vand.u32 2147483647, %v5981
      %v5987 = vand.u32 2147483647, %v5982
      %v5988 = vand.u32 2147483647, %v5983
      %v5989 = vand.u32 2147483647, %v5984
      %v5990 = vmul.f32 %v5985, 0.3275911
      %v5991 = vmul.f32 %v5986, 0.3275911
      %v5992 = vmul.f32 %v5987, 0.3275911
      %v5993 = vmul.f32 %v5988, 0.3275911
      %v5994 = vmul.f32 %v5989, 0.3275911
      %v5995 = vadd.f32 %v5990, 1.0
      %v5996 = vadd.f32 %v5991, 1.0
      %v5997 = vadd.f32 %v5992, 1.0
      %v5998 = vadd.f32 %v5993, 1.0
      %v5999 = vadd.f32 %v5994, 1.0
      %v6000 = vrcp.pop %v5995
      %v6001 = vmul.f32 1.0, %v6000
      %v6002 = vrcp.pop %v5996
      %v6003 = vmul.f32 1.0, %v6002
      %v6004 = vrcp.pop %v5997
      %v6005 = vmul.f32 1.0, %v6004
      %v6006 = vrcp.pop %v5998
      %v6007 = vmul.f32 1.0, %v6006
      %v6008 = vrcp.pop %v5999
      %v6009 = vmul.f32 1.0, %v6008
      %v6010 = vmul.f32 %v6001, 1.0614054
      %v6011 = vmul.f32 %v6003, 1.0614054
      %v6012 = vmul.f32 %v6005, 1.0614054
      %v6013 = vmul.f32 %v6007, 1.0614054
      %v6014 = vmul.f32 %v6009, 1.0614054
      %v6015 = vadd.f32 %v6010, -1.4531521
      %v6016 = vadd.f32 %v6011, -1.4531521
      %v6017 = vadd.f32 %v6012, -1.4531521
      %v6018 = vadd.f32 %v6013, -1.4531521
      %v6019 = vadd.f32 %v6014, -1.4531521
      %v6020 = vmul.f32 %v6015, %v6001
      %v6021 = vmul.f32 %v6016, %v6003
      %v6022 = vmul.f32 %v6017, %v6005
      %v6023 = vmul.f32 %v6018, %v6007
      %v6024 = vmul.f32 %v6019, %v6009
      %v6025 = vadd.f32 %v6020, 1.4214138
      %v6026 = vadd.f32 %v6021, 1.4214138
      %v6027 = vadd.f32 %v6022, 1.4214138
      %v6028 = vadd.f32 %v6023, 1.4214138
      %v6029 = vadd.f32 %v6024, 1.4214138
      %v6030 = vmul.f32 %v6025, %v6001
      %v6031 = vmul.f32 %v6026, %v6003
      %v6032 = vmul.f32 %v6027, %v6005
      %v6033 = vmul.f32 %v6028, %v6007
      %v6034 = vmul.f32 %v6029, %v6009
      %v6035 = vadd.f32 %v6030, -0.28449672
      %v6036 = vadd.f32 %v6031, -0.28449672
      %v6037 = vadd.f32 %v6032, -0.28449672
      %v6038 = vadd.f32 %v6033, -0.28449672
      %v6039 = vadd.f32 %v6034, -0.28449672
      %v6040 = vmul.f32 %v6035, %v6001
      %v6041 = vmul.f32 %v6036, %v6003
      %v6042 = vmul.f32 %v6037, %v6005
      %v6043 = vmul.f32 %v6038, %v6007
      %v6044 = vmul.f32 %v6039, %v6009
      %v6045 = vadd.f32 %v6040, 0.2548296
      %v6046 = vadd.f32 %v6041, 0.2548296
      %v6047 = vadd.f32 %v6042, 0.2548296
      %v6048 = vadd.f32 %v6043, 0.2548296
      %v6049 = vadd.f32 %v6044, 0.2548296
      %v6050 = vmul.f32 %v6045, %v6001
      %v6051 = vmul.f32 %v6046, %v6003
      %v6052 = vmul.f32 %v6047, %v6005
      %v6053 = vmul.f32 %v6048, %v6007
      %v6054 = vmul.f32 %v6049, %v6009
      %v6055 = vsub.f32 0.0, %v5985
      %v6056 = vsub.f32 0.0, %v5986
      %v6057 = vsub.f32 0.0, %v5987
      %v6058 = vsub.f32 0.0, %v5988
      %v6059 = vsub.f32 0.0, %v5989
      %v6060 = vmul.f32 %v6055, %v5985
      %v6061 = vmul.f32 %v6056, %v5986
      %v6062 = vmul.f32 %v6057, %v5987
      %v6063 = vmul.f32 %v6058, %v5988
      %v6064 = vmul.f32 %v6059, %v5989
      %v6065 = vmul.f32 %v6060, 1.442695
      %v6066 = vpow.pop %v6065
      %v6067 = vmul.f32 %v6061, 1.442695
      %v6068 = vpow.pop %v6067
      %v6069 = vmul.f32 %v6062, 1.442695
      %v6070 = vpow.pop %v6069
      %v6071 = vmul.f32 %v6063, 1.442695
      %v6072 = vpow.pop %v6071
      %v6073 = vmul.f32 %v6064, 1.442695
      %v6074 = vpow.pop %v6073
      %v6075 = vmul.f32 %v6050, %v6066
      %v6076 = vmul.f32 %v6051, %v6068
      %v6077 = vmul.f32 %v6052, %v6070
      %v6078 = vmul.f32 %v6053, %v6072
      %v6079 = vmul.f32 %v6054, %v6074
      %v6080 = vsub.f32 1.0, %v6075
      %v6081 = vsub.f32 1.0, %v6076
      %v6082 = vsub.f32 1.0, %v6077
      %v6083 = vsub.f32 1.0, %v6078
      %v6084 = vsub.f32 1.0, %v6079
      %vm6085 = vcmp.lt.f32.partialorder %v5980, 0.0
      %vm6086 = vcmp.lt.f32.partialorder %v5981, 0.0
      %vm6087 = vcmp.lt.f32.partialorder %v5982, 0.0
      %vm6088 = vcmp.lt.f32.partialorder %v5983, 0.0
      %vm6089 = vcmp.lt.f32.partialorder %v5984, 0.0
      %v6090 = vsub.f32 0.0, %v6080
      %v6091 = vsub.f32 0.0, %v6081
      %v6092 = vsub.f32 0.0, %v6082
      %v6093 = vsub.f32 0.0, %v6083
      %v6094 = vsub.f32 0.0, %v6084
      %v6095 = vsel %vm6085, %v6090, %v6080
      %v6096 = vsel %vm6086, %v6091, %v6081
      %v6097 = vsel %vm6087, %v6092, %v6082
      %v6098 = vsel %vm6088, %v6093, %v6083
      %v6099 = vsel %vm6089, %v6094, %v6084
      %v6100 = vadd.f32 %v6095, 1.0
      %v6101 = vadd.f32 %v6096, 1.0
      %v6102 = vadd.f32 %v6097, 1.0
      %v6103 = vadd.f32 %v6098, 1.0
      %v6104 = vadd.f32 %v6099, 1.0
      %v6105 = vmul.f32 %v5975, %v6100
      %v6106 = vmul.f32 %v5976, %v6101
      %v6107 = vmul.f32 %v5977, %v6102
      %v6108 = vmul.f32 %v5978, %v6103
      %v6109 = vmul.f32 %v5979, %v6104
      %v6110 = vpack.c.bf16 %v6106, %v6105
      %v6111 = vpack.c.bf16 %v6108, %v6107
      %v6112 = vpack.c.bf16 %v6109, %v6109
      %v6113 = vld [vmem:[%s1038] sm:$0xf]
      %v6114 = vld [vmem:[%s1038 + $0x4] sm:$0xf]
      %v6115 = vld [vmem:[%s1038 + $0x8] sm:$0xf]
      %v6116 = vld [vmem:[%s1038 + $0xc] sm:$0xf]
      %v6117 = vld [vmem:[%s1038 + $0x10] sm:$0xf]
      %v6118 = vld [vmem:[%s1038 + $0x14] sm:$0xf]
      %v6119 = vld [vmem:[%s1038 + $0x18] sm:$0xf]
      %v6120 = vld [vmem:[%s1038 + $0x1c] sm:$0xf]
      %v6129 = vunpack.c.l.b16 %v6113
      %v6130 = vunpack.c.l.b16 %v6114
      %v6131 = vunpack.c.l.b16 %v6115
      %v6132 = vunpack.c.l.b16 %v6116
      %v6133 = vunpack.c.l.b16 %v6117
      %v6134 = vunpack.c.l.b16 %v6118
      %v6135 = vunpack.c.l.b16 %v6119
      %v6136 = vunpack.c.l.b16 %v6120
      %v6137 = vpack.c.b16 %v6130, %v6129
      %v6138 = vpack.c.b16 %v6132, %v6131
      %v6139 = vpack.c.b16 %v6134, %v6133
      %v6140 = vpack.c.b16 %v6136, %v6135
      %vm6145 = vcmask 523264
      %v6147 = vsel %vm6145, %v6110, 0
      %v6150 = vsel %vm6145, %v6111, 0
      %v6153 = vsel %vm6145, %v6112, 0
      %6155 = vmatprep.subr.bf16.mxu0 0
      %6156 = vmatpush1.bf16.msra.mxu0 %v6137
      %6157 = vmatprep.subr.bf16.mxu0 0
      %6158 = vmatpush1.bf16.msra.mxu0 %v6138
      %6159 = vmatprep.subr.bf16.mxu0 0
      %6160 = vmatpush1.bf16.msra.mxu0 %v6139
      %6161 = vmatprep.subr.bf16.mxu0 0
      %6162 = vmatpush1.bf16.msra.mxu0 %v6140
      %6163 = vmatprep.subr.bf16.mxu0 0
      %6164 = vmatpush1.bf16.msra.mxu0 0
      %6165 = vmatprep.subr.bf16.mxu0 0
      %6166 = vmatpush1.bf16.msra.mxu0 0
      %6167 = vmatprep.subr.bf16.mxu0 0
      %6168 = vmatpush1.bf16.msra.mxu0 0
      %6169 = vmatprep.subr.bf16.mxu0 0
      %6170 = vmatpush1.bf16.msra.mxu0 0
      %6171 = vmatprep.subr.bf16.mxu0 0
      %6172 = vmatpush1.bf16.msra.mxu0 0
      %6173 = vmatprep.subr.bf16.mxu0 0
      %6174 = vmatpush1.bf16.msra.mxu0 0
      %6175 = vmatprep.subr.bf16.mxu0 0
      %6176 = vmatpush1.bf16.msra.mxu0 0
      %6177 = vmatprep.subr.bf16.mxu0 0
      %6178 = vmatpush1.bf16.msra.mxu0 0
      %6179 = vmatprep.subr.bf16.mxu0 0
      %6180 = vmatpush1.bf16.msra.mxu0 0
      %6181 = vmatprep.subr.bf16.mxu0 0
      %6182 = vmatpush1.bf16.msra.mxu0 0
      %6183 = vmatprep.subr.bf16.mxu0 0
      %6184 = vmatpush1.bf16.msra.mxu0 0
      %6185 = vmatprep.subr.bf16.mxu0 0
      %6186 = vmatpush1.bf16.msra.mxu0 0
      %6187 = vmatprep.mubr.bf16.mxu0 0
      %6188 = vmatmul.mubr.bf16.gmra.mrb[0].mxu0 %v6147
      %v6189 = vpop.f32.mrb[0].mxu0
      %v6190 = vadd.f32 0.0, %v6189
      %v6191 = vpop.f32.mrb[0].mxu0
      %v6192 = vpop.f32.mrb[0].mxu0
      %v6193 = vadd.f32 0.0, %v6192
      %v6194 = vpop.f32.mrb[0].mxu0
      %6195 = vmatprep.mubr.bf16.mxu0 0
      %6196 = vmatmul.mubr.bf16.gmra.mrb[0].mxu0 %v6150
      %v6197 = vpop.f32.mrb[0].mxu0
      %v6198 = vadd.f32 0.0, %v6197
      %v6199 = vpop.f32.mrb[0].mxu0
      %v6200 = vpop.f32.mrb[0].mxu0
      %v6201 = vadd.f32 0.0, %v6200
      %v6202 = vpop.f32.mrb[0].mxu0
      %6203 = vmatprep.mubr.bf16.mxu0 0
      %6204 = vmatmul.mubr.bf16.gmra.mrb[0].mxu0 %v6153
      %v6205 = vpop.f32.mrb[0].mxu0
      %v6206 = vadd.f32 0.0, %v6205
      %v6207 = vpop.f32.mrb[0].mxu0
      %v6208 = vpop.f32.mrb[0].mxu0
      %v6209 = vpop.f32.mrb[0].mxu0
      %6210 = vdwg.mxu0
      %v6211 = vadd.f32 %v5790, %v6190
      %v6212 = vadd.f32 %v5791, %v6193
      %v6213 = vadd.f32 %v5792, %v6198
      %v6214 = vadd.f32 %v5793, %v6201
      %v6215 = vadd.f32 %v5794, %v6206
      %v6216 = vld [vmem:[%s1041] sm:$0x1]
      %v6218 = vlaneseq
      %v6219 = vshrl.u32 %v6218, 7
      %v6220 = vsub.s32 0, %v6219
      %v6221 = vrot.slane %v6216, %v6220
      %v6223 = vadd.f32 %v6211, %v6221
      %v6224 = vadd.f32 %v6212, %v6221
      %v6225 = vadd.f32 %v6213, %v6221
      %v6226 = vadd.f32 %v6214, %v6221
      %v6227 = vadd.f32 %v6215, %v6221
      %6228 = vst.msk [vmem:[#allocation2] sm:$0xff] %vm1742, %v6223
      %6229 = vst.msk [vmem:[#allocation2 + $0x8] sm:$0xff] %vm1742, %v6224
      %6230 = vst.msk [vmem:[#allocation2 + $0x10] sm:$0xff] %vm1742, %v6225
      %6231 = vst.msk [vmem:[#allocation2 + $0x18] sm:$0xff] %vm1742, %v6226
      %6232 = vst.msk [vmem:[#allocation2 + $0x20] sm:$0xff] %vm1742, %v6227
      %p6233 = scmp.eq.s32.totalorder %s43, 1
      // Predicated region
      $region125: #{vit_mil_forward.1} parent=119 // pred_check
        %p6234 = pneg %p6233
      $region126: #{vit_mil_forward.1} parent=119 // pred_check_branch
        %6236 = sbr.rel (%p6234) target = $region128
      $region127: #{vit_mil_forward.1} parent=119 // pred_region
        %v6237 = vlaneseq
        %v6238 = vshrl.u32 %v6237, 7
        %v6239 = vlaneseq
        %v6240 = vand.u32 %v6239, 127
        %v6241 = vmul.u32 %v6238, 5
        %vm6242 = vcmp.eq.s32.totalorder %v6240, %v6241
        %v6243 = vsel %vm6242, 1, 0
        %v6244 = vcvt.s32.f32 %v6243
        %vm6245 = vcmask 326656
        %v6247 = vsel %vm6245, %v6244, 0
        %6249 = vmatprep.subr.mxu0 0.0
        %6250 = vmatpush1.msra.mxu0 %v6223
        %6251 = vmatprep.subr.mxu0 0.0
        %6252 = vmatpush1.msra.mxu0 %v6224
        %6253 = vmatprep.subr.mxu0 0.0
        %6254 = vmatpush1.msra.mxu0 %v6225
        %6255 = vmatprep.subr.mxu0 0.0
        %6256 = vmatpush1.msra.mxu0 %v6226
        %6257 = vmatprep.subr.mxu0 0.0
        %6258 = vmatpush1.msra.mxu0 %v6227
        %6259 = vmatprep.subr.mxu0 0.0
        %6260 = vmatpush1.msra.mxu0 0.0
        %6261 = vmatprep.subr.mxu0 0.0
        %6262 = vmatpush1.msra.mxu0 0.0
        %6263 = vmatprep.subr.mxu0 0.0
        %6264 = vmatpush1.msra.mxu0 0.0
        %6265 = vmatprep.subr.mxu0 0.0
        %6266 = vmatpush1.msra.mxu0 0.0
        %6267 = vmatprep.subr.mxu0 0.0
        %6268 = vmatpush1.msra.mxu0 0.0
        %6269 = vmatprep.subr.mxu0 0.0
        %6270 = vmatpush1.msra.mxu0 0.0
        %6271 = vmatprep.subr.mxu0 0.0
        %6272 = vmatpush1.msra.mxu0 0.0
        %6273 = vmatprep.subr.mxu0 0.0
        %6274 = vmatpush1.msra.mxu0 0.0
        %6275 = vmatprep.subr.mxu0 0.0
        %6276 = vmatpush1.msra.mxu0 0.0
        %6277 = vmatprep.subr.mxu0 0.0
        %6278 = vmatpush1.msra.mxu0 0.0
        %6279 = vmatprep.subr.mxu0 0.0
        %6280 = vmatpush1.msra.mxu0 0.0
        %6281 = vmatprep.subr.mxu0 0.0
        %6282 = vmatpush1.msra.mxu0 0.0
        %6283 = vmatprep.subr.mxu0 0.0
        %6284 = vmatpush1.msra.mxu0 0.0
        %6285 = vmatprep.subr.mxu0 0.0
        %6286 = vmatpush1.msra.mxu0 0.0
        %6287 = vmatprep.subr.mxu0 0.0
        %6288 = vmatpush1.msra.mxu0 0.0
        %6289 = vmatprep.subr.mxu0 0.0
        %6290 = vmatpush1.msra.mxu0 0.0
        %6291 = vmatprep.subr.mxu0 0.0
        %6292 = vmatpush1.msra.mxu0 0.0
        %6293 = vmatprep.subr.mxu0 0.0
        %6294 = vmatpush1.msra.mxu0 0.0
        %6295 = vmatprep.subr.mxu0 0.0
        %6296 = vmatpush1.msra.mxu0 0.0
        %6297 = vmatprep.subr.mxu0 0.0
        %6298 = vmatpush1.msra.mxu0 0.0
        %6299 = vmatprep.subr.mxu0 0.0
        %6300 = vmatpush1.msra.mxu0 0.0
        %6301 = vmatprep.subr.mxu0 0.0
        %6302 = vmatpush1.msra.mxu0 0.0
        %6303 = vmatprep.subr.mxu0 0.0
        %6304 = vmatpush1.msra.mxu0 0.0
        %6305 = vmatprep.subr.mxu0 0.0
        %6306 = vmatpush1.msra.mxu0 0.0
        %6307 = vmatprep.subr.mxu0 0.0
        %6308 = vmatpush1.msra.mxu0 0.0
        %6309 = vmatprep.subr.mxu0 0.0
        %6310 = vmatpush1.msra.mxu0 0.0
        %6311 = vmatprep.subr.mxu0 0.0
        %6312 = vmatpush1.msra.mxu0 0.0
        %6313 = vmatprep.mubr.f32.mxu0 0.0
        %6314 = vmatmul.mubr.f32.gmra.mrb[0].mxu0 %v6247
        %v6315 = vpop.f32.mrb[0].mxu0
        %v6316 = vadd.f32 0.0, %v6315
        %v6317 = vpop.f32.mrb[0].mxu0
        %6318 = vdwg.mxu0
        %v6319 = vld [vmem:[%s19] sm:$0x1]
        %v6320 = vld [vmem:[%s20] sm:$0x1]
        %v6321 = vsel %vm1742, %v6316, 0.0
        %6322 = vadd.xlane.f32.xlu0 %v6321
        %v6323 = vpop.xlane.xlu0 %6322
        %v6324 = vmul.f32 %v6323, %v1758
        %v6325 = vsub.f32 %v6316, %v6324
        %v6326 = vmul.f32 %v6325, %v6325
        %v6327 = vsel %vm1742, %v6326, 0.0
        %6328 = vadd.xlane.f32.xlu0 %v6327
        %v6329 = vpop.xlane.xlu0 %6328
        %v6330 = vmul.f32 %v6329, %v1758
        %v6331 = vadd.f32 %v6330, 1e-06
        %v6332 = vrsqrt.pop %v6331
        %v6333 = vmul.f32 %v6325, %v6332
        %v6335 = vlaneseq
        %v6336 = vshrl.u32 %v6335, 7
        %v6337 = vsub.s32 0, %v6336
        %v6338 = vrot.slane %v6319, %v6337
        %v6340 = vmul.f32 %v6333, %v6338
        %v6342 = vlaneseq
        %v6343 = vshrl.u32 %v6342, 7
        %v6344 = vsub.s32 0, %v6343
        %v6345 = vrot.slane %v6320, %v6344
        %v6347 = vadd.f32 %v6340, %v6345
        %v6348 = vld [vmem:[%s21] sm:$0x1]
        %v6349 = vld [vmem:[#allocation3] sm:$0x1]
        %6351 = vset.pattern.permute.xlu0 0
        %6352 = vperm.xlu0 %6351, %v6349
        %v6353 = vpop.permute.xlu0 %6352
        %v6355 = vlaneseq
        %v6356 = vshrl.u32 %v6355, 7
        %v6357 = vsub.s32 0, %v6356
        %v6358 = vrot.slane %v6353, %v6357
        %v6360 = vsel %vm1742, %v6348, 0
        %v6363 = vsel %vm1742, %v6347, 0
        %6365 = vmatprep.subr.mxu0 0.0
        %6366 = vmatpush1.xpose.msra.mxu0 %v6363
        %6367 = vmatprep.subr.mxu0 0.0
        %6368 = vmatpush1.xpose.msra.mxu0 0.0
        %6369 = vmatprep.subr.mxu0 0.0
        %6370 = vmatpush1.xpose.msra.mxu0 0.0
        %6371 = vmatprep.subr.mxu0 0.0
        %6372 = vmatpush1.xpose.msra.mxu0 0.0
        %6373 = vmatprep.subr.mxu0 0.0
        %6374 = vmatpush1.xpose.msra.mxu0 0.0
        %6375 = vmatprep.subr.mxu0 0.0
        %6376 = vmatpush1.xpose.msra.mxu0 0.0
        %6377 = vmatprep.subr.mxu0 0.0
        %6378 = vmatpush1.xpose.msra.mxu0 0.0
        %6379 = vmatprep.subr.mxu0 0.0
        %6380 = vmatpush1.xpose.msra.mxu0 0.0
        %6381 = vmatprep.subr.mxu0 0.0
        %6382 = vmatpush1.xpose.msra.mxu0 0.0
        %6383 = vmatprep.subr.mxu0 0.0
        %6384 = vmatpush1.xpose.msra.mxu0 0.0
        %6385 = vmatprep.subr.mxu0 0.0
        %6386 = vmatpush1.xpose.msra.mxu0 0.0
        %6387 = vmatprep.subr.mxu0 0.0
        %6388 = vmatpush1.xpose.msra.mxu0 0.0
        %6389 = vmatprep.subr.mxu0 0.0
        %6390 = vmatpush1.xpose.msra.mxu0 0.0
        %6391 = vmatprep.subr.mxu0 0.0
        %6392 = vmatpush1.xpose.msra.mxu0 0.0
        %6393 = vmatprep.subr.mxu0 0.0
        %6394 = vmatpush1.xpose.msra.mxu0 0.0
        %6395 = vmatprep.subr.mxu0 0.0
        %6396 = vmatpush1.xpose.msra.mxu0 0.0
        %6397 = vmatprep.subr.mxu0 0.0
        %6398 = vmatpush1.xpose.msra.mxu0 0.0
        %6399 = vmatprep.subr.mxu0 0.0
        %6400 = vmatpush1.xpose.msra.mxu0 0.0
        %6401 = vmatprep.subr.mxu0 0.0
        %6402 = vmatpush1.xpose.msra.mxu0 0.0
        %6403 = vmatprep.subr.mxu0 0.0
        %6404 = vmatpush1.xpose.msra.mxu0 0.0
        %6405 = vmatprep.subr.mxu0 0.0
        %6406 = vmatpush1.xpose.msra.mxu0 0.0
        %6407 = vmatprep.subr.mxu0 0.0
        %6408 = vmatpush1.xpose.msra.mxu0 0.0
        %6409 = vmatprep.subr.mxu0 0.0
        %6410 = vmatpush1.xpose.msra.mxu0 0.0
        %6411 = vmatprep.subr.mxu0 0.0
        %6412 = vmatpush1.xpose.msra.mxu0 0.0
        %6413 = vmatprep.subr.mxu0 0.0
        %6414 = vmatpush1.xpose.msra.mxu0 0.0
        %6415 = vmatprep.subr.mxu0 0.0
        %6416 = vmatpush1.xpose.msra.mxu0 0.0
        %6417 = vmatprep.subr.mxu0 0.0
        %6418 = vmatpush1.xpose.msra.mxu0 0.0
        %6419 = vmatprep.subr.mxu0 0.0
        %6420 = vmatpush1.xpose.msra.mxu0 0.0
        %6421 = vmatprep.subr.mxu0 0.0
        %6422 = vmatpush1.xpose.msra.mxu0 0.0
        %6423 = vmatprep.subr.mxu0 0.0
        %6424 = vmatpush1.xpose.msra.mxu0 0.0
        %6425 = vmatprep.subr.mxu0 0.0
        %6426 = vmatpush1.xpose.msra.mxu0 0.0
        %6427 = vmatprep.subr.mxu0 0.0
        %6428 = vmatpush1.xpose.msra.mxu0 0.0
        %6429 = vmatprep.mubr.f32.mxu0 0.0
        %6430 = vmatmul.mubr.f32.gmra.mrb[0].mxu0 %v6360
        %v6431 = vpop.f32.mrb[0].mxu0
        %v6432 = vadd.f32 %v6358, %v6431
        %v6433 = vpop.f32.mrb[0].mxu0
        %6434 = vdwg.mxu0
        %vm6435 = vcmask 24576
        %v6436 = vsel %vm6435, %v6432, -inf
        %6437 = vmax.xlane.f32.xlu0 %v6436
        %v6438 = vpop.xlane.xlu0 %6437
        %v6439 = vsub.f32 %v6432, %v6438
        %v6440 = vmul.f32 %v6439, 1.442695
        %v6441 = vpow.pop %v6440
        %v6442 = vsel %vm6435, %v6441, 0.0
        %6443 = vadd.xlane.f32.xlu0 %v6442
        %v6444 = vpop.xlane.xlu0 %6443
        %v6445 = vrcp.pop %v6444
        %v6446 = vmul.f32 %v6441, %v6445
        %vm6447 = vcmask 31744
        %v6449 = vsel %vm6447, %v6446, 0
        %v6451 = vsel %vm4047, %v6347, 0
        %6453 = vmatprep.subr.mxu0 0.0
        %6454 = vmatpush1.msra.mxu0 %v6451
        %6455 = vmatprep.subr.mxu0 0.0
        %6456 = vmatpush1.msra.mxu0 0.0
        %6457 = vmatprep.subr.mxu0 0.0
        %6458 = vmatpush1.msra.mxu0 0.0
        %6459 = vmatprep.subr.mxu0 0.0
        %6460 = vmatpush1.msra.mxu0 0.0
        %6461 = vmatprep.subr.mxu0 0.0
        %6462 = vmatpush1.msra.mxu0 0.0
        %6463 = vmatprep.subr.mxu0 0.0
        %6464 = vmatpush1.msra.mxu0 0.0
        %6465 = vmatprep.subr.mxu0 0.0
        %6466 = vmatpush1.msra.mxu0 0.0
        %6467 = vmatprep.subr.mxu0 0.0
        %6468 = vmatpush1.msra.mxu0 0.0
        %6469 = vmatprep.subr.mxu0 0.0
        %6470 = vmatpush1.msra.mxu0 0.0
        %6471 = vmatprep.subr.mxu0 0.0
        %6472 = vmatpush1.msra.mxu0 0.0
        %6473 = vmatprep.subr.mxu0 0.0
        %6474 = vmatpush1.msra.mxu0 0.0
        %6475 = vmatprep.subr.mxu0 0.0
        %6476 = vmatpush1.msra.mxu0 0.0
        %6477 = vmatprep.subr.mxu0 0.0
        %6478 = vmatpush1.msra.mxu0 0.0
        %6479 = vmatprep.subr.mxu0 0.0
        %6480 = vmatpush1.msra.mxu0 0.0
        %6481 = vmatprep.subr.mxu0 0.0
        %6482 = vmatpush1.msra.mxu0 0.0
        %6483 = vmatprep.subr.mxu0 0.0
        %6484 = vmatpush1.msra.mxu0 0.0
        %6485 = vmatprep.subr.mxu0 0.0
        %6486 = vmatpush1.msra.mxu0 0.0
        %6487 = vmatprep.subr.mxu0 0.0
        %6488 = vmatpush1.msra.mxu0 0.0
        %6489 = vmatprep.subr.mxu0 0.0
        %6490 = vmatpush1.msra.mxu0 0.0
        %6491 = vmatprep.subr.mxu0 0.0
        %6492 = vmatpush1.msra.mxu0 0.0
        %6493 = vmatprep.subr.mxu0 0.0
        %6494 = vmatpush1.msra.mxu0 0.0
        %6495 = vmatprep.subr.mxu0 0.0
        %6496 = vmatpush1.msra.mxu0 0.0
        %6497 = vmatprep.subr.mxu0 0.0
        %6498 = vmatpush1.msra.mxu0 0.0
        %6499 = vmatprep.subr.mxu0 0.0
        %6500 = vmatpush1.msra.mxu0 0.0
        %6501 = vmatprep.subr.mxu0 0.0
        %6502 = vmatpush1.msra.mxu0 0.0
        %6503 = vmatprep.subr.mxu0 0.0
        %6504 = vmatpush1.msra.mxu0 0.0
        %6505 = vmatprep.subr.mxu0 0.0
        %6506 = vmatpush1.msra.mxu0 0.0
        %6507 = vmatprep.subr.mxu0 0.0
        %6508 = vmatpush1.msra.mxu0 0.0
        %6509 = vmatprep.subr.mxu0 0.0
        %6510 = vmatpush1.msra.mxu0 0.0
        %6511 = vmatprep.subr.mxu0 0.0
        %6512 = vmatpush1.msra.mxu0 0.0
        %6513 = vmatprep.subr.mxu0 0.0
        %6514 = vmatpush1.msra.mxu0 0.0
        %6515 = vmatprep.subr.mxu0 0.0
        %6516 = vmatpush1.msra.mxu0 0.0
        %6517 = vmatprep.mubr.f32.mxu0 0.0
        %6518 = vmatmul.mubr.f32.gmra.mrb[0].mxu0 %v6449
        %v6519 = vpop.f32.mrb[0].mxu0
        %v6520 = vadd.f32 0.0, %v6519
        %v6521 = vpop.f32.mrb[0].mxu0
        %6522 = vdwg.mxu0
        %v6523 = vld [vmem:[%s23] sm:$0xff]
        %v6524 = vld [vmem:[%s23 + $0x8] sm:$0xff]
        %v6525 = vld [vmem:[%s23 + $0x10] sm:$0xff]
        %v6526 = vld [vmem:[%s23 + $0x18] sm:$0xff]
        %v6527 = vld [vmem:[%s24] sm:$0x1]
        %v6529 = vsel %vm1742, %v6520, 0
        %6531 = vmatprep.subr.mxu0 0.0
        %6532 = vmatpush1.msra.mxu0 %v6523
        %6533 = vmatprep.subr.mxu0 0.0
        %6534 = vmatpush1.msra.mxu0 %v6524
        %6535 = vmatprep.subr.mxu0 0.0
        %6536 = vmatpush1.msra.mxu0 %v6525
        %6537 = vmatprep.subr.mxu0 0.0
        %6538 = vmatpush1.msra.mxu0 %v6526
        %6539 = vmatprep.subr.mxu0 0.0
        %6540 = vmatpush1.msra.mxu0 0.0
        %6541 = vmatprep.subr.mxu0 0.0
        %6542 = vmatpush1.msra.mxu0 0.0
        %6543 = vmatprep.subr.mxu0 0.0
        %6544 = vmatpush1.msra.mxu0 0.0
        %6545 = vmatprep.subr.mxu0 0.0
        %6546 = vmatpush1.msra.mxu0 0.0
        %6547 = vmatprep.subr.mxu0 0.0
        %6548 = vmatpush1.msra.mxu0 0.0
        %6549 = vmatprep.subr.mxu0 0.0
        %6550 = vmatpush1.msra.mxu0 0.0
        %6551 = vmatprep.subr.mxu0 0.0
        %6552 = vmatpush1.msra.mxu0 0.0
        %6553 = vmatprep.subr.mxu0 0.0
        %6554 = vmatpush1.msra.mxu0 0.0
        %6555 = vmatprep.subr.mxu0 0.0
        %6556 = vmatpush1.msra.mxu0 0.0
        %6557 = vmatprep.subr.mxu0 0.0
        %6558 = vmatpush1.msra.mxu0 0.0
        %6559 = vmatprep.subr.mxu0 0.0
        %6560 = vmatpush1.msra.mxu0 0.0
        %6561 = vmatprep.subr.mxu0 0.0
        %6562 = vmatpush1.msra.mxu0 0.0
        %6563 = vmatprep.subr.mxu0 0.0
        %6564 = vmatpush1.msra.mxu0 0.0
        %6565 = vmatprep.subr.mxu0 0.0
        %6566 = vmatpush1.msra.mxu0 0.0
        %6567 = vmatprep.subr.mxu0 0.0
        %6568 = vmatpush1.msra.mxu0 0.0
        %6569 = vmatprep.subr.mxu0 0.0
        %6570 = vmatpush1.msra.mxu0 0.0
        %6571 = vmatprep.subr.mxu0 0.0
        %6572 = vmatpush1.msra.mxu0 0.0
        %6573 = vmatprep.subr.mxu0 0.0
        %6574 = vmatpush1.msra.mxu0 0.0
        %6575 = vmatprep.subr.mxu0 0.0
        %6576 = vmatpush1.msra.mxu0 0.0
        %6577 = vmatprep.subr.mxu0 0.0
        %6578 = vmatpush1.msra.mxu0 0.0
        %6579 = vmatprep.subr.mxu0 0.0
        %6580 = vmatpush1.msra.mxu0 0.0
        %6581 = vmatprep.subr.mxu0 0.0
        %6582 = vmatpush1.msra.mxu0 0.0
        %6583 = vmatprep.subr.mxu0 0.0
        %6584 = vmatpush1.msra.mxu0 0.0
        %6585 = vmatprep.subr.mxu0 0.0
        %6586 = vmatpush1.msra.mxu0 0.0
        %6587 = vmatprep.subr.mxu0 0.0
        %6588 = vmatpush1.msra.mxu0 0.0
        %6589 = vmatprep.subr.mxu0 0.0
        %6590 = vmatpush1.msra.mxu0 0.0
        %6591 = vmatprep.subr.mxu0 0.0
        %6592 = vmatpush1.msra.mxu0 0.0
        %6593 = vmatprep.subr.mxu0 0.0
        %6594 = vmatpush1.msra.mxu0 0.0
        %6595 = vmatprep.mubr.f32.mxu0 0.0
        %6596 = vmatmul.mubr.f32.gmra.mrb[0].mxu0 %v6529
        %v6597 = vpop.f32.mrb[0].mxu0
        %v6598 = vadd.f32 %v6527, %v6597
        %v6599 = vpop.f32.mrb[0].mxu0
        %6600 = vdwg.mxu0
        %6601 = vrot.lane.b32.xlu0 %v6446, 2
        %v6602 = vpop.permute.xlu0 %6601
        %vm6604 = vcmask 15360
        %v6605 = vsel %vm6604, %v6598, %v6602
        %vm6606 = vcmask 48128
        %v6607 = vsel %vm6606, %v6605, 0.0
        %v6608 = vrot.slane %v6347, 4
        %v6609 = vsel %vm1742, %v6608, 0
        %6611 = vmatprep.subr.mxu0 0.0
        %6612 = vmatpush1.xpose.msra.mxu0 %v6609
        %6613 = vmatprep.subr.mxu0 0.0
        %6614 = vmatpush1.xpose.msra.mxu0 0.0
        %6615 = vmatprep.subr.mxu0 0.0
        %6616 = vmatpush1.xpose.msra.mxu0 0.0
        %6617 = vmatprep.subr.mxu0 0.0
        %6618 = vmatpush1.xpose.msra.mxu0 0.0
        %6619 = vmatprep.subr.mxu0 0.0
        %6620 = vmatpush1.xpose.msra.mxu0 0.0
        %6621 = vmatprep.subr.mxu0 0.0
        %6622 = vmatpush1.xpose.msra.mxu0 0.0
        %6623 = vmatprep.subr.mxu0 0.0
        %6624 = vmatpush1.xpose.msra.mxu0 0.0
        %6625 = vmatprep.subr.mxu0 0.0
        %6626 = vmatpush1.xpose.msra.mxu0 0.0
        %6627 = vmatprep.subr.mxu0 0.0
        %6628 = vmatpush1.xpose.msra.mxu0 0.0
        %6629 = vmatprep.subr.mxu0 0.0
        %6630 = vmatpush1.xpose.msra.mxu0 0.0
        %6631 = vmatprep.subr.mxu0 0.0
        %6632 = vmatpush1.xpose.msra.mxu0 0.0
        %6633 = vmatprep.subr.mxu0 0.0
        %6634 = vmatpush1.xpose.msra.mxu0 0.0
        %6635 = vmatprep.subr.mxu0 0.0
        %6636 = vmatpush1.xpose.msra.mxu0 0.0
        %6637 = vmatprep.subr.mxu0 0.0
        %6638 = vmatpush1.xpose.msra.mxu0 0.0
        %6639 = vmatprep.subr.mxu0 0.0
        %6640 = vmatpush1.xpose.msra.mxu0 0.0
        %6641 = vmatprep.subr.mxu0 0.0
        %6642 = vmatpush1.xpose.msra.mxu0 0.0
        %6643 = vmatprep.subr.mxu0 0.0
        %6644 = vmatpush1.xpose.msra.mxu0 0.0
        %6645 = vmatprep.subr.mxu0 0.0
        %6646 = vmatpush1.xpose.msra.mxu0 0.0
        %6647 = vmatprep.subr.mxu0 0.0
        %6648 = vmatpush1.xpose.msra.mxu0 0.0
        %6649 = vmatprep.subr.mxu0 0.0
        %6650 = vmatpush1.xpose.msra.mxu0 0.0
        %6651 = vmatprep.subr.mxu0 0.0
        %6652 = vmatpush1.xpose.msra.mxu0 0.0
        %6653 = vmatprep.subr.mxu0 0.0
        %6654 = vmatpush1.xpose.msra.mxu0 0.0
        %6655 = vmatprep.subr.mxu0 0.0
        %6656 = vmatpush1.xpose.msra.mxu0 0.0
        %6657 = vmatprep.subr.mxu0 0.0
        %6658 = vmatpush1.xpose.msra.mxu0 0.0
        %6659 = vmatprep.subr.mxu0 0.0
        %6660 = vmatpush1.xpose.msra.mxu0 0.0
        %6661 = vmatprep.subr.mxu0 0.0
        %6662 = vmatpush1.xpose.msra.mxu0 0.0
        %6663 = vmatprep.subr.mxu0 0.0
        %6664 = vmatpush1.xpose.msra.mxu0 0.0
        %6665 = vmatprep.subr.mxu0 0.0
        %6666 = vmatpush1.xpose.msra.mxu0 0.0
        %6667 = vmatprep.subr.mxu0 0.0
        %6668 = vmatpush1.xpose.msra.mxu0 0.0
        %6669 = vmatprep.subr.mxu0 0.0
        %6670 = vmatpush1.xpose.msra.mxu0 0.0
        %6671 = vmatprep.subr.mxu0 0.0
        %6672 = vmatpush1.xpose.msra.mxu0 0.0
        %6673 = vmatprep.subr.mxu0 0.0
        %6674 = vmatpush1.xpose.msra.mxu0 0.0
        %6675 = vmatprep.mubr.f32.mxu0 0.0
        %6676 = vmatmul.mubr.f32.gmra.mrb[0].mxu0 %v6360
        %v6677 = vpop.f32.mrb[0].mxu0
        %v6678 = vadd.f32 %v6358, %v6677
        %v6679 = vpop.f32.mrb[0].mxu0
        %6680 = vdwg.mxu0
        %v6681 = vsel %vm6435, %v6678, -inf
        %6682 = vmax.xlane.f32.xlu0 %v6681
        %v6683 = vpop.xlane.xlu0 %6682
        %v6684 = vsub.f32 %v6678, %v6683
        %v6685 = vmul.f32 %v6684, 1.442695
        %v6686 = vpow.pop %v6685
        %v6687 = vsel %vm6435, %v6686, 0.0
        %6688 = vadd.xlane.f32.xlu0 %v6687
        %v6689 = vpop.xlane.xlu0 %6688
        %v6690 = vrcp.pop %v6689
        %v6691 = vmul.f32 %v6686, %v6690
        %v6693 = vsel %vm6447, %v6691, 0
        %v6695 = vsel %vm4047, %v6608, 0
        %6697 = vmatprep.subr.mxu0 0.0
        %6698 = vmatpush1.msra.mxu0 %v6695
        %6699 = vmatprep.subr.mxu0 0.0
        %6700 = vmatpush1.msra.mxu0 0.0
        %6701 = vmatprep.subr.mxu0 0.0
        %6702 = vmatpush1.msra.mxu0 0.0
        %6703 = vmatprep.subr.mxu0 0.0
        %6704 = vmatpush1.msra.mxu0 0.0
        %6705 = vmatprep.subr.mxu0 0.0
        %6706 = vmatpush1.msra.mxu0 0.0
        %6707 = vmatprep.subr.mxu0 0.0
        %6708 = vmatpush1.msra.mxu0 0.0
        %6709 = vmatprep.subr.mxu0 0.0
        %6710 = vmatpush1.msra.mxu0 0.0
        %6711 = vmatprep.subr.mxu0 0.0
        %6712 = vmatpush1.msra.mxu0 0.0
        %6713 = vmatprep.subr.mxu0 0.0
        %6714 = vmatpush1.msra.mxu0 0.0
        %6715 = vmatprep.subr.mxu0 0.0
        %6716 = vmatpush1.msra.mxu0 0.0
        %6717 = vmatprep.subr.mxu0 0.0
        %6718 = vmatpush1.msra.mxu0 0.0
        %6719 = vmatprep.subr.mxu0 0.0
        %6720 = vmatpush1.msra.mxu0 0.0
        %6721 = vmatprep.subr.mxu0 0.0
        %6722 = vmatpush1.msra.mxu0 0.0
        %6723 = vmatprep.subr.mxu0 0.0
        %6724 = vmatpush1.msra.mxu0 0.0
        %6725 = vmatprep.subr.mxu0 0.0
        %6726 = vmatpush1.msra.mxu0 0.0
        %6727 = vmatprep.subr.mxu0 0.0
        %6728 = vmatpush1.msra.mxu0 0.0
        %6729 = vmatprep.subr.mxu0 0.0
        %6730 = vmatpush1.msra.mxu0 0.0
        %6731 = vmatprep.subr.mxu0 0.0
        %6732 = vmatpush1.msra.mxu0 0.0
        %6733 = vmatprep.subr.mxu0 0.0
        %6734 = vmatpush1.msra.mxu0 0.0
        %6735 = vmatprep.subr.mxu0 0.0
        %6736 = vmatpush1.msra.mxu0 0.0
        %6737 = vmatprep.subr.mxu0 0.0
        %6738 = vmatpush1.msra.mxu0 0.0
        %6739 = vmatprep.subr.mxu0 0.0
        %6740 = vmatpush1.msra.mxu0 0.0
        %6741 = vmatprep.subr.mxu0 0.0
        %6742 = vmatpush1.msra.mxu0 0.0
        %6743 = vmatprep.subr.mxu0 0.0
        %6744 = vmatpush1.msra.mxu0 0.0
        %6745 = vmatprep.subr.mxu0 0.0
        %6746 = vmatpush1.msra.mxu0 0.0
        %6747 = vmatprep.subr.mxu0 0.0
        %6748 = vmatpush1.msra.mxu0 0.0
        %6749 = vmatprep.subr.mxu0 0.0
        %6750 = vmatpush1.msra.mxu0 0.0
        %6751 = vmatprep.subr.mxu0 0.0
        %6752 = vmatpush1.msra.mxu0 0.0
        %6753 = vmatprep.subr.mxu0 0.0
        %6754 = vmatpush1.msra.mxu0 0.0
        %6755 = vmatprep.subr.mxu0 0.0
        %6756 = vmatpush1.msra.mxu0 0.0
        %6757 = vmatprep.subr.mxu0 0.0
        %6758 = vmatpush1.msra.mxu0 0.0
        %6759 = vmatprep.subr.mxu0 0.0
        %6760 = vmatpush1.msra.mxu0 0.0
        %6761 = vmatprep.mubr.f32.mxu0 0.0
        %6762 = vmatmul.mubr.f32.gmra.mrb[0].mxu0 %v6693
        %v6763 = vpop.f32.mrb[0].mxu0
        %v6764 = vadd.f32 0.0, %v6763
        %v6765 = vpop.f32.mrb[0].mxu0
        %6766 = vdwg.mxu0
        %v6768 = vsel %vm1742, %v6764, 0
        %6770 = vmatprep.subr.mxu0 0.0
        %6771 = vmatpush1.msra.mxu0 %v6523
        %6772 = vmatprep.subr.mxu0 0.0
        %6773 = vmatpush1.msra.mxu0 %v6524
        %6774 = vmatprep.subr.mxu0 0.0
        %6775 = vmatpush1.msra.mxu0 %v6525
        %6776 = vmatprep.subr.mxu0 0.0
        %6777 = vmatpush1.msra.mxu0 %v6526
        %6778 = vmatprep.subr.mxu0 0.0
        %6779 = vmatpush1.msra.mxu0 0.0
        %6780 = vmatprep.subr.mxu0 0.0
        %6781 = vmatpush1.msra.mxu0 0.0
        %6782 = vmatprep.subr.mxu0 0.0
        %6783 = vmatpush1.msra.mxu0 0.0
        %6784 = vmatprep.subr.mxu0 0.0
        %6785 = vmatpush1.msra.mxu0 0.0
        %6786 = vmatprep.subr.mxu0 0.0
        %6787 = vmatpush1.msra.mxu0 0.0
        %6788 = vmatprep.subr.mxu0 0.0
        %6789 = vmatpush1.msra.mxu0 0.0
        %6790 = vmatprep.subr.mxu0 0.0
        %6791 = vmatpush1.msra.mxu0 0.0
        %6792 = vmatprep.subr.mxu0 0.0
        %6793 = vmatpush1.msra.mxu0 0.0
        %6794 = vmatprep.subr.mxu0 0.0
        %6795 = vmatpush1.msra.mxu0 0.0
        %6796 = vmatprep.subr.mxu0 0.0
        %6797 = vmatpush1.msra.mxu0 0.0
        %6798 = vmatprep.subr.mxu0 0.0
        %6799 = vmatpush1.msra.mxu0 0.0
        %6800 = vmatprep.subr.mxu0 0.0
        %6801 = vmatpush1.msra.mxu0 0.0
        %6802 = vmatprep.subr.mxu0 0.0
        %6803 = vmatpush1.msra.mxu0 0.0
        %6804 = vmatprep.subr.mxu0 0.0
        %6805 = vmatpush1.msra.mxu0 0.0
        %6806 = vmatprep.subr.mxu0 0.0
        %6807 = vmatpush1.msra.mxu0 0.0
        %6808 = vmatprep.subr.mxu0 0.0
        %6809 = vmatpush1.msra.mxu0 0.0
        %6810 = vmatprep.subr.mxu0 0.0
        %6811 = vmatpush1.msra.mxu0 0.0
        %6812 = vmatprep.subr.mxu0 0.0
        %6813 = vmatpush1.msra.mxu0 0.0
        %6814 = vmatprep.subr.mxu0 0.0
        %6815 = vmatpush1.msra.mxu0 0.0
        %6816 = vmatprep.subr.mxu0 0.0
        %6817 = vmatpush1.msra.mxu0 0.0
        %6818 = vmatprep.subr.mxu0 0.0
        %6819 = vmatpush1.msra.mxu0 0.0
        %6820 = vmatprep.subr.mxu0 0.0
        %6821 = vmatpush1.msra.mxu0 0.0
        %6822 = vmatprep.subr.mxu0 0.0
        %6823 = vmatpush1.msra.mxu0 0.0
        %6824 = vmatprep.subr.mxu0 0.0
        %6825 = vmatpush1.msra.mxu0 0.0
        %6826 = vmatprep.subr.mxu0 0.0
        %6827 = vmatpush1.msra.mxu0 0.0
        %6828 = vmatprep.subr.mxu0 0.0
        %6829 = vmatpush1.msra.mxu0 0.0
        %6830 = vmatprep.subr.mxu0 0.0
        %6831 = vmatpush1.msra.mxu0 0.0
        %6832 = vmatprep.subr.mxu0 0.0
        %6833 = vmatpush1.msra.mxu0 0.0
        %6834 = vmatprep.mubr.f32.mxu0 0.0
        %6835 = vmatmul.mubr.f32.gmra.mrb[0].mxu0 %v6768
        %v6836 = vpop.f32.mrb[0].mxu0
        %v6837 = vadd.f32 %v6527, %v6836
        %v6838 = vpop.f32.mrb[0].mxu0
        %6839 = vdwg.mxu0
        %6840 = vrot.lane.b32.xlu0 %v6691, 2
        %v6841 = vpop.permute.xlu0 %6840
        %v6843 = vsel %vm6604, %v6837, %v6841
        %v6844 = vsel %vm6606, %v6843, 0.0
        %v6846 = vrot.slane %v6844, 7
        %v6848 = vsel %vm3612, %v6607, %v6846
        %6849 = vst [vmem:[%s1045] sm:$0x3] %v6848
      $region128: #{vit_mil_forward.1} parent=119 // pred_fallthru
        _
      %p6850 = scmp.lt.s32.totalorder %s42, 0
      %s6851 = scalar_select %p6850, %s42, 0
      %s6852 = smul.addr %s6851, 2
      %s6853 = scalar_lea.vmem %s25, %s6852
      // Predicated region
      $region129: #{vit_mil_forward.1} parent=119 // pred_check
        %p6854 = pneg %p678
      $region130: #{vit_mil_forward.1} parent=119 // pred_check_branch
        %6856 = sbr.rel (%p6854) target = $region132
      $region131: #{vit_mil_forward.1} parent=119 // pred_region
        _
      $region132: #{vit_mil_forward.1} parent=119 // pred_fallthru
        _
      // Predicated region
      $region133: #{vit_mil_forward.1} parent=119 // pred_check
        %p6857 = pneg %p678
      $region134: #{vit_mil_forward.1} parent=119 // pred_check_branch
        %6859 = sbr.rel (%p6857) target = $region136
      $region135: #{vit_mil_forward.1} parent=119 // pred_region
        %p6860 = scmp.lt.s32.totalorder %s42, 0
        %s6861 = scalar_select %p6860, %s42, 0
        %s6862 = smul.addr %s6861, 2
        %s6863 = scalar_lea.vmem %s25, %s6862
      $region136: #{vit_mil_forward.1} parent=119 // pred_fallthru
        _
    $region120: #{vit_mil_forward.1} parent=5 // pred_fallthru
      _
    %p6864 = scmp.le.s32.totalorder 2, %s33
    // Predicated region
    $region137: #{vit_mil_forward.1} parent=5 // pred_check
      %p6865 = pneg %p6864
    $region138: #{vit_mil_forward.1} parent=5 // pred_check_branch
      %6867 = sbr.rel (%p6865) target = $region140
    $region139: #{vit_mil_forward.1} parent=5 // pred_region
      %s6868 = ssub.s32 %s33, 2
    $region140: #{vit_mil_forward.1} parent=5 // pred_fallthru
      _
  $region6: #{vit_mil_forward.1} parent=0 // loop_footer
    %s37 = sadd.s32 1, %s33
  $region7: #{vit_mil_forward.1} parent=0 // loop_footer_branch
    %32 = sbr.rel target = $region3
  $region8: #{vit_mil_forward.1} parent=0 // loop_exit
    _

</llo_original>
